<compile_context>
chip_gen: v7x
topology: tpu7x:2x2x1
jax: 0.10.0
libtpu: 0.0.40
codegen_flags: <defaults>
</compile_context>

<pallas_src>
import functools
import math

import jax
import jax.numpy as jnp
import numpy as np
from jax import lax
from jax.experimental import pallas as pl
from jax.experimental.pallas import tpu as pltpu


POOL_K = 5
POOL_S = 3
CONV_CH = 128     # Conv2d out_channels in the module
HIDDEN = 1024     # lin_1 out_features in the module


def _pooled_hw(h, w):
    return (h - POOL_K) // POOL_S + 1, (w - POOL_K) // POOL_S + 1


def _round_up(x, m):
    return -(-x // m) * m


# ------------------------------ Pallas kernel ------------------------------ #

def _aux_classifier_kernel(x_ref, pool_ref, wct_ref, bc_ref, w1_ref, b1_ref,
                           w2_ref, b2_ref, o_ref, flat_ref, *, block_batch, S):
    # x_ref   : (B, Cin, H*W)       B images, NCHW with spatial flattened (no transpose)
    # pool_ref: (S, H*W)            combined 5x5/stride-3 avg-pool matrix (1/25 entries)
    # wct_ref : (Cin, 128)          1x1 conv weight, (c_in, c_out)
    # bc_ref  : (1, 128)            conv bias row
    # w1_ref  : (S*128, 1024)       lin_1 weight pre-permuted to the kernel's (s, c) order
    # b1_ref  : (1, 1024)
    # w2_ref  : (1024, Cpad)        classifier weight, zero-padded to Cpad lanes
    # b2_ref  : (1, Cpad)           classifier bias, padded columns = -1e30
    # o_ref   : (B, Cpad)           softmax probabilities (padded cols ~ 0)
    # flat_ref: (B, S*128) VMEM     scratch for the flattened feature rows
    B = block_batch
    pool = pool_ref[...]

    # --- Stage 1: average pool per image (module order: pool first, 5x fewer MACs
    # than conv-first at realistic Cin).  pb[s, ci] = sum_p pool[s, p] * x[ci, p]
    pooled = []
    for b in range(B):
        xb = x_ref[b].astype(pool.dtype)                              # (Cin, H*W)
        pb = lax.dot_general(pool, xb, (((1,), (1,)), ((), ())),      # A @ B^T pattern
                             preferred_element_type=jnp.float32)      # (S, Cin)
        pooled.append(pb)
    pall = jnp.concatenate(pooled, axis=0) if B > 1 else pooled[0]    # (B*S, Cin)

    # --- Stage 2: 1x1 conv + bias + ReLU for the whole batch in ONE dense matmul.
    feat = jnp.dot(pall.astype(wct_ref.dtype), wct_ref[...],
                   preferred_element_type=jnp.float32) + bc_ref[...]
    feat = jnp.maximum(feat, 0.0)                                     # (B*S, 128)

    # --- Stage 3: flatten each image to one (1, S*128) row.  Pieces are 128-lane
    # aligned slices, so this is cheap lane-concatenation + a row store (no reshape).
    for b in range(B):
        row = jnp.concatenate(
            [feat[b * S + s: b * S + s + 1, :] for s in range(S)], axis=1)
        flat_ref[pl.ds(b, 1), :] = row

    # --- Stage 4: lin_1 -> ReLU -> (dropout = identity at inference) -> classifier
    # -> softmax, all batched over the B rows.
    # TODO(synk): Dropout(p=0.7) stochastic masking for training mode is not implemented.
    flat = flat_ref[...]
    h = jnp.dot(flat.astype(w1_ref.dtype), w1_ref[...],
                preferred_element_type=jnp.float32) + b1_ref[...]
    h = jnp.maximum(h, 0.0)                                           # (B, 1024)
    logits = jnp.dot(h.astype(w2_ref.dtype), w2_ref[...],
                     preferred_element_type=jnp.float32) + b2_ref[...]
    m = jnp.max(logits, axis=-1, keepdims=True)
    e = jnp.exp(logits - m)                                           # padded cols -> 0
    o_ref[...] = (e / jnp.sum(e, axis=-1, keepdims=True)).astype(o_ref.dtype)


# -------------------- Buffered(1) capability probe (once) ------------------- #

def _probe_kernel(x_ref, o_ref):
    o_ref[...] = x_ref[...] + 1.0


@functools.lru_cache(maxsize=1)
def _single_buffer_weights_ok():
    """Probe whether BlockSpec(pipeline_mode=pl.Buffered(1)) compiles & runs here."""
    try:
        spec = pl.BlockSpec((8, 128), lambda i: (0, 0), pipeline_mode=pl.Buffered(1))
        fn = pl.pallas_call(
            _probe_kernel,
            out_shape=jax.ShapeDtypeStruct((8, 128), jnp.float32),
            grid=(1,),
            in_specs=[spec],
            out_specs=pl.BlockSpec((8, 128), lambda i: (0, 0)),
        )
        x = jnp.zeros((8, 128), jnp.float32)
        out = jax.block_until_ready(fn(x))
        return bool(jnp.allclose(out, x + 1.0))
    except Exception:
        return False


# ------------------------------ kernel wrapper ------------------------------ #

def aux_classifier_forward(x_nchw, kparams, *, num_classes, block_batch=8):
    """Fused forward pass. x_nchw: (N, Cin, H, W) f32 -> (N, num_classes) probs."""
    bb = int(min(block_batch, x_nchw.shape[0]))
    return _forward_jit(x_nchw, kparams, num_classes=int(num_classes),
                        block_batch=bb, single_buffer=_single_buffer_weights_ok())


@functools.partial(jax.jit,
                   static_argnames=("num_classes", "block_batch", "single_buffer"))
def _forward_jit(x_nchw, kp, *, num_classes, block_batch, single_buffer):
    N, Cin, H, W = x_nchw.shape
    Ho, Wo = _pooled_hw(H, W)
    S, HW = Ho * Wo, H * W
    Cpad = kp["w2"].shape[1]
    B = block_batch
    n_blocks = -(-N // B)
    Npad = n_blocks * B

    # Free (contiguous) reshape only -- input stays NCHW, no transpose round trip.
    x = x_nchw.reshape(N, Cin, HW)
    if Npad != N:
        x = jnp.pad(x, ((0, Npad - N), (0, 0), (0, 0)))

    weights = (kp["pool"], kp["wct"], kp["bc"], kp["w1"], kp["b1"], kp["w2"], kp["b2"])

    def wspec(arr):
        # Grid-invariant weights stay VMEM resident; single-buffer them when supported.
        if single_buffer:
            return pl.BlockSpec(arr.shape, lambda n: (0, 0),
                                pipeline_mode=pl.Buffered(1))
        return pl.BlockSpec(arr.shape, lambda n: (0, 0))

    # Right-size the scoped VMEM limit from the actual buffer footprint.
    wbytes = sum(int(a.size) * a.dtype.itemsize for a in weights)
    bufs = 1 if single_buffer else 2
    vmem_need = (bufs * wbytes
                 + 2 * B * Cin * HW * 4          # double-buffered input block
                 + 2 * B * Cpad * 4              # double-buffered output block
                 + B * S * CONV_CH * 4           # flat scratch
                 + (4 << 20))                    # slack
    vmem_limit = int(min(max(vmem_need, 16 << 20), 64 << 20))

    kern = functools.partial(_aux_classifier_kernel, block_batch=B, S=S)
    out = pl.pallas_call(
        kern,
        out_shape=jax.ShapeDtypeStruct((Npad, Cpad), jnp.float32),
        grid=(n_blocks,),
        in_specs=[pl.BlockSpec((B, Cin, HW), lambda n: (n, 0, 0))]
                 + [wspec(a) for a in weights],
        out_specs=pl.BlockSpec((B, Cpad), lambda n: (n, 0)),
        scratch_shapes=[pltpu.VMEM((B, S * CONV_CH), jnp.float32)],
        compiler_params=pltpu.CompilerParams(
            dimension_semantics=("parallel",),
            vmem_limit_bytes=vmem_limit),
    )(x, *weights)
    return out[:N, :num_classes]


# ----------------------- parameters / weight preparation -------------------- #

def _uniform(key, shape, bound):
    return jax.random.uniform(key, shape, jnp.float32, -bound, bound)


def init_params(key, cin, H, W, num_classes):
    """Deterministic PyTorch-like init, PyTorch weight layouts."""
    Ho, Wo = _pooled_hw(H, W)
    F = CONV_CH * Ho * Wo
    ks = jax.random.split(key, 6)
    bc = 1.0 / math.sqrt(cin)          # conv fan_in = cin * 1 * 1
    b1 = 1.0 / math.sqrt(F)
    b2 = 1.0 / math.sqrt(HIDDEN)
    return {
        "conv_w": _uniform(ks[0], (CONV_CH, cin, 1, 1), bc),
        "conv_b": _uniform(ks[1], (CONV_CH,), bc),
        "lin1_w": _uniform(ks[2], (HIDDEN, F), b1),
        "lin1_b": _uniform(ks[3], (HIDDEN,), b1),
        "lin2_w": _uniform(ks[4], (num_classes, HIDDEN), b2),
        "lin2_b": _uniform(ks[5], (num_classes,), b2),
    }


def _pool_matrix(H, W):
    """(S, H*W) matrix P with P[ho*Wo+wo, h*W+w] = 1/25 inside the 5x5 window."""
    Ho, Wo = _pooled_hw(H, W)
    pt = np.zeros((Ho * Wo, H * W), np.float32)
    inv = 1.0 / float(POOL_K * POOL_K)
    for ho in range(Ho):
        for wo in range(Wo):
            s = ho * Wo + wo
            for dh in range(POOL_K):
                for dw in range(POOL_K):
                    pt[s, (POOL_S * ho + dh) * W + (POOL_S * wo + dw)] = inv
    return pt


def prepare_kernel_params(pt_params, cin, H, W, param_dtype=jnp.float32):
    """One-time weight re-layout, hoisted out of the jitted per-call path.

    param_dtype=jnp.bfloat16 halves the resident matmul-weight footprint for
    v5e/v6e (biases stay f32, accumulation stays f32); default keeps f32.
    """
    Ho, Wo = _pooled_hw(H, W)
    S = Ho * Wo
    cout = pt_params["conv_w"].shape[0]                     # 128
    nh = pt_params["lin1_w"].shape[0]                       # 1024
    ncls = pt_params["lin2_w"].shape[0]
    cpad = max(128, _round_up(ncls, 128))

    pool = jnp.asarray(_pool_matrix(H, W)).astype(param_dtype)          # (S, H*W)
    wct = jnp.transpose(pt_params["conv_w"][:, :, 0, 0], (1, 0)).astype(param_dtype)
    bc = pt_params["conv_b"].reshape(1, cout).astype(jnp.float32)

    # lin_1: PyTorch flattens the conv output as (c, ho, wo) -> index c*S + s.
    # The kernel's flat rows use index s*128 + c, so permute once here (free).
    w1 = (pt_params["lin1_w"].reshape(nh, cout, S)
          .transpose(2, 1, 0)
          .reshape(S * cout, nh)).astype(param_dtype)                   # (S*128, 1024)
    b1 = pt_params["lin1_b"].reshape(1, nh).astype(jnp.float32)

    w2 = jnp.zeros((nh, cpad), param_dtype).at[:, :ncls].set(
        pt_params["lin2_w"].T.astype(param_dtype))                      # (1024, Cpad)
    b2 = jnp.full((1, cpad), -1e30, jnp.float32).at[0, :ncls].set(
        pt_params["lin2_b"])                                            # (1, Cpad)

    return dict(pool=pool, wct=wct, bc=bc, w1=w1, b1=b1, w2=w2, b2=b2)


# ------------------------------ pure-JAX reference --------------------------- #

def reference_forward(x_nchw, pt):
    """Faithful re-implementation of the PyTorch module (eval mode)."""
    s = lax.reduce_window(x_nchw, 0.0, lax.add,
                          (1, 1, POOL_K, POOL_K), (1, 1, POOL_S, POOL_S), "VALID")
    pooled = s / float(POOL_K * POOL_K)
    y = jnp.einsum("nchw,oc->nohw", pooled, pt["conv_w"][:, :, 0, 0],
                   precision=lax.Precision.HIGHEST)
    y = y + pt["conv_b"][None, :, None, None]
    y = jnp.maximum(y, 0.0)
    flat = y.reshape(y.shape[0], -1)                    # NCHW flatten order
    h = jnp.dot(flat, pt["lin1_w"].T, precision=lax.Precision.HIGHEST) + pt["lin1_b"]
    h = jnp.maximum(h, 0.0)                             # dropout = identity (eval)
    logits = jnp.dot(h, pt["lin2_w"].T, precision=lax.Precision.HIGHEST) + pt["lin2_b"]
    return jax.nn.softmax(logits, axis=1)


if __name__ == "__main__":
    key = jax.random.PRNGKey(0)
    k_x, k_p = jax.random.split(key)

    N, Cin, H, W = 2, 4, 16, 16
    num_classes = 10

    x = jax.random.normal(k_x, (N, Cin, H, W), jnp.float32)
    pt_params = init_params(k_p, Cin, H, W, num_classes)
    kparams = prepare_kernel_params(pt_params, Cin, H, W)   # hoisted, done once

    out = jax.block_until_ready(
        aux_classifier_forward(x, kparams, num_classes=num_classes))
    assert out.shape == (N, num_classes), out.shape

    ref = reference_forward(x, pt_params)
    err = float(jnp.max(jnp.abs(out - ref)))
    assert err < 5e-4, f"max abs error {err}"
    row_err = float(jnp.max(jnp.abs(jnp.sum(out, axis=1) - 1.0)))
    assert row_err < 1e-5, f"rows do not sum to 1: {row_err}"

    print("KERNEL_OK")
</pallas_src>

<mosaic_0001>
module attributes {stable_mosaic.version = 11 : i64} {
  func.func @_probe_kernel(%arg0: i32, %arg1: memref<8x128xf32, #tpu.memory_space<vmem>>, %arg2: memref<8x128xf32, #tpu.memory_space<vmem>>) attributes {dimension_semantics = [#tpu.dimension_semantics<arbitrary>], iteration_bounds = array<i64: 1>, scalar_prefetch = 0 : i64, scratch_operands = 0 : i64, tpu.core_type = #tpu.core_type<tc>, window_params = [{pipeline_mode = #tpu.pipeline_mode<synchronous>, transform_indices = @transform_0, window_bounds = array<i64: 8, 128>}, {pipeline_mode = #tpu.pipeline_mode<synchronous>, transform_indices = @transform_1, window_bounds = array<i64: 8, 128>}]} {
    %c0 = arith.constant 0 : index
    %c0_0 = arith.constant 0 : index
    %0 = vector.load %arg1[%c0, %c0_0] : memref<8x128xf32, #tpu.memory_space<vmem>>, vector<8x128xf32>
    %cst = arith.constant 1.000000e+00 : f32
    %1 = vector.broadcast %cst : f32 to vector<8x128xf32>
    %2 = arith.addf %0, %1 : vector<8x128xf32>
    %c0_1 = arith.constant 0 : index
    %c0_2 = arith.constant 0 : index
    %3 = vector.load %arg2[%c0_1, %c0_2] : memref<8x128xf32, #tpu.memory_space<vmem>>, vector<8x128xf32>
    tpu.vector_store %arg2[%c0_1, %c0_2], %2 {strides = array<i32>} : memref<8x128xf32, #tpu.memory_space<vmem>>, vector<8x128xf32>,
    return
  }
  func.func @transform_0(%arg0: i32) -> (i32, i32) {
    %c0_i32 = arith.constant 0 : i32
    %c0_i32_0 = arith.constant 0 : i32
    %c0_i32_1 = arith.constant 0 : i32
    return %c0_i32, %c0_i32_0 : i32, i32
  }
  func.func @transform_1(%arg0: i32) -> (i32, i32) {
    %c0_i32 = arith.constant 0 : i32
    %c0_i32_0 = arith.constant 0 : i32
    %c0_i32_1 = arith.constant 0 : i32
    return %c0_i32, %c0_i32_0 : i32, i32
  }
}

module attributes {stable_mosaic.version = 11 : i64} {
  func.func @_aux_classifier_kernel(%arg0: i32, %arg1: memref<2x4x256xf32, #tpu.memory_space<vmem>>, %arg2: memref<16x256xf32, #tpu.memory_space<vmem>>, %arg3: memref<4x128xf32, #tpu.memory_space<vmem>>, %arg4: memref<1x128xf32, #tpu.memory_space<vmem>>, %arg5: memref<2048x1024xf32, #tpu.memory_space<vmem>>, %arg6: memref<1x1024xf32, #tpu.memory_space<vmem>>, %arg7: memref<1024x128xf32, #tpu.memory_space<vmem>>, %arg8: memref<1x128xf32, #tpu.memory_space<vmem>>, %arg9: memref<2x128xf32, #tpu.memory_space<vmem>>, %arg10: memref<2x2048xf32, #tpu.memory_space<vmem>>) attributes {dimension_semantics = [#tpu.dimension_semantics<parallel>], iteration_bounds = array<i64: 1>, scalar_prefetch = 0 : i64, scratch_operands = 1 : i64, tpu.core_type = #tpu.core_type<tc>, window_params = [{transform_indices = @transform_0, window_bounds = array<i64: 2, 4, 256>}, {pipeline_mode = #tpu.pipeline_mode<synchronous>, transform_indices = @transform_1, window_bounds = array<i64: 16, 256>}, {pipeline_mode = #tpu.pipeline_mode<synchronous>, transform_indices = @transform_2, window_bounds = array<i64: 4, 128>}, {pipeline_mode = #tpu.pipeline_mode<synchronous>, transform_indices = @transform_3, window_bounds = array<i64: 1, 128>}, {pipeline_mode = #tpu.pipeline_mode<synchronous>, transform_indices = @transform_4, window_bounds = array<i64: 2048, 1024>}, {pipeline_mode = #tpu.pipeline_mode<synchronous>, transform_indices = @transform_5, window_bounds = array<i64: 1, 1024>}, {pipeline_mode = #tpu.pipeline_mode<synchronous>, transform_indices = @transform_6, window_bounds = array<i64: 1024, 128>}, {pipeline_mode = #tpu.pipeline_mode<synchronous>, transform_indices = @transform_7, window_bounds = array<i64: 1, 128>}, {transform_indices = @transform_8, window_bounds = array<i64: 2, 128>}]} {
    %c0 = arith.constant 0 : index
    %c0_0 = arith.constant 0 : index
    %0 = vector.load %arg2[%c0, %c0_0] : memref<16x256xf32, #tpu.memory_space<vmem>>, vector<16x256xf32>
    %c0_1 = arith.constant 0 : index
    %c0_2 = arith.constant 0 : index
    %c0_3 = arith.constant 0 : index
    %1 = vector.load %arg1[%c0_1, %c0_2, %c0_3] : memref<2x4x256xf32, #tpu.memory_space<vmem>>, vector<1x4x256xf32>
    %2 = vector.shape_cast %1 : vector<1x4x256xf32> to vector<4x256xf32>
    %cst = arith.constant dense<0.000000e+00> : vector<16x4xf32>
    %3 = tpu.matmul %0, %2, %cst {dimension_numbers = #tpu.dot_dimension_numbers<[1], [1], [0], [0], [0, 0, 1, 0], [], []>} : vector<16x256xf32>, vector<4x256xf32>, vector<16x4xf32> -> vector<16x4xf32>
    %c1 = arith.constant 1 : index
    %c0_4 = arith.constant 0 : index
    %c0_5 = arith.constant 0 : index
    %4 = vector.load %arg1[%c1, %c0_4, %c0_5] : memref<2x4x256xf32, #tpu.memory_space<vmem>>, vector<1x4x256xf32>
    %5 = vector.shape_cast %4 : vector<1x4x256xf32> to vector<4x256xf32>
    %cst_6 = arith.constant dense<0.000000e+00> : vector<16x4xf32>
    %6 = tpu.matmul %0, %5, %cst_6 {dimension_numbers = #tpu.dot_dimension_numbers<[1], [1], [0], [0], [0, 0, 1, 0], [], []>} : vector<16x256xf32>, vector<4x256xf32>, vector<16x4xf32> -> vector<16x4xf32>
    %7 = tpu.concatenate %3, %6 in 0 : vector<16x4xf32>, vector<16x4xf32> -> vector<32x4xf32>
    %c0_7 = arith.constant 0 : index
    %c0_8 = arith.constant 0 : index
    %8 = vector.load %arg3[%c0_7, %c0_8] : memref<4x128xf32, #tpu.memory_space<vmem>>, vector<4x128xf32>
    %cst_9 = arith.constant dense<0.000000e+00> : vector<32x128xf32>
    %9 = tpu.matmul %7, %8, %cst_9 {dimension_numbers = #tpu.dot_dimension_numbers<[1], [0], [0], [1], [0, 0, 1, 1], [], []>} : vector<32x4xf32>, vector<4x128xf32>, vector<32x128xf32> -> vector<32x128xf32>
    %c0_10 = arith.constant 0 : index
    %c0_11 = arith.constant 0 : index
    %10 = vector.load %arg4[%c0_10, %c0_11] : memref<1x128xf32, #tpu.memory_space<vmem>>, vector<1x128xf32>
    %11 = vector.broadcast %10 : vector<1x128xf32> to vector<32x128xf32>
    %12 = arith.addf %9, %11 : vector<32x128xf32>
    %cst_12 = arith.constant 0.000000e+00 : f32
    %13 = vector.broadcast %cst_12 : f32 to vector<32x128xf32>
    %14 = arith.maximumf %12, %13 : vector<32x128xf32>
    %15 = vector.extract_strided_slice %14 {offsets = [0, 0], sizes = [1, 128], strides = [1, 1]} : vector<32x128xf32> to vector<1x128xf32>
    %16 = vector.extract_strided_slice %14 {offsets = [1, 0], sizes = [1, 128], strides = [1, 1]} : vector<32x128xf32> to vector<1x128xf32>
    %17 = vector.extract_strided_slice %14 {offsets = [2, 0], sizes = [1, 128], strides = [1, 1]} : vector<32x128xf32> to vector<1x128xf32>
    %18 = vector.extract_strided_slice %14 {offsets = [3, 0], sizes = [1, 128], strides = [1, 1]} : vector<32x128xf32> to vector<1x128xf32>
    %19 = vector.extract_strided_slice %14 {offsets = [4, 0], sizes = [1, 128], strides = [1, 1]} : vector<32x128xf32> to vector<1x128xf32>
    %20 = vector.extract_strided_slice %14 {offsets = [5, 0], sizes = [1, 128], strides = [1, 1]} : vector<32x128xf32> to vector<1x128xf32>
    %21 = vector.extract_strided_slice %14 {offsets = [6, 0], sizes = [1, 128], strides = [1, 1]} : vector<32x128xf32> to vector<1x128xf32>
    %22 = vector.extract_strided_slice %14 {offsets = [7, 0], sizes = [1, 128], strides = [1, 1]} : vector<32x128xf32> to vector<1x128xf32>
    %23 = vector.extract_strided_slice %14 {offsets = [8, 0], sizes = [1, 128], strides = [1, 1]} : vector<32x128xf32> to vector<1x128xf32>
    %24 = vector.extract_strided_slice %14 {offsets = [9, 0], sizes = [1, 128], strides = [1, 1]} : vector<32x128xf32> to vector<1x128xf32>
    %25 = vector.extract_strided_slice %14 {offsets = [10, 0], sizes = [1, 128], strides = [1, 1]} : vector<32x128xf32> to vector<1x128xf32>
    %26 = vector.extract_strided_slice %14 {offsets = [11, 0], sizes = [1, 128], strides = [1, 1]} : vector<32x128xf32> to vector<1x128xf32>
    %27 = vector.extract_strided_slice %14 {offsets = [12, 0], sizes = [1, 128], strides = [1, 1]} : vector<32x128xf32> to vector<1x128xf32>
    %28 = vector.extract_strided_slice %14 {offsets = [13, 0], sizes = [1, 128], strides = [1, 1]} : vector<32x128xf32> to vector<1x128xf32>
    %29 = vector.extract_strided_slice %14 {offsets = [14, 0], sizes = [1, 128], strides = [1, 1]} : vector<32x128xf32> to vector<1x128xf32>
    %30 = vector.extract_strided_slice %14 {offsets = [15, 0], sizes = [1, 128], strides = [1, 1]} : vector<32x128xf32> to vector<1x128xf32>
    %31 = tpu.concatenate %15, %16, %17, %18, %19, %20, %21, %22, %23, %24, %25, %26, %27, %28, %29, %30 in 1 : vector<1x128xf32>, vector<1x128xf32>, vector<1x128xf32>, vector<1x128xf32>, vector<1x128xf32>, vector<1x128xf32>, vector<1x128xf32>, vector<1x128xf32>, vector<1x128xf32>, vector<1x128xf32>, vector<1x128xf32>, vector<1x128xf32>, vector<1x128xf32>, vector<1x128xf32>, vector<1x128xf32>, vector<1x128xf32> -> vector<1x2048xf32>
    %c0_13 = arith.constant 0 : index
    %c0_14 = arith.constant 0 : index
    %32 = vector.load %arg10[%c0_13, %c0_14] : memref<2x2048xf32, #tpu.memory_space<vmem>>, vector<1x2048xf32>
    tpu.vector_store %arg10[%c0_13, %c0_14], %31 {strides = array<i32>} : memref<2x2048xf32, #tpu.memory_space<vmem>>, vector<1x2048xf32>,
    %33 = vector.extract_strided_slice %14 {offsets = [16, 0], sizes = [1, 128], strides = [1, 1]} : vector<32x128xf32> to vector<1x128xf32>
    %34 = vector.extract_strided_slice %14 {offsets = [17, 0], sizes = [1, 128], strides = [1, 1]} : vector<32x128xf32> to vector<1x128xf32>
    %35 = vector.extract_strided_slice %14 {offsets = [18, 0], sizes = [1, 128], strides = [1, 1]} : vector<32x128xf32> to vector<1x128xf32>
    %36 = vector.extract_strided_slice %14 {offsets = [19, 0], sizes = [1, 128], strides = [1, 1]} : vector<32x128xf32> to vector<1x128xf32>
    %37 = vector.extract_strided_slice %14 {offsets = [20, 0], sizes = [1, 128], strides = [1, 1]} : vector<32x128xf32> to vector<1x128xf32>
    %38 = vector.extract_strided_slice %14 {offsets = [21, 0], sizes = [1, 128], strides = [1, 1]} : vector<32x128xf32> to vector<1x128xf32>
    %39 = vector.extract_strided_slice %14 {offsets = [22, 0], sizes = [1, 128], strides = [1, 1]} : vector<32x128xf32> to vector<1x128xf32>
    %40 = vector.extract_strided_slice %14 {offsets = [23, 0], sizes = [1, 128], strides = [1, 1]} : vector<32x128xf32> to vector<1x128xf32>
    %41 = vector.extract_strided_slice %14 {offsets = [24, 0], sizes = [1, 128], strides = [1, 1]} : vector<32x128xf32> to vector<1x128xf32>
    %42 = vector.extract_strided_slice %14 {offsets = [25, 0], sizes = [1, 128], strides = [1, 1]} : vector<32x128xf32> to vector<1x128xf32>
    %43 = vector.extract_strided_slice %14 {offsets = [26, 0], sizes = [1, 128], strides = [1, 1]} : vector<32x128xf32> to vector<1x128xf32>
    %44 = vector.extract_strided_slice %14 {offsets = [27, 0], sizes = [1, 128], strides = [1, 1]} : vector<32x128xf32> to vector<1x128xf32>
    %45 = vector.extract_strided_slice %14 {offsets = [28, 0], sizes = [1, 128], strides = [1, 1]} : vector<32x128xf32> to vector<1x128xf32>
    %46 = vector.extract_strided_slice %14 {offsets = [29, 0], sizes = [1, 128], strides = [1, 1]} : vector<32x128xf32> to vector<1x128xf32>
    %47 = vector.extract_strided_slice %14 {offsets = [30, 0], sizes = [1, 128], strides = [1, 1]} : vector<32x128xf32> to vector<1x128xf32>
    %48 = vector.extract_strided_slice %14 {offsets = [31, 0], sizes = [1, 128], strides = [1, 1]} : vector<32x128xf32> to vector<1x128xf32>
    %49 = tpu.concatenate %33, %34, %35, %36, %37, %38, %39, %40, %41, %42, %43, %44, %45, %46, %47, %48 in 1 : vector<1x128xf32>, vector<1x128xf32>, vector<1x128xf32>, vector<1x128xf32>, vector<1x128xf32>, vector<1x128xf32>, vector<1x128xf32>, vector<1x128xf32>, vector<1x128xf32>, vector<1x128xf32>, vector<1x128xf32>, vector<1x128xf32>, vector<1x128xf32>, vector<1x128xf32>, vector<1x128xf32>, vector<1x128xf32> -> vector<1x2048xf32>
    %c1_15 = arith.constant 1 : index
    %c0_16 = arith.constant 0 : index
    %50 = vector.load %arg10[%c1_15, %c0_16] : memref<2x2048xf32, #tpu.memory_space<vmem>>, vector<1x2048xf32>
    tpu.vector_store %arg10[%c1_15, %c0_16], %49 {strides = array<i32>} : memref<2x2048xf32, #tpu.memory_space<vmem>>, vector<1x2048xf32>,
    %c0_17 = arith.constant 0 : index
    %c0_18 = arith.constant 0 : index
    %51 = vector.load %arg10[%c0_17, %c0_18] : memref<2x2048xf32, #tpu.memory_space<vmem>>, vector<2x2048xf32>
    %c0_19 = arith.constant 0 : index
    %c0_20 = arith.constant 0 : index
    %52 = vector.load %arg5[%c0_19, %c0_20] : memref<2048x1024xf32, #tpu.memory_space<vmem>>, vector<2048x1024xf32>
    %cst_21 = arith.constant dense<0.000000e+00> : vector<2x1024xf32>
    %53 = tpu.matmul %51, %52, %cst_21 {dimension_numbers = #tpu.dot_dimension_numbers<[1], [0], [0], [1], [0, 0, 1, 1], [], []>} : vector<2x2048xf32>, vector<2048x1024xf32>, vector<2x1024xf32> -> vector<2x1024xf32>
    %c0_22 = arith.constant 0 : index
    %c0_23 = arith.constant 0 : index
    %54 = vector.load %arg6[%c0_22, %c0_23] : memref<1x1024xf32, #tpu.memory_space<vmem>>, vector<1x1024xf32>
    %55 = vector.broadcast %54 : vector<1x1024xf32> to vector<2x1024xf32>
    %56 = arith.addf %53, %55 : vector<2x1024xf32>
    %cst_24 = arith.constant 0.000000e+00 : f32
    %57 = vector.broadcast %cst_24 : f32 to vector<2x1024xf32>
    %58 = arith.maximumf %56, %57 : vector<2x1024xf32>
    %c0_25 = arith.constant 0 : index
    %c0_26 = arith.constant 0 : index
    %59 = vector.load %arg7[%c0_25, %c0_26] : memref<1024x128xf32, #tpu.memory_space<vmem>>, vector<1024x128xf32>
    %cst_27 = arith.constant dense<0.000000e+00> : vector<2x128xf32>
    %60 = tpu.matmul %58, %59, %cst_27 {dimension_numbers = #tpu.dot_dimension_numbers<[1], [0], [0], [1], [0, 0, 1, 1], [], []>} : vector<2x1024xf32>, vector<1024x128xf32>, vector<2x128xf32> -> vector<2x128xf32>
    %c0_28 = arith.constant 0 : index
    %c0_29 = arith.constant 0 : index
    %61 = vector.load %arg8[%c0_28, %c0_29] : memref<1x128xf32, #tpu.memory_space<vmem>>, vector<1x128xf32>
    %62 = vector.broadcast %61 : vector<1x128xf32> to vector<2x128xf32>
    %63 = arith.addf %60, %62 : vector<2x128xf32>
    %cst_30 = arith.constant dense<0xFF800000> : vector<2xf32>
    %64 = vector.multi_reduction <maximumf>, %63, %cst_30 [1] : vector<2x128xf32> to vector<2xf32>
    %65 = vector.shape_cast %64 : vector<2xf32> to vector<2x1xf32>
    %66 = vector.broadcast %65 : vector<2x1xf32> to vector<2x128xf32>
    %67 = arith.subf %63, %66 : vector<2x128xf32>
    %68 = math.exp %67 : vector<2x128xf32>
    %cst_31 = arith.constant dense<0.000000e+00> : vector<2xf32>
    %69 = vector.multi_reduction <add>, %68, %cst_31 [1] : vector<2x128xf32> to vector<2xf32>
    %70 = vector.shape_cast %69 : vector<2xf32> to vector<2x1xf32>
    %71 = vector.broadcast %70 : vector<2x1xf32> to vector<2x128xf32>
    %72 = arith.divf %68, %71 : vector<2x128xf32>
    %c0_32 = arith.constant 0 : index
    %c0_33 = arith.constant 0 : index
    %73 = vector.load %arg9[%c0_32, %c0_33] : memref<2x128xf32, #tpu.memory_space<vmem>>, vector<2x128xf32>
    tpu.vector_store %arg9[%c0_32, %c0_33], %72 {strides = array<i32>} : memref<2x128xf32, #tpu.memory_space<vmem>>, vector<2x128xf32>,
    return
  }
  func.func @transform_0(%arg0: i32) -> (i32, i32, i32) {
    %c0_i32 = arith.constant 0 : i32
    %c0_i32_0 = arith.constant 0 : i32
    %c0_i32_1 = arith.constant 0 : i32
    return %arg0, %c0_i32, %c0_i32_0 : i32, i32, i32
  }
  func.func @transform_1(%arg0: i32) -> (i32, i32) {
    %c0_i32 = arith.constant 0 : i32
    %c0_i32_0 = arith.constant 0 : i32
    %c0_i32_1 = arith.constant 0 : i32
    return %c0_i32, %c0_i32_0 : i32, i32
  }
  func.func @transform_2(%arg0: i32) -> (i32, i32) {
    %c0_i32 = arith.constant 0 : i32
    %c0_i32_0 = arith.constant 0 : i32
    %c0_i32_1 = arith.constant 0 : i32
    return %c0_i32, %c0_i32_0 : i32, i32
  }
  func.func @transform_3(%arg0: i32) -> (i32, i32) {
    %c0_i32 = arith.constant 0 : i32
    %c0_i32_0 = arith.constant 0 : i32
    %c0_i32_1 = arith.constant 0 : i32
    return %c0_i32, %c0_i32_0 : i32, i32
  }
  func.func @transform_4(%arg0: i32) -> (i32, i32) {
    %c0_i32 = arith.constant 0 : i32
    %c0_i32_0 = arith.constant 0 : i32
    %c0_i32_1 = arith.constant 0 : i32
    return %c0_i32, %c0_i32_0 : i32, i32
  }
  func.func @transform_5(%arg0: i32) -> (i32, i32) {
    %c0_i32 = arith.constant 0 : i32
    %c0_i32_0 = arith.constant 0 : i32
    %c0_i32_1 = arith.constant 0 : i32
    return %c0_i32, %c0_i32_0 : i32, i32
  }
  func.func @transform_6(%arg0: i32) -> (i32, i32) {
    %c0_i32 = arith.constant 0 : i32
    %c0_i32_0 = arith.constant 0 : i32
    %c0_i32_1 = arith.constant 0 : i32
    return %c0_i32, %c0_i32_0 : i32, i32
  }
  func.func @transform_7(%arg0: i32) -> (i32, i32) {
    %c0_i32 = arith.constant 0 : i32
    %c0_i32_0 = arith.constant 0 : i32
    %c0_i32_1 = arith.constant 0 : i32
    return %c0_i32, %c0_i32_0 : i32, i32
  }
  func.func @transform_8(%arg0: i32) -> (i32, i32) {
    %c0_i32 = arith.constant 0 : i32
    %c0_i32_0 = arith.constant 0 : i32
    return %arg0, %c0_i32 : i32, i32
  }
}

</mosaic_0001>

<llo_original>
// kernel: tpu_custom_call.1
$region0: #{tpu_custom_call.1}
  #allocation0 [shape = 'u32[]', space=smem, size = 0x4, offset = 0x4, fixed_abs, tag = 'smem constant byte address 0x4 - core index']
  #allocation1 [shape = 'u32[144,128]{1,0:T(1,128)}', space=vmem, size = 0x12000, scoped, tag = 'internal scratch']
  %s0 = inlined_call_operand.hbm [shape: f32[8,128], index: 0, kind: input, shape index: {}]
  %s1 = inlined_call_operand.hbm [shape: f32[8,128], index: 1, kind: output, shape index: {}]
  %s2 = sld [smem:[#allocation0]]
  $region18: #{tpu_custom_call.1} parent=0
    _
  %s4 = ssub.s32 1, %s2
  %s5 = scalar_select 0, %s4, %s2
  $region1: #{tpu_custom_call.1} parent=0
    #allocation2 [shape = 'u8[4096]{0}', space=vmem, size = 0x1000, scoped, tag = 'input window, operand 0, single buffered']
    #allocation3 [shape = 's32[1]{0}', space=sflag, size = 0x4, scoped, tag = 'scoped memory for tpu_custom_call.1']
    #allocation4 [shape = 's32[1]{0}', space=sflag, size = 0x4, scoped, tag = 'scoped memory for tpu_custom_call.1']
    #allocation5 [shape = 'u8[4096]{0}', space=vmem, size = 0x1000, scoped, tag = 'output window, operand 0, single buffered']
    %6 = vsyncpa [#allocation3], 0
    %7 = vsyncpa [#allocation4], 0
    // Predicated region
    $region2: #{tpu_custom_call.1} parent=1 // pred_check
      _
    $region3: #{tpu_custom_call.1} parent=1 // pred_check_branch
      %9 = sbr.rel (0) target = $region5
    $region4: #{tpu_custom_call.1} parent=1 // pred_region
      %s11 = ssub.s32 128, 128
      %12 = vsyncadd [#allocation3], %s11
      %s14 = sshll.u32 [#allocation2], 4
      %s15 = int_to_ptr.vmem [resolvable:$true] %s14
      %17 = dma.hbm_to_vmem [thread:$0]  %s0, 128, %s15, [#allocation3]
    $region5: #{tpu_custom_call.1} parent=1 // pred_fallthru
      _
    // Predicated region
    $region6: #{tpu_custom_call.1} parent=1 // pred_check
      _
    $region7: #{tpu_custom_call.1} parent=1 // pred_check_branch
      %19 = sbr.rel (0) target = $region9
    $region8: #{tpu_custom_call.1} parent=1 // pred_region
      %20 = dma.done [#allocation3], 128
    $region9: #{tpu_custom_call.1} parent=1 // pred_fallthru
      _
    %v21 = vld [vmem:[#allocation2] sm:$0xff]
    %v22 = vadd.f32 %v21, 1.0
    %23 = vst [vmem:[#allocation5] sm:$0xff] %v22
    // Predicated region
    $region10: #{tpu_custom_call.1} parent=1 // pred_check
      _
    $region11: #{tpu_custom_call.1} parent=1 // pred_check_branch
      %25 = sbr.rel (0) target = $region13
    $region12: #{tpu_custom_call.1} parent=1 // pred_region
      %s27 = ssub.s32 128, 128
      %28 = vsyncadd [#allocation4], %s27
      %s30 = sshll.u32 [#allocation5], 4
      %s31 = int_to_ptr.vmem [resolvable:$true] %s30
      %33 = dma.vmem_to_hbm [thread:$0]  %s31, 128, %s1, [#allocation4]
    $region13: #{tpu_custom_call.1} parent=1 // pred_fallthru
      _
    // Predicated region
    $region14: #{tpu_custom_call.1} parent=1 // pred_check
      _
    $region15: #{tpu_custom_call.1} parent=1 // pred_check_branch
      %35 = sbr.rel (0) target = $region17
    $region16: #{tpu_custom_call.1} parent=1 // pred_region
      %36 = dma.done [#allocation4], 128
    $region17: #{tpu_custom_call.1} parent=1 // pred_fallthru
      _
    %37 = vsyncpa [#allocation3], 1
    %38 = vsyncpa [#allocation4], 1

// kernel: _forward_jit.1
$region0: #{_forward_jit.1}
  #allocation0 [shape = 'u32[]', space=smem, size = 0x4, offset = 0x4, fixed_abs, tag = 'smem constant byte address 0x4 - core index']
  #allocation1 [shape = 'u32[144,128]{1,0:T(1,128)}', space=vmem, size = 0x12000, scoped, tag = 'internal scratch']
  #allocation2 [shape = 'f32[2,2048]{1,0:T(2,128)}', space=vmem, size = 0x4000, scoped, tag = 'scratch operand']
  %s0 = inlined_call_operand.vmem [shape: f32[2,4,256], index: 0, kind: input, shape index: {}]
  %s1 = inlined_call_operand.hbm [shape: f32[16,256], index: 1, kind: input, shape index: {}]
  %s2 = inlined_call_operand.hbm [shape: f32[4,128], index: 2, kind: input, shape index: {}]
  %s3 = inlined_call_operand.hbm [shape: f32[1,128], index: 3, kind: input, shape index: {}]
  %s4 = inlined_call_operand.hbm [shape: f32[2048,1024], index: 4, kind: input, shape index: {}]
  %s5 = inlined_call_operand.hbm [shape: f32[1,1024], index: 5, kind: input, shape index: {}]
  %s6 = inlined_call_operand.hbm [shape: f32[1024,128], index: 6, kind: input, shape index: {}]
  %s7 = inlined_call_operand.hbm [shape: f32[1,128], index: 7, kind: input, shape index: {}]
  %s8 = inlined_call_operand.hbm [shape: f32[2,128], index: 8, kind: output, shape index: {}]
  %s9 = sld [smem:[#allocation0]]
  $region70: #{_forward_jit.1} parent=0
    _
  %s11 = ssub.s32 1, %s9
  %s12 = scalar_select 0, %s11, %s9
  $region1: #{_forward_jit.1} parent=0
    #allocation3 [shape = 'u8[16384]{0}', space=vmem, size = 0x4000, scoped, tag = 'input window, operand 1, single buffered']
    #allocation4 [shape = 's32[1]{0}', space=sflag, size = 0x4, scoped, tag = 'scoped memory for _forward_jit.1']
    #allocation5 [shape = 's32[1]{0}', space=sflag, size = 0x4, scoped, tag = 'scoped memory for _forward_jit.1']
    #allocation6 [shape = 'u8[2048]{0}', space=vmem, size = 0x800, scoped, tag = 'input window, operand 2, single buffered']
    #allocation7 [shape = 's32[1]{0}', space=sflag, size = 0x4, scoped, tag = 'scoped memory for _forward_jit.1']
    #allocation8 [shape = 'u8[512]{0}', space=vmem, size = 0x400, scoped, tag = 'input window, operand 3, single buffered']
    #allocation9 [shape = 'u8[8388608]{0}', space=vmem, size = 0x800000, scoped, tag = 'input window, operand 4, single buffered']
    #allocation10 [shape = 's32[1]{0}', space=sflag, size = 0x4, scoped, tag = 'scoped memory for _forward_jit.1']
    #allocation11 [shape = 'u8[4096]{0}', space=vmem, size = 0x1000, scoped, tag = 'input window, operand 5, single buffered']
    #allocation12 [shape = 'u8[524288]{0}', space=vmem, size = 0x80000, scoped, tag = 'input window, operand 6, single buffered']
    #allocation13 [shape = 's32[1]{0}', space=sflag, size = 0x4, scoped, tag = 'scoped memory for _forward_jit.1']
    #allocation14 [shape = 'u8[512]{0}', space=vmem, size = 0x400, scoped, tag = 'input window, operand 7, single buffered']
    #allocation15 [shape = 'u8[1024]{0}', space=vmem, size = 0x400, scoped, tag = 'output window, operand 0, single buffered']
    %13 = vsyncpa [#allocation4], 0
    %14 = vsyncpa [#allocation7], 0
    %15 = vsyncpa [#allocation10], 0
    %16 = vsyncpa [#allocation13], 0
    %17 = vsyncpa [#allocation5], 0
    // Predicated region
    $region2: #{_forward_jit.1} parent=1 // pred_check
      _
    $region3: #{_forward_jit.1} parent=1 // pred_check_branch
      %19 = sbr.rel (0) target = $region5
    $region4: #{_forward_jit.1} parent=1 // pred_region
      _
    $region5: #{_forward_jit.1} parent=1 // pred_fallthru
      _
    // Predicated region
    $region6: #{_forward_jit.1} parent=1 // pred_check
      _
    $region7: #{_forward_jit.1} parent=1 // pred_check_branch
      %21 = sbr.rel (0) target = $region9
    $region8: #{_forward_jit.1} parent=1 // pred_region
      %s23 = ssub.s32 512, 512
      %24 = vsyncadd [#allocation4], %s23
      %s25 = sshll.u32 [#allocation3], 4
      %s26 = int_to_ptr.vmem [resolvable:$true] %s25
      %31 = dma.hbm_to_vmem [thread:$0]  %s1, 512, %s26, [#allocation4], 256, 256, 16
    $region9: #{_forward_jit.1} parent=1 // pred_fallthru
      _
    // Predicated region
    $region10: #{_forward_jit.1} parent=1 // pred_check
      _
    $region11: #{_forward_jit.1} parent=1 // pred_check_branch
      %33 = sbr.rel (0) target = $region13
    $region12: #{_forward_jit.1} parent=1 // pred_region
      %s35 = ssub.s32 64, 64
      %36 = vsyncadd [#allocation7], %s35
      %s38 = sshll.u32 [#allocation6], 4
      %s39 = int_to_ptr.vmem [resolvable:$true] %s38
      %41 = dma.hbm_to_vmem [thread:$0]  %s2, 64, %s39, [#allocation7]
    $region13: #{_forward_jit.1} parent=1 // pred_fallthru
      _
    // Predicated region
    $region14: #{_forward_jit.1} parent=1 // pred_check
      _
    $region15: #{_forward_jit.1} parent=1 // pred_check_branch
      %43 = sbr.rel (0) target = $region17
    $region16: #{_forward_jit.1} parent=1 // pred_region
      %s45 = ssub.s32 16, 16
      %46 = vsyncadd [#allocation7], %s45
      %s48 = sshll.u32 [#allocation8], 4
      %s49 = int_to_ptr.vmem [resolvable:$true] %s48
      %51 = dma.hbm_to_vmem [thread:$0]  %s3, 16, %s49, [#allocation7]
    $region17: #{_forward_jit.1} parent=1 // pred_fallthru
      _
    // Predicated region
    $region18: #{_forward_jit.1} parent=1 // pred_check
      _
    $region19: #{_forward_jit.1} parent=1 // pred_check_branch
      %53 = sbr.rel (0) target = $region21
    $region20: #{_forward_jit.1} parent=1 // pred_region
      %s55 = ssub.s32 262144, 262144
      %56 = vsyncadd [#allocation10], %s55
      %s57 = sshll.u32 [#allocation9], 4
      %s58 = int_to_ptr.vmem [resolvable:$true] %s57
      %63 = dma.hbm_to_vmem [thread:$0]  %s4, 262144, %s58, [#allocation10], 1024, 1024, 64
    $region21: #{_forward_jit.1} parent=1 // pred_fallthru
      _
    // Predicated region
    $region22: #{_forward_jit.1} parent=1 // pred_check
      _
    $region23: #{_forward_jit.1} parent=1 // pred_check_branch
      %65 = sbr.rel (0) target = $region25
    $region24: #{_forward_jit.1} parent=1 // pred_region
      %s67 = ssub.s32 128, 128
      %68 = vsyncadd [#allocation10], %s67
      %s70 = sshll.u32 [#allocation11], 4
      %s71 = int_to_ptr.vmem [resolvable:$true] %s70
      %73 = dma.hbm_to_vmem [thread:$0]  %s5, 128, %s71, [#allocation10]
    $region25: #{_forward_jit.1} parent=1 // pred_fallthru
      _
    // Predicated region
    $region26: #{_forward_jit.1} parent=1 // pred_check
      _
    $region27: #{_forward_jit.1} parent=1 // pred_check_branch
      %75 = sbr.rel (0) target = $region29
    $region28: #{_forward_jit.1} parent=1 // pred_region
      %s77 = ssub.s32 16384, 16384
      %78 = vsyncadd [#allocation13], %s77
      %s79 = sshll.u32 [#allocation12], 4
      %s80 = int_to_ptr.vmem [resolvable:$true] %s79
      %85 = dma.hbm_to_vmem [thread:$0]  %s6, 16384, %s80, [#allocation13], 128, 128, 8
    $region29: #{_forward_jit.1} parent=1 // pred_fallthru
      _
    // Predicated region
    $region30: #{_forward_jit.1} parent=1 // pred_check
      _
    $region31: #{_forward_jit.1} parent=1 // pred_check_branch
      %87 = sbr.rel (0) target = $region33
    $region32: #{_forward_jit.1} parent=1 // pred_region
      %s89 = ssub.s32 16, 16
      %90 = vsyncadd [#allocation13], %s89
      %s92 = sshll.u32 [#allocation14], 4
      %s93 = int_to_ptr.vmem [resolvable:$true] %s92
      %95 = dma.hbm_to_vmem [thread:$0]  %s7, 16, %s93, [#allocation13]
    $region33: #{_forward_jit.1} parent=1 // pred_fallthru
      _
    // Predicated region
    $region34: #{_forward_jit.1} parent=1 // pred_check
      _
    $region35: #{_forward_jit.1} parent=1 // pred_check_branch
      %97 = sbr.rel (0) target = $region37
    $region36: #{_forward_jit.1} parent=1 // pred_region
      %98 = dma.done [#allocation4], 512
    $region37: #{_forward_jit.1} parent=1 // pred_fallthru
      _
    // Predicated region
    $region38: #{_forward_jit.1} parent=1 // pred_check
      _
    $region39: #{_forward_jit.1} parent=1 // pred_check_branch
      %100 = sbr.rel (0) target = $region41
    $region40: #{_forward_jit.1} parent=1 // pred_region
      %101 = dma.done [#allocation7], 64
    $region41: #{_forward_jit.1} parent=1 // pred_fallthru
      _
    // Predicated region
    $region42: #{_forward_jit.1} parent=1 // pred_check
      _
    $region43: #{_forward_jit.1} parent=1 // pred_check_branch
      %103 = sbr.rel (0) target = $region45
    $region44: #{_forward_jit.1} parent=1 // pred_region
      %104 = dma.done [#allocation7], 16
    $region45: #{_forward_jit.1} parent=1 // pred_fallthru
      _
    // Predicated region
    $region46: #{_forward_jit.1} parent=1 // pred_check
      _
    $region47: #{_forward_jit.1} parent=1 // pred_check_branch
      %106 = sbr.rel (0) target = $region49
    $region48: #{_forward_jit.1} parent=1 // pred_region
      %107 = dma.done [#allocation10], 262144
    $region49: #{_forward_jit.1} parent=1 // pred_fallthru
      _
    // Predicated region
    $region50: #{_forward_jit.1} parent=1 // pred_check
      _
    $region51: #{_forward_jit.1} parent=1 // pred_check_branch
      %109 = sbr.rel (0) target = $region53
    $region52: #{_forward_jit.1} parent=1 // pred_region
      %110 = dma.done [#allocation10], 128
    $region53: #{_forward_jit.1} parent=1 // pred_fallthru
      _
    // Predicated region
    $region54: #{_forward_jit.1} parent=1 // pred_check
      _
    $region55: #{_forward_jit.1} parent=1 // pred_check_branch
      %112 = sbr.rel (0) target = $region57
    $region56: #{_forward_jit.1} parent=1 // pred_region
      %113 = dma.done [#allocation13], 16384
    $region57: #{_forward_jit.1} parent=1 // pred_fallthru
      _
    // Predicated region
    $region58: #{_forward_jit.1} parent=1 // pred_check
      _
    $region59: #{_forward_jit.1} parent=1 // pred_check_branch
      %115 = sbr.rel (0) target = $region61
    $region60: #{_forward_jit.1} parent=1 // pred_region
      %116 = dma.done [#allocation13], 16
    $region61: #{_forward_jit.1} parent=1 // pred_fallthru
      _
    %v117 = vld [vmem:[#allocation3] sm:$0xff]
    %v118 = vld [vmem:[#allocation3 + $0x8] sm:$0xff]
    %v119 = vld [vmem:[#allocation3 + $0x10] sm:$0xff]
    %v120 = vld [vmem:[#allocation3 + $0x18] sm:$0xff]
    %v121 = vld [vmem:[%s0] sm:$0xff]
    %v123 = vcombine.high %v121, %v121
    %125 = vmatprep.subr.mxu0 %v123
    %126 = vmatpush1.xpose.msra.mxu0 %v121
    %127 = vmatprep.subr.mxu0 0.0
    %128 = vmatpush1.xpose.msra.mxu0 0.0
    %129 = vmatprep.subr.mxu0 0.0
    %130 = vmatpush1.xpose.msra.mxu0 0.0
    %131 = vmatprep.subr.mxu0 0.0
    %132 = vmatpush1.xpose.msra.mxu0 0.0
    %133 = vmatprep.subr.mxu0 0.0
    %134 = vmatpush1.xpose.msra.mxu0 0.0
    %135 = vmatprep.subr.mxu0 0.0
    %136 = vmatpush1.xpose.msra.mxu0 0.0
    %137 = vmatprep.subr.mxu0 0.0
    %138 = vmatpush1.xpose.msra.mxu0 0.0
    %139 = vmatprep.subr.mxu0 0.0
    %140 = vmatpush1.xpose.msra.mxu0 0.0
    %141 = vmatprep.subr.mxu0 0.0
    %142 = vmatpush1.xpose.msra.mxu0 0.0
    %143 = vmatprep.subr.mxu0 0.0
    %144 = vmatpush1.xpose.msra.mxu0 0.0
    %145 = vmatprep.subr.mxu0 0.0
    %146 = vmatpush1.xpose.msra.mxu0 0.0
    %147 = vmatprep.subr.mxu0 0.0
    %148 = vmatpush1.xpose.msra.mxu0 0.0
    %149 = vmatprep.subr.mxu0 0.0
    %150 = vmatpush1.xpose.msra.mxu0 0.0
    %151 = vmatprep.subr.mxu0 0.0
    %152 = vmatpush1.xpose.msra.mxu0 0.0
    %153 = vmatprep.subr.mxu0 0.0
    %154 = vmatpush1.xpose.msra.mxu0 0.0
    %155 = vmatprep.subr.mxu0 0.0
    %156 = vmatpush1.xpose.msra.mxu0 0.0
    %157 = vmatprep.subr.mxu0 0.0
    %158 = vmatpush1.xpose.msra.mxu0 0.0
    %159 = vmatprep.subr.mxu0 0.0
    %160 = vmatpush1.xpose.msra.mxu0 0.0
    %161 = vmatprep.subr.mxu0 0.0
    %162 = vmatpush1.xpose.msra.mxu0 0.0
    %163 = vmatprep.subr.mxu0 0.0
    %164 = vmatpush1.xpose.msra.mxu0 0.0
    %165 = vmatprep.subr.mxu0 0.0
    %166 = vmatpush1.xpose.msra.mxu0 0.0
    %167 = vmatprep.subr.mxu0 0.0
    %168 = vmatpush1.xpose.msra.mxu0 0.0
    %169 = vmatprep.subr.mxu0 0.0
    %170 = vmatpush1.xpose.msra.mxu0 0.0
    %171 = vmatprep.subr.mxu0 0.0
    %172 = vmatpush1.xpose.msra.mxu0 0.0
    %173 = vmatprep.subr.mxu0 0.0
    %174 = vmatpush1.xpose.msra.mxu0 0.0
    %175 = vmatprep.subr.mxu0 0.0
    %176 = vmatpush1.xpose.msra.mxu0 0.0
    %177 = vmatprep.subr.mxu0 0.0
    %178 = vmatpush1.xpose.msra.mxu0 0.0
    %179 = vmatprep.subr.mxu0 0.0
    %180 = vmatpush1.xpose.msra.mxu0 0.0
    %181 = vmatprep.subr.mxu0 0.0
    %182 = vmatpush1.xpose.msra.mxu0 0.0
    %183 = vmatprep.subr.mxu0 0.0
    %184 = vmatpush1.xpose.msra.mxu0 0.0
    %185 = vmatprep.subr.mxu0 0.0
    %186 = vmatpush1.xpose.msra.mxu0 0.0
    %187 = vmatprep.subr.mxu0 0.0
    %188 = vmatpush1.xpose.msra.mxu0 0.0
    %189 = vmatprep.mubr.f32.mxu0 %v118
    %190 = vmatmul.mubr.f32.gmra.mrb[0].mxu0 %v117
    %v191 = vpop.f32.mrb[0].mxu0
    %v192 = vadd.f32 0.0, %v191
    %v193 = vpop.f32.mrb[0].mxu0
    %194 = vmatprep.mubr.f32.mxu0 %v120
    %195 = vmatmul.mubr.f32.gmra.mrb[0].mxu0 %v119
    %v196 = vpop.f32.mrb[0].mxu0
    %v197 = vadd.f32 0.0, %v196
    %v198 = vpop.f32.mrb[0].mxu0
    %199 = vdwg.mxu0
    %s200 = scalar_lea.vmem %s0, 8
    %v201 = vld [vmem:[%s200] sm:$0xff]
    %v203 = vcombine.high %v201, %v201
    %205 = vmatprep.subr.mxu0 %v203
    %206 = vmatpush1.xpose.msra.mxu0 %v201
    %207 = vmatprep.subr.mxu0 0.0
    %208 = vmatpush1.xpose.msra.mxu0 0.0
    %209 = vmatprep.subr.mxu0 0.0
    %210 = vmatpush1.xpose.msra.mxu0 0.0
    %211 = vmatprep.subr.mxu0 0.0
    %212 = vmatpush1.xpose.msra.mxu0 0.0
    %213 = vmatprep.subr.mxu0 0.0
    %214 = vmatpush1.xpose.msra.mxu0 0.0
    %215 = vmatprep.subr.mxu0 0.0
    %216 = vmatpush1.xpose.msra.mxu0 0.0
    %217 = vmatprep.subr.mxu0 0.0
    %218 = vmatpush1.xpose.msra.mxu0 0.0
    %219 = vmatprep.subr.mxu0 0.0
    %220 = vmatpush1.xpose.msra.mxu0 0.0
    %221 = vmatprep.subr.mxu0 0.0
    %222 = vmatpush1.xpose.msra.mxu0 0.0
    %223 = vmatprep.subr.mxu0 0.0
    %224 = vmatpush1.xpose.msra.mxu0 0.0
    %225 = vmatprep.subr.mxu0 0.0
    %226 = vmatpush1.xpose.msra.mxu0 0.0
    %227 = vmatprep.subr.mxu0 0.0
    %228 = vmatpush1.xpose.msra.mxu0 0.0
    %229 = vmatprep.subr.mxu0 0.0
    %230 = vmatpush1.xpose.msra.mxu0 0.0
    %231 = vmatprep.subr.mxu0 0.0
    %232 = vmatpush1.xpose.msra.mxu0 0.0
    %233 = vmatprep.subr.mxu0 0.0
    %234 = vmatpush1.xpose.msra.mxu0 0.0
    %235 = vmatprep.subr.mxu0 0.0
    %236 = vmatpush1.xpose.msra.mxu0 0.0
    %237 = vmatprep.subr.mxu0 0.0
    %238 = vmatpush1.xpose.msra.mxu0 0.0
    %239 = vmatprep.subr.mxu0 0.0
    %240 = vmatpush1.xpose.msra.mxu0 0.0
    %241 = vmatprep.subr.mxu0 0.0
    %242 = vmatpush1.xpose.msra.mxu0 0.0
    %243 = vmatprep.subr.mxu0 0.0
    %244 = vmatpush1.xpose.msra.mxu0 0.0
    %245 = vmatprep.subr.mxu0 0.0
    %246 = vmatpush1.xpose.msra.mxu0 0.0
    %247 = vmatprep.subr.mxu0 0.0
    %248 = vmatpush1.xpose.msra.mxu0 0.0
    %249 = vmatprep.subr.mxu0 0.0
    %250 = vmatpush1.xpose.msra.mxu0 0.0
    %251 = vmatprep.subr.mxu0 0.0
    %252 = vmatpush1.xpose.msra.mxu0 0.0
    %253 = vmatprep.subr.mxu0 0.0
    %254 = vmatpush1.xpose.msra.mxu0 0.0
    %255 = vmatprep.subr.mxu0 0.0
    %256 = vmatpush1.xpose.msra.mxu0 0.0
    %257 = vmatprep.subr.mxu0 0.0
    %258 = vmatpush1.xpose.msra.mxu0 0.0
    %259 = vmatprep.subr.mxu0 0.0
    %260 = vmatpush1.xpose.msra.mxu0 0.0
    %261 = vmatprep.subr.mxu0 0.0
    %262 = vmatpush1.xpose.msra.mxu0 0.0
    %263 = vmatprep.subr.mxu0 0.0
    %264 = vmatpush1.xpose.msra.mxu0 0.0
    %265 = vmatprep.subr.mxu0 0.0
    %266 = vmatpush1.xpose.msra.mxu0 0.0
    %267 = vmatprep.subr.mxu0 0.0
    %268 = vmatpush1.xpose.msra.mxu0 0.0
    %269 = vmatprep.mubr.f32.mxu0 %v118
    %270 = vmatmul.mubr.f32.gmra.mrb[0].mxu0 %v117
    %v271 = vpop.f32.mrb[0].mxu0
    %v272 = vadd.f32 0.0, %v271
    %v273 = vpop.f32.mrb[0].mxu0
    %274 = vmatprep.mubr.f32.mxu0 %v120
    %275 = vmatmul.mubr.f32.gmra.mrb[0].mxu0 %v119
    %v276 = vpop.f32.mrb[0].mxu0
    %v277 = vadd.f32 0.0, %v276
    %v278 = vpop.f32.mrb[0].mxu0
    %279 = vdwg.mxu0
    %v280 = vld [vmem:[#allocation6] sm:$0xf]
    %v281 = vld [vmem:[#allocation8] sm:$0x1]
    %v283 = vlaneseq
    %v284 = vshrl.u32 %v283, 7
    %v285 = vsub.s32 0, %v284
    %v286 = vrot.slane %v281, %v285
    %vm288 = vcmask 31744
    %v290 = vsel %vm288, %v192, 0
    %v293 = vsel %vm288, %v197, 0
    %v296 = vsel %vm288, %v272, 0
    %v299 = vsel %vm288, %v277, 0
    %vm301 = vcmask 1043456
    %v303 = vsel %vm301, %v280, 0
    %305 = vmatprep.subr.mxu0 0.0
    %306 = vmatpush1.msra.mxu0 %v303
    %307 = vmatprep.subr.mxu0 0.0
    %308 = vmatpush1.msra.mxu0 0.0
    %309 = vmatprep.subr.mxu0 0.0
    %310 = vmatpush1.msra.mxu0 0.0
    %311 = vmatprep.subr.mxu0 0.0
    %312 = vmatpush1.msra.mxu0 0.0
    %313 = vmatprep.subr.mxu0 0.0
    %314 = vmatpush1.msra.mxu0 0.0
    %315 = vmatprep.subr.mxu0 0.0
    %316 = vmatpush1.msra.mxu0 0.0
    %317 = vmatprep.subr.mxu0 0.0
    %318 = vmatpush1.msra.mxu0 0.0
    %319 = vmatprep.subr.mxu0 0.0
    %320 = vmatpush1.msra.mxu0 0.0
    %321 = vmatprep.subr.mxu0 0.0
    %322 = vmatpush1.msra.mxu0 0.0
    %323 = vmatprep.subr.mxu0 0.0
    %324 = vmatpush1.msra.mxu0 0.0
    %325 = vmatprep.subr.mxu0 0.0
    %326 = vmatpush1.msra.mxu0 0.0
    %327 = vmatprep.subr.mxu0 0.0
    %328 = vmatpush1.msra.mxu0 0.0
    %329 = vmatprep.subr.mxu0 0.0
    %330 = vmatpush1.msra.mxu0 0.0
    %331 = vmatprep.subr.mxu0 0.0
    %332 = vmatpush1.msra.mxu0 0.0
    %333 = vmatprep.subr.mxu0 0.0
    %334 = vmatpush1.msra.mxu0 0.0
    %335 = vmatprep.subr.mxu0 0.0
    %336 = vmatpush1.msra.mxu0 0.0
    %337 = vmatprep.subr.mxu0 0.0
    %338 = vmatpush1.msra.mxu0 0.0
    %339 = vmatprep.subr.mxu0 0.0
    %340 = vmatpush1.msra.mxu0 0.0
    %341 = vmatprep.subr.mxu0 0.0
    %342 = vmatpush1.msra.mxu0 0.0
    %343 = vmatprep.subr.mxu0 0.0
    %344 = vmatpush1.msra.mxu0 0.0
    %345 = vmatprep.subr.mxu0 0.0
    %346 = vmatpush1.msra.mxu0 0.0
    %347 = vmatprep.subr.mxu0 0.0
    %348 = vmatpush1.msra.mxu0 0.0
    %349 = vmatprep.subr.mxu0 0.0
    %350 = vmatpush1.msra.mxu0 0.0
    %351 = vmatprep.subr.mxu0 0.0
    %352 = vmatpush1.msra.mxu0 0.0
    %353 = vmatprep.subr.mxu0 0.0
    %354 = vmatpush1.msra.mxu0 0.0
    %355 = vmatprep.subr.mxu0 0.0
    %356 = vmatpush1.msra.mxu0 0.0
    %357 = vmatprep.subr.mxu0 0.0
    %358 = vmatpush1.msra.mxu0 0.0
    %359 = vmatprep.subr.mxu0 0.0
    %360 = vmatpush1.msra.mxu0 0.0
    %361 = vmatprep.subr.mxu0 0.0
    %362 = vmatpush1.msra.mxu0 0.0
    %363 = vmatprep.subr.mxu0 0.0
    %364 = vmatpush1.msra.mxu0 0.0
    %365 = vmatprep.subr.mxu0 0.0
    %366 = vmatpush1.msra.mxu0 0.0
    %367 = vmatprep.subr.mxu0 0.0
    %368 = vmatpush1.msra.mxu0 0.0
    %369 = vmatprep.mubr.f32.mxu0 0.0
    %370 = vmatmul.mubr.f32.gmra.mrb[0].mxu0 %v290
    %v371 = vpop.f32.mrb[0].mxu0
    %v372 = vadd.f32 %v286, %v371
    %v373 = vpop.f32.mrb[0].mxu0
    %374 = vmatprep.mubr.f32.mxu0 0.0
    %375 = vmatmul.mubr.f32.gmra.mrb[0].mxu0 %v293
    %v376 = vpop.f32.mrb[0].mxu0
    %v377 = vadd.f32 %v286, %v376
    %v378 = vpop.f32.mrb[0].mxu0
    %379 = vmatprep.mubr.f32.mxu0 0.0
    %380 = vmatmul.mubr.f32.gmra.mrb[0].mxu0 %v296
    %v381 = vpop.f32.mrb[0].mxu0
    %v382 = vadd.f32 %v286, %v381
    %v383 = vpop.f32.mrb[0].mxu0
    %384 = vmatprep.mubr.f32.mxu0 0.0
    %385 = vmatmul.mubr.f32.gmra.mrb[0].mxu0 %v299
    %v386 = vpop.f32.mrb[0].mxu0
    %v387 = vadd.f32 %v286, %v386
    %v388 = vpop.f32.mrb[0].mxu0
    %389 = vdwg.mxu0
    %v390 = vmax.f32 %v372, 0.0
    %v391 = vmax.f32 %v377, 0.0
    %v392 = vmax.f32 %v382, 0.0
    %v393 = vmax.f32 %v387, 0.0
    %v395 = vrot.slane %v390, 1
    %v396 = vrot.slane %v390, 2
    %v397 = vrot.slane %v390, 3
    %v398 = vrot.slane %v390, 4
    %v399 = vrot.slane %v390, 5
    %v400 = vrot.slane %v390, 6
    %v401 = vrot.slane %v390, 7
    %v403 = vrot.slane %v391, 1
    %v404 = vrot.slane %v391, 2
    %v405 = vrot.slane %v391, 3
    %v406 = vrot.slane %v391, 4
    %v407 = vrot.slane %v391, 5
    %v408 = vrot.slane %v391, 6
    %v409 = vrot.slane %v391, 7
    %v410 = vcombine.low %v390, %v395
    %v411 = vcombine.low %v396, %v397
    %v412 = vcombine.low %v398, %v399
    %v413 = vcombine.low %v400, %v401
    %v415 = vunpack.c.l.s4 1966171168
    %v416 = vunpack.c.0.s8 %v415
    %v417 = vlaneseq
    %v418 = vshrl.u32 %v417, 7
    %v419 = vsub.s32 %v416, %v418
    %v420 = vrot.slane %v410, %v419
    %v422 = vunpack.c.l.s4 1966171168
    %v423 = vunpack.c.0.s8 %v422
    %v424 = vlaneseq
    %v425 = vshrl.u32 %v424, 7
    %v426 = vsub.s32 %v423, %v425
    %v427 = vrot.slane %v411, %v426
    %v429 = vunpack.c.l.s4 1966171168
    %v430 = vunpack.c.0.s8 %v429
    %v431 = vlaneseq
    %v432 = vshrl.u32 %v431, 7
    %v433 = vsub.s32 %v430, %v432
    %v434 = vrot.slane %v412, %v433
    %v436 = vunpack.c.l.s4 1966171168
    %v437 = vunpack.c.0.s8 %v436
    %v438 = vlaneseq
    %v439 = vshrl.u32 %v438, 7
    %v440 = vsub.s32 %v437, %v439
    %v441 = vrot.slane %v413, %v440
    %v442 = vcombine.low %v420, %v427
    %v443 = vcombine.low %v434, %v441
    %v445 = vunpack.c.l.s4 1966171168
    %v446 = vunpack.c.0.s8 %v445
    %v447 = vlaneseq
    %v448 = vshrl.u32 %v447, 7
    %v449 = vsub.s32 %v446, %v448
    %v450 = vrot.slane %v442, %v449
    %v452 = vunpack.c.l.s4 1966171168
    %v453 = vunpack.c.0.s8 %v452
    %v454 = vlaneseq
    %v455 = vshrl.u32 %v454, 7
    %v456 = vsub.s32 %v453, %v455
    %v457 = vrot.slane %v443, %v456
    %v458 = vcombine.low %v450, %v457
    %v459 = vcombine.low %v391, %v403
    %v460 = vcombine.low %v404, %v405
    %v461 = vcombine.low %v406, %v407
    %v462 = vcombine.low %v408, %v409
    %v464 = vunpack.c.l.s4 1966171168
    %v465 = vunpack.c.0.s8 %v464
    %v466 = vlaneseq
    %v467 = vshrl.u32 %v466, 7
    %v468 = vsub.s32 %v465, %v467
    %v469 = vrot.slane %v459, %v468
    %v471 = vunpack.c.l.s4 1966171168
    %v472 = vunpack.c.0.s8 %v471
    %v473 = vlaneseq
    %v474 = vshrl.u32 %v473, 7
    %v475 = vsub.s32 %v472, %v474
    %v476 = vrot.slane %v460, %v475
    %v478 = vunpack.c.l.s4 1966171168
    %v479 = vunpack.c.0.s8 %v478
    %v480 = vlaneseq
    %v481 = vshrl.u32 %v480, 7
    %v482 = vsub.s32 %v479, %v481
    %v483 = vrot.slane %v461, %v482
    %v485 = vunpack.c.l.s4 1966171168
    %v486 = vunpack.c.0.s8 %v485
    %v487 = vlaneseq
    %v488 = vshrl.u32 %v487, 7
    %v489 = vsub.s32 %v486, %v488
    %v490 = vrot.slane %v462, %v489
    %v491 = vcombine.low %v469, %v476
    %v492 = vcombine.low %v483, %v490
    %v494 = vunpack.c.l.s4 1966171168
    %v495 = vunpack.c.0.s8 %v494
    %v496 = vlaneseq
    %v497 = vshrl.u32 %v496, 7
    %v498 = vsub.s32 %v495, %v497
    %v499 = vrot.slane %v491, %v498
    %v501 = vunpack.c.l.s4 1966171168
    %v502 = vunpack.c.0.s8 %v501
    %v503 = vlaneseq
    %v504 = vshrl.u32 %v503, 7
    %v505 = vsub.s32 %v502, %v504
    %v506 = vrot.slane %v492, %v505
    %v507 = vcombine.low %v499, %v506
    %510 = vst [vmem:[#allocation2] ss:$2 sm:$0xff] %v458
    %s511 = scalar_lea.vmem [#allocation2], 16
    %512 = vst [vmem:[%s511] ss:$2 sm:$0xff] %v507
    %v514 = vrot.slane %v392, 1
    %v515 = vrot.slane %v392, 2
    %v516 = vrot.slane %v392, 3
    %v517 = vrot.slane %v392, 4
    %v518 = vrot.slane %v392, 5
    %v519 = vrot.slane %v392, 6
    %v520 = vrot.slane %v392, 7
    %v522 = vrot.slane %v393, 1
    %v523 = vrot.slane %v393, 2
    %v524 = vrot.slane %v393, 3
    %v525 = vrot.slane %v393, 4
    %v526 = vrot.slane %v393, 5
    %v527 = vrot.slane %v393, 6
    %v528 = vrot.slane %v393, 7
    %v529 = vcombine.low %v392, %v514
    %v530 = vcombine.low %v515, %v516
    %v531 = vcombine.low %v517, %v518
    %v532 = vcombine.low %v519, %v520
    %v534 = vunpack.c.l.s4 1966171168
    %v535 = vunpack.c.0.s8 %v534
    %v536 = vlaneseq
    %v537 = vshrl.u32 %v536, 7
    %v538 = vsub.s32 %v535, %v537
    %v539 = vrot.slane %v529, %v538
    %v541 = vunpack.c.l.s4 1966171168
    %v542 = vunpack.c.0.s8 %v541
    %v543 = vlaneseq
    %v544 = vshrl.u32 %v543, 7
    %v545 = vsub.s32 %v542, %v544
    %v546 = vrot.slane %v530, %v545
    %v548 = vunpack.c.l.s4 1966171168
    %v549 = vunpack.c.0.s8 %v548
    %v550 = vlaneseq
    %v551 = vshrl.u32 %v550, 7
    %v552 = vsub.s32 %v549, %v551
    %v553 = vrot.slane %v531, %v552
    %v555 = vunpack.c.l.s4 1966171168
    %v556 = vunpack.c.0.s8 %v555
    %v557 = vlaneseq
    %v558 = vshrl.u32 %v557, 7
    %v559 = vsub.s32 %v556, %v558
    %v560 = vrot.slane %v532, %v559
    %v561 = vcombine.low %v539, %v546
    %v562 = vcombine.low %v553, %v560
    %v564 = vunpack.c.l.s4 1966171168
    %v565 = vunpack.c.0.s8 %v564
    %v566 = vlaneseq
    %v567 = vshrl.u32 %v566, 7
    %v568 = vsub.s32 %v565, %v567
    %v569 = vrot.slane %v561, %v568
    %v571 = vunpack.c.l.s4 1966171168
    %v572 = vunpack.c.0.s8 %v571
    %v573 = vlaneseq
    %v574 = vshrl.u32 %v573, 7
    %v575 = vsub.s32 %v572, %v574
    %v576 = vrot.slane %v562, %v575
    %v577 = vcombine.low %v569, %v576
    %v578 = vcombine.low %v393, %v522
    %v579 = vcombine.low %v523, %v524
    %v580 = vcombine.low %v525, %v526
    %v581 = vcombine.low %v527, %v528
    %v583 = vunpack.c.l.s4 1966171168
    %v584 = vunpack.c.0.s8 %v583
    %v585 = vlaneseq
    %v586 = vshrl.u32 %v585, 7
    %v587 = vsub.s32 %v584, %v586
    %v588 = vrot.slane %v578, %v587
    %v590 = vunpack.c.l.s4 1966171168
    %v591 = vunpack.c.0.s8 %v590
    %v592 = vlaneseq
    %v593 = vshrl.u32 %v592, 7
    %v594 = vsub.s32 %v591, %v593
    %v595 = vrot.slane %v579, %v594
    %v597 = vunpack.c.l.s4 1966171168
    %v598 = vunpack.c.0.s8 %v597
    %v599 = vlaneseq
    %v600 = vshrl.u32 %v599, 7
    %v601 = vsub.s32 %v598, %v600
    %v602 = vrot.slane %v580, %v601
    %v604 = vunpack.c.l.s4 1966171168
    %v605 = vunpack.c.0.s8 %v604
    %v606 = vlaneseq
    %v607 = vshrl.u32 %v606, 7
    %v608 = vsub.s32 %v605, %v607
    %v609 = vrot.slane %v581, %v608
    %v610 = vcombine.low %v588, %v595
    %v611 = vcombine.low %v602, %v609
    %v613 = vunpack.c.l.s4 1966171168
    %v614 = vunpack.c.0.s8 %v613
    %v615 = vlaneseq
    %v616 = vshrl.u32 %v615, 7
    %v617 = vsub.s32 %v614, %v616
    %v618 = vrot.slane %v610, %v617
    %v620 = vunpack.c.l.s4 1966171168
    %v621 = vunpack.c.0.s8 %v620
    %v622 = vlaneseq
    %v623 = vshrl.u32 %v622, 7
    %v624 = vsub.s32 %v621, %v623
    %v625 = vrot.slane %v611, %v624
    %v626 = vcombine.low %v618, %v625
    %s629 = scalar_lea.vmem [#allocation2], 1
    %630 = vst [vmem:[%s629] ss:$2 sm:$0xff] %v577
    %s631 = scalar_lea.vmem [#allocation2], 17
    %632 = vst [vmem:[%s631] ss:$2 sm:$0xff] %v626
    %v633 = vld [vmem:[#allocation2] sm:$0xff]
    %v634 = vld [vmem:[#allocation2 + $0x8] sm:$0xff]
    %v635 = vld [vmem:[#allocation2 + $0x10] sm:$0xff]
    %v636 = vld [vmem:[#allocation2 + $0x18] sm:$0xff]
    %v637 = vld [vmem:[#allocation9] sm:$0xff]
    %v638 = vld [vmem:[#allocation9 + $0x8] sm:$0xff]
    %v639 = vld [vmem:[#allocation9 + $0x10] sm:$0xff]
    %v640 = vld [vmem:[#allocation9 + $0x18] sm:$0xff]
    %v641 = vld [vmem:[#allocation9 + $0x20] sm:$0xff]
    %v642 = vld [vmem:[#allocation9 + $0x28] sm:$0xff]
    %v643 = vld [vmem:[#allocation9 + $0x30] sm:$0xff]
    %v644 = vld [vmem:[#allocation9 + $0x38] sm:$0xff]
    %v645 = vld [vmem:[#allocation9 + $0x40] sm:$0xff]
    %v646 = vld [vmem:[#allocation9 + $0x48] sm:$0xff]
    %v647 = vld [vmem:[#allocation9 + $0x50] sm:$0xff]
    %v648 = vld [vmem:[#allocation9 + $0x58] sm:$0xff]
    %v649 = vld [vmem:[#allocation9 + $0x60] sm:$0xff]
    %v650 = vld [vmem:[#allocation9 + $0x68] sm:$0xff]
    %v651 = vld [vmem:[#allocation9 + $0x70] sm:$0xff]
    %v652 = vld [vmem:[#allocation9 + $0x78] sm:$0xff]
    %v653 = vld [vmem:[#allocation9 + $0x80] sm:$0xff]
    %v654 = vld [vmem:[#allocation9 + $0x88] sm:$0xff]
    %v655 = vld [vmem:[#allocation9 + $0x90] sm:$0xff]
    %v656 = vld [vmem:[#allocation9 + $0x98] sm:$0xff]
    %v657 = vld [vmem:[#allocation9 + $0xa0] sm:$0xff]
    %v658 = vld [vmem:[#allocation9 + $0xa8] sm:$0xff]
    %v659 = vld [vmem:[#allocation9 + $0xb0] sm:$0xff]
    %v660 = vld [vmem:[#allocation9 + $0xb8] sm:$0xff]
    %v661 = vld [vmem:[#allocation9 + $0xc0] sm:$0xff]
    %v662 = vld [vmem:[#allocation9 + $0xc8] sm:$0xff]
    %v663 = vld [vmem:[#allocation9 + $0xd0] sm:$0xff]
    %v664 = vld [vmem:[#allocation9 + $0xd8] sm:$0xff]
    %v665 = vld [vmem:[#allocation9 + $0xe0] sm:$0xff]
    %v666 = vld [vmem:[#allocation9 + $0xe8] sm:$0xff]
    %v667 = vld [vmem:[#allocation9 + $0xf0] sm:$0xff]
    %v668 = vld [vmem:[#allocation9 + $0xf8] sm:$0xff]
    %v669 = vld [vmem:[#allocation9 + $0x100] sm:$0xff]
    %v670 = vld [vmem:[#allocation9 + $0x108] sm:$0xff]
    %v671 = vld [vmem:[#allocation9 + $0x110] sm:$0xff]
    %v672 = vld [vmem:[#allocation9 + $0x118] sm:$0xff]
    %v673 = vld [vmem:[#allocation9 + $0x120] sm:$0xff]
    %v674 = vld [vmem:[#allocation9 + $0x128] sm:$0xff]
    %v675 = vld [vmem:[#allocation9 + $0x130] sm:$0xff]
    %v676 = vld [vmem:[#allocation9 + $0x138] sm:$0xff]
    %v677 = vld [vmem:[#allocation9 + $0x140] sm:$0xff]
    %v678 = vld [vmem:[#allocation9 + $0x148] sm:$0xff]
    %v679 = vld [vmem:[#allocation9 + $0x150] sm:$0xff]
    %v680 = vld [vmem:[#allocation9 + $0x158] sm:$0xff]
    %v681 = vld [vmem:[#allocation9 + $0x160] sm:$0xff]
    %v682 = vld [vmem:[#allocation9 + $0x168] sm:$0xff]
    %v683 = vld [vmem:[#allocation9 + $0x170] sm:$0xff]
    %v684 = vld [vmem:[#allocation9 + $0x178] sm:$0xff]
    %v685 = vld [vmem:[#allocation9 + $0x180] sm:$0xff]
    %v686 = vld [vmem:[#allocation9 + $0x188] sm:$0xff]
    %v687 = vld [vmem:[#allocation9 + $0x190] sm:$0xff]
    %v688 = vld [vmem:[#allocation9 + $0x198] sm:$0xff]
    %v689 = vld [vmem:[#allocation9 + $0x1a0] sm:$0xff]
    %v690 = vld [vmem:[#allocation9 + $0x1a8] sm:$0xff]
    %v691 = vld [vmem:[#allocation9 + $0x1b0] sm:$0xff]
    %v692 = vld [vmem:[#allocation9 + $0x1b8] sm:$0xff]
    %v693 = vld [vmem:[#allocation9 + $0x1c0] sm:$0xff]
    %v694 = vld [vmem:[#allocation9 + $0x1c8] sm:$0xff]
    %v695 = vld [vmem:[#allocation9 + $0x1d0] sm:$0xff]
    %v696 = vld [vmem:[#allocation9 + $0x1d8] sm:$0xff]
    %v697 = vld [vmem:[#allocation9 + $0x1e0] sm:$0xff]
    %v698 = vld [vmem:[#allocation9 + $0x1e8] sm:$0xff]
    %v699 = vld [vmem:[#allocation9 + $0x1f0] sm:$0xff]
    %v700 = vld [vmem:[#allocation9 + $0x1f8] sm:$0xff]
    %v701 = vld [vmem:[#allocation9 + $0x200] sm:$0xff]
    %v702 = vld [vmem:[#allocation9 + $0x208] sm:$0xff]
    %v703 = vld [vmem:[#allocation9 + $0x210] sm:$0xff]
    %v704 = vld [vmem:[#allocation9 + $0x218] sm:$0xff]
    %v705 = vld [vmem:[#allocation9 + $0x220] sm:$0xff]
    %v706 = vld [vmem:[#allocation9 + $0x228] sm:$0xff]
    %v707 = vld [vmem:[#allocation9 + $0x230] sm:$0xff]
    %v708 = vld [vmem:[#allocation9 + $0x238] sm:$0xff]
    %v709 = vld [vmem:[#allocation9 + $0x240] sm:$0xff]
    %v710 = vld [vmem:[#allocation9 + $0x248] sm:$0xff]
    %v711 = vld [vmem:[#allocation9 + $0x250] sm:$0xff]
    %v712 = vld [vmem:[#allocation9 + $0x258] sm:$0xff]
    %v713 = vld [vmem:[#allocation9 + $0x260] sm:$0xff]
    %v714 = vld [vmem:[#allocation9 + $0x268] sm:$0xff]
    %v715 = vld [vmem:[#allocation9 + $0x270] sm:$0xff]
    %v716 = vld [vmem:[#allocation9 + $0x278] sm:$0xff]
    %v717 = vld [vmem:[#allocation9 + $0x280] sm:$0xff]
    %v718 = vld [vmem:[#allocation9 + $0x288] sm:$0xff]
    %v719 = vld [vmem:[#allocation9 + $0x290] sm:$0xff]
    %v720 = vld [vmem:[#allocation9 + $0x298] sm:$0xff]
    %v721 = vld [vmem:[#allocation9 + $0x2a0] sm:$0xff]
    %v722 = vld [vmem:[#allocation9 + $0x2a8] sm:$0xff]
    %v723 = vld [vmem:[#allocation9 + $0x2b0] sm:$0xff]
    %v724 = vld [vmem:[#allocation9 + $0x2b8] sm:$0xff]
    %v725 = vld [vmem:[#allocation9 + $0x2c0] sm:$0xff]
    %v726 = vld [vmem:[#allocation9 + $0x2c8] sm:$0xff]
    %v727 = vld [vmem:[#allocation9 + $0x2d0] sm:$0xff]
    %v728 = vld [vmem:[#allocation9 + $0x2d8] sm:$0xff]
    %v729 = vld [vmem:[#allocation9 + $0x2e0] sm:$0xff]
    %v730 = vld [vmem:[#allocation9 + $0x2e8] sm:$0xff]
    %v731 = vld [vmem:[#allocation9 + $0x2f0] sm:$0xff]
    %v732 = vld [vmem:[#allocation9 + $0x2f8] sm:$0xff]
    %v733 = vld [vmem:[#allocation9 + $0x300] sm:$0xff]
    %v734 = vld [vmem:[#allocation9 + $0x308] sm:$0xff]
    %v735 = vld [vmem:[#allocation9 + $0x310] sm:$0xff]
    %v736 = vld [vmem:[#allocation9 + $0x318] sm:$0xff]
    %v737 = vld [vmem:[#allocation9 + $0x320] sm:$0xff]
    %v738 = vld [vmem:[#allocation9 + $0x328] sm:$0xff]
    %v739 = vld [vmem:[#allocation9 + $0x330] sm:$0xff]
    %v740 = vld [vmem:[#allocation9 + $0x338] sm:$0xff]
    %v741 = vld [vmem:[#allocation9 + $0x340] sm:$0xff]
    %v742 = vld [vmem:[#allocation9 + $0x348] sm:$0xff]
    %v743 = vld [vmem:[#allocation9 + $0x350] sm:$0xff]
    %v744 = vld [vmem:[#allocation9 + $0x358] sm:$0xff]
    %v745 = vld [vmem:[#allocation9 + $0x360] sm:$0xff]
    %v746 = vld [vmem:[#allocation9 + $0x368] sm:$0xff]
    %v747 = vld [vmem:[#allocation9 + $0x370] sm:$0xff]
    %v748 = vld [vmem:[#allocation9 + $0x378] sm:$0xff]
    %v749 = vld [vmem:[#allocation9 + $0x380] sm:$0xff]
    %v750 = vld [vmem:[#allocation9 + $0x388] sm:$0xff]
    %v751 = vld [vmem:[#allocation9 + $0x390] sm:$0xff]
    %v752 = vld [vmem:[#allocation9 + $0x398] sm:$0xff]
    %v753 = vld [vmem:[#allocation9 + $0x3a0] sm:$0xff]
    %v754 = vld [vmem:[#allocation9 + $0x3a8] sm:$0xff]
    %v755 = vld [vmem:[#allocation9 + $0x3b0] sm:$0xff]
    %v756 = vld [vmem:[#allocation9 + $0x3b8] sm:$0xff]
    %v757 = vld [vmem:[#allocation9 + $0x3c0] sm:$0xff]
    %v758 = vld [vmem:[#allocation9 + $0x3c8] sm:$0xff]
    %v759 = vld [vmem:[#allocation9 + $0x3d0] sm:$0xff]
    %v760 = vld [vmem:[#allocation9 + $0x3d8] sm:$0xff]
    %v761 = vld [vmem:[#allocation9 + $0x3e0] sm:$0xff]
    %v762 = vld [vmem:[#allocation9 + $0x3e8] sm:$0xff]
    %v763 = vld [vmem:[#allocation9 + $0x3f0] sm:$0xff]
    %v764 = vld [vmem:[#allocation9 + $0x3f8] sm:$0xff]
    %v765 = vld [vmem:[#allocation9 + $0x400] sm:$0xff]
    %v766 = vld [vmem:[#allocation9 + $0x408] sm:$0xff]
    %v767 = vld [vmem:[#allocation9 + $0x410] sm:$0xff]
    %v768 = vld [vmem:[#allocation9 + $0x418] sm:$0xff]
    %v769 = vld [vmem:[#allocation9 + $0x420] sm:$0xff]
    %v770 = vld [vmem:[#allocation9 + $0x428] sm:$0xff]
    %v771 = vld [vmem:[#allocation9 + $0x430] sm:$0xff]
    %v772 = vld [vmem:[#allocation9 + $0x438] sm:$0xff]
    %v773 = vld [vmem:[#allocation9 + $0x440] sm:$0xff]
    %v774 = vld [vmem:[#allocation9 + $0x448] sm:$0xff]
    %v775 = vld [vmem:[#allocation9 + $0x450] sm:$0xff]
    %v776 = vld [vmem:[#allocation9 + $0x458] sm:$0xff]
    %v777 = vld [vmem:[#allocation9 + $0x460] sm:$0xff]
    %v778 = vld [vmem:[#allocation9 + $0x468] sm:$0xff]
    %v779 = vld [vmem:[#allocation9 + $0x470] sm:$0xff]
    %v780 = vld [vmem:[#allocation9 + $0x478] sm:$0xff]
    %v781 = vld [vmem:[#allocation9 + $0x480] sm:$0xff]
    %v782 = vld [vmem:[#allocation9 + $0x488] sm:$0xff]
    %v783 = vld [vmem:[#allocation9 + $0x490] sm:$0xff]
    %v784 = vld [vmem:[#allocation9 + $0x498] sm:$0xff]
    %v785 = vld [vmem:[#allocation9 + $0x4a0] sm:$0xff]
    %v786 = vld [vmem:[#allocation9 + $0x4a8] sm:$0xff]
    %v787 = vld [vmem:[#allocation9 + $0x4b0] sm:$0xff]
    %v788 = vld [vmem:[#allocation9 + $0x4b8] sm:$0xff]
    %v789 = vld [vmem:[#allocation9 + $0x4c0] sm:$0xff]
    %v790 = vld [vmem:[#allocation9 + $0x4c8] sm:$0xff]
    %v791 = vld [vmem:[#allocation9 + $0x4d0] sm:$0xff]
    %v792 = vld [vmem:[#allocation9 + $0x4d8] sm:$0xff]
    %v793 = vld [vmem:[#allocation9 + $0x4e0] sm:$0xff]
    %v794 = vld [vmem:[#allocation9 + $0x4e8] sm:$0xff]
    %v795 = vld [vmem:[#allocation9 + $0x4f0] sm:$0xff]
    %v796 = vld [vmem:[#allocation9 + $0x4f8] sm:$0xff]
    %v797 = vld [vmem:[#allocation9 + $0x500] sm:$0xff]
    %v798 = vld [vmem:[#allocation9 + $0x508] sm:$0xff]
    %v799 = vld [vmem:[#allocation9 + $0x510] sm:$0xff]
    %v800 = vld [vmem:[#allocation9 + $0x518] sm:$0xff]
    %v801 = vld [vmem:[#allocation9 + $0x520] sm:$0xff]
    %v802 = vld [vmem:[#allocation9 + $0x528] sm:$0xff]
    %v803 = vld [vmem:[#allocation9 + $0x530] sm:$0xff]
    %v804 = vld [vmem:[#allocation9 + $0x538] sm:$0xff]
    %v805 = vld [vmem:[#allocation9 + $0x540] sm:$0xff]
    %v806 = vld [vmem:[#allocation9 + $0x548] sm:$0xff]
    %v807 = vld [vmem:[#allocation9 + $0x550] sm:$0xff]
    %v808 = vld [vmem:[#allocation9 + $0x558] sm:$0xff]
    %v809 = vld [vmem:[#allocation9 + $0x560] sm:$0xff]
    %v810 = vld [vmem:[#allocation9 + $0x568] sm:$0xff]
    %v811 = vld [vmem:[#allocation9 + $0x570] sm:$0xff]
    %v812 = vld [vmem:[#allocation9 + $0x578] sm:$0xff]
    %v813 = vld [vmem:[#allocation9 + $0x580] sm:$0xff]
    %v814 = vld [vmem:[#allocation9 + $0x588] sm:$0xff]
    %v815 = vld [vmem:[#allocation9 + $0x590] sm:$0xff]
    %v816 = vld [vmem:[#allocation9 + $0x598] sm:$0xff]
    %v817 = vld [vmem:[#allocation9 + $0x5a0] sm:$0xff]
    %v818 = vld [vmem:[#allocation9 + $0x5a8] sm:$0xff]
    %v819 = vld [vmem:[#allocation9 + $0x5b0] sm:$0xff]
    %v820 = vld [vmem:[#allocation9 + $0x5b8] sm:$0xff]
    %v821 = vld [vmem:[#allocation9 + $0x5c0] sm:$0xff]
    %v822 = vld [vmem:[#allocation9 + $0x5c8] sm:$0xff]
    %v823 = vld [vmem:[#allocation9 + $0x5d0] sm:$0xff]
    %v824 = vld [vmem:[#allocation9 + $0x5d8] sm:$0xff]
    %v825 = vld [vmem:[#allocation9 + $0x5e0] sm:$0xff]
    %v826 = vld [vmem:[#allocation9 + $0x5e8] sm:$0xff]
    %v827 = vld [vmem:[#allocation9 + $0x5f0] sm:$0xff]
    %v828 = vld [vmem:[#allocation9 + $0x5f8] sm:$0xff]
    %v829 = vld [vmem:[#allocation9 + $0x600] sm:$0xff]
    %v830 = vld [vmem:[#allocation9 + $0x608] sm:$0xff]
    %v831 = vld [vmem:[#allocation9 + $0x610] sm:$0xff]
    %v832 = vld [vmem:[#allocation9 + $0x618] sm:$0xff]
    %v833 = vld [vmem:[#allocation9 + $0x620] sm:$0xff]
    %v834 = vld [vmem:[#allocation9 + $0x628] sm:$0xff]
    %v835 = vld [vmem:[#allocation9 + $0x630] sm:$0xff]
    %v836 = vld [vmem:[#allocation9 + $0x638] sm:$0xff]
    %v837 = vld [vmem:[#allocation9 + $0x640] sm:$0xff]
    %v838 = vld [vmem:[#allocation9 + $0x648] sm:$0xff]
    %v839 = vld [vmem:[#allocation9 + $0x650] sm:$0xff]
    %v840 = vld [vmem:[#allocation9 + $0x658] sm:$0xff]
    %v841 = vld [vmem:[#allocation9 + $0x660] sm:$0xff]
    %v842 = vld [vmem:[#allocation9 + $0x668] sm:$0xff]
    %v843 = vld [vmem:[#allocation9 + $0x670] sm:$0xff]
    %v844 = vld [vmem:[#allocation9 + $0x678] sm:$0xff]
    %v845 = vld [vmem:[#allocation9 + $0x680] sm:$0xff]
    %v846 = vld [vmem:[#allocation9 + $0x688] sm:$0xff]
    %v847 = vld [vmem:[#allocation9 + $0x690] sm:$0xff]
    %v848 = vld [vmem:[#allocation9 + $0x698] sm:$0xff]
    %v849 = vld [vmem:[#allocation9 + $0x6a0] sm:$0xff]
    %v850 = vld [vmem:[#allocation9 + $0x6a8] sm:$0xff]
    %v851 = vld [vmem:[#allocation9 + $0x6b0] sm:$0xff]
    %v852 = vld [vmem:[#allocation9 + $0x6b8] sm:$0xff]
    %v853 = vld [vmem:[#allocation9 + $0x6c0] sm:$0xff]
    %v854 = vld [vmem:[#allocation9 + $0x6c8] sm:$0xff]
    %v855 = vld [vmem:[#allocation9 + $0x6d0] sm:$0xff]
    %v856 = vld [vmem:[#allocation9 + $0x6d8] sm:$0xff]
    %v857 = vld [vmem:[#allocation9 + $0x6e0] sm:$0xff]
    %v858 = vld [vmem:[#allocation9 + $0x6e8] sm:$0xff]
    %v859 = vld [vmem:[#allocation9 + $0x6f0] sm:$0xff]
    %v860 = vld [vmem:[#allocation9 + $0x6f8] sm:$0xff]
    %v861 = vld [vmem:[#allocation9 + $0x700] sm:$0xff]
    %v862 = vld [vmem:[#allocation9 + $0x708] sm:$0xff]
    %v863 = vld [vmem:[#allocation9 + $0x710] sm:$0xff]
    %v864 = vld [vmem:[#allocation9 + $0x718] sm:$0xff]
    %v865 = vld [vmem:[#allocation9 + $0x720] sm:$0xff]
    %v866 = vld [vmem:[#allocation9 + $0x728] sm:$0xff]
    %v867 = vld [vmem:[#allocation9 + $0x730] sm:$0xff]
    %v868 = vld [vmem:[#allocation9 + $0x738] sm:$0xff]
    %v869 = vld [vmem:[#allocation9 + $0x740] sm:$0xff]
    %v870 = vld [vmem:[#allocation9 + $0x748] sm:$0xff]
    %v871 = vld [vmem:[#allocation9 + $0x750] sm:$0xff]
    %v872 = vld [vmem:[#allocation9 + $0x758] sm:$0xff]
    %v873 = vld [vmem:[#allocation9 + $0x760] sm:$0xff]
    %v874 = vld [vmem:[#allocation9 + $0x768] sm:$0xff]
    %v875 = vld [vmem:[#allocation9 + $0x770] sm:$0xff]
    %v876 = vld [vmem:[#allocation9 + $0x778] sm:$0xff]
    %v877 = vld [vmem:[#allocation9 + $0x780] sm:$0xff]
    %v878 = vld [vmem:[#allocation9 + $0x788] sm:$0xff]
    %v879 = vld [vmem:[#allocation9 + $0x790] sm:$0xff]
    %v880 = vld [vmem:[#allocation9 + $0x798] sm:$0xff]
    %v881 = vld [vmem:[#allocation9 + $0x7a0] sm:$0xff]
    %v882 = vld [vmem:[#allocation9 + $0x7a8] sm:$0xff]
    %v883 = vld [vmem:[#allocation9 + $0x7b0] sm:$0xff]
    %v884 = vld [vmem:[#allocation9 + $0x7b8] sm:$0xff]
    %v885 = vld [vmem:[#allocation9 + $0x7c0] sm:$0xff]
    %v886 = vld [vmem:[#allocation9 + $0x7c8] sm:$0xff]
    %v887 = vld [vmem:[#allocation9 + $0x7d0] sm:$0xff]
    %v888 = vld [vmem:[#allocation9 + $0x7d8] sm:$0xff]
    %v889 = vld [vmem:[#allocation9 + $0x7e0] sm:$0xff]
    %v890 = vld [vmem:[#allocation9 + $0x7e8] sm:$0xff]
    %v891 = vld [vmem:[#allocation9 + $0x7f0] sm:$0xff]
    %v892 = vld [vmem:[#allocation9 + $0x7f8] sm:$0xff]
    %v893 = vld [vmem:[#allocation9 + $0x800] sm:$0xff]
    %v894 = vld [vmem:[#allocation9 + $0x808] sm:$0xff]
    %v895 = vld [vmem:[#allocation9 + $0x810] sm:$0xff]
    %v896 = vld [vmem:[#allocation9 + $0x818] sm:$0xff]
    %v897 = vld [vmem:[#allocation9 + $0x820] sm:$0xff]
    %v898 = vld [vmem:[#allocation9 + $0x828] sm:$0xff]
    %v899 = vld [vmem:[#allocation9 + $0x830] sm:$0xff]
    %v900 = vld [vmem:[#allocation9 + $0x838] sm:$0xff]
    %v901 = vld [vmem:[#allocation9 + $0x840] sm:$0xff]
    %v902 = vld [vmem:[#allocation9 + $0x848] sm:$0xff]
    %v903 = vld [vmem:[#allocation9 + $0x850] sm:$0xff]
    %v904 = vld [vmem:[#allocation9 + $0x858] sm:$0xff]
    %v905 = vld [vmem:[#allocation9 + $0x860] sm:$0xff]
    %v906 = vld [vmem:[#allocation9 + $0x868] sm:$0xff]
    %v907 = vld [vmem:[#allocation9 + $0x870] sm:$0xff]
    %v908 = vld [vmem:[#allocation9 + $0x878] sm:$0xff]
    %v909 = vld [vmem:[#allocation9 + $0x880] sm:$0xff]
    %v910 = vld [vmem:[#allocation9 + $0x888] sm:$0xff]
    %v911 = vld [vmem:[#allocation9 + $0x890] sm:$0xff]
    %v912 = vld [vmem:[#allocation9 + $0x898] sm:$0xff]
    %v913 = vld [vmem:[#allocation9 + $0x8a0] sm:$0xff]
    %v914 = vld [vmem:[#allocation9 + $0x8a8] sm:$0xff]
    %v915 = vld [vmem:[#allocation9 + $0x8b0] sm:$0xff]
    %v916 = vld [vmem:[#allocation9 + $0x8b8] sm:$0xff]
    %v917 = vld [vmem:[#allocation9 + $0x8c0] sm:$0xff]
    %v918 = vld [vmem:[#allocation9 + $0x8c8] sm:$0xff]
    %v919 = vld [vmem:[#allocation9 + $0x8d0] sm:$0xff]
    %v920 = vld [vmem:[#allocation9 + $0x8d8] sm:$0xff]
    %v921 = vld [vmem:[#allocation9 + $0x8e0] sm:$0xff]
    %v922 = vld [vmem:[#allocation9 + $0x8e8] sm:$0xff]
    %v923 = vld [vmem:[#allocation9 + $0x8f0] sm:$0xff]
    %v924 = vld [vmem:[#allocation9 + $0x8f8] sm:$0xff]
    %v925 = vld [vmem:[#allocation9 + $0x900] sm:$0xff]
    %v926 = vld [vmem:[#allocation9 + $0x908] sm:$0xff]
    %v927 = vld [vmem:[#allocation9 + $0x910] sm:$0xff]
    %v928 = vld [vmem:[#allocation9 + $0x918] sm:$0xff]
    %v929 = vld [vmem:[#allocation9 + $0x920] sm:$0xff]
    %v930 = vld [vmem:[#allocation9 + $0x928] sm:$0xff]
    %v931 = vld [vmem:[#allocation9 + $0x930] sm:$0xff]
    %v932 = vld [vmem:[#allocation9 + $0x938] sm:$0xff]
    %v933 = vld [vmem:[#allocation9 + $0x940] sm:$0xff]
    %v934 = vld [vmem:[#allocation9 + $0x948] sm:$0xff]
    %v935 = vld [vmem:[#allocation9 + $0x950] sm:$0xff]
    %v936 = vld [vmem:[#allocation9 + $0x958] sm:$0xff]
    %v937 = vld [vmem:[#allocation9 + $0x960] sm:$0xff]
    %v938 = vld [vmem:[#allocation9 + $0x968] sm:$0xff]
    %v939 = vld [vmem:[#allocation9 + $0x970] sm:$0xff]
    %v940 = vld [vmem:[#allocation9 + $0x978] sm:$0xff]
    %v941 = vld [vmem:[#allocation9 + $0x980] sm:$0xff]
    %v942 = vld [vmem:[#allocation9 + $0x988] sm:$0xff]
    %v943 = vld [vmem:[#allocation9 + $0x990] sm:$0xff]
    %v944 = vld [vmem:[#allocation9 + $0x998] sm:$0xff]
    %v945 = vld [vmem:[#allocation9 + $0x9a0] sm:$0xff]
    %v946 = vld [vmem:[#allocation9 + $0x9a8] sm:$0xff]
    %v947 = vld [vmem:[#allocation9 + $0x9b0] sm:$0xff]
    %v948 = vld [vmem:[#allocation9 + $0x9b8] sm:$0xff]
    %v949 = vld [vmem:[#allocation9 + $0x9c0] sm:$0xff]
    %v950 = vld [vmem:[#allocation9 + $0x9c8] sm:$0xff]
    %v951 = vld [vmem:[#allocation9 + $0x9d0] sm:$0xff]
    %v952 = vld [vmem:[#allocation9 + $0x9d8] sm:$0xff]
    %v953 = vld [vmem:[#allocation9 + $0x9e0] sm:$0xff]
    %v954 = vld [vmem:[#allocation9 + $0x9e8] sm:$0xff]
    %v955 = vld [vmem:[#allocation9 + $0x9f0] sm:$0xff]
    %v956 = vld [vmem:[#allocation9 + $0x9f8] sm:$0xff]
    %v957 = vld [vmem:[#allocation9 + $0xa00] sm:$0xff]
    %v958 = vld [vmem:[#allocation9 + $0xa08] sm:$0xff]
    %v959 = vld [vmem:[#allocation9 + $0xa10] sm:$0xff]
    %v960 = vld [vmem:[#allocation9 + $0xa18] sm:$0xff]
    %v961 = vld [vmem:[#allocation9 + $0xa20] sm:$0xff]
    %v962 = vld [vmem:[#allocation9 + $0xa28] sm:$0xff]
    %v963 = vld [vmem:[#allocation9 + $0xa30] sm:$0xff]
    %v964 = vld [vmem:[#allocation9 + $0xa38] sm:$0xff]
    %v965 = vld [vmem:[#allocation9 + $0xa40] sm:$0xff]
    %v966 = vld [vmem:[#allocation9 + $0xa48] sm:$0xff]
    %v967 = vld [vmem:[#allocation9 + $0xa50] sm:$0xff]
    %v968 = vld [vmem:[#allocation9 + $0xa58] sm:$0xff]
    %v969 = vld [vmem:[#allocation9 + $0xa60] sm:$0xff]
    %v970 = vld [vmem:[#allocation9 + $0xa68] sm:$0xff]
    %v971 = vld [vmem:[#allocation9 + $0xa70] sm:$0xff]
    %v972 = vld [vmem:[#allocation9 + $0xa78] sm:$0xff]
    %v973 = vld [vmem:[#allocation9 + $0xa80] sm:$0xff]
    %v974 = vld [vmem:[#allocation9 + $0xa88] sm:$0xff]
    %v975 = vld [vmem:[#allocation9 + $0xa90] sm:$0xff]
    %v976 = vld [vmem:[#allocation9 + $0xa98] sm:$0xff]
    %v977 = vld [vmem:[#allocation9 + $0xaa0] sm:$0xff]
    %v978 = vld [vmem:[#allocation9 + $0xaa8] sm:$0xff]
    %v979 = vld [vmem:[#allocation9 + $0xab0] sm:$0xff]
    %v980 = vld [vmem:[#allocation9 + $0xab8] sm:$0xff]
    %v981 = vld [vmem:[#allocation9 + $0xac0] sm:$0xff]
    %v982 = vld [vmem:[#allocation9 + $0xac8] sm:$0xff]
    %v983 = vld [vmem:[#allocation9 + $0xad0] sm:$0xff]
    %v984 = vld [vmem:[#allocation9 + $0xad8] sm:$0xff]
    %v985 = vld [vmem:[#allocation9 + $0xae0] sm:$0xff]
    %v986 = vld [vmem:[#allocation9 + $0xae8] sm:$0xff]
    %v987 = vld [vmem:[#allocation9 + $0xaf0] sm:$0xff]
    %v988 = vld [vmem:[#allocation9 + $0xaf8] sm:$0xff]
    %v989 = vld [vmem:[#allocation9 + $0xb00] sm:$0xff]
    %v990 = vld [vmem:[#allocation9 + $0xb08] sm:$0xff]
    %v991 = vld [vmem:[#allocation9 + $0xb10] sm:$0xff]
    %v992 = vld [vmem:[#allocation9 + $0xb18] sm:$0xff]
    %v993 = vld [vmem:[#allocation9 + $0xb20] sm:$0xff]
    %v994 = vld [vmem:[#allocation9 + $0xb28] sm:$0xff]
    %v995 = vld [vmem:[#allocation9 + $0xb30] sm:$0xff]
    %v996 = vld [vmem:[#allocation9 + $0xb38] sm:$0xff]
    %v997 = vld [vmem:[#allocation9 + $0xb40] sm:$0xff]
    %v998 = vld [vmem:[#allocation9 + $0xb48] sm:$0xff]
    %v999 = vld [vmem:[#allocation9 + $0xb50] sm:$0xff]
    %v1000 = vld [vmem:[#allocation9 + $0xb58] sm:$0xff]
    %v1001 = vld [vmem:[#allocation9 + $0xb60] sm:$0xff]
    %v1002 = vld [vmem:[#allocation9 + $0xb68] sm:$0xff]
    %v1003 = vld [vmem:[#allocation9 + $0xb70] sm:$0xff]
    %v1004 = vld [vmem:[#allocation9 + $0xb78] sm:$0xff]
    %v1005 = vld [vmem:[#allocation9 + $0xb80] sm:$0xff]
    %v1006 = vld [vmem:[#allocation9 + $0xb88] sm:$0xff]
    %v1007 = vld [vmem:[#allocation9 + $0xb90] sm:$0xff]
    %v1008 = vld [vmem:[#allocation9 + $0xb98] sm:$0xff]
    %v1009 = vld [vmem:[#allocation9 + $0xba0] sm:$0xff]
    %v1010 = vld [vmem:[#allocation9 + $0xba8] sm:$0xff]
    %v1011 = vld [vmem:[#allocation9 + $0xbb0] sm:$0xff]
    %v1012 = vld [vmem:[#allocation9 + $0xbb8] sm:$0xff]
    %v1013 = vld [vmem:[#allocation9 + $0xbc0] sm:$0xff]
    %v1014 = vld [vmem:[#allocation9 + $0xbc8] sm:$0xff]
    %v1015 = vld [vmem:[#allocation9 + $0xbd0] sm:$0xff]
    %v1016 = vld [vmem:[#allocation9 + $0xbd8] sm:$0xff]
    %v1017 = vld [vmem:[#allocation9 + $0xbe0] sm:$0xff]
    %v1018 = vld [vmem:[#allocation9 + $0xbe8] sm:$0xff]
    %v1019 = vld [vmem:[#allocation9 + $0xbf0] sm:$0xff]
    %v1020 = vld [vmem:[#allocation9 + $0xbf8] sm:$0xff]
    %v1021 = vld [vmem:[#allocation9 + $0xc00] sm:$0xff]
    %v1022 = vld [vmem:[#allocation9 + $0xc08] sm:$0xff]
    %v1023 = vld [vmem:[#allocation9 + $0xc10] sm:$0xff]
    %v1024 = vld [vmem:[#allocation9 + $0xc18] sm:$0xff]
    %v1025 = vld [vmem:[#allocation9 + $0xc20] sm:$0xff]
    %v1026 = vld [vmem:[#allocation9 + $0xc28] sm:$0xff]
    %v1027 = vld [vmem:[#allocation9 + $0xc30] sm:$0xff]
    %v1028 = vld [vmem:[#allocation9 + $0xc38] sm:$0xff]
    %v1029 = vld [vmem:[#allocation9 + $0xc40] sm:$0xff]
    %v1030 = vld [vmem:[#allocation9 + $0xc48] sm:$0xff]
    %v1031 = vld [vmem:[#allocation9 + $0xc50] sm:$0xff]
    %v1032 = vld [vmem:[#allocation9 + $0xc58] sm:$0xff]
    %v1033 = vld [vmem:[#allocation9 + $0xc60] sm:$0xff]
    %v1034 = vld [vmem:[#allocation9 + $0xc68] sm:$0xff]
    %v1035 = vld [vmem:[#allocation9 + $0xc70] sm:$0xff]
    %v1036 = vld [vmem:[#allocation9 + $0xc78] sm:$0xff]
    %v1037 = vld [vmem:[#allocation9 + $0xc80] sm:$0xff]
    %v1038 = vld [vmem:[#allocation9 + $0xc88] sm:$0xff]
    %v1039 = vld [vmem:[#allocation9 + $0xc90] sm:$0xff]
    %v1040 = vld [vmem:[#allocation9 + $0xc98] sm:$0xff]
    %v1041 = vld [vmem:[#allocation9 + $0xca0] sm:$0xff]
    %v1042 = vld [vmem:[#allocation9 + $0xca8] sm:$0xff]
    %v1043 = vld [vmem:[#allocation9 + $0xcb0] sm:$0xff]
    %v1044 = vld [vmem:[#allocation9 + $0xcb8] sm:$0xff]
    %v1045 = vld [vmem:[#allocation9 + $0xcc0] sm:$0xff]
    %v1046 = vld [vmem:[#allocation9 + $0xcc8] sm:$0xff]
    %v1047 = vld [vmem:[#allocation9 + $0xcd0] sm:$0xff]
    %v1048 = vld [vmem:[#allocation9 + $0xcd8] sm:$0xff]
    %v1049 = vld [vmem:[#allocation9 + $0xce0] sm:$0xff]
    %v1050 = vld [vmem:[#allocation9 + $0xce8] sm:$0xff]
    %v1051 = vld [vmem:[#allocation9 + $0xcf0] sm:$0xff]
    %v1052 = vld [vmem:[#allocation9 + $0xcf8] sm:$0xff]
    %v1053 = vld [vmem:[#allocation9 + $0xd00] sm:$0xff]
    %v1054 = vld [vmem:[#allocation9 + $0xd08] sm:$0xff]
    %v1055 = vld [vmem:[#allocation9 + $0xd10] sm:$0xff]
    %v1056 = vld [vmem:[#allocation9 + $0xd18] sm:$0xff]
    %v1057 = vld [vmem:[#allocation9 + $0xd20] sm:$0xff]
    %v1058 = vld [vmem:[#allocation9 + $0xd28] sm:$0xff]
    %v1059 = vld [vmem:[#allocation9 + $0xd30] sm:$0xff]
    %v1060 = vld [vmem:[#allocation9 + $0xd38] sm:$0xff]
    %v1061 = vld [vmem:[#allocation9 + $0xd40] sm:$0xff]
    %v1062 = vld [vmem:[#allocation9 + $0xd48] sm:$0xff]
    %v1063 = vld [vmem:[#allocation9 + $0xd50] sm:$0xff]
    %v1064 = vld [vmem:[#allocation9 + $0xd58] sm:$0xff]
    %v1065 = vld [vmem:[#allocation9 + $0xd60] sm:$0xff]
    %v1066 = vld [vmem:[#allocation9 + $0xd68] sm:$0xff]
    %v1067 = vld [vmem:[#allocation9 + $0xd70] sm:$0xff]
    %v1068 = vld [vmem:[#allocation9 + $0xd78] sm:$0xff]
    %v1069 = vld [vmem:[#allocation9 + $0xd80] sm:$0xff]
    %v1070 = vld [vmem:[#allocation9 + $0xd88] sm:$0xff]
    %v1071 = vld [vmem:[#allocation9 + $0xd90] sm:$0xff]
    %v1072 = vld [vmem:[#allocation9 + $0xd98] sm:$0xff]
    %v1073 = vld [vmem:[#allocation9 + $0xda0] sm:$0xff]
    %v1074 = vld [vmem:[#allocation9 + $0xda8] sm:$0xff]
    %v1075 = vld [vmem:[#allocation9 + $0xdb0] sm:$0xff]
    %v1076 = vld [vmem:[#allocation9 + $0xdb8] sm:$0xff]
    %v1077 = vld [vmem:[#allocation9 + $0xdc0] sm:$0xff]
    %v1078 = vld [vmem:[#allocation9 + $0xdc8] sm:$0xff]
    %v1079 = vld [vmem:[#allocation9 + $0xdd0] sm:$0xff]
    %v1080 = vld [vmem:[#allocation9 + $0xdd8] sm:$0xff]
    %v1081 = vld [vmem:[#allocation9 + $0xde0] sm:$0xff]
    %v1082 = vld [vmem:[#allocation9 + $0xde8] sm:$0xff]
    %v1083 = vld [vmem:[#allocation9 + $0xdf0] sm:$0xff]
    %v1084 = vld [vmem:[#allocation9 + $0xdf8] sm:$0xff]
    %v1085 = vld [vmem:[#allocation9 + $0xe00] sm:$0xff]
    %v1086 = vld [vmem:[#allocation9 + $0xe08] sm:$0xff]
    %v1087 = vld [vmem:[#allocation9 + $0xe10] sm:$0xff]
    %v1088 = vld [vmem:[#allocation9 + $0xe18] sm:$0xff]
    %v1089 = vld [vmem:[#allocation9 + $0xe20] sm:$0xff]
    %v1090 = vld [vmem:[#allocation9 + $0xe28] sm:$0xff]
    %v1091 = vld [vmem:[#allocation9 + $0xe30] sm:$0xff]
    %v1092 = vld [vmem:[#allocation9 + $0xe38] sm:$0xff]
    %v1093 = vld [vmem:[#allocation9 + $0xe40] sm:$0xff]
    %v1094 = vld [vmem:[#allocation9 + $0xe48] sm:$0xff]
    %v1095 = vld [vmem:[#allocation9 + $0xe50] sm:$0xff]
    %v1096 = vld [vmem:[#allocation9 + $0xe58] sm:$0xff]
    %v1097 = vld [vmem:[#allocation9 + $0xe60] sm:$0xff]
    %v1098 = vld [vmem:[#allocation9 + $0xe68] sm:$0xff]
    %v1099 = vld [vmem:[#allocation9 + $0xe70] sm:$0xff]
    %v1100 = vld [vmem:[#allocation9 + $0xe78] sm:$0xff]
    %v1101 = vld [vmem:[#allocation9 + $0xe80] sm:$0xff]
    %v1102 = vld [vmem:[#allocation9 + $0xe88] sm:$0xff]
    %v1103 = vld [vmem:[#allocation9 + $0xe90] sm:$0xff]
    %v1104 = vld [vmem:[#allocation9 + $0xe98] sm:$0xff]
    %v1105 = vld [vmem:[#allocation9 + $0xea0] sm:$0xff]
    %v1106 = vld [vmem:[#allocation9 + $0xea8] sm:$0xff]
    %v1107 = vld [vmem:[#allocation9 + $0xeb0] sm:$0xff]
    %v1108 = vld [vmem:[#allocation9 + $0xeb8] sm:$0xff]
    %v1109 = vld [vmem:[#allocation9 + $0xec0] sm:$0xff]
    %v1110 = vld [vmem:[#allocation9 + $0xec8] sm:$0xff]
    %v1111 = vld [vmem:[#allocation9 + $0xed0] sm:$0xff]
    %v1112 = vld [vmem:[#allocation9 + $0xed8] sm:$0xff]
    %v1113 = vld [vmem:[#allocation9 + $0xee0] sm:$0xff]
    %v1114 = vld [vmem:[#allocation9 + $0xee8] sm:$0xff]
    %v1115 = vld [vmem:[#allocation9 + $0xef0] sm:$0xff]
    %v1116 = vld [vmem:[#allocation9 + $0xef8] sm:$0xff]
    %v1117 = vld [vmem:[#allocation9 + $0xf00] sm:$0xff]
    %v1118 = vld [vmem:[#allocation9 + $0xf08] sm:$0xff]
    %v1119 = vld [vmem:[#allocation9 + $0xf10] sm:$0xff]
    %v1120 = vld [vmem:[#allocation9 + $0xf18] sm:$0xff]
    %v1121 = vld [vmem:[#allocation9 + $0xf20] sm:$0xff]
    %v1122 = vld [vmem:[#allocation9 + $0xf28] sm:$0xff]
    %v1123 = vld [vmem:[#allocation9 + $0xf30] sm:$0xff]
    %v1124 = vld [vmem:[#allocation9 + $0xf38] sm:$0xff]
    %v1125 = vld [vmem:[#allocation9 + $0xf40] sm:$0xff]
    %v1126 = vld [vmem:[#allocation9 + $0xf48] sm:$0xff]
    %v1127 = vld [vmem:[#allocation9 + $0xf50] sm:$0xff]
    %v1128 = vld [vmem:[#allocation9 + $0xf58] sm:$0xff]
    %v1129 = vld [vmem:[#allocation9 + $0xf60] sm:$0xff]
    %v1130 = vld [vmem:[#allocation9 + $0xf68] sm:$0xff]
    %v1131 = vld [vmem:[#allocation9 + $0xf70] sm:$0xff]
    %v1132 = vld [vmem:[#allocation9 + $0xf78] sm:$0xff]
    %v1133 = vld [vmem:[#allocation9 + $0xf80] sm:$0xff]
    %v1134 = vld [vmem:[#allocation9 + $0xf88] sm:$0xff]
    %v1135 = vld [vmem:[#allocation9 + $0xf90] sm:$0xff]
    %v1136 = vld [vmem:[#allocation9 + $0xf98] sm:$0xff]
    %v1137 = vld [vmem:[#allocation9 + $0xfa0] sm:$0xff]
    %v1138 = vld [vmem:[#allocation9 + $0xfa8] sm:$0xff]
    %v1139 = vld [vmem:[#allocation9 + $0xfb0] sm:$0xff]
    %v1140 = vld [vmem:[#allocation9 + $0xfb8] sm:$0xff]
    %v1141 = vld [vmem:[#allocation9 + $0xfc0] sm:$0xff]
    %v1142 = vld [vmem:[#allocation9 + $0xfc8] sm:$0xff]
    %v1143 = vld [vmem:[#allocation9 + $0xfd0] sm:$0xff]
    %v1144 = vld [vmem:[#allocation9 + $0xfd8] sm:$0xff]
    %v1145 = vld [vmem:[#allocation9 + $0xfe0] sm:$0xff]
    %v1146 = vld [vmem:[#allocation9 + $0xfe8] sm:$0xff]
    %v1147 = vld [vmem:[#allocation9 + $0xff0] sm:$0xff]
    %v1148 = vld [vmem:[#allocation9 + $0xff8] sm:$0xff]
    %v1149 = vld [vmem:[#allocation9 + $0x1000] sm:$0xff]
    %v1150 = vld [vmem:[#allocation9 + $0x1008] sm:$0xff]
    %v1151 = vld [vmem:[#allocation9 + $0x1010] sm:$0xff]
    %v1152 = vld [vmem:[#allocation9 + $0x1018] sm:$0xff]
    %v1153 = vld [vmem:[#allocation9 + $0x1020] sm:$0xff]
    %v1154 = vld [vmem:[#allocation9 + $0x1028] sm:$0xff]
    %v1155 = vld [vmem:[#allocation9 + $0x1030] sm:$0xff]
    %v1156 = vld [vmem:[#allocation9 + $0x1038] sm:$0xff]
    %v1157 = vld [vmem:[#allocation9 + $0x1040] sm:$0xff]
    %v1158 = vld [vmem:[#allocation9 + $0x1048] sm:$0xff]
    %v1159 = vld [vmem:[#allocation9 + $0x1050] sm:$0xff]
    %v1160 = vld [vmem:[#allocation9 + $0x1058] sm:$0xff]
    %v1161 = vld [vmem:[#allocation9 + $0x1060] sm:$0xff]
    %v1162 = vld [vmem:[#allocation9 + $0x1068] sm:$0xff]
    %v1163 = vld [vmem:[#allocation9 + $0x1070] sm:$0xff]
    %v1164 = vld [vmem:[#allocation9 + $0x1078] sm:$0xff]
    %v1165 = vld [vmem:[#allocation9 + $0x1080] sm:$0xff]
    %v1166 = vld [vmem:[#allocation9 + $0x1088] sm:$0xff]
    %v1167 = vld [vmem:[#allocation9 + $0x1090] sm:$0xff]
    %v1168 = vld [vmem:[#allocation9 + $0x1098] sm:$0xff]
    %v1169 = vld [vmem:[#allocation9 + $0x10a0] sm:$0xff]
    %v1170 = vld [vmem:[#allocation9 + $0x10a8] sm:$0xff]
    %v1171 = vld [vmem:[#allocation9 + $0x10b0] sm:$0xff]
    %v1172 = vld [vmem:[#allocation9 + $0x10b8] sm:$0xff]
    %v1173 = vld [vmem:[#allocation9 + $0x10c0] sm:$0xff]
    %v1174 = vld [vmem:[#allocation9 + $0x10c8] sm:$0xff]
    %v1175 = vld [vmem:[#allocation9 + $0x10d0] sm:$0xff]
    %v1176 = vld [vmem:[#allocation9 + $0x10d8] sm:$0xff]
    %v1177 = vld [vmem:[#allocation9 + $0x10e0] sm:$0xff]
    %v1178 = vld [vmem:[#allocation9 + $0x10e8] sm:$0xff]
    %v1179 = vld [vmem:[#allocation9 + $0x10f0] sm:$0xff]
    %v1180 = vld [vmem:[#allocation9 + $0x10f8] sm:$0xff]
    %v1181 = vld [vmem:[#allocation9 + $0x1100] sm:$0xff]
    %v1182 = vld [vmem:[#allocation9 + $0x1108] sm:$0xff]
    %v1183 = vld [vmem:[#allocation9 + $0x1110] sm:$0xff]
    %v1184 = vld [vmem:[#allocation9 + $0x1118] sm:$0xff]
    %v1185 = vld [vmem:[#allocation9 + $0x1120] sm:$0xff]
    %v1186 = vld [vmem:[#allocation9 + $0x1128] sm:$0xff]
    %v1187 = vld [vmem:[#allocation9 + $0x1130] sm:$0xff]
    %v1188 = vld [vmem:[#allocation9 + $0x1138] sm:$0xff]
    %v1189 = vld [vmem:[#allocation9 + $0x1140] sm:$0xff]
    %v1190 = vld [vmem:[#allocation9 + $0x1148] sm:$0xff]
    %v1191 = vld [vmem:[#allocation9 + $0x1150] sm:$0xff]
    %v1192 = vld [vmem:[#allocation9 + $0x1158] sm:$0xff]
    %v1193 = vld [vmem:[#allocation9 + $0x1160] sm:$0xff]
    %v1194 = vld [vmem:[#allocation9 + $0x1168] sm:$0xff]
    %v1195 = vld [vmem:[#allocation9 + $0x1170] sm:$0xff]
    %v1196 = vld [vmem:[#allocation9 + $0x1178] sm:$0xff]
    %v1197 = vld [vmem:[#allocation9 + $0x1180] sm:$0xff]
    %v1198 = vld [vmem:[#allocation9 + $0x1188] sm:$0xff]
    %v1199 = vld [vmem:[#allocation9 + $0x1190] sm:$0xff]
    %v1200 = vld [vmem:[#allocation9 + $0x1198] sm:$0xff]
    %v1201 = vld [vmem:[#allocation9 + $0x11a0] sm:$0xff]
    %v1202 = vld [vmem:[#allocation9 + $0x11a8] sm:$0xff]
    %v1203 = vld [vmem:[#allocation9 + $0x11b0] sm:$0xff]
    %v1204 = vld [vmem:[#allocation9 + $0x11b8] sm:$0xff]
    %v1205 = vld [vmem:[#allocation9 + $0x11c0] sm:$0xff]
    %v1206 = vld [vmem:[#allocation9 + $0x11c8] sm:$0xff]
    %v1207 = vld [vmem:[#allocation9 + $0x11d0] sm:$0xff]
    %v1208 = vld [vmem:[#allocation9 + $0x11d8] sm:$0xff]
    %v1209 = vld [vmem:[#allocation9 + $0x11e0] sm:$0xff]
    %v1210 = vld [vmem:[#allocation9 + $0x11e8] sm:$0xff]
    %v1211 = vld [vmem:[#allocation9 + $0x11f0] sm:$0xff]
    %v1212 = vld [vmem:[#allocation9 + $0x11f8] sm:$0xff]
    %v1213 = vld [vmem:[#allocation9 + $0x1200] sm:$0xff]
    %v1214 = vld [vmem:[#allocation9 + $0x1208] sm:$0xff]
    %v1215 = vld [vmem:[#allocation9 + $0x1210] sm:$0xff]
    %v1216 = vld [vmem:[#allocation9 + $0x1218] sm:$0xff]
    %v1217 = vld [vmem:[#allocation9 + $0x1220] sm:$0xff]
    %v1218 = vld [vmem:[#allocation9 + $0x1228] sm:$0xff]
    %v1219 = vld [vmem:[#allocation9 + $0x1230] sm:$0xff]
    %v1220 = vld [vmem:[#allocation9 + $0x1238] sm:$0xff]
    %v1221 = vld [vmem:[#allocation9 + $0x1240] sm:$0xff]
    %v1222 = vld [vmem:[#allocation9 + $0x1248] sm:$0xff]
    %v1223 = vld [vmem:[#allocation9 + $0x1250] sm:$0xff]
    %v1224 = vld [vmem:[#allocation9 + $0x1258] sm:$0xff]
    %v1225 = vld [vmem:[#allocation9 + $0x1260] sm:$0xff]
    %v1226 = vld [vmem:[#allocation9 + $0x1268] sm:$0xff]
    %v1227 = vld [vmem:[#allocation9 + $0x1270] sm:$0xff]
    %v1228 = vld [vmem:[#allocation9 + $0x1278] sm:$0xff]
    %v1229 = vld [vmem:[#allocation9 + $0x1280] sm:$0xff]
    %v1230 = vld [vmem:[#allocation9 + $0x1288] sm:$0xff]
    %v1231 = vld [vmem:[#allocation9 + $0x1290] sm:$0xff]
    %v1232 = vld [vmem:[#allocation9 + $0x1298] sm:$0xff]
    %v1233 = vld [vmem:[#allocation9 + $0x12a0] sm:$0xff]
    %v1234 = vld [vmem:[#allocation9 + $0x12a8] sm:$0xff]
    %v1235 = vld [vmem:[#allocation9 + $0x12b0] sm:$0xff]
    %v1236 = vld [vmem:[#allocation9 + $0x12b8] sm:$0xff]
    %v1237 = vld [vmem:[#allocation9 + $0x12c0] sm:$0xff]
    %v1238 = vld [vmem:[#allocation9 + $0x12c8] sm:$0xff]
    %v1239 = vld [vmem:[#allocation9 + $0x12d0] sm:$0xff]
    %v1240 = vld [vmem:[#allocation9 + $0x12d8] sm:$0xff]
    %v1241 = vld [vmem:[#allocation9 + $0x12e0] sm:$0xff]
    %v1242 = vld [vmem:[#allocation9 + $0x12e8] sm:$0xff]
    %v1243 = vld [vmem:[#allocation9 + $0x12f0] sm:$0xff]
    %v1244 = vld [vmem:[#allocation9 + $0x12f8] sm:$0xff]
    %v1245 = vld [vmem:[#allocation9 + $0x1300] sm:$0xff]
    %v1246 = vld [vmem:[#allocation9 + $0x1308] sm:$0xff]
    %v1247 = vld [vmem:[#allocation9 + $0x1310] sm:$0xff]
    %v1248 = vld [vmem:[#allocation9 + $0x1318] sm:$0xff]
    %v1249 = vld [vmem:[#allocation9 + $0x1320] sm:$0xff]
    %v1250 = vld [vmem:[#allocation9 + $0x1328] sm:$0xff]
    %v1251 = vld [vmem:[#allocation9 + $0x1330] sm:$0xff]
    %v1252 = vld [vmem:[#allocation9 + $0x1338] sm:$0xff]
    %v1253 = vld [vmem:[#allocation9 + $0x1340] sm:$0xff]
    %v1254 = vld [vmem:[#allocation9 + $0x1348] sm:$0xff]
    %v1255 = vld [vmem:[#allocation9 + $0x1350] sm:$0xff]
    %v1256 = vld [vmem:[#allocation9 + $0x1358] sm:$0xff]
    %v1257 = vld [vmem:[#allocation9 + $0x1360] sm:$0xff]
    %v1258 = vld [vmem:[#allocation9 + $0x1368] sm:$0xff]
    %v1259 = vld [vmem:[#allocation9 + $0x1370] sm:$0xff]
    %v1260 = vld [vmem:[#allocation9 + $0x1378] sm:$0xff]
    %v1261 = vld [vmem:[#allocation9 + $0x1380] sm:$0xff]
    %v1262 = vld [vmem:[#allocation9 + $0x1388] sm:$0xff]
    %v1263 = vld [vmem:[#allocation9 + $0x1390] sm:$0xff]
    %v1264 = vld [vmem:[#allocation9 + $0x1398] sm:$0xff]
    %v1265 = vld [vmem:[#allocation9 + $0x13a0] sm:$0xff]
    %v1266 = vld [vmem:[#allocation9 + $0x13a8] sm:$0xff]
    %v1267 = vld [vmem:[#allocation9 + $0x13b0] sm:$0xff]
    %v1268 = vld [vmem:[#allocation9 + $0x13b8] sm:$0xff]
    %v1269 = vld [vmem:[#allocation9 + $0x13c0] sm:$0xff]
    %v1270 = vld [vmem:[#allocation9 + $0x13c8] sm:$0xff]
    %v1271 = vld [vmem:[#allocation9 + $0x13d0] sm:$0xff]
    %v1272 = vld [vmem:[#allocation9 + $0x13d8] sm:$0xff]
    %v1273 = vld [vmem:[#allocation9 + $0x13e0] sm:$0xff]
    %v1274 = vld [vmem:[#allocation9 + $0x13e8] sm:$0xff]
    %v1275 = vld [vmem:[#allocation9 + $0x13f0] sm:$0xff]
    %v1276 = vld [vmem:[#allocation9 + $0x13f8] sm:$0xff]
    %v1277 = vld [vmem:[#allocation9 + $0x1400] sm:$0xff]
    %v1278 = vld [vmem:[#allocation9 + $0x1408] sm:$0xff]
    %v1279 = vld [vmem:[#allocation9 + $0x1410] sm:$0xff]
    %v1280 = vld [vmem:[#allocation9 + $0x1418] sm:$0xff]
    %v1281 = vld [vmem:[#allocation9 + $0x1420] sm:$0xff]
    %v1282 = vld [vmem:[#allocation9 + $0x1428] sm:$0xff]
    %v1283 = vld [vmem:[#allocation9 + $0x1430] sm:$0xff]
    %v1284 = vld [vmem:[#allocation9 + $0x1438] sm:$0xff]
    %v1285 = vld [vmem:[#allocation9 + $0x1440] sm:$0xff]
    %v1286 = vld [vmem:[#allocation9 + $0x1448] sm:$0xff]
    %v1287 = vld [vmem:[#allocation9 + $0x1450] sm:$0xff]
    %v1288 = vld [vmem:[#allocation9 + $0x1458] sm:$0xff]
    %v1289 = vld [vmem:[#allocation9 + $0x1460] sm:$0xff]
    %v1290 = vld [vmem:[#allocation9 + $0x1468] sm:$0xff]
    %v1291 = vld [vmem:[#allocation9 + $0x1470] sm:$0xff]
    %v1292 = vld [vmem:[#allocation9 + $0x1478] sm:$0xff]
    %v1293 = vld [vmem:[#allocation9 + $0x1480] sm:$0xff]
    %v1294 = vld [vmem:[#allocation9 + $0x1488] sm:$0xff]
    %v1295 = vld [vmem:[#allocation9 + $0x1490] sm:$0xff]
    %v1296 = vld [vmem:[#allocation9 + $0x1498] sm:$0xff]
    %v1297 = vld [vmem:[#allocation9 + $0x14a0] sm:$0xff]
    %v1298 = vld [vmem:[#allocation9 + $0x14a8] sm:$0xff]
    %v1299 = vld [vmem:[#allocation9 + $0x14b0] sm:$0xff]
    %v1300 = vld [vmem:[#allocation9 + $0x14b8] sm:$0xff]
    %v1301 = vld [vmem:[#allocation9 + $0x14c0] sm:$0xff]
    %v1302 = vld [vmem:[#allocation9 + $0x14c8] sm:$0xff]
    %v1303 = vld [vmem:[#allocation9 + $0x14d0] sm:$0xff]
    %v1304 = vld [vmem:[#allocation9 + $0x14d8] sm:$0xff]
    %v1305 = vld [vmem:[#allocation9 + $0x14e0] sm:$0xff]
    %v1306 = vld [vmem:[#allocation9 + $0x14e8] sm:$0xff]
    %v1307 = vld [vmem:[#allocation9 + $0x14f0] sm:$0xff]
    %v1308 = vld [vmem:[#allocation9 + $0x14f8] sm:$0xff]
    %v1309 = vld [vmem:[#allocation9 + $0x1500] sm:$0xff]
    %v1310 = vld [vmem:[#allocation9 + $0x1508] sm:$0xff]
    %v1311 = vld [vmem:[#allocation9 + $0x1510] sm:$0xff]
    %v1312 = vld [vmem:[#allocation9 + $0x1518] sm:$0xff]
    %v1313 = vld [vmem:[#allocation9 + $0x1520] sm:$0xff]
    %v1314 = vld [vmem:[#allocation9 + $0x1528] sm:$0xff]
    %v1315 = vld [vmem:[#allocation9 + $0x1530] sm:$0xff]
    %v1316 = vld [vmem:[#allocation9 + $0x1538] sm:$0xff]
    %v1317 = vld [vmem:[#allocation9 + $0x1540] sm:$0xff]
    %v1318 = vld [vmem:[#allocation9 + $0x1548] sm:$0xff]
    %v1319 = vld [vmem:[#allocation9 + $0x1550] sm:$0xff]
    %v1320 = vld [vmem:[#allocation9 + $0x1558] sm:$0xff]
    %v1321 = vld [vmem:[#allocation9 + $0x1560] sm:$0xff]
    %v1322 = vld [vmem:[#allocation9 + $0x1568] sm:$0xff]
    %v1323 = vld [vmem:[#allocation9 + $0x1570] sm:$0xff]
    %v1324 = vld [vmem:[#allocation9 + $0x1578] sm:$0xff]
    %v1325 = vld [vmem:[#allocation9 + $0x1580] sm:$0xff]
    %v1326 = vld [vmem:[#allocation9 + $0x1588] sm:$0xff]
    %v1327 = vld [vmem:[#allocation9 + $0x1590] sm:$0xff]
    %v1328 = vld [vmem:[#allocation9 + $0x1598] sm:$0xff]
    %v1329 = vld [vmem:[#allocation9 + $0x15a0] sm:$0xff]
    %v1330 = vld [vmem:[#allocation9 + $0x15a8] sm:$0xff]
    %v1331 = vld [vmem:[#allocation9 + $0x15b0] sm:$0xff]
    %v1332 = vld [vmem:[#allocation9 + $0x15b8] sm:$0xff]
    %v1333 = vld [vmem:[#allocation9 + $0x15c0] sm:$0xff]
    %v1334 = vld [vmem:[#allocation9 + $0x15c8] sm:$0xff]
    %v1335 = vld [vmem:[#allocation9 + $0x15d0] sm:$0xff]
    %v1336 = vld [vmem:[#allocation9 + $0x15d8] sm:$0xff]
    %v1337 = vld [vmem:[#allocation9 + $0x15e0] sm:$0xff]
    %v1338 = vld [vmem:[#allocation9 + $0x15e8] sm:$0xff]
    %v1339 = vld [vmem:[#allocation9 + $0x15f0] sm:$0xff]
    %v1340 = vld [vmem:[#allocation9 + $0x15f8] sm:$0xff]
    %v1341 = vld [vmem:[#allocation9 + $0x1600] sm:$0xff]
    %v1342 = vld [vmem:[#allocation9 + $0x1608] sm:$0xff]
    %v1343 = vld [vmem:[#allocation9 + $0x1610] sm:$0xff]
    %v1344 = vld [vmem:[#allocation9 + $0x1618] sm:$0xff]
    %v1345 = vld [vmem:[#allocation9 + $0x1620] sm:$0xff]
    %v1346 = vld [vmem:[#allocation9 + $0x1628] sm:$0xff]
    %v1347 = vld [vmem:[#allocation9 + $0x1630] sm:$0xff]
    %v1348 = vld [vmem:[#allocation9 + $0x1638] sm:$0xff]
    %v1349 = vld [vmem:[#allocation9 + $0x1640] sm:$0xff]
    %v1350 = vld [vmem:[#allocation9 + $0x1648] sm:$0xff]
    %v1351 = vld [vmem:[#allocation9 + $0x1650] sm:$0xff]
    %v1352 = vld [vmem:[#allocation9 + $0x1658] sm:$0xff]
    %v1353 = vld [vmem:[#allocation9 + $0x1660] sm:$0xff]
    %v1354 = vld [vmem:[#allocation9 + $0x1668] sm:$0xff]
    %v1355 = vld [vmem:[#allocation9 + $0x1670] sm:$0xff]
    %v1356 = vld [vmem:[#allocation9 + $0x1678] sm:$0xff]
    %v1357 = vld [vmem:[#allocation9 + $0x1680] sm:$0xff]
    %v1358 = vld [vmem:[#allocation9 + $0x1688] sm:$0xff]
    %v1359 = vld [vmem:[#allocation9 + $0x1690] sm:$0xff]
    %v1360 = vld [vmem:[#allocation9 + $0x1698] sm:$0xff]
    %v1361 = vld [vmem:[#allocation9 + $0x16a0] sm:$0xff]
    %v1362 = vld [vmem:[#allocation9 + $0x16a8] sm:$0xff]
    %v1363 = vld [vmem:[#allocation9 + $0x16b0] sm:$0xff]
    %v1364 = vld [vmem:[#allocation9 + $0x16b8] sm:$0xff]
    %v1365 = vld [vmem:[#allocation9 + $0x16c0] sm:$0xff]
    %v1366 = vld [vmem:[#allocation9 + $0x16c8] sm:$0xff]
    %v1367 = vld [vmem:[#allocation9 + $0x16d0] sm:$0xff]
    %v1368 = vld [vmem:[#allocation9 + $0x16d8] sm:$0xff]
    %v1369 = vld [vmem:[#allocation9 + $0x16e0] sm:$0xff]
    %v1370 = vld [vmem:[#allocation9 + $0x16e8] sm:$0xff]
    %v1371 = vld [vmem:[#allocation9 + $0x16f0] sm:$0xff]
    %v1372 = vld [vmem:[#allocation9 + $0x16f8] sm:$0xff]
    %v1373 = vld [vmem:[#allocation9 + $0x1700] sm:$0xff]
    %v1374 = vld [vmem:[#allocation9 + $0x1708] sm:$0xff]
    %v1375 = vld [vmem:[#allocation9 + $0x1710] sm:$0xff]
    %v1376 = vld [vmem:[#allocation9 + $0x1718] sm:$0xff]
    %v1377 = vld [vmem:[#allocation9 + $0x1720] sm:$0xff]
    %v1378 = vld [vmem:[#allocation9 + $0x1728] sm:$0xff]
    %v1379 = vld [vmem:[#allocation9 + $0x1730] sm:$0xff]
    %v1380 = vld [vmem:[#allocation9 + $0x1738] sm:$0xff]
    %v1381 = vld [vmem:[#allocation9 + $0x1740] sm:$0xff]
    %v1382 = vld [vmem:[#allocation9 + $0x1748] sm:$0xff]
    %v1383 = vld [vmem:[#allocation9 + $0x1750] sm:$0xff]
    %v1384 = vld [vmem:[#allocation9 + $0x1758] sm:$0xff]
    %v1385 = vld [vmem:[#allocation9 + $0x1760] sm:$0xff]
    %v1386 = vld [vmem:[#allocation9 + $0x1768] sm:$0xff]
    %v1387 = vld [vmem:[#allocation9 + $0x1770] sm:$0xff]
    %v1388 = vld [vmem:[#allocation9 + $0x1778] sm:$0xff]
    %v1389 = vld [vmem:[#allocation9 + $0x1780] sm:$0xff]
    %v1390 = vld [vmem:[#allocation9 + $0x1788] sm:$0xff]
    %v1391 = vld [vmem:[#allocation9 + $0x1790] sm:$0xff]
    %v1392 = vld [vmem:[#allocation9 + $0x1798] sm:$0xff]
    %v1393 = vld [vmem:[#allocation9 + $0x17a0] sm:$0xff]
    %v1394 = vld [vmem:[#allocation9 + $0x17a8] sm:$0xff]
    %v1395 = vld [vmem:[#allocation9 + $0x17b0] sm:$0xff]
    %v1396 = vld [vmem:[#allocation9 + $0x17b8] sm:$0xff]
    %v1397 = vld [vmem:[#allocation9 + $0x17c0] sm:$0xff]
    %v1398 = vld [vmem:[#allocation9 + $0x17c8] sm:$0xff]
    %v1399 = vld [vmem:[#allocation9 + $0x17d0] sm:$0xff]
    %v1400 = vld [vmem:[#allocation9 + $0x17d8] sm:$0xff]
    %v1401 = vld [vmem:[#allocation9 + $0x17e0] sm:$0xff]
    %v1402 = vld [vmem:[#allocation9 + $0x17e8] sm:$0xff]
    %v1403 = vld [vmem:[#allocation9 + $0x17f0] sm:$0xff]
    %v1404 = vld [vmem:[#allocation9 + $0x17f8] sm:$0xff]
    %v1405 = vld [vmem:[#allocation9 + $0x1800] sm:$0xff]
    %v1406 = vld [vmem:[#allocation9 + $0x1808] sm:$0xff]
    %v1407 = vld [vmem:[#allocation9 + $0x1810] sm:$0xff]
    %v1408 = vld [vmem:[#allocation9 + $0x1818] sm:$0xff]
    %v1409 = vld [vmem:[#allocation9 + $0x1820] sm:$0xff]
    %v1410 = vld [vmem:[#allocation9 + $0x1828] sm:$0xff]
    %v1411 = vld [vmem:[#allocation9 + $0x1830] sm:$0xff]
    %v1412 = vld [vmem:[#allocation9 + $0x1838] sm:$0xff]
    %v1413 = vld [vmem:[#allocation9 + $0x1840] sm:$0xff]
    %v1414 = vld [vmem:[#allocation9 + $0x1848] sm:$0xff]
    %v1415 = vld [vmem:[#allocation9 + $0x1850] sm:$0xff]
    %v1416 = vld [vmem:[#allocation9 + $0x1858] sm:$0xff]
    %v1417 = vld [vmem:[#allocation9 + $0x1860] sm:$0xff]
    %v1418 = vld [vmem:[#allocation9 + $0x1868] sm:$0xff]
    %v1419 = vld [vmem:[#allocation9 + $0x1870] sm:$0xff]
    %v1420 = vld [vmem:[#allocation9 + $0x1878] sm:$0xff]
    %v1421 = vld [vmem:[#allocation9 + $0x1880] sm:$0xff]
    %v1422 = vld [vmem:[#allocation9 + $0x1888] sm:$0xff]
    %v1423 = vld [vmem:[#allocation9 + $0x1890] sm:$0xff]
    %v1424 = vld [vmem:[#allocation9 + $0x1898] sm:$0xff]
    %v1425 = vld [vmem:[#allocation9 + $0x18a0] sm:$0xff]
    %v1426 = vld [vmem:[#allocation9 + $0x18a8] sm:$0xff]
    %v1427 = vld [vmem:[#allocation9 + $0x18b0] sm:$0xff]
    %v1428 = vld [vmem:[#allocation9 + $0x18b8] sm:$0xff]
    %v1429 = vld [vmem:[#allocation9 + $0x18c0] sm:$0xff]
    %v1430 = vld [vmem:[#allocation9 + $0x18c8] sm:$0xff]
    %v1431 = vld [vmem:[#allocation9 + $0x18d0] sm:$0xff]
    %v1432 = vld [vmem:[#allocation9 + $0x18d8] sm:$0xff]
    %v1433 = vld [vmem:[#allocation9 + $0x18e0] sm:$0xff]
    %v1434 = vld [vmem:[#allocation9 + $0x18e8] sm:$0xff]
    %v1435 = vld [vmem:[#allocation9 + $0x18f0] sm:$0xff]
    %v1436 = vld [vmem:[#allocation9 + $0x18f8] sm:$0xff]
    %v1437 = vld [vmem:[#allocation9 + $0x1900] sm:$0xff]
    %v1438 = vld [vmem:[#allocation9 + $0x1908] sm:$0xff]
    %v1439 = vld [vmem:[#allocation9 + $0x1910] sm:$0xff]
    %v1440 = vld [vmem:[#allocation9 + $0x1918] sm:$0xff]
    %v1441 = vld [vmem:[#allocation9 + $0x1920] sm:$0xff]
    %v1442 = vld [vmem:[#allocation9 + $0x1928] sm:$0xff]
    %v1443 = vld [vmem:[#allocation9 + $0x1930] sm:$0xff]
    %v1444 = vld [vmem:[#allocation9 + $0x1938] sm:$0xff]
    %v1445 = vld [vmem:[#allocation9 + $0x1940] sm:$0xff]
    %v1446 = vld [vmem:[#allocation9 + $0x1948] sm:$0xff]
    %v1447 = vld [vmem:[#allocation9 + $0x1950] sm:$0xff]
    %v1448 = vld [vmem:[#allocation9 + $0x1958] sm:$0xff]
    %v1449 = vld [vmem:[#allocation9 + $0x1960] sm:$0xff]
    %v1450 = vld [vmem:[#allocation9 + $0x1968] sm:$0xff]
    %v1451 = vld [vmem:[#allocation9 + $0x1970] sm:$0xff]
    %v1452 = vld [vmem:[#allocation9 + $0x1978] sm:$0xff]
    %v1453 = vld [vmem:[#allocation9 + $0x1980] sm:$0xff]
    %v1454 = vld [vmem:[#allocation9 + $0x1988] sm:$0xff]
    %v1455 = vld [vmem:[#allocation9 + $0x1990] sm:$0xff]
    %v1456 = vld [vmem:[#allocation9 + $0x1998] sm:$0xff]
    %v1457 = vld [vmem:[#allocation9 + $0x19a0] sm:$0xff]
    %v1458 = vld [vmem:[#allocation9 + $0x19a8] sm:$0xff]
    %v1459 = vld [vmem:[#allocation9 + $0x19b0] sm:$0xff]
    %v1460 = vld [vmem:[#allocation9 + $0x19b8] sm:$0xff]
    %v1461 = vld [vmem:[#allocation9 + $0x19c0] sm:$0xff]
    %v1462 = vld [vmem:[#allocation9 + $0x19c8] sm:$0xff]
    %v1463 = vld [vmem:[#allocation9 + $0x19d0] sm:$0xff]
    %v1464 = vld [vmem:[#allocation9 + $0x19d8] sm:$0xff]
    %v1465 = vld [vmem:[#allocation9 + $0x19e0] sm:$0xff]
    %v1466 = vld [vmem:[#allocation9 + $0x19e8] sm:$0xff]
    %v1467 = vld [vmem:[#allocation9 + $0x19f0] sm:$0xff]
    %v1468 = vld [vmem:[#allocation9 + $0x19f8] sm:$0xff]
    %v1469 = vld [vmem:[#allocation9 + $0x1a00] sm:$0xff]
    %v1470 = vld [vmem:[#allocation9 + $0x1a08] sm:$0xff]
    %v1471 = vld [vmem:[#allocation9 + $0x1a10] sm:$0xff]
    %v1472 = vld [vmem:[#allocation9 + $0x1a18] sm:$0xff]
    %v1473 = vld [vmem:[#allocation9 + $0x1a20] sm:$0xff]
    %v1474 = vld [vmem:[#allocation9 + $0x1a28] sm:$0xff]
    %v1475 = vld [vmem:[#allocation9 + $0x1a30] sm:$0xff]
    %v1476 = vld [vmem:[#allocation9 + $0x1a38] sm:$0xff]
    %v1477 = vld [vmem:[#allocation9 + $0x1a40] sm:$0xff]
    %v1478 = vld [vmem:[#allocation9 + $0x1a48] sm:$0xff]
    %v1479 = vld [vmem:[#allocation9 + $0x1a50] sm:$0xff]
    %v1480 = vld [vmem:[#allocation9 + $0x1a58] sm:$0xff]
    %v1481 = vld [vmem:[#allocation9 + $0x1a60] sm:$0xff]
    %v1482 = vld [vmem:[#allocation9 + $0x1a68] sm:$0xff]
    %v1483 = vld [vmem:[#allocation9 + $0x1a70] sm:$0xff]
    %v1484 = vld [vmem:[#allocation9 + $0x1a78] sm:$0xff]
    %v1485 = vld [vmem:[#allocation9 + $0x1a80] sm:$0xff]
    %v1486 = vld [vmem:[#allocation9 + $0x1a88] sm:$0xff]
    %v1487 = vld [vmem:[#allocation9 + $0x1a90] sm:$0xff]
    %v1488 = vld [vmem:[#allocation9 + $0x1a98] sm:$0xff]
    %v1489 = vld [vmem:[#allocation9 + $0x1aa0] sm:$0xff]
    %v1490 = vld [vmem:[#allocation9 + $0x1aa8] sm:$0xff]
    %v1491 = vld [vmem:[#allocation9 + $0x1ab0] sm:$0xff]
    %v1492 = vld [vmem:[#allocation9 + $0x1ab8] sm:$0xff]
    %v1493 = vld [vmem:[#allocation9 + $0x1ac0] sm:$0xff]
    %v1494 = vld [vmem:[#allocation9 + $0x1ac8] sm:$0xff]
    %v1495 = vld [vmem:[#allocation9 + $0x1ad0] sm:$0xff]
    %v1496 = vld [vmem:[#allocation9 + $0x1ad8] sm:$0xff]
    %v1497 = vld [vmem:[#allocation9 + $0x1ae0] sm:$0xff]
    %v1498 = vld [vmem:[#allocation9 + $0x1ae8] sm:$0xff]
    %v1499 = vld [vmem:[#allocation9 + $0x1af0] sm:$0xff]
    %v1500 = vld [vmem:[#allocation9 + $0x1af8] sm:$0xff]
    %v1501 = vld [vmem:[#allocation9 + $0x1b00] sm:$0xff]
    %v1502 = vld [vmem:[#allocation9 + $0x1b08] sm:$0xff]
    %v1503 = vld [vmem:[#allocation9 + $0x1b10] sm:$0xff]
    %v1504 = vld [vmem:[#allocation9 + $0x1b18] sm:$0xff]
    %v1505 = vld [vmem:[#allocation9 + $0x1b20] sm:$0xff]
    %v1506 = vld [vmem:[#allocation9 + $0x1b28] sm:$0xff]
    %v1507 = vld [vmem:[#allocation9 + $0x1b30] sm:$0xff]
    %v1508 = vld [vmem:[#allocation9 + $0x1b38] sm:$0xff]
    %v1509 = vld [vmem:[#allocation9 + $0x1b40] sm:$0xff]
    %v1510 = vld [vmem:[#allocation9 + $0x1b48] sm:$0xff]
    %v1511 = vld [vmem:[#allocation9 + $0x1b50] sm:$0xff]
    %v1512 = vld [vmem:[#allocation9 + $0x1b58] sm:$0xff]
    %v1513 = vld [vmem:[#allocation9 + $0x1b60] sm:$0xff]
    %v1514 = vld [vmem:[#allocation9 + $0x1b68] sm:$0xff]
    %v1515 = vld [vmem:[#allocation9 + $0x1b70] sm:$0xff]
    %v1516 = vld [vmem:[#allocation9 + $0x1b78] sm:$0xff]
    %v1517 = vld [vmem:[#allocation9 + $0x1b80] sm:$0xff]
    %v1518 = vld [vmem:[#allocation9 + $0x1b88] sm:$0xff]
    %v1519 = vld [vmem:[#allocation9 + $0x1b90] sm:$0xff]
    %v1520 = vld [vmem:[#allocation9 + $0x1b98] sm:$0xff]
    %v1521 = vld [vmem:[#allocation9 + $0x1ba0] sm:$0xff]
    %v1522 = vld [vmem:[#allocation9 + $0x1ba8] sm:$0xff]
    %v1523 = vld [vmem:[#allocation9 + $0x1bb0] sm:$0xff]
    %v1524 = vld [vmem:[#allocation9 + $0x1bb8] sm:$0xff]
    %v1525 = vld [vmem:[#allocation9 + $0x1bc0] sm:$0xff]
    %v1526 = vld [vmem:[#allocation9 + $0x1bc8] sm:$0xff]
    %v1527 = vld [vmem:[#allocation9 + $0x1bd0] sm:$0xff]
    %v1528 = vld [vmem:[#allocation9 + $0x1bd8] sm:$0xff]
    %v1529 = vld [vmem:[#allocation9 + $0x1be0] sm:$0xff]
    %v1530 = vld [vmem:[#allocation9 + $0x1be8] sm:$0xff]
    %v1531 = vld [vmem:[#allocation9 + $0x1bf0] sm:$0xff]
    %v1532 = vld [vmem:[#allocation9 + $0x1bf8] sm:$0xff]
    %v1533 = vld [vmem:[#allocation9 + $0x1c00] sm:$0xff]
    %v1534 = vld [vmem:[#allocation9 + $0x1c08] sm:$0xff]
    %v1535 = vld [vmem:[#allocation9 + $0x1c10] sm:$0xff]
    %v1536 = vld [vmem:[#allocation9 + $0x1c18] sm:$0xff]
    %v1537 = vld [vmem:[#allocation9 + $0x1c20] sm:$0xff]
    %v1538 = vld [vmem:[#allocation9 + $0x1c28] sm:$0xff]
    %v1539 = vld [vmem:[#allocation9 + $0x1c30] sm:$0xff]
    %v1540 = vld [vmem:[#allocation9 + $0x1c38] sm:$0xff]
    %v1541 = vld [vmem:[#allocation9 + $0x1c40] sm:$0xff]
    %v1542 = vld [vmem:[#allocation9 + $0x1c48] sm:$0xff]
    %v1543 = vld [vmem:[#allocation9 + $0x1c50] sm:$0xff]
    %v1544 = vld [vmem:[#allocation9 + $0x1c58] sm:$0xff]
    %v1545 = vld [vmem:[#allocation9 + $0x1c60] sm:$0xff]
    %v1546 = vld [vmem:[#allocation9 + $0x1c68] sm:$0xff]
    %v1547 = vld [vmem:[#allocation9 + $0x1c70] sm:$0xff]
    %v1548 = vld [vmem:[#allocation9 + $0x1c78] sm:$0xff]
    %v1549 = vld [vmem:[#allocation9 + $0x1c80] sm:$0xff]
    %v1550 = vld [vmem:[#allocation9 + $0x1c88] sm:$0xff]
    %v1551 = vld [vmem:[#allocation9 + $0x1c90] sm:$0xff]
    %v1552 = vld [vmem:[#allocation9 + $0x1c98] sm:$0xff]
    %v1553 = vld [vmem:[#allocation9 + $0x1ca0] sm:$0xff]
    %v1554 = vld [vmem:[#allocation9 + $0x1ca8] sm:$0xff]
    %v1555 = vld [vmem:[#allocation9 + $0x1cb0] sm:$0xff]
    %v1556 = vld [vmem:[#allocation9 + $0x1cb8] sm:$0xff]
    %v1557 = vld [vmem:[#allocation9 + $0x1cc0] sm:$0xff]
    %v1558 = vld [vmem:[#allocation9 + $0x1cc8] sm:$0xff]
    %v1559 = vld [vmem:[#allocation9 + $0x1cd0] sm:$0xff]
    %v1560 = vld [vmem:[#allocation9 + $0x1cd8] sm:$0xff]
    %v1561 = vld [vmem:[#allocation9 + $0x1ce0] sm:$0xff]
    %v1562 = vld [vmem:[#allocation9 + $0x1ce8] sm:$0xff]
    %v1563 = vld [vmem:[#allocation9 + $0x1cf0] sm:$0xff]
    %v1564 = vld [vmem:[#allocation9 + $0x1cf8] sm:$0xff]
    %v1565 = vld [vmem:[#allocation9 + $0x1d00] sm:$0xff]
    %v1566 = vld [vmem:[#allocation9 + $0x1d08] sm:$0xff]
    %v1567 = vld [vmem:[#allocation9 + $0x1d10] sm:$0xff]
    %v1568 = vld [vmem:[#allocation9 + $0x1d18] sm:$0xff]
    %v1569 = vld [vmem:[#allocation9 + $0x1d20] sm:$0xff]
    %v1570 = vld [vmem:[#allocation9 + $0x1d28] sm:$0xff]
    %v1571 = vld [vmem:[#allocation9 + $0x1d30] sm:$0xff]
    %v1572 = vld [vmem:[#allocation9 + $0x1d38] sm:$0xff]
    %v1573 = vld [vmem:[#allocation9 + $0x1d40] sm:$0xff]
    %v1574 = vld [vmem:[#allocation9 + $0x1d48] sm:$0xff]
    %v1575 = vld [vmem:[#allocation9 + $0x1d50] sm:$0xff]
    %v1576 = vld [vmem:[#allocation9 + $0x1d58] sm:$0xff]
    %v1577 = vld [vmem:[#allocation9 + $0x1d60] sm:$0xff]
    %v1578 = vld [vmem:[#allocation9 + $0x1d68] sm:$0xff]
    %v1579 = vld [vmem:[#allocation9 + $0x1d70] sm:$0xff]
    %v1580 = vld [vmem:[#allocation9 + $0x1d78] sm:$0xff]
    %v1581 = vld [vmem:[#allocation9 + $0x1d80] sm:$0xff]
    %v1582 = vld [vmem:[#allocation9 + $0x1d88] sm:$0xff]
    %v1583 = vld [vmem:[#allocation9 + $0x1d90] sm:$0xff]
    %v1584 = vld [vmem:[#allocation9 + $0x1d98] sm:$0xff]
    %v1585 = vld [vmem:[#allocation9 + $0x1da0] sm:$0xff]
    %v1586 = vld [vmem:[#allocation9 + $0x1da8] sm:$0xff]
    %v1587 = vld [vmem:[#allocation9 + $0x1db0] sm:$0xff]
    %v1588 = vld [vmem:[#allocation9 + $0x1db8] sm:$0xff]
    %v1589 = vld [vmem:[#allocation9 + $0x1dc0] sm:$0xff]
    %v1590 = vld [vmem:[#allocation9 + $0x1dc8] sm:$0xff]
    %v1591 = vld [vmem:[#allocation9 + $0x1dd0] sm:$0xff]
    %v1592 = vld [vmem:[#allocation9 + $0x1dd8] sm:$0xff]
    %v1593 = vld [vmem:[#allocation9 + $0x1de0] sm:$0xff]
    %v1594 = vld [vmem:[#allocation9 + $0x1de8] sm:$0xff]
    %v1595 = vld [vmem:[#allocation9 + $0x1df0] sm:$0xff]
    %v1596 = vld [vmem:[#allocation9 + $0x1df8] sm:$0xff]
    %v1597 = vld [vmem:[#allocation9 + $0x1e00] sm:$0xff]
    %v1598 = vld [vmem:[#allocation9 + $0x1e08] sm:$0xff]
    %v1599 = vld [vmem:[#allocation9 + $0x1e10] sm:$0xff]
    %v1600 = vld [vmem:[#allocation9 + $0x1e18] sm:$0xff]
    %v1601 = vld [vmem:[#allocation9 + $0x1e20] sm:$0xff]
    %v1602 = vld [vmem:[#allocation9 + $0x1e28] sm:$0xff]
    %v1603 = vld [vmem:[#allocation9 + $0x1e30] sm:$0xff]
    %v1604 = vld [vmem:[#allocation9 + $0x1e38] sm:$0xff]
    %v1605 = vld [vmem:[#allocation9 + $0x1e40] sm:$0xff]
    %v1606 = vld [vmem:[#allocation9 + $0x1e48] sm:$0xff]
    %v1607 = vld [vmem:[#allocation9 + $0x1e50] sm:$0xff]
    %v1608 = vld [vmem:[#allocation9 + $0x1e58] sm:$0xff]
    %v1609 = vld [vmem:[#allocation9 + $0x1e60] sm:$0xff]
    %v1610 = vld [vmem:[#allocation9 + $0x1e68] sm:$0xff]
    %v1611 = vld [vmem:[#allocation9 + $0x1e70] sm:$0xff]
    %v1612 = vld [vmem:[#allocation9 + $0x1e78] sm:$0xff]
    %v1613 = vld [vmem:[#allocation9 + $0x1e80] sm:$0xff]
    %v1614 = vld [vmem:[#allocation9 + $0x1e88] sm:$0xff]
    %v1615 = vld [vmem:[#allocation9 + $0x1e90] sm:$0xff]
    %v1616 = vld [vmem:[#allocation9 + $0x1e98] sm:$0xff]
    %v1617 = vld [vmem:[#allocation9 + $0x1ea0] sm:$0xff]
    %v1618 = vld [vmem:[#allocation9 + $0x1ea8] sm:$0xff]
    %v1619 = vld [vmem:[#allocation9 + $0x1eb0] sm:$0xff]
    %v1620 = vld [vmem:[#allocation9 + $0x1eb8] sm:$0xff]
    %v1621 = vld [vmem:[#allocation9 + $0x1ec0] sm:$0xff]
    %v1622 = vld [vmem:[#allocation9 + $0x1ec8] sm:$0xff]
    %v1623 = vld [vmem:[#allocation9 + $0x1ed0] sm:$0xff]
    %v1624 = vld [vmem:[#allocation9 + $0x1ed8] sm:$0xff]
    %v1625 = vld [vmem:[#allocation9 + $0x1ee0] sm:$0xff]
    %v1626 = vld [vmem:[#allocation9 + $0x1ee8] sm:$0xff]
    %v1627 = vld [vmem:[#allocation9 + $0x1ef0] sm:$0xff]
    %v1628 = vld [vmem:[#allocation9 + $0x1ef8] sm:$0xff]
    %v1629 = vld [vmem:[#allocation9 + $0x1f00] sm:$0xff]
    %v1630 = vld [vmem:[#allocation9 + $0x1f08] sm:$0xff]
    %v1631 = vld [vmem:[#allocation9 + $0x1f10] sm:$0xff]
    %v1632 = vld [vmem:[#allocation9 + $0x1f18] sm:$0xff]
    %v1633 = vld [vmem:[#allocation9 + $0x1f20] sm:$0xff]
    %v1634 = vld [vmem:[#allocation9 + $0x1f28] sm:$0xff]
    %v1635 = vld [vmem:[#allocation9 + $0x1f30] sm:$0xff]
    %v1636 = vld [vmem:[#allocation9 + $0x1f38] sm:$0xff]
    %v1637 = vld [vmem:[#allocation9 + $0x1f40] sm:$0xff]
    %v1638 = vld [vmem:[#allocation9 + $0x1f48] sm:$0xff]
    %v1639 = vld [vmem:[#allocation9 + $0x1f50] sm:$0xff]
    %v1640 = vld [vmem:[#allocation9 + $0x1f58] sm:$0xff]
    %v1641 = vld [vmem:[#allocation9 + $0x1f60] sm:$0xff]
    %v1642 = vld [vmem:[#allocation9 + $0x1f68] sm:$0xff]
    %v1643 = vld [vmem:[#allocation9 + $0x1f70] sm:$0xff]
    %v1644 = vld [vmem:[#allocation9 + $0x1f78] sm:$0xff]
    %v1645 = vld [vmem:[#allocation9 + $0x1f80] sm:$0xff]
    %v1646 = vld [vmem:[#allocation9 + $0x1f88] sm:$0xff]
    %v1647 = vld [vmem:[#allocation9 + $0x1f90] sm:$0xff]
    %v1648 = vld [vmem:[#allocation9 + $0x1f98] sm:$0xff]
    %v1649 = vld [vmem:[#allocation9 + $0x1fa0] sm:$0xff]
    %v1650 = vld [vmem:[#allocation9 + $0x1fa8] sm:$0xff]
    %v1651 = vld [vmem:[#allocation9 + $0x1fb0] sm:$0xff]
    %v1652 = vld [vmem:[#allocation9 + $0x1fb8] sm:$0xff]
    %v1653 = vld [vmem:[#allocation9 + $0x1fc0] sm:$0xff]
    %v1654 = vld [vmem:[#allocation9 + $0x1fc8] sm:$0xff]
    %v1655 = vld [vmem:[#allocation9 + $0x1fd0] sm:$0xff]
    %v1656 = vld [vmem:[#allocation9 + $0x1fd8] sm:$0xff]
    %v1657 = vld [vmem:[#allocation9 + $0x1fe0] sm:$0xff]
    %v1658 = vld [vmem:[#allocation9 + $0x1fe8] sm:$0xff]
    %v1659 = vld [vmem:[#allocation9 + $0x1ff0] sm:$0xff]
    %v1660 = vld [vmem:[#allocation9 + $0x1ff8] sm:$0xff]
    %v1661 = vld [vmem:[#allocation9 + $0x2000] sm:$0xff]
    %v1662 = vld [vmem:[#allocation9 + $0x2008] sm:$0xff]
    %v1663 = vld [vmem:[#allocation9 + $0x2010] sm:$0xff]
    %v1664 = vld [vmem:[#allocation9 + $0x2018] sm:$0xff]
    %v1665 = vld [vmem:[#allocation9 + $0x2020] sm:$0xff]
    %v1666 = vld [vmem:[#allocation9 + $0x2028] sm:$0xff]
    %v1667 = vld [vmem:[#allocation9 + $0x2030] sm:$0xff]
    %v1668 = vld [vmem:[#allocation9 + $0x2038] sm:$0xff]
    %v1669 = vld [vmem:[#allocation9 + $0x2040] sm:$0xff]
    %v1670 = vld [vmem:[#allocation9 + $0x2048] sm:$0xff]
    %v1671 = vld [vmem:[#allocation9 + $0x2050] sm:$0xff]
    %v1672 = vld [vmem:[#allocation9 + $0x2058] sm:$0xff]
    %v1673 = vld [vmem:[#allocation9 + $0x2060] sm:$0xff]
    %v1674 = vld [vmem:[#allocation9 + $0x2068] sm:$0xff]
    %v1675 = vld [vmem:[#allocation9 + $0x2070] sm:$0xff]
    %v1676 = vld [vmem:[#allocation9 + $0x2078] sm:$0xff]
    %v1677 = vld [vmem:[#allocation9 + $0x2080] sm:$0xff]
    %v1678 = vld [vmem:[#allocation9 + $0x2088] sm:$0xff]
    %v1679 = vld [vmem:[#allocation9 + $0x2090] sm:$0xff]
    %v1680 = vld [vmem:[#allocation9 + $0x2098] sm:$0xff]
    %v1681 = vld [vmem:[#allocation9 + $0x20a0] sm:$0xff]
    %v1682 = vld [vmem:[#allocation9 + $0x20a8] sm:$0xff]
    %v1683 = vld [vmem:[#allocation9 + $0x20b0] sm:$0xff]
    %v1684 = vld [vmem:[#allocation9 + $0x20b8] sm:$0xff]
    %v1685 = vld [vmem:[#allocation9 + $0x20c0] sm:$0xff]
    %v1686 = vld [vmem:[#allocation9 + $0x20c8] sm:$0xff]
    %v1687 = vld [vmem:[#allocation9 + $0x20d0] sm:$0xff]
    %v1688 = vld [vmem:[#allocation9 + $0x20d8] sm:$0xff]
    %v1689 = vld [vmem:[#allocation9 + $0x20e0] sm:$0xff]
    %v1690 = vld [vmem:[#allocation9 + $0x20e8] sm:$0xff]
    %v1691 = vld [vmem:[#allocation9 + $0x20f0] sm:$0xff]
    %v1692 = vld [vmem:[#allocation9 + $0x20f8] sm:$0xff]
    %v1693 = vld [vmem:[#allocation9 + $0x2100] sm:$0xff]
    %v1694 = vld [vmem:[#allocation9 + $0x2108] sm:$0xff]
    %v1695 = vld [vmem:[#allocation9 + $0x2110] sm:$0xff]
    %v1696 = vld [vmem:[#allocation9 + $0x2118] sm:$0xff]
    %v1697 = vld [vmem:[#allocation9 + $0x2120] sm:$0xff]
    %v1698 = vld [vmem:[#allocation9 + $0x2128] sm:$0xff]
    %v1699 = vld [vmem:[#allocation9 + $0x2130] sm:$0xff]
    %v1700 = vld [vmem:[#allocation9 + $0x2138] sm:$0xff]
    %v1701 = vld [vmem:[#allocation9 + $0x2140] sm:$0xff]
    %v1702 = vld [vmem:[#allocation9 + $0x2148] sm:$0xff]
    %v1703 = vld [vmem:[#allocation9 + $0x2150] sm:$0xff]
    %v1704 = vld [vmem:[#allocation9 + $0x2158] sm:$0xff]
    %v1705 = vld [vmem:[#allocation9 + $0x2160] sm:$0xff]
    %v1706 = vld [vmem:[#allocation9 + $0x2168] sm:$0xff]
    %v1707 = vld [vmem:[#allocation9 + $0x2170] sm:$0xff]
    %v1708 = vld [vmem:[#allocation9 + $0x2178] sm:$0xff]
    %v1709 = vld [vmem:[#allocation9 + $0x2180] sm:$0xff]
    %v1710 = vld [vmem:[#allocation9 + $0x2188] sm:$0xff]
    %v1711 = vld [vmem:[#allocation9 + $0x2190] sm:$0xff]
    %v1712 = vld [vmem:[#allocation9 + $0x2198] sm:$0xff]
    %v1713 = vld [vmem:[#allocation9 + $0x21a0] sm:$0xff]
    %v1714 = vld [vmem:[#allocation9 + $0x21a8] sm:$0xff]
    %v1715 = vld [vmem:[#allocation9 + $0x21b0] sm:$0xff]
    %v1716 = vld [vmem:[#allocation9 + $0x21b8] sm:$0xff]
    %v1717 = vld [vmem:[#allocation9 + $0x21c0] sm:$0xff]
    %v1718 = vld [vmem:[#allocation9 + $0x21c8] sm:$0xff]
    %v1719 = vld [vmem:[#allocation9 + $0x21d0] sm:$0xff]
    %v1720 = vld [vmem:[#allocation9 + $0x21d8] sm:$0xff]
    %v1721 = vld [vmem:[#allocation9 + $0x21e0] sm:$0xff]
    %v1722 = vld [vmem:[#allocation9 + $0x21e8] sm:$0xff]
    %v1723 = vld [vmem:[#allocation9 + $0x21f0] sm:$0xff]
    %v1724 = vld [vmem:[#allocation9 + $0x21f8] sm:$0xff]
    %v1725 = vld [vmem:[#allocation9 + $0x2200] sm:$0xff]
    %v1726 = vld [vmem:[#allocation9 + $0x2208] sm:$0xff]
    %v1727 = vld [vmem:[#allocation9 + $0x2210] sm:$0xff]
    %v1728 = vld [vmem:[#allocation9 + $0x2218] sm:$0xff]
    %v1729 = vld [vmem:[#allocation9 + $0x2220] sm:$0xff]
    %v1730 = vld [vmem:[#allocation9 + $0x2228] sm:$0xff]
    %v1731 = vld [vmem:[#allocation9 + $0x2230] sm:$0xff]
    %v1732 = vld [vmem:[#allocation9 + $0x2238] sm:$0xff]
    %v1733 = vld [vmem:[#allocation9 + $0x2240] sm:$0xff]
    %v1734 = vld [vmem:[#allocation9 + $0x2248] sm:$0xff]
    %v1735 = vld [vmem:[#allocation9 + $0x2250] sm:$0xff]
    %v1736 = vld [vmem:[#allocation9 + $0x2258] sm:$0xff]
    %v1737 = vld [vmem:[#allocation9 + $0x2260] sm:$0xff]
    %v1738 = vld [vmem:[#allocation9 + $0x2268] sm:$0xff]
    %v1739 = vld [vmem:[#allocation9 + $0x2270] sm:$0xff]
    %v1740 = vld [vmem:[#allocation9 + $0x2278] sm:$0xff]
    %v1741 = vld [vmem:[#allocation9 + $0x2280] sm:$0xff]
    %v1742 = vld [vmem:[#allocation9 + $0x2288] sm:$0xff]
    %v1743 = vld [vmem:[#allocation9 + $0x2290] sm:$0xff]
    %v1744 = vld [vmem:[#allocation9 + $0x2298] sm:$0xff]
    %v1745 = vld [vmem:[#allocation9 + $0x22a0] sm:$0xff]
    %v1746 = vld [vmem:[#allocation9 + $0x22a8] sm:$0xff]
    %v1747 = vld [vmem:[#allocation9 + $0x22b0] sm:$0xff]
    %v1748 = vld [vmem:[#allocation9 + $0x22b8] sm:$0xff]
    %v1749 = vld [vmem:[#allocation9 + $0x22c0] sm:$0xff]
    %v1750 = vld [vmem:[#allocation9 + $0x22c8] sm:$0xff]
    %v1751 = vld [vmem:[#allocation9 + $0x22d0] sm:$0xff]
    %v1752 = vld [vmem:[#allocation9 + $0x22d8] sm:$0xff]
    %v1753 = vld [vmem:[#allocation9 + $0x22e0] sm:$0xff]
    %v1754 = vld [vmem:[#allocation9 + $0x22e8] sm:$0xff]
    %v1755 = vld [vmem:[#allocation9 + $0x22f0] sm:$0xff]
    %v1756 = vld [vmem:[#allocation9 + $0x22f8] sm:$0xff]
    %v1757 = vld [vmem:[#allocation9 + $0x2300] sm:$0xff]
    %v1758 = vld [vmem:[#allocation9 + $0x2308] sm:$0xff]
    %v1759 = vld [vmem:[#allocation9 + $0x2310] sm:$0xff]
    %v1760 = vld [vmem:[#allocation9 + $0x2318] sm:$0xff]
    %v1761 = vld [vmem:[#allocation9 + $0x2320] sm:$0xff]
    %v1762 = vld [vmem:[#allocation9 + $0x2328] sm:$0xff]
    %v1763 = vld [vmem:[#allocation9 + $0x2330] sm:$0xff]
    %v1764 = vld [vmem:[#allocation9 + $0x2338] sm:$0xff]
    %v1765 = vld [vmem:[#allocation9 + $0x2340] sm:$0xff]
    %v1766 = vld [vmem:[#allocation9 + $0x2348] sm:$0xff]
    %v1767 = vld [vmem:[#allocation9 + $0x2350] sm:$0xff]
    %v1768 = vld [vmem:[#allocation9 + $0x2358] sm:$0xff]
    %v1769 = vld [vmem:[#allocation9 + $0x2360] sm:$0xff]
    %v1770 = vld [vmem:[#allocation9 + $0x2368] sm:$0xff]
    %v1771 = vld [vmem:[#allocation9 + $0x2370] sm:$0xff]
    %v1772 = vld [vmem:[#allocation9 + $0x2378] sm:$0xff]
    %v1773 = vld [vmem:[#allocation9 + $0x2380] sm:$0xff]
    %v1774 = vld [vmem:[#allocation9 + $0x2388] sm:$0xff]
    %v1775 = vld [vmem:[#allocation9 + $0x2390] sm:$0xff]
    %v1776 = vld [vmem:[#allocation9 + $0x2398] sm:$0xff]
    %v1777 = vld [vmem:[#allocation9 + $0x23a0] sm:$0xff]
    %v1778 = vld [vmem:[#allocation9 + $0x23a8] sm:$0xff]
    %v1779 = vld [vmem:[#allocation9 + $0x23b0] sm:$0xff]
    %v1780 = vld [vmem:[#allocation9 + $0x23b8] sm:$0xff]
    %v1781 = vld [vmem:[#allocation9 + $0x23c0] sm:$0xff]
    %v1782 = vld [vmem:[#allocation9 + $0x23c8] sm:$0xff]
    %v1783 = vld [vmem:[#allocation9 + $0x23d0] sm:$0xff]
    %v1784 = vld [vmem:[#allocation9 + $0x23d8] sm:$0xff]
    %v1785 = vld [vmem:[#allocation9 + $0x23e0] sm:$0xff]
    %v1786 = vld [vmem:[#allocation9 + $0x23e8] sm:$0xff]
    %v1787 = vld [vmem:[#allocation9 + $0x23f0] sm:$0xff]
    %v1788 = vld [vmem:[#allocation9 + $0x23f8] sm:$0xff]
    %v1789 = vld [vmem:[#allocation9 + $0x2400] sm:$0xff]
    %v1790 = vld [vmem:[#allocation9 + $0x2408] sm:$0xff]
    %v1791 = vld [vmem:[#allocation9 + $0x2410] sm:$0xff]
    %v1792 = vld [vmem:[#allocation9 + $0x2418] sm:$0xff]
    %v1793 = vld [vmem:[#allocation9 + $0x2420] sm:$0xff]
    %v1794 = vld [vmem:[#allocation9 + $0x2428] sm:$0xff]
    %v1795 = vld [vmem:[#allocation9 + $0x2430] sm:$0xff]
    %v1796 = vld [vmem:[#allocation9 + $0x2438] sm:$0xff]
    %v1797 = vld [vmem:[#allocation9 + $0x2440] sm:$0xff]
    %v1798 = vld [vmem:[#allocation9 + $0x2448] sm:$0xff]
    %v1799 = vld [vmem:[#allocation9 + $0x2450] sm:$0xff]
    %v1800 = vld [vmem:[#allocation9 + $0x2458] sm:$0xff]
    %v1801 = vld [vmem:[#allocation9 + $0x2460] sm:$0xff]
    %v1802 = vld [vmem:[#allocation9 + $0x2468] sm:$0xff]
    %v1803 = vld [vmem:[#allocation9 + $0x2470] sm:$0xff]
    %v1804 = vld [vmem:[#allocation9 + $0x2478] sm:$0xff]
    %v1805 = vld [vmem:[#allocation9 + $0x2480] sm:$0xff]
    %v1806 = vld [vmem:[#allocation9 + $0x2488] sm:$0xff]
    %v1807 = vld [vmem:[#allocation9 + $0x2490] sm:$0xff]
    %v1808 = vld [vmem:[#allocation9 + $0x2498] sm:$0xff]
    %v1809 = vld [vmem:[#allocation9 + $0x24a0] sm:$0xff]
    %v1810 = vld [vmem:[#allocation9 + $0x24a8] sm:$0xff]
    %v1811 = vld [vmem:[#allocation9 + $0x24b0] sm:$0xff]
    %v1812 = vld [vmem:[#allocation9 + $0x24b8] sm:$0xff]
    %v1813 = vld [vmem:[#allocation9 + $0x24c0] sm:$0xff]
    %v1814 = vld [vmem:[#allocation9 + $0x24c8] sm:$0xff]
    %v1815 = vld [vmem:[#allocation9 + $0x24d0] sm:$0xff]
    %v1816 = vld [vmem:[#allocation9 + $0x24d8] sm:$0xff]
    %v1817 = vld [vmem:[#allocation9 + $0x24e0] sm:$0xff]
    %v1818 = vld [vmem:[#allocation9 + $0x24e8] sm:$0xff]
    %v1819 = vld [vmem:[#allocation9 + $0x24f0] sm:$0xff]
    %v1820 = vld [vmem:[#allocation9 + $0x24f8] sm:$0xff]
    %v1821 = vld [vmem:[#allocation9 + $0x2500] sm:$0xff]
    %v1822 = vld [vmem:[#allocation9 + $0x2508] sm:$0xff]
    %v1823 = vld [vmem:[#allocation9 + $0x2510] sm:$0xff]
    %v1824 = vld [vmem:[#allocation9 + $0x2518] sm:$0xff]
    %v1825 = vld [vmem:[#allocation9 + $0x2520] sm:$0xff]
    %v1826 = vld [vmem:[#allocation9 + $0x2528] sm:$0xff]
    %v1827 = vld [vmem:[#allocation9 + $0x2530] sm:$0xff]
    %v1828 = vld [vmem:[#allocation9 + $0x2538] sm:$0xff]
    %v1829 = vld [vmem:[#allocation9 + $0x2540] sm:$0xff]
    %v1830 = vld [vmem:[#allocation9 + $0x2548] sm:$0xff]
    %v1831 = vld [vmem:[#allocation9 + $0x2550] sm:$0xff]
    %v1832 = vld [vmem:[#allocation9 + $0x2558] sm:$0xff]
    %v1833 = vld [vmem:[#allocation9 + $0x2560] sm:$0xff]
    %v1834 = vld [vmem:[#allocation9 + $0x2568] sm:$0xff]
    %v1835 = vld [vmem:[#allocation9 + $0x2570] sm:$0xff]
    %v1836 = vld [vmem:[#allocation9 + $0x2578] sm:$0xff]
    %v1837 = vld [vmem:[#allocation9 + $0x2580] sm:$0xff]
    %v1838 = vld [vmem:[#allocation9 + $0x2588] sm:$0xff]
    %v1839 = vld [vmem:[#allocation9 + $0x2590] sm:$0xff]
    %v1840 = vld [vmem:[#allocation9 + $0x2598] sm:$0xff]
    %v1841 = vld [vmem:[#allocation9 + $0x25a0] sm:$0xff]
    %v1842 = vld [vmem:[#allocation9 + $0x25a8] sm:$0xff]
    %v1843 = vld [vmem:[#allocation9 + $0x25b0] sm:$0xff]
    %v1844 = vld [vmem:[#allocation9 + $0x25b8] sm:$0xff]
    %v1845 = vld [vmem:[#allocation9 + $0x25c0] sm:$0xff]
    %v1846 = vld [vmem:[#allocation9 + $0x25c8] sm:$0xff]
    %v1847 = vld [vmem:[#allocation9 + $0x25d0] sm:$0xff]
    %v1848 = vld [vmem:[#allocation9 + $0x25d8] sm:$0xff]
    %v1849 = vld [vmem:[#allocation9 + $0x25e0] sm:$0xff]
    %v1850 = vld [vmem:[#allocation9 + $0x25e8] sm:$0xff]
    %v1851 = vld [vmem:[#allocation9 + $0x25f0] sm:$0xff]
    %v1852 = vld [vmem:[#allocation9 + $0x25f8] sm:$0xff]
    %v1853 = vld [vmem:[#allocation9 + $0x2600] sm:$0xff]
    %v1854 = vld [vmem:[#allocation9 + $0x2608] sm:$0xff]
    %v1855 = vld [vmem:[#allocation9 + $0x2610] sm:$0xff]
    %v1856 = vld [vmem:[#allocation9 + $0x2618] sm:$0xff]
    %v1857 = vld [vmem:[#allocation9 + $0x2620] sm:$0xff]
    %v1858 = vld [vmem:[#allocation9 + $0x2628] sm:$0xff]
    %v1859 = vld [vmem:[#allocation9 + $0x2630] sm:$0xff]
    %v1860 = vld [vmem:[#allocation9 + $0x2638] sm:$0xff]
    %v1861 = vld [vmem:[#allocation9 + $0x2640] sm:$0xff]
    %v1862 = vld [vmem:[#allocation9 + $0x2648] sm:$0xff]
    %v1863 = vld [vmem:[#allocation9 + $0x2650] sm:$0xff]
    %v1864 = vld [vmem:[#allocation9 + $0x2658] sm:$0xff]
    %v1865 = vld [vmem:[#allocation9 + $0x2660] sm:$0xff]
    %v1866 = vld [vmem:[#allocation9 + $0x2668] sm:$0xff]
    %v1867 = vld [vmem:[#allocation9 + $0x2670] sm:$0xff]
    %v1868 = vld [vmem:[#allocation9 + $0x2678] sm:$0xff]
    %v1869 = vld [vmem:[#allocation9 + $0x2680] sm:$0xff]
    %v1870 = vld [vmem:[#allocation9 + $0x2688] sm:$0xff]
    %v1871 = vld [vmem:[#allocation9 + $0x2690] sm:$0xff]
    %v1872 = vld [vmem:[#allocation9 + $0x2698] sm:$0xff]
    %v1873 = vld [vmem:[#allocation9 + $0x26a0] sm:$0xff]
    %v1874 = vld [vmem:[#allocation9 + $0x26a8] sm:$0xff]
    %v1875 = vld [vmem:[#allocation9 + $0x26b0] sm:$0xff]
    %v1876 = vld [vmem:[#allocation9 + $0x26b8] sm:$0xff]
    %v1877 = vld [vmem:[#allocation9 + $0x26c0] sm:$0xff]
    %v1878 = vld [vmem:[#allocation9 + $0x26c8] sm:$0xff]
    %v1879 = vld [vmem:[#allocation9 + $0x26d0] sm:$0xff]
    %v1880 = vld [vmem:[#allocation9 + $0x26d8] sm:$0xff]
    %v1881 = vld [vmem:[#allocation9 + $0x26e0] sm:$0xff]
    %v1882 = vld [vmem:[#allocation9 + $0x26e8] sm:$0xff]
    %v1883 = vld [vmem:[#allocation9 + $0x26f0] sm:$0xff]
    %v1884 = vld [vmem:[#allocation9 + $0x26f8] sm:$0xff]
    %v1885 = vld [vmem:[#allocation9 + $0x2700] sm:$0xff]
    %v1886 = vld [vmem:[#allocation9 + $0x2708] sm:$0xff]
    %v1887 = vld [vmem:[#allocation9 + $0x2710] sm:$0xff]
    %v1888 = vld [vmem:[#allocation9 + $0x2718] sm:$0xff]
    %v1889 = vld [vmem:[#allocation9 + $0x2720] sm:$0xff]
    %v1890 = vld [vmem:[#allocation9 + $0x2728] sm:$0xff]
    %v1891 = vld [vmem:[#allocation9 + $0x2730] sm:$0xff]
    %v1892 = vld [vmem:[#allocation9 + $0x2738] sm:$0xff]
    %v1893 = vld [vmem:[#allocation9 + $0x2740] sm:$0xff]
    %v1894 = vld [vmem:[#allocation9 + $0x2748] sm:$0xff]
    %v1895 = vld [vmem:[#allocation9 + $0x2750] sm:$0xff]
    %v1896 = vld [vmem:[#allocation9 + $0x2758] sm:$0xff]
    %v1897 = vld [vmem:[#allocation9 + $0x2760] sm:$0xff]
    %v1898 = vld [vmem:[#allocation9 + $0x2768] sm:$0xff]
    %v1899 = vld [vmem:[#allocation9 + $0x2770] sm:$0xff]
    %v1900 = vld [vmem:[#allocation9 + $0x2778] sm:$0xff]
    %v1901 = vld [vmem:[#allocation9 + $0x2780] sm:$0xff]
    %v1902 = vld [vmem:[#allocation9 + $0x2788] sm:$0xff]
    %v1903 = vld [vmem:[#allocation9 + $0x2790] sm:$0xff]
    %v1904 = vld [vmem:[#allocation9 + $0x2798] sm:$0xff]
    %v1905 = vld [vmem:[#allocation9 + $0x27a0] sm:$0xff]
    %v1906 = vld [vmem:[#allocation9 + $0x27a8] sm:$0xff]
    %v1907 = vld [vmem:[#allocation9 + $0x27b0] sm:$0xff]
    %v1908 = vld [vmem:[#allocation9 + $0x27b8] sm:$0xff]
    %v1909 = vld [vmem:[#allocation9 + $0x27c0] sm:$0xff]
    %v1910 = vld [vmem:[#allocation9 + $0x27c8] sm:$0xff]
    %v1911 = vld [vmem:[#allocation9 + $0x27d0] sm:$0xff]
    %v1912 = vld [vmem:[#allocation9 + $0x27d8] sm:$0xff]
    %v1913 = vld [vmem:[#allocation9 + $0x27e0] sm:$0xff]
    %v1914 = vld [vmem:[#allocation9 + $0x27e8] sm:$0xff]
    %v1915 = vld [vmem:[#allocation9 + $0x27f0] sm:$0xff]
    %v1916 = vld [vmem:[#allocation9 + $0x27f8] sm:$0xff]
    %v1917 = vld [vmem:[#allocation9 + $0x2800] sm:$0xff]
    %v1918 = vld [vmem:[#allocation9 + $0x2808] sm:$0xff]
    %v1919 = vld [vmem:[#allocation9 + $0x2810] sm:$0xff]
    %v1920 = vld [vmem:[#allocation9 + $0x2818] sm:$0xff]
    %v1921 = vld [vmem:[#allocation9 + $0x2820] sm:$0xff]
    %v1922 = vld [vmem:[#allocation9 + $0x2828] sm:$0xff]
    %v1923 = vld [vmem:[#allocation9 + $0x2830] sm:$0xff]
    %v1924 = vld [vmem:[#allocation9 + $0x2838] sm:$0xff]
    %v1925 = vld [vmem:[#allocation9 + $0x2840] sm:$0xff]
    %v1926 = vld [vmem:[#allocation9 + $0x2848] sm:$0xff]
    %v1927 = vld [vmem:[#allocation9 + $0x2850] sm:$0xff]
    %v1928 = vld [vmem:[#allocation9 + $0x2858] sm:$0xff]
    %v1929 = vld [vmem:[#allocation9 + $0x2860] sm:$0xff]
    %v1930 = vld [vmem:[#allocation9 + $0x2868] sm:$0xff]
    %v1931 = vld [vmem:[#allocation9 + $0x2870] sm:$0xff]
    %v1932 = vld [vmem:[#allocation9 + $0x2878] sm:$0xff]
    %v1933 = vld [vmem:[#allocation9 + $0x2880] sm:$0xff]
    %v1934 = vld [vmem:[#allocation9 + $0x2888] sm:$0xff]
    %v1935 = vld [vmem:[#allocation9 + $0x2890] sm:$0xff]
    %v1936 = vld [vmem:[#allocation9 + $0x2898] sm:$0xff]
    %v1937 = vld [vmem:[#allocation9 + $0x28a0] sm:$0xff]
    %v1938 = vld [vmem:[#allocation9 + $0x28a8] sm:$0xff]
    %v1939 = vld [vmem:[#allocation9 + $0x28b0] sm:$0xff]
    %v1940 = vld [vmem:[#allocation9 + $0x28b8] sm:$0xff]
    %v1941 = vld [vmem:[#allocation9 + $0x28c0] sm:$0xff]
    %v1942 = vld [vmem:[#allocation9 + $0x28c8] sm:$0xff]
    %v1943 = vld [vmem:[#allocation9 + $0x28d0] sm:$0xff]
    %v1944 = vld [vmem:[#allocation9 + $0x28d8] sm:$0xff]
    %v1945 = vld [vmem:[#allocation9 + $0x28e0] sm:$0xff]
    %v1946 = vld [vmem:[#allocation9 + $0x28e8] sm:$0xff]
    %v1947 = vld [vmem:[#allocation9 + $0x28f0] sm:$0xff]
    %v1948 = vld [vmem:[#allocation9 + $0x28f8] sm:$0xff]
    %v1949 = vld [vmem:[#allocation9 + $0x2900] sm:$0xff]
    %v1950 = vld [vmem:[#allocation9 + $0x2908] sm:$0xff]
    %v1951 = vld [vmem:[#allocation9 + $0x2910] sm:$0xff]
    %v1952 = vld [vmem:[#allocation9 + $0x2918] sm:$0xff]
    %v1953 = vld [vmem:[#allocation9 + $0x2920] sm:$0xff]
    %v1954 = vld [vmem:[#allocation9 + $0x2928] sm:$0xff]
    %v1955 = vld [vmem:[#allocation9 + $0x2930] sm:$0xff]
    %v1956 = vld [vmem:[#allocation9 + $0x2938] sm:$0xff]
    %v1957 = vld [vmem:[#allocation9 + $0x2940] sm:$0xff]
    %v1958 = vld [vmem:[#allocation9 + $0x2948] sm:$0xff]
    %v1959 = vld [vmem:[#allocation9 + $0x2950] sm:$0xff]
    %v1960 = vld [vmem:[#allocation9 + $0x2958] sm:$0xff]
    %v1961 = vld [vmem:[#allocation9 + $0x2960] sm:$0xff]
    %v1962 = vld [vmem:[#allocation9 + $0x2968] sm:$0xff]
    %v1963 = vld [vmem:[#allocation9 + $0x2970] sm:$0xff]
    %v1964 = vld [vmem:[#allocation9 + $0x2978] sm:$0xff]
    %v1965 = vld [vmem:[#allocation9 + $0x2980] sm:$0xff]
    %v1966 = vld [vmem:[#allocation9 + $0x2988] sm:$0xff]
    %v1967 = vld [vmem:[#allocation9 + $0x2990] sm:$0xff]
    %v1968 = vld [vmem:[#allocation9 + $0x2998] sm:$0xff]
    %v1969 = vld [vmem:[#allocation9 + $0x29a0] sm:$0xff]
    %v1970 = vld [vmem:[#allocation9 + $0x29a8] sm:$0xff]
    %v1971 = vld [vmem:[#allocation9 + $0x29b0] sm:$0xff]
    %v1972 = vld [vmem:[#allocation9 + $0x29b8] sm:$0xff]
    %v1973 = vld [vmem:[#allocation9 + $0x29c0] sm:$0xff]
    %v1974 = vld [vmem:[#allocation9 + $0x29c8] sm:$0xff]
    %v1975 = vld [vmem:[#allocation9 + $0x29d0] sm:$0xff]
    %v1976 = vld [vmem:[#allocation9 + $0x29d8] sm:$0xff]
    %v1977 = vld [vmem:[#allocation9 + $0x29e0] sm:$0xff]
    %v1978 = vld [vmem:[#allocation9 + $0x29e8] sm:$0xff]
    %v1979 = vld [vmem:[#allocation9 + $0x29f0] sm:$0xff]
    %v1980 = vld [vmem:[#allocation9 + $0x29f8] sm:$0xff]
    %v1981 = vld [vmem:[#allocation9 + $0x2a00] sm:$0xff]
    %v1982 = vld [vmem:[#allocation9 + $0x2a08] sm:$0xff]
    %v1983 = vld [vmem:[#allocation9 + $0x2a10] sm:$0xff]
    %v1984 = vld [vmem:[#allocation9 + $0x2a18] sm:$0xff]
    %v1985 = vld [vmem:[#allocation9 + $0x2a20] sm:$0xff]
    %v1986 = vld [vmem:[#allocation9 + $0x2a28] sm:$0xff]
    %v1987 = vld [vmem:[#allocation9 + $0x2a30] sm:$0xff]
    %v1988 = vld [vmem:[#allocation9 + $0x2a38] sm:$0xff]
    %v1989 = vld [vmem:[#allocation9 + $0x2a40] sm:$0xff]
    %v1990 = vld [vmem:[#allocation9 + $0x2a48] sm:$0xff]
    %v1991 = vld [vmem:[#allocation9 + $0x2a50] sm:$0xff]
    %v1992 = vld [vmem:[#allocation9 + $0x2a58] sm:$0xff]
    %v1993 = vld [vmem:[#allocation9 + $0x2a60] sm:$0xff]
    %v1994 = vld [vmem:[#allocation9 + $0x2a68] sm:$0xff]
    %v1995 = vld [vmem:[#allocation9 + $0x2a70] sm:$0xff]
    %v1996 = vld [vmem:[#allocation9 + $0x2a78] sm:$0xff]
    %v1997 = vld [vmem:[#allocation9 + $0x2a80] sm:$0xff]
    %v1998 = vld [vmem:[#allocation9 + $0x2a88] sm:$0xff]
    %v1999 = vld [vmem:[#allocation9 + $0x2a90] sm:$0xff]
    %v2000 = vld [vmem:[#allocation9 + $0x2a98] sm:$0xff]
    %v2001 = vld [vmem:[#allocation9 + $0x2aa0] sm:$0xff]
    %v2002 = vld [vmem:[#allocation9 + $0x2aa8] sm:$0xff]
    %v2003 = vld [vmem:[#allocation9 + $0x2ab0] sm:$0xff]
    %v2004 = vld [vmem:[#allocation9 + $0x2ab8] sm:$0xff]
    %v2005 = vld [vmem:[#allocation9 + $0x2ac0] sm:$0xff]
    %v2006 = vld [vmem:[#allocation9 + $0x2ac8] sm:$0xff]
    %v2007 = vld [vmem:[#allocation9 + $0x2ad0] sm:$0xff]
    %v2008 = vld [vmem:[#allocation9 + $0x2ad8] sm:$0xff]
    %v2009 = vld [vmem:[#allocation9 + $0x2ae0] sm:$0xff]
    %v2010 = vld [vmem:[#allocation9 + $0x2ae8] sm:$0xff]
    %v2011 = vld [vmem:[#allocation9 + $0x2af0] sm:$0xff]
    %v2012 = vld [vmem:[#allocation9 + $0x2af8] sm:$0xff]
    %v2013 = vld [vmem:[#allocation9 + $0x2b00] sm:$0xff]
    %v2014 = vld [vmem:[#allocation9 + $0x2b08] sm:$0xff]
    %v2015 = vld [vmem:[#allocation9 + $0x2b10] sm:$0xff]
    %v2016 = vld [vmem:[#allocation9 + $0x2b18] sm:$0xff]
    %v2017 = vld [vmem:[#allocation9 + $0x2b20] sm:$0xff]
    %v2018 = vld [vmem:[#allocation9 + $0x2b28] sm:$0xff]
    %v2019 = vld [vmem:[#allocation9 + $0x2b30] sm:$0xff]
    %v2020 = vld [vmem:[#allocation9 + $0x2b38] sm:$0xff]
    %v2021 = vld [vmem:[#allocation9 + $0x2b40] sm:$0xff]
    %v2022 = vld [vmem:[#allocation9 + $0x2b48] sm:$0xff]
    %v2023 = vld [vmem:[#allocation9 + $0x2b50] sm:$0xff]
    %v2024 = vld [vmem:[#allocation9 + $0x2b58] sm:$0xff]
    %v2025 = vld [vmem:[#allocation9 + $0x2b60] sm:$0xff]
    %v2026 = vld [vmem:[#allocation9 + $0x2b68] sm:$0xff]
    %v2027 = vld [vmem:[#allocation9 + $0x2b70] sm:$0xff]
    %v2028 = vld [vmem:[#allocation9 + $0x2b78] sm:$0xff]
    %v2029 = vld [vmem:[#allocation9 + $0x2b80] sm:$0xff]
    %v2030 = vld [vmem:[#allocation9 + $0x2b88] sm:$0xff]
    %v2031 = vld [vmem:[#allocation9 + $0x2b90] sm:$0xff]
    %v2032 = vld [vmem:[#allocation9 + $0x2b98] sm:$0xff]
    %v2033 = vld [vmem:[#allocation9 + $0x2ba0] sm:$0xff]
    %v2034 = vld [vmem:[#allocation9 + $0x2ba8] sm:$0xff]
    %v2035 = vld [vmem:[#allocation9 + $0x2bb0] sm:$0xff]
    %v2036 = vld [vmem:[#allocation9 + $0x2bb8] sm:$0xff]
    %v2037 = vld [vmem:[#allocation9 + $0x2bc0] sm:$0xff]
    %v2038 = vld [vmem:[#allocation9 + $0x2bc8] sm:$0xff]
    %v2039 = vld [vmem:[#allocation9 + $0x2bd0] sm:$0xff]
    %v2040 = vld [vmem:[#allocation9 + $0x2bd8] sm:$0xff]
    %v2041 = vld [vmem:[#allocation9 + $0x2be0] sm:$0xff]
    %v2042 = vld [vmem:[#allocation9 + $0x2be8] sm:$0xff]
    %v2043 = vld [vmem:[#allocation9 + $0x2bf0] sm:$0xff]
    %v2044 = vld [vmem:[#allocation9 + $0x2bf8] sm:$0xff]
    %v2045 = vld [vmem:[#allocation9 + $0x2c00] sm:$0xff]
    %v2046 = vld [vmem:[#allocation9 + $0x2c08] sm:$0xff]
    %v2047 = vld [vmem:[#allocation9 + $0x2c10] sm:$0xff]
    %v2048 = vld [vmem:[#allocation9 + $0x2c18] sm:$0xff]
    %v2049 = vld [vmem:[#allocation9 + $0x2c20] sm:$0xff]
    %v2050 = vld [vmem:[#allocation9 + $0x2c28] sm:$0xff]
    %v2051 = vld [vmem:[#allocation9 + $0x2c30] sm:$0xff]
    %v2052 = vld [vmem:[#allocation9 + $0x2c38] sm:$0xff]
    %v2053 = vld [vmem:[#allocation9 + $0x2c40] sm:$0xff]
    %v2054 = vld [vmem:[#allocation9 + $0x2c48] sm:$0xff]
    %v2055 = vld [vmem:[#allocation9 + $0x2c50] sm:$0xff]
    %v2056 = vld [vmem:[#allocation9 + $0x2c58] sm:$0xff]
    %v2057 = vld [vmem:[#allocation9 + $0x2c60] sm:$0xff]
    %v2058 = vld [vmem:[#allocation9 + $0x2c68] sm:$0xff]
    %v2059 = vld [vmem:[#allocation9 + $0x2c70] sm:$0xff]
    %v2060 = vld [vmem:[#allocation9 + $0x2c78] sm:$0xff]
    %v2061 = vld [vmem:[#allocation9 + $0x2c80] sm:$0xff]
    %v2062 = vld [vmem:[#allocation9 + $0x2c88] sm:$0xff]
    %v2063 = vld [vmem:[#allocation9 + $0x2c90] sm:$0xff]
    %v2064 = vld [vmem:[#allocation9 + $0x2c98] sm:$0xff]
    %v2065 = vld [vmem:[#allocation9 + $0x2ca0] sm:$0xff]
    %v2066 = vld [vmem:[#allocation9 + $0x2ca8] sm:$0xff]
    %v2067 = vld [vmem:[#allocation9 + $0x2cb0] sm:$0xff]
    %v2068 = vld [vmem:[#allocation9 + $0x2cb8] sm:$0xff]
    %v2069 = vld [vmem:[#allocation9 + $0x2cc0] sm:$0xff]
    %v2070 = vld [vmem:[#allocation9 + $0x2cc8] sm:$0xff]
    %v2071 = vld [vmem:[#allocation9 + $0x2cd0] sm:$0xff]
    %v2072 = vld [vmem:[#allocation9 + $0x2cd8] sm:$0xff]
    %v2073 = vld [vmem:[#allocation9 + $0x2ce0] sm:$0xff]
    %v2074 = vld [vmem:[#allocation9 + $0x2ce8] sm:$0xff]
    %v2075 = vld [vmem:[#allocation9 + $0x2cf0] sm:$0xff]
    %v2076 = vld [vmem:[#allocation9 + $0x2cf8] sm:$0xff]
    %v2077 = vld [vmem:[#allocation9 + $0x2d00] sm:$0xff]
    %v2078 = vld [vmem:[#allocation9 + $0x2d08] sm:$0xff]
    %v2079 = vld [vmem:[#allocation9 + $0x2d10] sm:$0xff]
    %v2080 = vld [vmem:[#allocation9 + $0x2d18] sm:$0xff]
    %v2081 = vld [vmem:[#allocation9 + $0x2d20] sm:$0xff]
    %v2082 = vld [vmem:[#allocation9 + $0x2d28] sm:$0xff]
    %v2083 = vld [vmem:[#allocation9 + $0x2d30] sm:$0xff]
    %v2084 = vld [vmem:[#allocation9 + $0x2d38] sm:$0xff]
    %v2085 = vld [vmem:[#allocation9 + $0x2d40] sm:$0xff]
    %v2086 = vld [vmem:[#allocation9 + $0x2d48] sm:$0xff]
    %v2087 = vld [vmem:[#allocation9 + $0x2d50] sm:$0xff]
    %v2088 = vld [vmem:[#allocation9 + $0x2d58] sm:$0xff]
    %v2089 = vld [vmem:[#allocation9 + $0x2d60] sm:$0xff]
    %v2090 = vld [vmem:[#allocation9 + $0x2d68] sm:$0xff]
    %v2091 = vld [vmem:[#allocation9 + $0x2d70] sm:$0xff]
    %v2092 = vld [vmem:[#allocation9 + $0x2d78] sm:$0xff]
    %v2093 = vld [vmem:[#allocation9 + $0x2d80] sm:$0xff]
    %v2094 = vld [vmem:[#allocation9 + $0x2d88] sm:$0xff]
    %v2095 = vld [vmem:[#allocation9 + $0x2d90] sm:$0xff]
    %v2096 = vld [vmem:[#allocation9 + $0x2d98] sm:$0xff]
    %v2097 = vld [vmem:[#allocation9 + $0x2da0] sm:$0xff]
    %v2098 = vld [vmem:[#allocation9 + $0x2da8] sm:$0xff]
    %v2099 = vld [vmem:[#allocation9 + $0x2db0] sm:$0xff]
    %v2100 = vld [vmem:[#allocation9 + $0x2db8] sm:$0xff]
    %v2101 = vld [vmem:[#allocation9 + $0x2dc0] sm:$0xff]
    %v2102 = vld [vmem:[#allocation9 + $0x2dc8] sm:$0xff]
    %v2103 = vld [vmem:[#allocation9 + $0x2dd0] sm:$0xff]
    %v2104 = vld [vmem:[#allocation9 + $0x2dd8] sm:$0xff]
    %v2105 = vld [vmem:[#allocation9 + $0x2de0] sm:$0xff]
    %v2106 = vld [vmem:[#allocation9 + $0x2de8] sm:$0xff]
    %v2107 = vld [vmem:[#allocation9 + $0x2df0] sm:$0xff]
    %v2108 = vld [vmem:[#allocation9 + $0x2df8] sm:$0xff]
    %v2109 = vld [vmem:[#allocation9 + $0x2e00] sm:$0xff]
    %v2110 = vld [vmem:[#allocation9 + $0x2e08] sm:$0xff]
    %v2111 = vld [vmem:[#allocation9 + $0x2e10] sm:$0xff]
    %v2112 = vld [vmem:[#allocation9 + $0x2e18] sm:$0xff]
    %v2113 = vld [vmem:[#allocation9 + $0x2e20] sm:$0xff]
    %v2114 = vld [vmem:[#allocation9 + $0x2e28] sm:$0xff]
    %v2115 = vld [vmem:[#allocation9 + $0x2e30] sm:$0xff]
    %v2116 = vld [vmem:[#allocation9 + $0x2e38] sm:$0xff]
    %v2117 = vld [vmem:[#allocation9 + $0x2e40] sm:$0xff]
    %v2118 = vld [vmem:[#allocation9 + $0x2e48] sm:$0xff]
    %v2119 = vld [vmem:[#allocation9 + $0x2e50] sm:$0xff]
    %v2120 = vld [vmem:[#allocation9 + $0x2e58] sm:$0xff]
    %v2121 = vld [vmem:[#allocation9 + $0x2e60] sm:$0xff]
    %v2122 = vld [vmem:[#allocation9 + $0x2e68] sm:$0xff]
    %v2123 = vld [vmem:[#allocation9 + $0x2e70] sm:$0xff]
    %v2124 = vld [vmem:[#allocation9 + $0x2e78] sm:$0xff]
    %v2125 = vld [vmem:[#allocation9 + $0x2e80] sm:$0xff]
    %v2126 = vld [vmem:[#allocation9 + $0x2e88] sm:$0xff]
    %v2127 = vld [vmem:[#allocation9 + $0x2e90] sm:$0xff]
    %v2128 = vld [vmem:[#allocation9 + $0x2e98] sm:$0xff]
    %v2129 = vld [vmem:[#allocation9 + $0x2ea0] sm:$0xff]
    %v2130 = vld [vmem:[#allocation9 + $0x2ea8] sm:$0xff]
    %v2131 = vld [vmem:[#allocation9 + $0x2eb0] sm:$0xff]
    %v2132 = vld [vmem:[#allocation9 + $0x2eb8] sm:$0xff]
    %v2133 = vld [vmem:[#allocation9 + $0x2ec0] sm:$0xff]
    %v2134 = vld [vmem:[#allocation9 + $0x2ec8] sm:$0xff]
    %v2135 = vld [vmem:[#allocation9 + $0x2ed0] sm:$0xff]
    %v2136 = vld [vmem:[#allocation9 + $0x2ed8] sm:$0xff]
    %v2137 = vld [vmem:[#allocation9 + $0x2ee0] sm:$0xff]
    %v2138 = vld [vmem:[#allocation9 + $0x2ee8] sm:$0xff]
    %v2139 = vld [vmem:[#allocation9 + $0x2ef0] sm:$0xff]
    %v2140 = vld [vmem:[#allocation9 + $0x2ef8] sm:$0xff]
    %v2141 = vld [vmem:[#allocation9 + $0x2f00] sm:$0xff]
    %v2142 = vld [vmem:[#allocation9 + $0x2f08] sm:$0xff]
    %v2143 = vld [vmem:[#allocation9 + $0x2f10] sm:$0xff]
    %v2144 = vld [vmem:[#allocation9 + $0x2f18] sm:$0xff]
    %v2145 = vld [vmem:[#allocation9 + $0x2f20] sm:$0xff]
    %v2146 = vld [vmem:[#allocation9 + $0x2f28] sm:$0xff]
    %v2147 = vld [vmem:[#allocation9 + $0x2f30] sm:$0xff]
    %v2148 = vld [vmem:[#allocation9 + $0x2f38] sm:$0xff]
    %v2149 = vld [vmem:[#allocation9 + $0x2f40] sm:$0xff]
    %v2150 = vld [vmem:[#allocation9 + $0x2f48] sm:$0xff]
    %v2151 = vld [vmem:[#allocation9 + $0x2f50] sm:$0xff]
    %v2152 = vld [vmem:[#allocation9 + $0x2f58] sm:$0xff]
    %v2153 = vld [vmem:[#allocation9 + $0x2f60] sm:$0xff]
    %v2154 = vld [vmem:[#allocation9 + $0x2f68] sm:$0xff]
    %v2155 = vld [vmem:[#allocation9 + $0x2f70] sm:$0xff]
    %v2156 = vld [vmem:[#allocation9 + $0x2f78] sm:$0xff]
    %v2157 = vld [vmem:[#allocation9 + $0x2f80] sm:$0xff]
    %v2158 = vld [vmem:[#allocation9 + $0x2f88] sm:$0xff]
    %v2159 = vld [vmem:[#allocation9 + $0x2f90] sm:$0xff]
    %v2160 = vld [vmem:[#allocation9 + $0x2f98] sm:$0xff]
    %v2161 = vld [vmem:[#allocation9 + $0x2fa0] sm:$0xff]
    %v2162 = vld [vmem:[#allocation9 + $0x2fa8] sm:$0xff]
    %v2163 = vld [vmem:[#allocation9 + $0x2fb0] sm:$0xff]
    %v2164 = vld [vmem:[#allocation9 + $0x2fb8] sm:$0xff]
    %v2165 = vld [vmem:[#allocation9 + $0x2fc0] sm:$0xff]
    %v2166 = vld [vmem:[#allocation9 + $0x2fc8] sm:$0xff]
    %v2167 = vld [vmem:[#allocation9 + $0x2fd0] sm:$0xff]
    %v2168 = vld [vmem:[#allocation9 + $0x2fd8] sm:$0xff]
    %v2169 = vld [vmem:[#allocation9 + $0x2fe0] sm:$0xff]
    %v2170 = vld [vmem:[#allocation9 + $0x2fe8] sm:$0xff]
    %v2171 = vld [vmem:[#allocation9 + $0x2ff0] sm:$0xff]
    %v2172 = vld [vmem:[#allocation9 + $0x2ff8] sm:$0xff]
    %v2173 = vld [vmem:[#allocation9 + $0x3000] sm:$0xff]
    %v2174 = vld [vmem:[#allocation9 + $0x3008] sm:$0xff]
    %v2175 = vld [vmem:[#allocation9 + $0x3010] sm:$0xff]
    %v2176 = vld [vmem:[#allocation9 + $0x3018] sm:$0xff]
    %v2177 = vld [vmem:[#allocation9 + $0x3020] sm:$0xff]
    %v2178 = vld [vmem:[#allocation9 + $0x3028] sm:$0xff]
    %v2179 = vld [vmem:[#allocation9 + $0x3030] sm:$0xff]
    %v2180 = vld [vmem:[#allocation9 + $0x3038] sm:$0xff]
    %v2181 = vld [vmem:[#allocation9 + $0x3040] sm:$0xff]
    %v2182 = vld [vmem:[#allocation9 + $0x3048] sm:$0xff]
    %v2183 = vld [vmem:[#allocation9 + $0x3050] sm:$0xff]
    %v2184 = vld [vmem:[#allocation9 + $0x3058] sm:$0xff]
    %v2185 = vld [vmem:[#allocation9 + $0x3060] sm:$0xff]
    %v2186 = vld [vmem:[#allocation9 + $0x3068] sm:$0xff]
    %v2187 = vld [vmem:[#allocation9 + $0x3070] sm:$0xff]
    %v2188 = vld [vmem:[#allocation9 + $0x3078] sm:$0xff]
    %v2189 = vld [vmem:[#allocation9 + $0x3080] sm:$0xff]
    %v2190 = vld [vmem:[#allocation9 + $0x3088] sm:$0xff]
    %v2191 = vld [vmem:[#allocation9 + $0x3090] sm:$0xff]
    %v2192 = vld [vmem:[#allocation9 + $0x3098] sm:$0xff]
    %v2193 = vld [vmem:[#allocation9 + $0x30a0] sm:$0xff]
    %v2194 = vld [vmem:[#allocation9 + $0x30a8] sm:$0xff]
    %v2195 = vld [vmem:[#allocation9 + $0x30b0] sm:$0xff]
    %v2196 = vld [vmem:[#allocation9 + $0x30b8] sm:$0xff]
    %v2197 = vld [vmem:[#allocation9 + $0x30c0] sm:$0xff]
    %v2198 = vld [vmem:[#allocation9 + $0x30c8] sm:$0xff]
    %v2199 = vld [vmem:[#allocation9 + $0x30d0] sm:$0xff]
    %v2200 = vld [vmem:[#allocation9 + $0x30d8] sm:$0xff]
    %v2201 = vld [vmem:[#allocation9 + $0x30e0] sm:$0xff]
    %v2202 = vld [vmem:[#allocation9 + $0x30e8] sm:$0xff]
    %v2203 = vld [vmem:[#allocation9 + $0x30f0] sm:$0xff]
    %v2204 = vld [vmem:[#allocation9 + $0x30f8] sm:$0xff]
    %v2205 = vld [vmem:[#allocation9 + $0x3100] sm:$0xff]
    %v2206 = vld [vmem:[#allocation9 + $0x3108] sm:$0xff]
    %v2207 = vld [vmem:[#allocation9 + $0x3110] sm:$0xff]
    %v2208 = vld [vmem:[#allocation9 + $0x3118] sm:$0xff]
    %v2209 = vld [vmem:[#allocation9 + $0x3120] sm:$0xff]
    %v2210 = vld [vmem:[#allocation9 + $0x3128] sm:$0xff]
    %v2211 = vld [vmem:[#allocation9 + $0x3130] sm:$0xff]
    %v2212 = vld [vmem:[#allocation9 + $0x3138] sm:$0xff]
    %v2213 = vld [vmem:[#allocation9 + $0x3140] sm:$0xff]
    %v2214 = vld [vmem:[#allocation9 + $0x3148] sm:$0xff]
    %v2215 = vld [vmem:[#allocation9 + $0x3150] sm:$0xff]
    %v2216 = vld [vmem:[#allocation9 + $0x3158] sm:$0xff]
    %v2217 = vld [vmem:[#allocation9 + $0x3160] sm:$0xff]
    %v2218 = vld [vmem:[#allocation9 + $0x3168] sm:$0xff]
    %v2219 = vld [vmem:[#allocation9 + $0x3170] sm:$0xff]
    %v2220 = vld [vmem:[#allocation9 + $0x3178] sm:$0xff]
    %v2221 = vld [vmem:[#allocation9 + $0x3180] sm:$0xff]
    %v2222 = vld [vmem:[#allocation9 + $0x3188] sm:$0xff]
    %v2223 = vld [vmem:[#allocation9 + $0x3190] sm:$0xff]
    %v2224 = vld [vmem:[#allocation9 + $0x3198] sm:$0xff]
    %v2225 = vld [vmem:[#allocation9 + $0x31a0] sm:$0xff]
    %v2226 = vld [vmem:[#allocation9 + $0x31a8] sm:$0xff]
    %v2227 = vld [vmem:[#allocation9 + $0x31b0] sm:$0xff]
    %v2228 = vld [vmem:[#allocation9 + $0x31b8] sm:$0xff]
    %v2229 = vld [vmem:[#allocation9 + $0x31c0] sm:$0xff]
    %v2230 = vld [vmem:[#allocation9 + $0x31c8] sm:$0xff]
    %v2231 = vld [vmem:[#allocation9 + $0x31d0] sm:$0xff]
    %v2232 = vld [vmem:[#allocation9 + $0x31d8] sm:$0xff]
    %v2233 = vld [vmem:[#allocation9 + $0x31e0] sm:$0xff]
    %v2234 = vld [vmem:[#allocation9 + $0x31e8] sm:$0xff]
    %v2235 = vld [vmem:[#allocation9 + $0x31f0] sm:$0xff]
    %v2236 = vld [vmem:[#allocation9 + $0x31f8] sm:$0xff]
    %v2237 = vld [vmem:[#allocation9 + $0x3200] sm:$0xff]
    %v2238 = vld [vmem:[#allocation9 + $0x3208] sm:$0xff]
    %v2239 = vld [vmem:[#allocation9 + $0x3210] sm:$0xff]
    %v2240 = vld [vmem:[#allocation9 + $0x3218] sm:$0xff]
    %v2241 = vld [vmem:[#allocation9 + $0x3220] sm:$0xff]
    %v2242 = vld [vmem:[#allocation9 + $0x3228] sm:$0xff]
    %v2243 = vld [vmem:[#allocation9 + $0x3230] sm:$0xff]
    %v2244 = vld [vmem:[#allocation9 + $0x3238] sm:$0xff]
    %v2245 = vld [vmem:[#allocation9 + $0x3240] sm:$0xff]
    %v2246 = vld [vmem:[#allocation9 + $0x3248] sm:$0xff]
    %v2247 = vld [vmem:[#allocation9 + $0x3250] sm:$0xff]
    %v2248 = vld [vmem:[#allocation9 + $0x3258] sm:$0xff]
    %v2249 = vld [vmem:[#allocation9 + $0x3260] sm:$0xff]
    %v2250 = vld [vmem:[#allocation9 + $0x3268] sm:$0xff]
    %v2251 = vld [vmem:[#allocation9 + $0x3270] sm:$0xff]
    %v2252 = vld [vmem:[#allocation9 + $0x3278] sm:$0xff]
    %v2253 = vld [vmem:[#allocation9 + $0x3280] sm:$0xff]
    %v2254 = vld [vmem:[#allocation9 + $0x3288] sm:$0xff]
    %v2255 = vld [vmem:[#allocation9 + $0x3290] sm:$0xff]
    %v2256 = vld [vmem:[#allocation9 + $0x3298] sm:$0xff]
    %v2257 = vld [vmem:[#allocation9 + $0x32a0] sm:$0xff]
    %v2258 = vld [vmem:[#allocation9 + $0x32a8] sm:$0xff]
    %v2259 = vld [vmem:[#allocation9 + $0x32b0] sm:$0xff]
    %v2260 = vld [vmem:[#allocation9 + $0x32b8] sm:$0xff]
    %v2261 = vld [vmem:[#allocation9 + $0x32c0] sm:$0xff]
    %v2262 = vld [vmem:[#allocation9 + $0x32c8] sm:$0xff]
    %v2263 = vld [vmem:[#allocation9 + $0x32d0] sm:$0xff]
    %v2264 = vld [vmem:[#allocation9 + $0x32d8] sm:$0xff]
    %v2265 = vld [vmem:[#allocation9 + $0x32e0] sm:$0xff]
    %v2266 = vld [vmem:[#allocation9 + $0x32e8] sm:$0xff]
    %v2267 = vld [vmem:[#allocation9 + $0x32f0] sm:$0xff]
    %v2268 = vld [vmem:[#allocation9 + $0x32f8] sm:$0xff]
    %v2269 = vld [vmem:[#allocation9 + $0x3300] sm:$0xff]
    %v2270 = vld [vmem:[#allocation9 + $0x3308] sm:$0xff]
    %v2271 = vld [vmem:[#allocation9 + $0x3310] sm:$0xff]
    %v2272 = vld [vmem:[#allocation9 + $0x3318] sm:$0xff]
    %v2273 = vld [vmem:[#allocation9 + $0x3320] sm:$0xff]
    %v2274 = vld [vmem:[#allocation9 + $0x3328] sm:$0xff]
    %v2275 = vld [vmem:[#allocation9 + $0x3330] sm:$0xff]
    %v2276 = vld [vmem:[#allocation9 + $0x3338] sm:$0xff]
    %v2277 = vld [vmem:[#allocation9 + $0x3340] sm:$0xff]
    %v2278 = vld [vmem:[#allocation9 + $0x3348] sm:$0xff]
    %v2279 = vld [vmem:[#allocation9 + $0x3350] sm:$0xff]
    %v2280 = vld [vmem:[#allocation9 + $0x3358] sm:$0xff]
    %v2281 = vld [vmem:[#allocation9 + $0x3360] sm:$0xff]
    %v2282 = vld [vmem:[#allocation9 + $0x3368] sm:$0xff]
    %v2283 = vld [vmem:[#allocation9 + $0x3370] sm:$0xff]
    %v2284 = vld [vmem:[#allocation9 + $0x3378] sm:$0xff]
    %v2285 = vld [vmem:[#allocation9 + $0x3380] sm:$0xff]
    %v2286 = vld [vmem:[#allocation9 + $0x3388] sm:$0xff]
    %v2287 = vld [vmem:[#allocation9 + $0x3390] sm:$0xff]
    %v2288 = vld [vmem:[#allocation9 + $0x3398] sm:$0xff]
    %v2289 = vld [vmem:[#allocation9 + $0x33a0] sm:$0xff]
    %v2290 = vld [vmem:[#allocation9 + $0x33a8] sm:$0xff]
    %v2291 = vld [vmem:[#allocation9 + $0x33b0] sm:$0xff]
    %v2292 = vld [vmem:[#allocation9 + $0x33b8] sm:$0xff]
    %v2293 = vld [vmem:[#allocation9 + $0x33c0] sm:$0xff]
    %v2294 = vld [vmem:[#allocation9 + $0x33c8] sm:$0xff]
    %v2295 = vld [vmem:[#allocation9 + $0x33d0] sm:$0xff]
    %v2296 = vld [vmem:[#allocation9 + $0x33d8] sm:$0xff]
    %v2297 = vld [vmem:[#allocation9 + $0x33e0] sm:$0xff]
    %v2298 = vld [vmem:[#allocation9 + $0x33e8] sm:$0xff]
    %v2299 = vld [vmem:[#allocation9 + $0x33f0] sm:$0xff]
    %v2300 = vld [vmem:[#allocation9 + $0x33f8] sm:$0xff]
    %v2301 = vld [vmem:[#allocation9 + $0x3400] sm:$0xff]
    %v2302 = vld [vmem:[#allocation9 + $0x3408] sm:$0xff]
    %v2303 = vld [vmem:[#allocation9 + $0x3410] sm:$0xff]
    %v2304 = vld [vmem:[#allocation9 + $0x3418] sm:$0xff]
    %v2305 = vld [vmem:[#allocation9 + $0x3420] sm:$0xff]
    %v2306 = vld [vmem:[#allocation9 + $0x3428] sm:$0xff]
    %v2307 = vld [vmem:[#allocation9 + $0x3430] sm:$0xff]
    %v2308 = vld [vmem:[#allocation9 + $0x3438] sm:$0xff]
    %v2309 = vld [vmem:[#allocation9 + $0x3440] sm:$0xff]
    %v2310 = vld [vmem:[#allocation9 + $0x3448] sm:$0xff]
    %v2311 = vld [vmem:[#allocation9 + $0x3450] sm:$0xff]
    %v2312 = vld [vmem:[#allocation9 + $0x3458] sm:$0xff]
    %v2313 = vld [vmem:[#allocation9 + $0x3460] sm:$0xff]
    %v2314 = vld [vmem:[#allocation9 + $0x3468] sm:$0xff]
    %v2315 = vld [vmem:[#allocation9 + $0x3470] sm:$0xff]
    %v2316 = vld [vmem:[#allocation9 + $0x3478] sm:$0xff]
    %v2317 = vld [vmem:[#allocation9 + $0x3480] sm:$0xff]
    %v2318 = vld [vmem:[#allocation9 + $0x3488] sm:$0xff]
    %v2319 = vld [vmem:[#allocation9 + $0x3490] sm:$0xff]
    %v2320 = vld [vmem:[#allocation9 + $0x3498] sm:$0xff]
    %v2321 = vld [vmem:[#allocation9 + $0x34a0] sm:$0xff]
    %v2322 = vld [vmem:[#allocation9 + $0x34a8] sm:$0xff]
    %v2323 = vld [vmem:[#allocation9 + $0x34b0] sm:$0xff]
    %v2324 = vld [vmem:[#allocation9 + $0x34b8] sm:$0xff]
    %v2325 = vld [vmem:[#allocation9 + $0x34c0] sm:$0xff]
    %v2326 = vld [vmem:[#allocation9 + $0x34c8] sm:$0xff]
    %v2327 = vld [vmem:[#allocation9 + $0x34d0] sm:$0xff]
    %v2328 = vld [vmem:[#allocation9 + $0x34d8] sm:$0xff]
    %v2329 = vld [vmem:[#allocation9 + $0x34e0] sm:$0xff]
    %v2330 = vld [vmem:[#allocation9 + $0x34e8] sm:$0xff]
    %v2331 = vld [vmem:[#allocation9 + $0x34f0] sm:$0xff]
    %v2332 = vld [vmem:[#allocation9 + $0x34f8] sm:$0xff]
    %v2333 = vld [vmem:[#allocation9 + $0x3500] sm:$0xff]
    %v2334 = vld [vmem:[#allocation9 + $0x3508] sm:$0xff]
    %v2335 = vld [vmem:[#allocation9 + $0x3510] sm:$0xff]
    %v2336 = vld [vmem:[#allocation9 + $0x3518] sm:$0xff]
    %v2337 = vld [vmem:[#allocation9 + $0x3520] sm:$0xff]
    %v2338 = vld [vmem:[#allocation9 + $0x3528] sm:$0xff]
    %v2339 = vld [vmem:[#allocation9 + $0x3530] sm:$0xff]
    %v2340 = vld [vmem:[#allocation9 + $0x3538] sm:$0xff]
    %v2341 = vld [vmem:[#allocation9 + $0x3540] sm:$0xff]
    %v2342 = vld [vmem:[#allocation9 + $0x3548] sm:$0xff]
    %v2343 = vld [vmem:[#allocation9 + $0x3550] sm:$0xff]
    %v2344 = vld [vmem:[#allocation9 + $0x3558] sm:$0xff]
    %v2345 = vld [vmem:[#allocation9 + $0x3560] sm:$0xff]
    %v2346 = vld [vmem:[#allocation9 + $0x3568] sm:$0xff]
    %v2347 = vld [vmem:[#allocation9 + $0x3570] sm:$0xff]
    %v2348 = vld [vmem:[#allocation9 + $0x3578] sm:$0xff]
    %v2349 = vld [vmem:[#allocation9 + $0x3580] sm:$0xff]
    %v2350 = vld [vmem:[#allocation9 + $0x3588] sm:$0xff]
    %v2351 = vld [vmem:[#allocation9 + $0x3590] sm:$0xff]
    %v2352 = vld [vmem:[#allocation9 + $0x3598] sm:$0xff]
    %v2353 = vld [vmem:[#allocation9 + $0x35a0] sm:$0xff]
    %v2354 = vld [vmem:[#allocation9 + $0x35a8] sm:$0xff]
    %v2355 = vld [vmem:[#allocation9 + $0x35b0] sm:$0xff]
    %v2356 = vld [vmem:[#allocation9 + $0x35b8] sm:$0xff]
    %v2357 = vld [vmem:[#allocation9 + $0x35c0] sm:$0xff]
    %v2358 = vld [vmem:[#allocation9 + $0x35c8] sm:$0xff]
    %v2359 = vld [vmem:[#allocation9 + $0x35d0] sm:$0xff]
    %v2360 = vld [vmem:[#allocation9 + $0x35d8] sm:$0xff]
    %v2361 = vld [vmem:[#allocation9 + $0x35e0] sm:$0xff]
    %v2362 = vld [vmem:[#allocation9 + $0x35e8] sm:$0xff]
    %v2363 = vld [vmem:[#allocation9 + $0x35f0] sm:$0xff]
    %v2364 = vld [vmem:[#allocation9 + $0x35f8] sm:$0xff]
    %v2365 = vld [vmem:[#allocation9 + $0x3600] sm:$0xff]
    %v2366 = vld [vmem:[#allocation9 + $0x3608] sm:$0xff]
    %v2367 = vld [vmem:[#allocation9 + $0x3610] sm:$0xff]
    %v2368 = vld [vmem:[#allocation9 + $0x3618] sm:$0xff]
    %v2369 = vld [vmem:[#allocation9 + $0x3620] sm:$0xff]
    %v2370 = vld [vmem:[#allocation9 + $0x3628] sm:$0xff]
    %v2371 = vld [vmem:[#allocation9 + $0x3630] sm:$0xff]
    %v2372 = vld [vmem:[#allocation9 + $0x3638] sm:$0xff]
    %v2373 = vld [vmem:[#allocation9 + $0x3640] sm:$0xff]
    %v2374 = vld [vmem:[#allocation9 + $0x3648] sm:$0xff]
    %v2375 = vld [vmem:[#allocation9 + $0x3650] sm:$0xff]
    %v2376 = vld [vmem:[#allocation9 + $0x3658] sm:$0xff]
    %v2377 = vld [vmem:[#allocation9 + $0x3660] sm:$0xff]
    %v2378 = vld [vmem:[#allocation9 + $0x3668] sm:$0xff]
    %v2379 = vld [vmem:[#allocation9 + $0x3670] sm:$0xff]
    %v2380 = vld [vmem:[#allocation9 + $0x3678] sm:$0xff]
    %v2381 = vld [vmem:[#allocation9 + $0x3680] sm:$0xff]
    %v2382 = vld [vmem:[#allocation9 + $0x3688] sm:$0xff]
    %v2383 = vld [vmem:[#allocation9 + $0x3690] sm:$0xff]
    %v2384 = vld [vmem:[#allocation9 + $0x3698] sm:$0xff]
    %v2385 = vld [vmem:[#allocation9 + $0x36a0] sm:$0xff]
    %v2386 = vld [vmem:[#allocation9 + $0x36a8] sm:$0xff]
    %v2387 = vld [vmem:[#allocation9 + $0x36b0] sm:$0xff]
    %v2388 = vld [vmem:[#allocation9 + $0x36b8] sm:$0xff]
    %v2389 = vld [vmem:[#allocation9 + $0x36c0] sm:$0xff]
    %v2390 = vld [vmem:[#allocation9 + $0x36c8] sm:$0xff]
    %v2391 = vld [vmem:[#allocation9 + $0x36d0] sm:$0xff]
    %v2392 = vld [vmem:[#allocation9 + $0x36d8] sm:$0xff]
    %v2393 = vld [vmem:[#allocation9 + $0x36e0] sm:$0xff]
    %v2394 = vld [vmem:[#allocation9 + $0x36e8] sm:$0xff]
    %v2395 = vld [vmem:[#allocation9 + $0x36f0] sm:$0xff]
    %v2396 = vld [vmem:[#allocation9 + $0x36f8] sm:$0xff]
    %v2397 = vld [vmem:[#allocation9 + $0x3700] sm:$0xff]
    %v2398 = vld [vmem:[#allocation9 + $0x3708] sm:$0xff]
    %v2399 = vld [vmem:[#allocation9 + $0x3710] sm:$0xff]
    %v2400 = vld [vmem:[#allocation9 + $0x3718] sm:$0xff]
    %v2401 = vld [vmem:[#allocation9 + $0x3720] sm:$0xff]
    %v2402 = vld [vmem:[#allocation9 + $0x3728] sm:$0xff]
    %v2403 = vld [vmem:[#allocation9 + $0x3730] sm:$0xff]
    %v2404 = vld [vmem:[#allocation9 + $0x3738] sm:$0xff]
    %v2405 = vld [vmem:[#allocation9 + $0x3740] sm:$0xff]
    %v2406 = vld [vmem:[#allocation9 + $0x3748] sm:$0xff]
    %v2407 = vld [vmem:[#allocation9 + $0x3750] sm:$0xff]
    %v2408 = vld [vmem:[#allocation9 + $0x3758] sm:$0xff]
    %v2409 = vld [vmem:[#allocation9 + $0x3760] sm:$0xff]
    %v2410 = vld [vmem:[#allocation9 + $0x3768] sm:$0xff]
    %v2411 = vld [vmem:[#allocation9 + $0x3770] sm:$0xff]
    %v2412 = vld [vmem:[#allocation9 + $0x3778] sm:$0xff]
    %v2413 = vld [vmem:[#allocation9 + $0x3780] sm:$0xff]
    %v2414 = vld [vmem:[#allocation9 + $0x3788] sm:$0xff]
    %v2415 = vld [vmem:[#allocation9 + $0x3790] sm:$0xff]
    %v2416 = vld [vmem:[#allocation9 + $0x3798] sm:$0xff]
    %v2417 = vld [vmem:[#allocation9 + $0x37a0] sm:$0xff]
    %v2418 = vld [vmem:[#allocation9 + $0x37a8] sm:$0xff]
    %v2419 = vld [vmem:[#allocation9 + $0x37b0] sm:$0xff]
    %v2420 = vld [vmem:[#allocation9 + $0x37b8] sm:$0xff]
    %v2421 = vld [vmem:[#allocation9 + $0x37c0] sm:$0xff]
    %v2422 = vld [vmem:[#allocation9 + $0x37c8] sm:$0xff]
    %v2423 = vld [vmem:[#allocation9 + $0x37d0] sm:$0xff]
    %v2424 = vld [vmem:[#allocation9 + $0x37d8] sm:$0xff]
    %v2425 = vld [vmem:[#allocation9 + $0x37e0] sm:$0xff]
    %v2426 = vld [vmem:[#allocation9 + $0x37e8] sm:$0xff]
    %v2427 = vld [vmem:[#allocation9 + $0x37f0] sm:$0xff]
    %v2428 = vld [vmem:[#allocation9 + $0x37f8] sm:$0xff]
    %v2429 = vld [vmem:[#allocation9 + $0x3800] sm:$0xff]
    %v2430 = vld [vmem:[#allocation9 + $0x3808] sm:$0xff]
    %v2431 = vld [vmem:[#allocation9 + $0x3810] sm:$0xff]
    %v2432 = vld [vmem:[#allocation9 + $0x3818] sm:$0xff]
    %v2433 = vld [vmem:[#allocation9 + $0x3820] sm:$0xff]
    %v2434 = vld [vmem:[#allocation9 + $0x3828] sm:$0xff]
    %v2435 = vld [vmem:[#allocation9 + $0x3830] sm:$0xff]
    %v2436 = vld [vmem:[#allocation9 + $0x3838] sm:$0xff]
    %v2437 = vld [vmem:[#allocation9 + $0x3840] sm:$0xff]
    %v2438 = vld [vmem:[#allocation9 + $0x3848] sm:$0xff]
    %v2439 = vld [vmem:[#allocation9 + $0x3850] sm:$0xff]
    %v2440 = vld [vmem:[#allocation9 + $0x3858] sm:$0xff]
    %v2441 = vld [vmem:[#allocation9 + $0x3860] sm:$0xff]
    %v2442 = vld [vmem:[#allocation9 + $0x3868] sm:$0xff]
    %v2443 = vld [vmem:[#allocation9 + $0x3870] sm:$0xff]
    %v2444 = vld [vmem:[#allocation9 + $0x3878] sm:$0xff]
    %v2445 = vld [vmem:[#allocation9 + $0x3880] sm:$0xff]
    %v2446 = vld [vmem:[#allocation9 + $0x3888] sm:$0xff]
    %v2447 = vld [vmem:[#allocation9 + $0x3890] sm:$0xff]
    %v2448 = vld [vmem:[#allocation9 + $0x3898] sm:$0xff]
    %v2449 = vld [vmem:[#allocation9 + $0x38a0] sm:$0xff]
    %v2450 = vld [vmem:[#allocation9 + $0x38a8] sm:$0xff]
    %v2451 = vld [vmem:[#allocation9 + $0x38b0] sm:$0xff]
    %v2452 = vld [vmem:[#allocation9 + $0x38b8] sm:$0xff]
    %v2453 = vld [vmem:[#allocation9 + $0x38c0] sm:$0xff]
    %v2454 = vld [vmem:[#allocation9 + $0x38c8] sm:$0xff]
    %v2455 = vld [vmem:[#allocation9 + $0x38d0] sm:$0xff]
    %v2456 = vld [vmem:[#allocation9 + $0x38d8] sm:$0xff]
    %v2457 = vld [vmem:[#allocation9 + $0x38e0] sm:$0xff]
    %v2458 = vld [vmem:[#allocation9 + $0x38e8] sm:$0xff]
    %v2459 = vld [vmem:[#allocation9 + $0x38f0] sm:$0xff]
    %v2460 = vld [vmem:[#allocation9 + $0x38f8] sm:$0xff]
    %v2461 = vld [vmem:[#allocation9 + $0x3900] sm:$0xff]
    %v2462 = vld [vmem:[#allocation9 + $0x3908] sm:$0xff]
    %v2463 = vld [vmem:[#allocation9 + $0x3910] sm:$0xff]
    %v2464 = vld [vmem:[#allocation9 + $0x3918] sm:$0xff]
    %v2465 = vld [vmem:[#allocation9 + $0x3920] sm:$0xff]
    %v2466 = vld [vmem:[#allocation9 + $0x3928] sm:$0xff]
    %v2467 = vld [vmem:[#allocation9 + $0x3930] sm:$0xff]
    %v2468 = vld [vmem:[#allocation9 + $0x3938] sm:$0xff]
    %v2469 = vld [vmem:[#allocation9 + $0x3940] sm:$0xff]
    %v2470 = vld [vmem:[#allocation9 + $0x3948] sm:$0xff]
    %v2471 = vld [vmem:[#allocation9 + $0x3950] sm:$0xff]
    %v2472 = vld [vmem:[#allocation9 + $0x3958] sm:$0xff]
    %v2473 = vld [vmem:[#allocation9 + $0x3960] sm:$0xff]
    %v2474 = vld [vmem:[#allocation9 + $0x3968] sm:$0xff]
    %v2475 = vld [vmem:[#allocation9 + $0x3970] sm:$0xff]
    %v2476 = vld [vmem:[#allocation9 + $0x3978] sm:$0xff]
    %v2477 = vld [vmem:[#allocation9 + $0x3980] sm:$0xff]
    %v2478 = vld [vmem:[#allocation9 + $0x3988] sm:$0xff]
    %v2479 = vld [vmem:[#allocation9 + $0x3990] sm:$0xff]
    %v2480 = vld [vmem:[#allocation9 + $0x3998] sm:$0xff]
    %v2481 = vld [vmem:[#allocation9 + $0x39a0] sm:$0xff]
    %v2482 = vld [vmem:[#allocation9 + $0x39a8] sm:$0xff]
    %v2483 = vld [vmem:[#allocation9 + $0x39b0] sm:$0xff]
    %v2484 = vld [vmem:[#allocation9 + $0x39b8] sm:$0xff]
    %v2485 = vld [vmem:[#allocation9 + $0x39c0] sm:$0xff]
    %v2486 = vld [vmem:[#allocation9 + $0x39c8] sm:$0xff]
    %v2487 = vld [vmem:[#allocation9 + $0x39d0] sm:$0xff]
    %v2488 = vld [vmem:[#allocation9 + $0x39d8] sm:$0xff]
    %v2489 = vld [vmem:[#allocation9 + $0x39e0] sm:$0xff]
    %v2490 = vld [vmem:[#allocation9 + $0x39e8] sm:$0xff]
    %v2491 = vld [vmem:[#allocation9 + $0x39f0] sm:$0xff]
    %v2492 = vld [vmem:[#allocation9 + $0x39f8] sm:$0xff]
    %v2493 = vld [vmem:[#allocation9 + $0x3a00] sm:$0xff]
    %v2494 = vld [vmem:[#allocation9 + $0x3a08] sm:$0xff]
    %v2495 = vld [vmem:[#allocation9 + $0x3a10] sm:$0xff]
    %v2496 = vld [vmem:[#allocation9 + $0x3a18] sm:$0xff]
    %v2497 = vld [vmem:[#allocation9 + $0x3a20] sm:$0xff]
    %v2498 = vld [vmem:[#allocation9 + $0x3a28] sm:$0xff]
    %v2499 = vld [vmem:[#allocation9 + $0x3a30] sm:$0xff]
    %v2500 = vld [vmem:[#allocation9 + $0x3a38] sm:$0xff]
    %v2501 = vld [vmem:[#allocation9 + $0x3a40] sm:$0xff]
    %v2502 = vld [vmem:[#allocation9 + $0x3a48] sm:$0xff]
    %v2503 = vld [vmem:[#allocation9 + $0x3a50] sm:$0xff]
    %v2504 = vld [vmem:[#allocation9 + $0x3a58] sm:$0xff]
    %v2505 = vld [vmem:[#allocation9 + $0x3a60] sm:$0xff]
    %v2506 = vld [vmem:[#allocation9 + $0x3a68] sm:$0xff]
    %v2507 = vld [vmem:[#allocation9 + $0x3a70] sm:$0xff]
    %v2508 = vld [vmem:[#allocation9 + $0x3a78] sm:$0xff]
    %v2509 = vld [vmem:[#allocation9 + $0x3a80] sm:$0xff]
    %v2510 = vld [vmem:[#allocation9 + $0x3a88] sm:$0xff]
    %v2511 = vld [vmem:[#allocation9 + $0x3a90] sm:$0xff]
    %v2512 = vld [vmem:[#allocation9 + $0x3a98] sm:$0xff]
    %v2513 = vld [vmem:[#allocation9 + $0x3aa0] sm:$0xff]
    %v2514 = vld [vmem:[#allocation9 + $0x3aa8] sm:$0xff]
    %v2515 = vld [vmem:[#allocation9 + $0x3ab0] sm:$0xff]
    %v2516 = vld [vmem:[#allocation9 + $0x3ab8] sm:$0xff]
    %v2517 = vld [vmem:[#allocation9 + $0x3ac0] sm:$0xff]
    %v2518 = vld [vmem:[#allocation9 + $0x3ac8] sm:$0xff]
    %v2519 = vld [vmem:[#allocation9 + $0x3ad0] sm:$0xff]
    %v2520 = vld [vmem:[#allocation9 + $0x3ad8] sm:$0xff]
    %v2521 = vld [vmem:[#allocation9 + $0x3ae0] sm:$0xff]
    %v2522 = vld [vmem:[#allocation9 + $0x3ae8] sm:$0xff]
    %v2523 = vld [vmem:[#allocation9 + $0x3af0] sm:$0xff]
    %v2524 = vld [vmem:[#allocation9 + $0x3af8] sm:$0xff]
    %v2525 = vld [vmem:[#allocation9 + $0x3b00] sm:$0xff]
    %v2526 = vld [vmem:[#allocation9 + $0x3b08] sm:$0xff]
    %v2527 = vld [vmem:[#allocation9 + $0x3b10] sm:$0xff]
    %v2528 = vld [vmem:[#allocation9 + $0x3b18] sm:$0xff]
    %v2529 = vld [vmem:[#allocation9 + $0x3b20] sm:$0xff]
    %v2530 = vld [vmem:[#allocation9 + $0x3b28] sm:$0xff]
    %v2531 = vld [vmem:[#allocation9 + $0x3b30] sm:$0xff]
    %v2532 = vld [vmem:[#allocation9 + $0x3b38] sm:$0xff]
    %v2533 = vld [vmem:[#allocation9 + $0x3b40] sm:$0xff]
    %v2534 = vld [vmem:[#allocation9 + $0x3b48] sm:$0xff]
    %v2535 = vld [vmem:[#allocation9 + $0x3b50] sm:$0xff]
    %v2536 = vld [vmem:[#allocation9 + $0x3b58] sm:$0xff]
    %v2537 = vld [vmem:[#allocation9 + $0x3b60] sm:$0xff]
    %v2538 = vld [vmem:[#allocation9 + $0x3b68] sm:$0xff]
    %v2539 = vld [vmem:[#allocation9 + $0x3b70] sm:$0xff]
    %v2540 = vld [vmem:[#allocation9 + $0x3b78] sm:$0xff]
    %v2541 = vld [vmem:[#allocation9 + $0x3b80] sm:$0xff]
    %v2542 = vld [vmem:[#allocation9 + $0x3b88] sm:$0xff]
    %v2543 = vld [vmem:[#allocation9 + $0x3b90] sm:$0xff]
    %v2544 = vld [vmem:[#allocation9 + $0x3b98] sm:$0xff]
    %v2545 = vld [vmem:[#allocation9 + $0x3ba0] sm:$0xff]
    %v2546 = vld [vmem:[#allocation9 + $0x3ba8] sm:$0xff]
    %v2547 = vld [vmem:[#allocation9 + $0x3bb0] sm:$0xff]
    %v2548 = vld [vmem:[#allocation9 + $0x3bb8] sm:$0xff]
    %v2549 = vld [vmem:[#allocation9 + $0x3bc0] sm:$0xff]
    %v2550 = vld [vmem:[#allocation9 + $0x3bc8] sm:$0xff]
    %v2551 = vld [vmem:[#allocation9 + $0x3bd0] sm:$0xff]
    %v2552 = vld [vmem:[#allocation9 + $0x3bd8] sm:$0xff]
    %v2553 = vld [vmem:[#allocation9 + $0x3be0] sm:$0xff]
    %v2554 = vld [vmem:[#allocation9 + $0x3be8] sm:$0xff]
    %v2555 = vld [vmem:[#allocation9 + $0x3bf0] sm:$0xff]
    %v2556 = vld [vmem:[#allocation9 + $0x3bf8] sm:$0xff]
    %v2557 = vld [vmem:[#allocation9 + $0x3c00] sm:$0xff]
    %v2558 = vld [vmem:[#allocation9 + $0x3c08] sm:$0xff]
    %v2559 = vld [vmem:[#allocation9 + $0x3c10] sm:$0xff]
    %v2560 = vld [vmem:[#allocation9 + $0x3c18] sm:$0xff]
    %v2561 = vld [vmem:[#allocation9 + $0x3c20] sm:$0xff]
    %v2562 = vld [vmem:[#allocation9 + $0x3c28] sm:$0xff]
    %v2563 = vld [vmem:[#allocation9 + $0x3c30] sm:$0xff]
    %v2564 = vld [vmem:[#allocation9 + $0x3c38] sm:$0xff]
    %v2565 = vld [vmem:[#allocation9 + $0x3c40] sm:$0xff]
    %v2566 = vld [vmem:[#allocation9 + $0x3c48] sm:$0xff]
    %v2567 = vld [vmem:[#allocation9 + $0x3c50] sm:$0xff]
    %v2568 = vld [vmem:[#allocation9 + $0x3c58] sm:$0xff]
    %v2569 = vld [vmem:[#allocation9 + $0x3c60] sm:$0xff]
    %v2570 = vld [vmem:[#allocation9 + $0x3c68] sm:$0xff]
    %v2571 = vld [vmem:[#allocation9 + $0x3c70] sm:$0xff]
    %v2572 = vld [vmem:[#allocation9 + $0x3c78] sm:$0xff]
    %v2573 = vld [vmem:[#allocation9 + $0x3c80] sm:$0xff]
    %v2574 = vld [vmem:[#allocation9 + $0x3c88] sm:$0xff]
    %v2575 = vld [vmem:[#allocation9 + $0x3c90] sm:$0xff]
    %v2576 = vld [vmem:[#allocation9 + $0x3c98] sm:$0xff]
    %v2577 = vld [vmem:[#allocation9 + $0x3ca0] sm:$0xff]
    %v2578 = vld [vmem:[#allocation9 + $0x3ca8] sm:$0xff]
    %v2579 = vld [vmem:[#allocation9 + $0x3cb0] sm:$0xff]
    %v2580 = vld [vmem:[#allocation9 + $0x3cb8] sm:$0xff]
    %v2581 = vld [vmem:[#allocation9 + $0x3cc0] sm:$0xff]
    %v2582 = vld [vmem:[#allocation9 + $0x3cc8] sm:$0xff]
    %v2583 = vld [vmem:[#allocation9 + $0x3cd0] sm:$0xff]
    %v2584 = vld [vmem:[#allocation9 + $0x3cd8] sm:$0xff]
    %v2585 = vld [vmem:[#allocation9 + $0x3ce0] sm:$0xff]
    %v2586 = vld [vmem:[#allocation9 + $0x3ce8] sm:$0xff]
    %v2587 = vld [vmem:[#allocation9 + $0x3cf0] sm:$0xff]
    %v2588 = vld [vmem:[#allocation9 + $0x3cf8] sm:$0xff]
    %v2589 = vld [vmem:[#allocation9 + $0x3d00] sm:$0xff]
    %v2590 = vld [vmem:[#allocation9 + $0x3d08] sm:$0xff]
    %v2591 = vld [vmem:[#allocation9 + $0x3d10] sm:$0xff]
    %v2592 = vld [vmem:[#allocation9 + $0x3d18] sm:$0xff]
    %v2593 = vld [vmem:[#allocation9 + $0x3d20] sm:$0xff]
    %v2594 = vld [vmem:[#allocation9 + $0x3d28] sm:$0xff]
    %v2595 = vld [vmem:[#allocation9 + $0x3d30] sm:$0xff]
    %v2596 = vld [vmem:[#allocation9 + $0x3d38] sm:$0xff]
    %v2597 = vld [vmem:[#allocation9 + $0x3d40] sm:$0xff]
    %v2598 = vld [vmem:[#allocation9 + $0x3d48] sm:$0xff]
    %v2599 = vld [vmem:[#allocation9 + $0x3d50] sm:$0xff]
    %v2600 = vld [vmem:[#allocation9 + $0x3d58] sm:$0xff]
    %v2601 = vld [vmem:[#allocation9 + $0x3d60] sm:$0xff]
    %v2602 = vld [vmem:[#allocation9 + $0x3d68] sm:$0xff]
    %v2603 = vld [vmem:[#allocation9 + $0x3d70] sm:$0xff]
    %v2604 = vld [vmem:[#allocation9 + $0x3d78] sm:$0xff]
    %v2605 = vld [vmem:[#allocation9 + $0x3d80] sm:$0xff]
    %v2606 = vld [vmem:[#allocation9 + $0x3d88] sm:$0xff]
    %v2607 = vld [vmem:[#allocation9 + $0x3d90] sm:$0xff]
    %v2608 = vld [vmem:[#allocation9 + $0x3d98] sm:$0xff]
    %v2609 = vld [vmem:[#allocation9 + $0x3da0] sm:$0xff]
    %v2610 = vld [vmem:[#allocation9 + $0x3da8] sm:$0xff]
    %v2611 = vld [vmem:[#allocation9 + $0x3db0] sm:$0xff]
    %v2612 = vld [vmem:[#allocation9 + $0x3db8] sm:$0xff]
    %v2613 = vld [vmem:[#allocation9 + $0x3dc0] sm:$0xff]
    %v2614 = vld [vmem:[#allocation9 + $0x3dc8] sm:$0xff]
    %v2615 = vld [vmem:[#allocation9 + $0x3dd0] sm:$0xff]
    %v2616 = vld [vmem:[#allocation9 + $0x3dd8] sm:$0xff]
    %v2617 = vld [vmem:[#allocation9 + $0x3de0] sm:$0xff]
    %v2618 = vld [vmem:[#allocation9 + $0x3de8] sm:$0xff]
    %v2619 = vld [vmem:[#allocation9 + $0x3df0] sm:$0xff]
    %v2620 = vld [vmem:[#allocation9 + $0x3df8] sm:$0xff]
    %v2621 = vld [vmem:[#allocation9 + $0x3e00] sm:$0xff]
    %v2622 = vld [vmem:[#allocation9 + $0x3e08] sm:$0xff]
    %v2623 = vld [vmem:[#allocation9 + $0x3e10] sm:$0xff]
    %v2624 = vld [vmem:[#allocation9 + $0x3e18] sm:$0xff]
    %v2625 = vld [vmem:[#allocation9 + $0x3e20] sm:$0xff]
    %v2626 = vld [vmem:[#allocation9 + $0x3e28] sm:$0xff]
    %v2627 = vld [vmem:[#allocation9 + $0x3e30] sm:$0xff]
    %v2628 = vld [vmem:[#allocation9 + $0x3e38] sm:$0xff]
    %v2629 = vld [vmem:[#allocation9 + $0x3e40] sm:$0xff]
    %v2630 = vld [vmem:[#allocation9 + $0x3e48] sm:$0xff]
    %v2631 = vld [vmem:[#allocation9 + $0x3e50] sm:$0xff]
    %v2632 = vld [vmem:[#allocation9 + $0x3e58] sm:$0xff]
    %v2633 = vld [vmem:[#allocation9 + $0x3e60] sm:$0xff]
    %v2634 = vld [vmem:[#allocation9 + $0x3e68] sm:$0xff]
    %v2635 = vld [vmem:[#allocation9 + $0x3e70] sm:$0xff]
    %v2636 = vld [vmem:[#allocation9 + $0x3e78] sm:$0xff]
    %v2637 = vld [vmem:[#allocation9 + $0x3e80] sm:$0xff]
    %v2638 = vld [vmem:[#allocation9 + $0x3e88] sm:$0xff]
    %v2639 = vld [vmem:[#allocation9 + $0x3e90] sm:$0xff]
    %v2640 = vld [vmem:[#allocation9 + $0x3e98] sm:$0xff]
    %v2641 = vld [vmem:[#allocation9 + $0x3ea0] sm:$0xff]
    %v2642 = vld [vmem:[#allocation9 + $0x3ea8] sm:$0xff]
    %v2643 = vld [vmem:[#allocation9 + $0x3eb0] sm:$0xff]
    %v2644 = vld [vmem:[#allocation9 + $0x3eb8] sm:$0xff]
    %v2645 = vld [vmem:[#allocation9 + $0x3ec0] sm:$0xff]
    %v2646 = vld [vmem:[#allocation9 + $0x3ec8] sm:$0xff]
    %v2647 = vld [vmem:[#allocation9 + $0x3ed0] sm:$0xff]
    %v2648 = vld [vmem:[#allocation9 + $0x3ed8] sm:$0xff]
    %v2649 = vld [vmem:[#allocation9 + $0x3ee0] sm:$0xff]
    %v2650 = vld [vmem:[#allocation9 + $0x3ee8] sm:$0xff]
    %v2651 = vld [vmem:[#allocation9 + $0x3ef0] sm:$0xff]
    %v2652 = vld [vmem:[#allocation9 + $0x3ef8] sm:$0xff]
    %v2653 = vld [vmem:[#allocation9 + $0x3f00] sm:$0xff]
    %v2654 = vld [vmem:[#allocation9 + $0x3f08] sm:$0xff]
    %v2655 = vld [vmem:[#allocation9 + $0x3f10] sm:$0xff]
    %v2656 = vld [vmem:[#allocation9 + $0x3f18] sm:$0xff]
    %v2657 = vld [vmem:[#allocation9 + $0x3f20] sm:$0xff]
    %v2658 = vld [vmem:[#allocation9 + $0x3f28] sm:$0xff]
    %v2659 = vld [vmem:[#allocation9 + $0x3f30] sm:$0xff]
    %v2660 = vld [vmem:[#allocation9 + $0x3f38] sm:$0xff]
    %v2661 = vld [vmem:[#allocation9 + $0x3f40] sm:$0xff]
    %v2662 = vld [vmem:[#allocation9 + $0x3f48] sm:$0xff]
    %v2663 = vld [vmem:[#allocation9 + $0x3f50] sm:$0xff]
    %v2664 = vld [vmem:[#allocation9 + $0x3f58] sm:$0xff]
    %v2665 = vld [vmem:[#allocation9 + $0x3f60] sm:$0xff]
    %v2666 = vld [vmem:[#allocation9 + $0x3f68] sm:$0xff]
    %v2667 = vld [vmem:[#allocation9 + $0x3f70] sm:$0xff]
    %v2668 = vld [vmem:[#allocation9 + $0x3f78] sm:$0xff]
    %v2669 = vld [vmem:[#allocation9 + $0x3f80] sm:$0xff]
    %v2670 = vld [vmem:[#allocation9 + $0x3f88] sm:$0xff]
    %v2671 = vld [vmem:[#allocation9 + $0x3f90] sm:$0xff]
    %v2672 = vld [vmem:[#allocation9 + $0x3f98] sm:$0xff]
    %v2673 = vld [vmem:[#allocation9 + $0x3fa0] sm:$0xff]
    %v2674 = vld [vmem:[#allocation9 + $0x3fa8] sm:$0xff]
    %v2675 = vld [vmem:[#allocation9 + $0x3fb0] sm:$0xff]
    %v2676 = vld [vmem:[#allocation9 + $0x3fb8] sm:$0xff]
    %v2677 = vld [vmem:[#allocation9 + $0x3fc0] sm:$0xff]
    %v2678 = vld [vmem:[#allocation9 + $0x3fc8] sm:$0xff]
    %v2679 = vld [vmem:[#allocation9 + $0x3fd0] sm:$0xff]
    %v2680 = vld [vmem:[#allocation9 + $0x3fd8] sm:$0xff]
    %v2681 = vld [vmem:[#allocation9 + $0x3fe0] sm:$0xff]
    %v2682 = vld [vmem:[#allocation9 + $0x3fe8] sm:$0xff]
    %v2683 = vld [vmem:[#allocation9 + $0x3ff0] sm:$0xff]
    %v2684 = vld [vmem:[#allocation9 + $0x3ff8] sm:$0xff]
    %v2685 = vld [vmem:[#allocation11] sm:$0xff]
    %v2687 = vlaneseq
    %v2688 = vshrl.u32 %v2687, 7
    %v2689 = vsub.s32 0, %v2688
    %v2690 = vrot.slane %v2685, %v2689
    %v2691 = vlaneseq
    %v2692 = vshrl.u32 %v2691, 7
    %v2693 = vsub.s32 1, %v2692
    %v2694 = vrot.slane %v2685, %v2693
    %v2695 = vlaneseq
    %v2696 = vshrl.u32 %v2695, 7
    %v2697 = vsub.s32 2, %v2696
    %v2698 = vrot.slane %v2685, %v2697
    %v2699 = vlaneseq
    %v2700 = vshrl.u32 %v2699, 7
    %v2701 = vsub.s32 3, %v2700
    %v2702 = vrot.slane %v2685, %v2701
    %v2703 = vlaneseq
    %v2704 = vshrl.u32 %v2703, 7
    %v2705 = vsub.s32 4, %v2704
    %v2706 = vrot.slane %v2685, %v2705
    %v2707 = vlaneseq
    %v2708 = vshrl.u32 %v2707, 7
    %v2709 = vsub.s32 5, %v2708
    %v2710 = vrot.slane %v2685, %v2709
    %v2711 = vlaneseq
    %v2712 = vshrl.u32 %v2711, 7
    %v2713 = vsub.s32 6, %v2712
    %v2714 = vrot.slane %v2685, %v2713
    %v2715 = vlaneseq
    %v2716 = vshrl.u32 %v2715, 7
    %v2717 = vsub.s32 7, %v2716
    %v2718 = vrot.slane %v2685, %v2717
    %v2731 = vcombine.high %v633, %v633
    %v2733 = vunpack.c.l.s4 1983009808
    %v2734 = vunpack.c.0.s8 %v2733
    %v2735 = vlaneseq
    %v2736 = vshrl.u32 %v2735, 7
    %v2737 = vsub.s32 %v2734, %v2736
    %v2738 = vrot.slane %v633, %v2737
    %v2740 = vunpack.c.l.s4 1983009808
    %v2741 = vunpack.c.0.s8 %v2740
    %v2742 = vlaneseq
    %v2743 = vshrl.u32 %v2742, 7
    %v2744 = vsub.s32 %v2741, %v2743
    %v2745 = vrot.slane %v2731, %v2744
    %v2746 = vcombine.high %v2738, %v2738
    %v2747 = vcombine.high %v2745, %v2745
    %v2748 = vcombine.high %v634, %v634
    %v2750 = vunpack.c.l.s4 1983009808
    %v2751 = vunpack.c.0.s8 %v2750
    %v2752 = vlaneseq
    %v2753 = vshrl.u32 %v2752, 7
    %v2754 = vsub.s32 %v2751, %v2753
    %v2755 = vrot.slane %v634, %v2754
    %v2757 = vunpack.c.l.s4 1983009808
    %v2758 = vunpack.c.0.s8 %v2757
    %v2759 = vlaneseq
    %v2760 = vshrl.u32 %v2759, 7
    %v2761 = vsub.s32 %v2758, %v2760
    %v2762 = vrot.slane %v2748, %v2761
    %v2763 = vcombine.high %v2755, %v2755
    %v2764 = vcombine.high %v2762, %v2762
    %v2765 = vcombine.high %v635, %v635
    %v2767 = vunpack.c.l.s4 1983009808
    %v2768 = vunpack.c.0.s8 %v2767
    %v2769 = vlaneseq
    %v2770 = vshrl.u32 %v2769, 7
    %v2771 = vsub.s32 %v2768, %v2770
    %v2772 = vrot.slane %v635, %v2771
    %v2774 = vunpack.c.l.s4 1983009808
    %v2775 = vunpack.c.0.s8 %v2774
    %v2776 = vlaneseq
    %v2777 = vshrl.u32 %v2776, 7
    %v2778 = vsub.s32 %v2775, %v2777
    %v2779 = vrot.slane %v2765, %v2778
    %v2780 = vcombine.high %v2772, %v2772
    %v2781 = vcombine.high %v2779, %v2779
    %v2782 = vcombine.high %v636, %v636
    %v2784 = vunpack.c.l.s4 1983009808
    %v2785 = vunpack.c.0.s8 %v2784
    %v2786 = vlaneseq
    %v2787 = vshrl.u32 %v2786, 7
    %v2788 = vsub.s32 %v2785, %v2787
    %v2789 = vrot.slane %v636, %v2788
    %v2791 = vunpack.c.l.s4 1983009808
    %v2792 = vunpack.c.0.s8 %v2791
    %v2793 = vlaneseq
    %v2794 = vshrl.u32 %v2793, 7
    %v2795 = vsub.s32 %v2792, %v2794
    %v2796 = vrot.slane %v2782, %v2795
    %v2797 = vcombine.high %v2789, %v2789
    %v2798 = vcombine.high %v2796, %v2796
    %2815 = vmatprep.subr.mxu0 %v638
    %2816 = vmatpush1.msra.mxu0 %v637
    %2817 = vmatprep.subr.mxu0 %v646
    %2818 = vmatpush1.msra.mxu0 %v645
    %2819 = vmatprep.subr.mxu0 %v654
    %2820 = vmatpush1.msra.mxu0 %v653
    %2821 = vmatprep.subr.mxu0 %v662
    %2822 = vmatpush1.msra.mxu0 %v661
    %2823 = vmatprep.subr.mxu0 %v670
    %2824 = vmatpush1.msra.mxu0 %v669
    %2825 = vmatprep.subr.mxu0 %v678
    %2826 = vmatpush1.msra.mxu0 %v677
    %2827 = vmatprep.subr.mxu0 %v686
    %2828 = vmatpush1.msra.mxu0 %v685
    %2829 = vmatprep.subr.mxu0 %v694
    %2830 = vmatpush1.msra.mxu0 %v693
    %2831 = vmatprep.subr.mxu0 %v702
    %2832 = vmatpush1.msra.mxu0 %v701
    %2833 = vmatprep.subr.mxu0 %v710
    %2834 = vmatpush1.msra.mxu0 %v709
    %2835 = vmatprep.subr.mxu0 %v718
    %2836 = vmatpush1.msra.mxu0 %v717
    %2837 = vmatprep.subr.mxu0 %v726
    %2838 = vmatpush1.msra.mxu0 %v725
    %2839 = vmatprep.subr.mxu0 %v734
    %2840 = vmatpush1.msra.mxu0 %v733
    %2841 = vmatprep.subr.mxu0 %v742
    %2842 = vmatpush1.msra.mxu0 %v741
    %2843 = vmatprep.subr.mxu0 %v750
    %2844 = vmatpush1.msra.mxu0 %v749
    %2845 = vmatprep.subr.mxu0 %v758
    %2846 = vmatpush1.msra.mxu0 %v757
    %2847 = vmatprep.subr.mxu0 %v766
    %2848 = vmatpush1.msra.mxu0 %v765
    %2849 = vmatprep.subr.mxu0 %v774
    %2850 = vmatpush1.msra.mxu0 %v773
    %2851 = vmatprep.subr.mxu0 %v782
    %2852 = vmatpush1.msra.mxu0 %v781
    %2853 = vmatprep.subr.mxu0 %v790
    %2854 = vmatpush1.msra.mxu0 %v789
    %2855 = vmatprep.subr.mxu0 %v798
    %2856 = vmatpush1.msra.mxu0 %v797
    %2857 = vmatprep.subr.mxu0 %v806
    %2858 = vmatpush1.msra.mxu0 %v805
    %2859 = vmatprep.subr.mxu0 %v814
    %2860 = vmatpush1.msra.mxu0 %v813
    %2861 = vmatprep.subr.mxu0 %v822
    %2862 = vmatpush1.msra.mxu0 %v821
    %2863 = vmatprep.subr.mxu0 %v830
    %2864 = vmatpush1.msra.mxu0 %v829
    %2865 = vmatprep.subr.mxu0 %v838
    %2866 = vmatpush1.msra.mxu0 %v837
    %2867 = vmatprep.subr.mxu0 %v846
    %2868 = vmatpush1.msra.mxu0 %v845
    %2869 = vmatprep.subr.mxu0 %v854
    %2870 = vmatpush1.msra.mxu0 %v853
    %2871 = vmatprep.subr.mxu0 %v862
    %2872 = vmatpush1.msra.mxu0 %v861
    %2873 = vmatprep.subr.mxu0 %v870
    %2874 = vmatpush1.msra.mxu0 %v869
    %2875 = vmatprep.subr.mxu0 %v878
    %2876 = vmatpush1.msra.mxu0 %v877
    %2877 = vmatprep.subr.mxu0 %v886
    %2878 = vmatpush1.msra.mxu0 %v885
    %2879 = vmatprep.mubr.f32.mxu0 %v2746
    %2880 = vmatmul.mubr.f32.gmra.mrb[0].mxu0 %v2738
    %v2881 = vpop.f32.mrb[0].mxu0
    %v2882 = vadd.f32 %v2690, %v2881
    %v2883 = vpop.f32.mrb[0].mxu0
    %v2884 = vadd.f32 %v2694, %v2883
    %2885 = vdwg.mxu0
    %2886 = vmatprep.subr.mxu0 %v894
    %2887 = vmatpush1.msra.mxu0 %v893
    %2888 = vmatprep.subr.mxu0 %v902
    %2889 = vmatpush1.msra.mxu0 %v901
    %2890 = vmatprep.subr.mxu0 %v910
    %2891 = vmatpush1.msra.mxu0 %v909
    %2892 = vmatprep.subr.mxu0 %v918
    %2893 = vmatpush1.msra.mxu0 %v917
    %2894 = vmatprep.subr.mxu0 %v926
    %2895 = vmatpush1.msra.mxu0 %v925
    %2896 = vmatprep.subr.mxu0 %v934
    %2897 = vmatpush1.msra.mxu0 %v933
    %2898 = vmatprep.subr.mxu0 %v942
    %2899 = vmatpush1.msra.mxu0 %v941
    %2900 = vmatprep.subr.mxu0 %v950
    %2901 = vmatpush1.msra.mxu0 %v949
    %2902 = vmatprep.subr.mxu0 %v958
    %2903 = vmatpush1.msra.mxu0 %v957
    %2904 = vmatprep.subr.mxu0 %v966
    %2905 = vmatpush1.msra.mxu0 %v965
    %2906 = vmatprep.subr.mxu0 %v974
    %2907 = vmatpush1.msra.mxu0 %v973
    %2908 = vmatprep.subr.mxu0 %v982
    %2909 = vmatpush1.msra.mxu0 %v981
    %2910 = vmatprep.subr.mxu0 %v990
    %2911 = vmatpush1.msra.mxu0 %v989
    %2912 = vmatprep.subr.mxu0 %v998
    %2913 = vmatpush1.msra.mxu0 %v997
    %2914 = vmatprep.subr.mxu0 %v1006
    %2915 = vmatpush1.msra.mxu0 %v1005
    %2916 = vmatprep.subr.mxu0 %v1014
    %2917 = vmatpush1.msra.mxu0 %v1013
    %2918 = vmatprep.subr.mxu0 %v1022
    %2919 = vmatpush1.msra.mxu0 %v1021
    %2920 = vmatprep.subr.mxu0 %v1030
    %2921 = vmatpush1.msra.mxu0 %v1029
    %2922 = vmatprep.subr.mxu0 %v1038
    %2923 = vmatpush1.msra.mxu0 %v1037
    %2924 = vmatprep.subr.mxu0 %v1046
    %2925 = vmatpush1.msra.mxu0 %v1045
    %2926 = vmatprep.subr.mxu0 %v1054
    %2927 = vmatpush1.msra.mxu0 %v1053
    %2928 = vmatprep.subr.mxu0 %v1062
    %2929 = vmatpush1.msra.mxu0 %v1061
    %2930 = vmatprep.subr.mxu0 %v1070
    %2931 = vmatpush1.msra.mxu0 %v1069
    %2932 = vmatprep.subr.mxu0 %v1078
    %2933 = vmatpush1.msra.mxu0 %v1077
    %2934 = vmatprep.subr.mxu0 %v1086
    %2935 = vmatpush1.msra.mxu0 %v1085
    %2936 = vmatprep.subr.mxu0 %v1094
    %2937 = vmatpush1.msra.mxu0 %v1093
    %2938 = vmatprep.subr.mxu0 %v1102
    %2939 = vmatpush1.msra.mxu0 %v1101
    %2940 = vmatprep.subr.mxu0 %v1110
    %2941 = vmatpush1.msra.mxu0 %v1109
    %2942 = vmatprep.subr.mxu0 %v1118
    %2943 = vmatpush1.msra.mxu0 %v1117
    %2944 = vmatprep.subr.mxu0 %v1126
    %2945 = vmatpush1.msra.mxu0 %v1125
    %2946 = vmatprep.subr.mxu0 %v1134
    %2947 = vmatpush1.msra.mxu0 %v1133
    %2948 = vmatprep.subr.mxu0 %v1142
    %2949 = vmatpush1.msra.mxu0 %v1141
    %2950 = vmatprep.mubr.f32.mxu0 %v2747
    %2951 = vmatmul.mubr.f32.gmra.mrb[0].mxu0 %v2745
    %v2952 = vpop.f32.mrb[0].mxu0
    %v2953 = vadd.f32 %v2882, %v2952
    %v2954 = vpop.f32.mrb[0].mxu0
    %v2955 = vadd.f32 %v2884, %v2954
    %2956 = vdwg.mxu0
    %2957 = vmatprep.subr.mxu0 %v1150
    %2958 = vmatpush1.msra.mxu0 %v1149
    %2959 = vmatprep.subr.mxu0 %v1158
    %2960 = vmatpush1.msra.mxu0 %v1157
    %2961 = vmatprep.subr.mxu0 %v1166
    %2962 = vmatpush1.msra.mxu0 %v1165
    %2963 = vmatprep.subr.mxu0 %v1174
    %2964 = vmatpush1.msra.mxu0 %v1173
    %2965 = vmatprep.subr.mxu0 %v1182
    %2966 = vmatpush1.msra.mxu0 %v1181
    %2967 = vmatprep.subr.mxu0 %v1190
    %2968 = vmatpush1.msra.mxu0 %v1189
    %2969 = vmatprep.subr.mxu0 %v1198
    %2970 = vmatpush1.msra.mxu0 %v1197
    %2971 = vmatprep.subr.mxu0 %v1206
    %2972 = vmatpush1.msra.mxu0 %v1205
    %2973 = vmatprep.subr.mxu0 %v1214
    %2974 = vmatpush1.msra.mxu0 %v1213
    %2975 = vmatprep.subr.mxu0 %v1222
    %2976 = vmatpush1.msra.mxu0 %v1221
    %2977 = vmatprep.subr.mxu0 %v1230
    %2978 = vmatpush1.msra.mxu0 %v1229
    %2979 = vmatprep.subr.mxu0 %v1238
    %2980 = vmatpush1.msra.mxu0 %v1237
    %2981 = vmatprep.subr.mxu0 %v1246
    %2982 = vmatpush1.msra.mxu0 %v1245
    %2983 = vmatprep.subr.mxu0 %v1254
    %2984 = vmatpush1.msra.mxu0 %v1253
    %2985 = vmatprep.subr.mxu0 %v1262
    %2986 = vmatpush1.msra.mxu0 %v1261
    %2987 = vmatprep.subr.mxu0 %v1270
    %2988 = vmatpush1.msra.mxu0 %v1269
    %2989 = vmatprep.subr.mxu0 %v1278
    %2990 = vmatpush1.msra.mxu0 %v1277
    %2991 = vmatprep.subr.mxu0 %v1286
    %2992 = vmatpush1.msra.mxu0 %v1285
    %2993 = vmatprep.subr.mxu0 %v1294
    %2994 = vmatpush1.msra.mxu0 %v1293
    %2995 = vmatprep.subr.mxu0 %v1302
    %2996 = vmatpush1.msra.mxu0 %v1301
    %2997 = vmatprep.subr.mxu0 %v1310
    %2998 = vmatpush1.msra.mxu0 %v1309
    %2999 = vmatprep.subr.mxu0 %v1318
    %3000 = vmatpush1.msra.mxu0 %v1317
    %3001 = vmatprep.subr.mxu0 %v1326
    %3002 = vmatpush1.msra.mxu0 %v1325
    %3003 = vmatprep.subr.mxu0 %v1334
    %3004 = vmatpush1.msra.mxu0 %v1333
    %3005 = vmatprep.subr.mxu0 %v1342
    %3006 = vmatpush1.msra.mxu0 %v1341
    %3007 = vmatprep.subr.mxu0 %v1350
    %3008 = vmatpush1.msra.mxu0 %v1349
    %3009 = vmatprep.subr.mxu0 %v1358
    %3010 = vmatpush1.msra.mxu0 %v1357
    %3011 = vmatprep.subr.mxu0 %v1366
    %3012 = vmatpush1.msra.mxu0 %v1365
    %3013 = vmatprep.subr.mxu0 %v1374
    %3014 = vmatpush1.msra.mxu0 %v1373
    %3015 = vmatprep.subr.mxu0 %v1382
    %3016 = vmatpush1.msra.mxu0 %v1381
    %3017 = vmatprep.subr.mxu0 %v1390
    %3018 = vmatpush1.msra.mxu0 %v1389
    %3019 = vmatprep.subr.mxu0 %v1398
    %3020 = vmatpush1.msra.mxu0 %v1397
    %3021 = vmatprep.mubr.f32.mxu0 %v2763
    %3022 = vmatmul.mubr.f32.gmra.mrb[0].mxu0 %v2755
    %v3023 = vpop.f32.mrb[0].mxu0
    %v3024 = vadd.f32 %v2953, %v3023
    %v3025 = vpop.f32.mrb[0].mxu0
    %v3026 = vadd.f32 %v2955, %v3025
    %3027 = vdwg.mxu0
    %3028 = vmatprep.subr.mxu0 %v1406
    %3029 = vmatpush1.msra.mxu0 %v1405
    %3030 = vmatprep.subr.mxu0 %v1414
    %3031 = vmatpush1.msra.mxu0 %v1413
    %3032 = vmatprep.subr.mxu0 %v1422
    %3033 = vmatpush1.msra.mxu0 %v1421
    %3034 = vmatprep.subr.mxu0 %v1430
    %3035 = vmatpush1.msra.mxu0 %v1429
    %3036 = vmatprep.subr.mxu0 %v1438
    %3037 = vmatpush1.msra.mxu0 %v1437
    %3038 = vmatprep.subr.mxu0 %v1446
    %3039 = vmatpush1.msra.mxu0 %v1445
    %3040 = vmatprep.subr.mxu0 %v1454
    %3041 = vmatpush1.msra.mxu0 %v1453
    %3042 = vmatprep.subr.mxu0 %v1462
    %3043 = vmatpush1.msra.mxu0 %v1461
    %3044 = vmatprep.subr.mxu0 %v1470
    %3045 = vmatpush1.msra.mxu0 %v1469
    %3046 = vmatprep.subr.mxu0 %v1478
    %3047 = vmatpush1.msra.mxu0 %v1477
    %3048 = vmatprep.subr.mxu0 %v1486
    %3049 = vmatpush1.msra.mxu0 %v1485
    %3050 = vmatprep.subr.mxu0 %v1494
    %3051 = vmatpush1.msra.mxu0 %v1493
    %3052 = vmatprep.subr.mxu0 %v1502
    %3053 = vmatpush1.msra.mxu0 %v1501
    %3054 = vmatprep.subr.mxu0 %v1510
    %3055 = vmatpush1.msra.mxu0 %v1509
    %3056 = vmatprep.subr.mxu0 %v1518
    %3057 = vmatpush1.msra.mxu0 %v1517
    %3058 = vmatprep.subr.mxu0 %v1526
    %3059 = vmatpush1.msra.mxu0 %v1525
    %3060 = vmatprep.subr.mxu0 %v1534
    %3061 = vmatpush1.msra.mxu0 %v1533
    %3062 = vmatprep.subr.mxu0 %v1542
    %3063 = vmatpush1.msra.mxu0 %v1541
    %3064 = vmatprep.subr.mxu0 %v1550
    %3065 = vmatpush1.msra.mxu0 %v1549
    %3066 = vmatprep.subr.mxu0 %v1558
    %3067 = vmatpush1.msra.mxu0 %v1557
    %3068 = vmatprep.subr.mxu0 %v1566
    %3069 = vmatpush1.msra.mxu0 %v1565
    %3070 = vmatprep.subr.mxu0 %v1574
    %3071 = vmatpush1.msra.mxu0 %v1573
    %3072 = vmatprep.subr.mxu0 %v1582
    %3073 = vmatpush1.msra.mxu0 %v1581
    %3074 = vmatprep.subr.mxu0 %v1590
    %3075 = vmatpush1.msra.mxu0 %v1589
    %3076 = vmatprep.subr.mxu0 %v1598
    %3077 = vmatpush1.msra.mxu0 %v1597
    %3078 = vmatprep.subr.mxu0 %v1606
    %3079 = vmatpush1.msra.mxu0 %v1605
    %3080 = vmatprep.subr.mxu0 %v1614
    %3081 = vmatpush1.msra.mxu0 %v1613
    %3082 = vmatprep.subr.mxu0 %v1622
    %3083 = vmatpush1.msra.mxu0 %v1621
    %3084 = vmatprep.subr.mxu0 %v1630
    %3085 = vmatpush1.msra.mxu0 %v1629
    %3086 = vmatprep.subr.mxu0 %v1638
    %3087 = vmatpush1.msra.mxu0 %v1637
    %3088 = vmatprep.subr.mxu0 %v1646
    %3089 = vmatpush1.msra.mxu0 %v1645
    %3090 = vmatprep.subr.mxu0 %v1654
    %3091 = vmatpush1.msra.mxu0 %v1653
    %3092 = vmatprep.mubr.f32.mxu0 %v2764
    %3093 = vmatmul.mubr.f32.gmra.mrb[0].mxu0 %v2762
    %v3094 = vpop.f32.mrb[0].mxu0
    %v3095 = vadd.f32 %v3024, %v3094
    %v3096 = vpop.f32.mrb[0].mxu0
    %v3097 = vadd.f32 %v3026, %v3096
    %3098 = vdwg.mxu0
    %3099 = vmatprep.subr.mxu0 %v1662
    %3100 = vmatpush1.msra.mxu0 %v1661
    %3101 = vmatprep.subr.mxu0 %v1670
    %3102 = vmatpush1.msra.mxu0 %v1669
    %3103 = vmatprep.subr.mxu0 %v1678
    %3104 = vmatpush1.msra.mxu0 %v1677
    %3105 = vmatprep.subr.mxu0 %v1686
    %3106 = vmatpush1.msra.mxu0 %v1685
    %3107 = vmatprep.subr.mxu0 %v1694
    %3108 = vmatpush1.msra.mxu0 %v1693
    %3109 = vmatprep.subr.mxu0 %v1702
    %3110 = vmatpush1.msra.mxu0 %v1701
    %3111 = vmatprep.subr.mxu0 %v1710
    %3112 = vmatpush1.msra.mxu0 %v1709
    %3113 = vmatprep.subr.mxu0 %v1718
    %3114 = vmatpush1.msra.mxu0 %v1717
    %3115 = vmatprep.subr.mxu0 %v1726
    %3116 = vmatpush1.msra.mxu0 %v1725
    %3117 = vmatprep.subr.mxu0 %v1734
    %3118 = vmatpush1.msra.mxu0 %v1733
    %3119 = vmatprep.subr.mxu0 %v1742
    %3120 = vmatpush1.msra.mxu0 %v1741
    %3121 = vmatprep.subr.mxu0 %v1750
    %3122 = vmatpush1.msra.mxu0 %v1749
    %3123 = vmatprep.subr.mxu0 %v1758
    %3124 = vmatpush1.msra.mxu0 %v1757
    %3125 = vmatprep.subr.mxu0 %v1766
    %3126 = vmatpush1.msra.mxu0 %v1765
    %3127 = vmatprep.subr.mxu0 %v1774
    %3128 = vmatpush1.msra.mxu0 %v1773
    %3129 = vmatprep.subr.mxu0 %v1782
    %3130 = vmatpush1.msra.mxu0 %v1781
    %3131 = vmatprep.subr.mxu0 %v1790
    %3132 = vmatpush1.msra.mxu0 %v1789
    %3133 = vmatprep.subr.mxu0 %v1798
    %3134 = vmatpush1.msra.mxu0 %v1797
    %3135 = vmatprep.subr.mxu0 %v1806
    %3136 = vmatpush1.msra.mxu0 %v1805
    %3137 = vmatprep.subr.mxu0 %v1814
    %3138 = vmatpush1.msra.mxu0 %v1813
    %3139 = vmatprep.subr.mxu0 %v1822
    %3140 = vmatpush1.msra.mxu0 %v1821
    %3141 = vmatprep.subr.mxu0 %v1830
    %3142 = vmatpush1.msra.mxu0 %v1829
    %3143 = vmatprep.subr.mxu0 %v1838
    %3144 = vmatpush1.msra.mxu0 %v1837
    %3145 = vmatprep.subr.mxu0 %v1846
    %3146 = vmatpush1.msra.mxu0 %v1845
    %3147 = vmatprep.subr.mxu0 %v1854
    %3148 = vmatpush1.msra.mxu0 %v1853
    %3149 = vmatprep.subr.mxu0 %v1862
    %3150 = vmatpush1.msra.mxu0 %v1861
    %3151 = vmatprep.subr.mxu0 %v1870
    %3152 = vmatpush1.msra.mxu0 %v1869
    %3153 = vmatprep.subr.mxu0 %v1878
    %3154 = vmatpush1.msra.mxu0 %v1877
    %3155 = vmatprep.subr.mxu0 %v1886
    %3156 = vmatpush1.msra.mxu0 %v1885
    %3157 = vmatprep.subr.mxu0 %v1894
    %3158 = vmatpush1.msra.mxu0 %v1893
    %3159 = vmatprep.subr.mxu0 %v1902
    %3160 = vmatpush1.msra.mxu0 %v1901
    %3161 = vmatprep.subr.mxu0 %v1910
    %3162 = vmatpush1.msra.mxu0 %v1909
    %3163 = vmatprep.mubr.f32.mxu0 %v2780
    %3164 = vmatmul.mubr.f32.gmra.mrb[0].mxu0 %v2772
    %v3165 = vpop.f32.mrb[0].mxu0
    %v3166 = vadd.f32 %v3095, %v3165
    %v3167 = vpop.f32.mrb[0].mxu0
    %v3168 = vadd.f32 %v3097, %v3167
    %3169 = vdwg.mxu0
    %3170 = vmatprep.subr.mxu0 %v1918
    %3171 = vmatpush1.msra.mxu0 %v1917
    %3172 = vmatprep.subr.mxu0 %v1926
    %3173 = vmatpush1.msra.mxu0 %v1925
    %3174 = vmatprep.subr.mxu0 %v1934
    %3175 = vmatpush1.msra.mxu0 %v1933
    %3176 = vmatprep.subr.mxu0 %v1942
    %3177 = vmatpush1.msra.mxu0 %v1941
    %3178 = vmatprep.subr.mxu0 %v1950
    %3179 = vmatpush1.msra.mxu0 %v1949
    %3180 = vmatprep.subr.mxu0 %v1958
    %3181 = vmatpush1.msra.mxu0 %v1957
    %3182 = vmatprep.subr.mxu0 %v1966
    %3183 = vmatpush1.msra.mxu0 %v1965
    %3184 = vmatprep.subr.mxu0 %v1974
    %3185 = vmatpush1.msra.mxu0 %v1973
    %3186 = vmatprep.subr.mxu0 %v1982
    %3187 = vmatpush1.msra.mxu0 %v1981
    %3188 = vmatprep.subr.mxu0 %v1990
    %3189 = vmatpush1.msra.mxu0 %v1989
    %3190 = vmatprep.subr.mxu0 %v1998
    %3191 = vmatpush1.msra.mxu0 %v1997
    %3192 = vmatprep.subr.mxu0 %v2006
    %3193 = vmatpush1.msra.mxu0 %v2005
    %3194 = vmatprep.subr.mxu0 %v2014
    %3195 = vmatpush1.msra.mxu0 %v2013
    %3196 = vmatprep.subr.mxu0 %v2022
    %3197 = vmatpush1.msra.mxu0 %v2021
    %3198 = vmatprep.subr.mxu0 %v2030
    %3199 = vmatpush1.msra.mxu0 %v2029
    %3200 = vmatprep.subr.mxu0 %v2038
    %3201 = vmatpush1.msra.mxu0 %v2037
    %3202 = vmatprep.subr.mxu0 %v2046
    %3203 = vmatpush1.msra.mxu0 %v2045
    %3204 = vmatprep.subr.mxu0 %v2054
    %3205 = vmatpush1.msra.mxu0 %v2053
    %3206 = vmatprep.subr.mxu0 %v2062
    %3207 = vmatpush1.msra.mxu0 %v2061
    %3208 = vmatprep.subr.mxu0 %v2070
    %3209 = vmatpush1.msra.mxu0 %v2069
    %3210 = vmatprep.subr.mxu0 %v2078
    %3211 = vmatpush1.msra.mxu0 %v2077
    %3212 = vmatprep.subr.mxu0 %v2086
    %3213 = vmatpush1.msra.mxu0 %v2085
    %3214 = vmatprep.subr.mxu0 %v2094
    %3215 = vmatpush1.msra.mxu0 %v2093
    %3216 = vmatprep.subr.mxu0 %v2102
    %3217 = vmatpush1.msra.mxu0 %v2101
    %3218 = vmatprep.subr.mxu0 %v2110
    %3219 = vmatpush1.msra.mxu0 %v2109
    %3220 = vmatprep.subr.mxu0 %v2118
    %3221 = vmatpush1.msra.mxu0 %v2117
    %3222 = vmatprep.subr.mxu0 %v2126
    %3223 = vmatpush1.msra.mxu0 %v2125
    %3224 = vmatprep.subr.mxu0 %v2134
    %3225 = vmatpush1.msra.mxu0 %v2133
    %3226 = vmatprep.subr.mxu0 %v2142
    %3227 = vmatpush1.msra.mxu0 %v2141
    %3228 = vmatprep.subr.mxu0 %v2150
    %3229 = vmatpush1.msra.mxu0 %v2149
    %3230 = vmatprep.subr.mxu0 %v2158
    %3231 = vmatpush1.msra.mxu0 %v2157
    %3232 = vmatprep.subr.mxu0 %v2166
    %3233 = vmatpush1.msra.mxu0 %v2165
    %3234 = vmatprep.mubr.f32.mxu0 %v2781
    %3235 = vmatmul.mubr.f32.gmra.mrb[0].mxu0 %v2779
    %v3236 = vpop.f32.mrb[0].mxu0
    %v3237 = vadd.f32 %v3166, %v3236
    %v3238 = vpop.f32.mrb[0].mxu0
    %v3239 = vadd.f32 %v3168, %v3238
    %3240 = vdwg.mxu0
    %3241 = vmatprep.subr.mxu0 %v2174
    %3242 = vmatpush1.msra.mxu0 %v2173
    %3243 = vmatprep.subr.mxu0 %v2182
    %3244 = vmatpush1.msra.mxu0 %v2181
    %3245 = vmatprep.subr.mxu0 %v2190
    %3246 = vmatpush1.msra.mxu0 %v2189
    %3247 = vmatprep.subr.mxu0 %v2198
    %3248 = vmatpush1.msra.mxu0 %v2197
    %3249 = vmatprep.subr.mxu0 %v2206
    %3250 = vmatpush1.msra.mxu0 %v2205
    %3251 = vmatprep.subr.mxu0 %v2214
    %3252 = vmatpush1.msra.mxu0 %v2213
    %3253 = vmatprep.subr.mxu0 %v2222
    %3254 = vmatpush1.msra.mxu0 %v2221
    %3255 = vmatprep.subr.mxu0 %v2230
    %3256 = vmatpush1.msra.mxu0 %v2229
    %3257 = vmatprep.subr.mxu0 %v2238
    %3258 = vmatpush1.msra.mxu0 %v2237
    %3259 = vmatprep.subr.mxu0 %v2246
    %3260 = vmatpush1.msra.mxu0 %v2245
    %3261 = vmatprep.subr.mxu0 %v2254
    %3262 = vmatpush1.msra.mxu0 %v2253
    %3263 = vmatprep.subr.mxu0 %v2262
    %3264 = vmatpush1.msra.mxu0 %v2261
    %3265 = vmatprep.subr.mxu0 %v2270
    %3266 = vmatpush1.msra.mxu0 %v2269
    %3267 = vmatprep.subr.mxu0 %v2278
    %3268 = vmatpush1.msra.mxu0 %v2277
    %3269 = vmatprep.subr.mxu0 %v2286
    %3270 = vmatpush1.msra.mxu0 %v2285
    %3271 = vmatprep.subr.mxu0 %v2294
    %3272 = vmatpush1.msra.mxu0 %v2293
    %3273 = vmatprep.subr.mxu0 %v2302
    %3274 = vmatpush1.msra.mxu0 %v2301
    %3275 = vmatprep.subr.mxu0 %v2310
    %3276 = vmatpush1.msra.mxu0 %v2309
    %3277 = vmatprep.subr.mxu0 %v2318
    %3278 = vmatpush1.msra.mxu0 %v2317
    %3279 = vmatprep.subr.mxu0 %v2326
    %3280 = vmatpush1.msra.mxu0 %v2325
    %3281 = vmatprep.subr.mxu0 %v2334
    %3282 = vmatpush1.msra.mxu0 %v2333
    %3283 = vmatprep.subr.mxu0 %v2342
    %3284 = vmatpush1.msra.mxu0 %v2341
    %3285 = vmatprep.subr.mxu0 %v2350
    %3286 = vmatpush1.msra.mxu0 %v2349
    %3287 = vmatprep.subr.mxu0 %v2358
    %3288 = vmatpush1.msra.mxu0 %v2357
    %3289 = vmatprep.subr.mxu0 %v2366
    %3290 = vmatpush1.msra.mxu0 %v2365
    %3291 = vmatprep.subr.mxu0 %v2374
    %3292 = vmatpush1.msra.mxu0 %v2373
    %3293 = vmatprep.subr.mxu0 %v2382
    %3294 = vmatpush1.msra.mxu0 %v2381
    %3295 = vmatprep.subr.mxu0 %v2390
    %3296 = vmatpush1.msra.mxu0 %v2389
    %3297 = vmatprep.subr.mxu0 %v2398
    %3298 = vmatpush1.msra.mxu0 %v2397
    %3299 = vmatprep.subr.mxu0 %v2406
    %3300 = vmatpush1.msra.mxu0 %v2405
    %3301 = vmatprep.subr.mxu0 %v2414
    %3302 = vmatpush1.msra.mxu0 %v2413
    %3303 = vmatprep.subr.mxu0 %v2422
    %3304 = vmatpush1.msra.mxu0 %v2421
    %3305 = vmatprep.mubr.f32.mxu0 %v2797
    %3306 = vmatmul.mubr.f32.gmra.mrb[0].mxu0 %v2789
    %v3307 = vpop.f32.mrb[0].mxu0
    %v3308 = vadd.f32 %v3237, %v3307
    %v3309 = vpop.f32.mrb[0].mxu0
    %v3310 = vadd.f32 %v3239, %v3309
    %3311 = vdwg.mxu0
    %3312 = vmatprep.subr.mxu0 %v2430
    %3313 = vmatpush1.msra.mxu0 %v2429
    %3314 = vmatprep.subr.mxu0 %v2438
    %3315 = vmatpush1.msra.mxu0 %v2437
    %3316 = vmatprep.subr.mxu0 %v2446
    %3317 = vmatpush1.msra.mxu0 %v2445
    %3318 = vmatprep.subr.mxu0 %v2454
    %3319 = vmatpush1.msra.mxu0 %v2453
    %3320 = vmatprep.subr.mxu0 %v2462
    %3321 = vmatpush1.msra.mxu0 %v2461
    %3322 = vmatprep.subr.mxu0 %v2470
    %3323 = vmatpush1.msra.mxu0 %v2469
    %3324 = vmatprep.subr.mxu0 %v2478
    %3325 = vmatpush1.msra.mxu0 %v2477
    %3326 = vmatprep.subr.mxu0 %v2486
    %3327 = vmatpush1.msra.mxu0 %v2485
    %3328 = vmatprep.subr.mxu0 %v2494
    %3329 = vmatpush1.msra.mxu0 %v2493
    %3330 = vmatprep.subr.mxu0 %v2502
    %3331 = vmatpush1.msra.mxu0 %v2501
    %3332 = vmatprep.subr.mxu0 %v2510
    %3333 = vmatpush1.msra.mxu0 %v2509
    %3334 = vmatprep.subr.mxu0 %v2518
    %3335 = vmatpush1.msra.mxu0 %v2517
    %3336 = vmatprep.subr.mxu0 %v2526
    %3337 = vmatpush1.msra.mxu0 %v2525
    %3338 = vmatprep.subr.mxu0 %v2534
    %3339 = vmatpush1.msra.mxu0 %v2533
    %3340 = vmatprep.subr.mxu0 %v2542
    %3341 = vmatpush1.msra.mxu0 %v2541
    %3342 = vmatprep.subr.mxu0 %v2550
    %3343 = vmatpush1.msra.mxu0 %v2549
    %3344 = vmatprep.subr.mxu0 %v2558
    %3345 = vmatpush1.msra.mxu0 %v2557
    %3346 = vmatprep.subr.mxu0 %v2566
    %3347 = vmatpush1.msra.mxu0 %v2565
    %3348 = vmatprep.subr.mxu0 %v2574
    %3349 = vmatpush1.msra.mxu0 %v2573
    %3350 = vmatprep.subr.mxu0 %v2582
    %3351 = vmatpush1.msra.mxu0 %v2581
    %3352 = vmatprep.subr.mxu0 %v2590
    %3353 = vmatpush1.msra.mxu0 %v2589
    %3354 = vmatprep.subr.mxu0 %v2598
    %3355 = vmatpush1.msra.mxu0 %v2597
    %3356 = vmatprep.subr.mxu0 %v2606
    %3357 = vmatpush1.msra.mxu0 %v2605
    %3358 = vmatprep.subr.mxu0 %v2614
    %3359 = vmatpush1.msra.mxu0 %v2613
    %3360 = vmatprep.subr.mxu0 %v2622
    %3361 = vmatpush1.msra.mxu0 %v2621
    %3362 = vmatprep.subr.mxu0 %v2630
    %3363 = vmatpush1.msra.mxu0 %v2629
    %3364 = vmatprep.subr.mxu0 %v2638
    %3365 = vmatpush1.msra.mxu0 %v2637
    %3366 = vmatprep.subr.mxu0 %v2646
    %3367 = vmatpush1.msra.mxu0 %v2645
    %3368 = vmatprep.subr.mxu0 %v2654
    %3369 = vmatpush1.msra.mxu0 %v2653
    %3370 = vmatprep.subr.mxu0 %v2662
    %3371 = vmatpush1.msra.mxu0 %v2661
    %3372 = vmatprep.subr.mxu0 %v2670
    %3373 = vmatpush1.msra.mxu0 %v2669
    %3374 = vmatprep.subr.mxu0 %v2678
    %3375 = vmatpush1.msra.mxu0 %v2677
    %3376 = vmatprep.mubr.f32.mxu0 %v2798
    %3377 = vmatmul.mubr.f32.gmra.mrb[0].mxu0 %v2796
    %v3378 = vpop.f32.mrb[0].mxu0
    %v3379 = vadd.f32 %v3308, %v3378
    %v3380 = vpop.f32.mrb[0].mxu0
    %v3381 = vadd.f32 %v3310, %v3380
    %3382 = vdwg.mxu0
    %3383 = vmatprep.subr.mxu0 %v640
    %3384 = vmatpush1.msra.mxu0 %v639
    %3385 = vmatprep.subr.mxu0 %v648
    %3386 = vmatpush1.msra.mxu0 %v647
    %3387 = vmatprep.subr.mxu0 %v656
    %3388 = vmatpush1.msra.mxu0 %v655
    %3389 = vmatprep.subr.mxu0 %v664
    %3390 = vmatpush1.msra.mxu0 %v663
    %3391 = vmatprep.subr.mxu0 %v672
    %3392 = vmatpush1.msra.mxu0 %v671
    %3393 = vmatprep.subr.mxu0 %v680
    %3394 = vmatpush1.msra.mxu0 %v679
    %3395 = vmatprep.subr.mxu0 %v688
    %3396 = vmatpush1.msra.mxu0 %v687
    %3397 = vmatprep.subr.mxu0 %v696
    %3398 = vmatpush1.msra.mxu0 %v695
    %3399 = vmatprep.subr.mxu0 %v704
    %3400 = vmatpush1.msra.mxu0 %v703
    %3401 = vmatprep.subr.mxu0 %v712
    %3402 = vmatpush1.msra.mxu0 %v711
    %3403 = vmatprep.subr.mxu0 %v720
    %3404 = vmatpush1.msra.mxu0 %v719
    %3405 = vmatprep.subr.mxu0 %v728
    %3406 = vmatpush1.msra.mxu0 %v727
    %3407 = vmatprep.subr.mxu0 %v736
    %3408 = vmatpush1.msra.mxu0 %v735
    %3409 = vmatprep.subr.mxu0 %v744
    %3410 = vmatpush1.msra.mxu0 %v743
    %3411 = vmatprep.subr.mxu0 %v752
    %3412 = vmatpush1.msra.mxu0 %v751
    %3413 = vmatprep.subr.mxu0 %v760
    %3414 = vmatpush1.msra.mxu0 %v759
    %3415 = vmatprep.subr.mxu0 %v768
    %3416 = vmatpush1.msra.mxu0 %v767
    %3417 = vmatprep.subr.mxu0 %v776
    %3418 = vmatpush1.msra.mxu0 %v775
    %3419 = vmatprep.subr.mxu0 %v784
    %3420 = vmatpush1.msra.mxu0 %v783
    %3421 = vmatprep.subr.mxu0 %v792
    %3422 = vmatpush1.msra.mxu0 %v791
    %3423 = vmatprep.subr.mxu0 %v800
    %3424 = vmatpush1.msra.mxu0 %v799
    %3425 = vmatprep.subr.mxu0 %v808
    %3426 = vmatpush1.msra.mxu0 %v807
    %3427 = vmatprep.subr.mxu0 %v816
    %3428 = vmatpush1.msra.mxu0 %v815
    %3429 = vmatprep.subr.mxu0 %v824
    %3430 = vmatpush1.msra.mxu0 %v823
    %3431 = vmatprep.subr.mxu0 %v832
    %3432 = vmatpush1.msra.mxu0 %v831
    %3433 = vmatprep.subr.mxu0 %v840
    %3434 = vmatpush1.msra.mxu0 %v839
    %3435 = vmatprep.subr.mxu0 %v848
    %3436 = vmatpush1.msra.mxu0 %v847
    %3437 = vmatprep.subr.mxu0 %v856
    %3438 = vmatpush1.msra.mxu0 %v855
    %3439 = vmatprep.subr.mxu0 %v864
    %3440 = vmatpush1.msra.mxu0 %v863
    %3441 = vmatprep.subr.mxu0 %v872
    %3442 = vmatpush1.msra.mxu0 %v871
    %3443 = vmatprep.subr.mxu0 %v880
    %3444 = vmatpush1.msra.mxu0 %v879
    %3445 = vmatprep.subr.mxu0 %v888
    %3446 = vmatpush1.msra.mxu0 %v887
    %3447 = vmatprep.mubr.f32.mxu0 %v2746
    %3448 = vmatmul.mubr.f32.gmra.mrb[0].mxu0 %v2738
    %v3449 = vpop.f32.mrb[0].mxu0
    %v3450 = vadd.f32 %v2698, %v3449
    %v3451 = vpop.f32.mrb[0].mxu0
    %v3452 = vadd.f32 %v2702, %v3451
    %3453 = vdwg.mxu0
    %3454 = vmatprep.subr.mxu0 %v896
    %3455 = vmatpush1.msra.mxu0 %v895
    %3456 = vmatprep.subr.mxu0 %v904
    %3457 = vmatpush1.msra.mxu0 %v903
    %3458 = vmatprep.subr.mxu0 %v912
    %3459 = vmatpush1.msra.mxu0 %v911
    %3460 = vmatprep.subr.mxu0 %v920
    %3461 = vmatpush1.msra.mxu0 %v919
    %3462 = vmatprep.subr.mxu0 %v928
    %3463 = vmatpush1.msra.mxu0 %v927
    %3464 = vmatprep.subr.mxu0 %v936
    %3465 = vmatpush1.msra.mxu0 %v935
    %3466 = vmatprep.subr.mxu0 %v944
    %3467 = vmatpush1.msra.mxu0 %v943
    %3468 = vmatprep.subr.mxu0 %v952
    %3469 = vmatpush1.msra.mxu0 %v951
    %3470 = vmatprep.subr.mxu0 %v960
    %3471 = vmatpush1.msra.mxu0 %v959
    %3472 = vmatprep.subr.mxu0 %v968
    %3473 = vmatpush1.msra.mxu0 %v967
    %3474 = vmatprep.subr.mxu0 %v976
    %3475 = vmatpush1.msra.mxu0 %v975
    %3476 = vmatprep.subr.mxu0 %v984
    %3477 = vmatpush1.msra.mxu0 %v983
    %3478 = vmatprep.subr.mxu0 %v992
    %3479 = vmatpush1.msra.mxu0 %v991
    %3480 = vmatprep.subr.mxu0 %v1000
    %3481 = vmatpush1.msra.mxu0 %v999
    %3482 = vmatprep.subr.mxu0 %v1008
    %3483 = vmatpush1.msra.mxu0 %v1007
    %3484 = vmatprep.subr.mxu0 %v1016
    %3485 = vmatpush1.msra.mxu0 %v1015
    %3486 = vmatprep.subr.mxu0 %v1024
    %3487 = vmatpush1.msra.mxu0 %v1023
    %3488 = vmatprep.subr.mxu0 %v1032
    %3489 = vmatpush1.msra.mxu0 %v1031
    %3490 = vmatprep.subr.mxu0 %v1040
    %3491 = vmatpush1.msra.mxu0 %v1039
    %3492 = vmatprep.subr.mxu0 %v1048
    %3493 = vmatpush1.msra.mxu0 %v1047
    %3494 = vmatprep.subr.mxu0 %v1056
    %3495 = vmatpush1.msra.mxu0 %v1055
    %3496 = vmatprep.subr.mxu0 %v1064
    %3497 = vmatpush1.msra.mxu0 %v1063
    %3498 = vmatprep.subr.mxu0 %v1072
    %3499 = vmatpush1.msra.mxu0 %v1071
    %3500 = vmatprep.subr.mxu0 %v1080
    %3501 = vmatpush1.msra.mxu0 %v1079
    %3502 = vmatprep.subr.mxu0 %v1088
    %3503 = vmatpush1.msra.mxu0 %v1087
    %3504 = vmatprep.subr.mxu0 %v1096
    %3505 = vmatpush1.msra.mxu0 %v1095
    %3506 = vmatprep.subr.mxu0 %v1104
    %3507 = vmatpush1.msra.mxu0 %v1103
    %3508 = vmatprep.subr.mxu0 %v1112
    %3509 = vmatpush1.msra.mxu0 %v1111
    %3510 = vmatprep.subr.mxu0 %v1120
    %3511 = vmatpush1.msra.mxu0 %v1119
    %3512 = vmatprep.subr.mxu0 %v1128
    %3513 = vmatpush1.msra.mxu0 %v1127
    %3514 = vmatprep.subr.mxu0 %v1136
    %3515 = vmatpush1.msra.mxu0 %v1135
    %3516 = vmatprep.subr.mxu0 %v1144
    %3517 = vmatpush1.msra.mxu0 %v1143
    %3518 = vmatprep.mubr.f32.mxu0 %v2747
    %3519 = vmatmul.mubr.f32.gmra.mrb[0].mxu0 %v2745
    %v3520 = vpop.f32.mrb[0].mxu0
    %v3521 = vadd.f32 %v3450, %v3520
    %v3522 = vpop.f32.mrb[0].mxu0
    %v3523 = vadd.f32 %v3452, %v3522
    %3524 = vdwg.mxu0
    %3525 = vmatprep.subr.mxu0 %v1152
    %3526 = vmatpush1.msra.mxu0 %v1151
    %3527 = vmatprep.subr.mxu0 %v1160
    %3528 = vmatpush1.msra.mxu0 %v1159
    %3529 = vmatprep.subr.mxu0 %v1168
    %3530 = vmatpush1.msra.mxu0 %v1167
    %3531 = vmatprep.subr.mxu0 %v1176
    %3532 = vmatpush1.msra.mxu0 %v1175
    %3533 = vmatprep.subr.mxu0 %v1184
    %3534 = vmatpush1.msra.mxu0 %v1183
    %3535 = vmatprep.subr.mxu0 %v1192
    %3536 = vmatpush1.msra.mxu0 %v1191
    %3537 = vmatprep.subr.mxu0 %v1200
    %3538 = vmatpush1.msra.mxu0 %v1199
    %3539 = vmatprep.subr.mxu0 %v1208
    %3540 = vmatpush1.msra.mxu0 %v1207
    %3541 = vmatprep.subr.mxu0 %v1216
    %3542 = vmatpush1.msra.mxu0 %v1215
    %3543 = vmatprep.subr.mxu0 %v1224
    %3544 = vmatpush1.msra.mxu0 %v1223
    %3545 = vmatprep.subr.mxu0 %v1232
    %3546 = vmatpush1.msra.mxu0 %v1231
    %3547 = vmatprep.subr.mxu0 %v1240
    %3548 = vmatpush1.msra.mxu0 %v1239
    %3549 = vmatprep.subr.mxu0 %v1248
    %3550 = vmatpush1.msra.mxu0 %v1247
    %3551 = vmatprep.subr.mxu0 %v1256
    %3552 = vmatpush1.msra.mxu0 %v1255
    %3553 = vmatprep.subr.mxu0 %v1264
    %3554 = vmatpush1.msra.mxu0 %v1263
    %3555 = vmatprep.subr.mxu0 %v1272
    %3556 = vmatpush1.msra.mxu0 %v1271
    %3557 = vmatprep.subr.mxu0 %v1280
    %3558 = vmatpush1.msra.mxu0 %v1279
    %3559 = vmatprep.subr.mxu0 %v1288
    %3560 = vmatpush1.msra.mxu0 %v1287
    %3561 = vmatprep.subr.mxu0 %v1296
    %3562 = vmatpush1.msra.mxu0 %v1295
    %3563 = vmatprep.subr.mxu0 %v1304
    %3564 = vmatpush1.msra.mxu0 %v1303
    %3565 = vmatprep.subr.mxu0 %v1312
    %3566 = vmatpush1.msra.mxu0 %v1311
    %3567 = vmatprep.subr.mxu0 %v1320
    %3568 = vmatpush1.msra.mxu0 %v1319
    %3569 = vmatprep.subr.mxu0 %v1328
    %3570 = vmatpush1.msra.mxu0 %v1327
    %3571 = vmatprep.subr.mxu0 %v1336
    %3572 = vmatpush1.msra.mxu0 %v1335
    %3573 = vmatprep.subr.mxu0 %v1344
    %3574 = vmatpush1.msra.mxu0 %v1343
    %3575 = vmatprep.subr.mxu0 %v1352
    %3576 = vmatpush1.msra.mxu0 %v1351
    %3577 = vmatprep.subr.mxu0 %v1360
    %3578 = vmatpush1.msra.mxu0 %v1359
    %3579 = vmatprep.subr.mxu0 %v1368
    %3580 = vmatpush1.msra.mxu0 %v1367
    %3581 = vmatprep.subr.mxu0 %v1376
    %3582 = vmatpush1.msra.mxu0 %v1375
    %3583 = vmatprep.subr.mxu0 %v1384
    %3584 = vmatpush1.msra.mxu0 %v1383
    %3585 = vmatprep.subr.mxu0 %v1392
    %3586 = vmatpush1.msra.mxu0 %v1391
    %3587 = vmatprep.subr.mxu0 %v1400
    %3588 = vmatpush1.msra.mxu0 %v1399
    %3589 = vmatprep.mubr.f32.mxu0 %v2763
    %3590 = vmatmul.mubr.f32.gmra.mrb[0].mxu0 %v2755
    %v3591 = vpop.f32.mrb[0].mxu0
    %v3592 = vadd.f32 %v3521, %v3591
    %v3593 = vpop.f32.mrb[0].mxu0
    %v3594 = vadd.f32 %v3523, %v3593
    %3595 = vdwg.mxu0
    %3596 = vmatprep.subr.mxu0 %v1408
    %3597 = vmatpush1.msra.mxu0 %v1407
    %3598 = vmatprep.subr.mxu0 %v1416
    %3599 = vmatpush1.msra.mxu0 %v1415
    %3600 = vmatprep.subr.mxu0 %v1424
    %3601 = vmatpush1.msra.mxu0 %v1423
    %3602 = vmatprep.subr.mxu0 %v1432
    %3603 = vmatpush1.msra.mxu0 %v1431
    %3604 = vmatprep.subr.mxu0 %v1440
    %3605 = vmatpush1.msra.mxu0 %v1439
    %3606 = vmatprep.subr.mxu0 %v1448
    %3607 = vmatpush1.msra.mxu0 %v1447
    %3608 = vmatprep.subr.mxu0 %v1456
    %3609 = vmatpush1.msra.mxu0 %v1455
    %3610 = vmatprep.subr.mxu0 %v1464
    %3611 = vmatpush1.msra.mxu0 %v1463
    %3612 = vmatprep.subr.mxu0 %v1472
    %3613 = vmatpush1.msra.mxu0 %v1471
    %3614 = vmatprep.subr.mxu0 %v1480
    %3615 = vmatpush1.msra.mxu0 %v1479
    %3616 = vmatprep.subr.mxu0 %v1488
    %3617 = vmatpush1.msra.mxu0 %v1487
    %3618 = vmatprep.subr.mxu0 %v1496
    %3619 = vmatpush1.msra.mxu0 %v1495
    %3620 = vmatprep.subr.mxu0 %v1504
    %3621 = vmatpush1.msra.mxu0 %v1503
    %3622 = vmatprep.subr.mxu0 %v1512
    %3623 = vmatpush1.msra.mxu0 %v1511
    %3624 = vmatprep.subr.mxu0 %v1520
    %3625 = vmatpush1.msra.mxu0 %v1519
    %3626 = vmatprep.subr.mxu0 %v1528
    %3627 = vmatpush1.msra.mxu0 %v1527
    %3628 = vmatprep.subr.mxu0 %v1536
    %3629 = vmatpush1.msra.mxu0 %v1535
    %3630 = vmatprep.subr.mxu0 %v1544
    %3631 = vmatpush1.msra.mxu0 %v1543
    %3632 = vmatprep.subr.mxu0 %v1552
    %3633 = vmatpush1.msra.mxu0 %v1551
    %3634 = vmatprep.subr.mxu0 %v1560
    %3635 = vmatpush1.msra.mxu0 %v1559
    %3636 = vmatprep.subr.mxu0 %v1568
    %3637 = vmatpush1.msra.mxu0 %v1567
    %3638 = vmatprep.subr.mxu0 %v1576
    %3639 = vmatpush1.msra.mxu0 %v1575
    %3640 = vmatprep.subr.mxu0 %v1584
    %3641 = vmatpush1.msra.mxu0 %v1583
    %3642 = vmatprep.subr.mxu0 %v1592
    %3643 = vmatpush1.msra.mxu0 %v1591
    %3644 = vmatprep.subr.mxu0 %v1600
    %3645 = vmatpush1.msra.mxu0 %v1599
    %3646 = vmatprep.subr.mxu0 %v1608
    %3647 = vmatpush1.msra.mxu0 %v1607
    %3648 = vmatprep.subr.mxu0 %v1616
    %3649 = vmatpush1.msra.mxu0 %v1615
    %3650 = vmatprep.subr.mxu0 %v1624
    %3651 = vmatpush1.msra.mxu0 %v1623
    %3652 = vmatprep.subr.mxu0 %v1632
    %3653 = vmatpush1.msra.mxu0 %v1631
    %3654 = vmatprep.subr.mxu0 %v1640
    %3655 = vmatpush1.msra.mxu0 %v1639
    %3656 = vmatprep.subr.mxu0 %v1648
    %3657 = vmatpush1.msra.mxu0 %v1647
    %3658 = vmatprep.subr.mxu0 %v1656
    %3659 = vmatpush1.msra.mxu0 %v1655
    %3660 = vmatprep.mubr.f32.mxu0 %v2764
    %3661 = vmatmul.mubr.f32.gmra.mrb[0].mxu0 %v2762
    %v3662 = vpop.f32.mrb[0].mxu0
    %v3663 = vadd.f32 %v3592, %v3662
    %v3664 = vpop.f32.mrb[0].mxu0
    %v3665 = vadd.f32 %v3594, %v3664
    %3666 = vdwg.mxu0
    %3667 = vmatprep.subr.mxu0 %v1664
    %3668 = vmatpush1.msra.mxu0 %v1663
    %3669 = vmatprep.subr.mxu0 %v1672
    %3670 = vmatpush1.msra.mxu0 %v1671
    %3671 = vmatprep.subr.mxu0 %v1680
    %3672 = vmatpush1.msra.mxu0 %v1679
    %3673 = vmatprep.subr.mxu0 %v1688
    %3674 = vmatpush1.msra.mxu0 %v1687
    %3675 = vmatprep.subr.mxu0 %v1696
    %3676 = vmatpush1.msra.mxu0 %v1695
    %3677 = vmatprep.subr.mxu0 %v1704
    %3678 = vmatpush1.msra.mxu0 %v1703
    %3679 = vmatprep.subr.mxu0 %v1712
    %3680 = vmatpush1.msra.mxu0 %v1711
    %3681 = vmatprep.subr.mxu0 %v1720
    %3682 = vmatpush1.msra.mxu0 %v1719
    %3683 = vmatprep.subr.mxu0 %v1728
    %3684 = vmatpush1.msra.mxu0 %v1727
    %3685 = vmatprep.subr.mxu0 %v1736
    %3686 = vmatpush1.msra.mxu0 %v1735
    %3687 = vmatprep.subr.mxu0 %v1744
    %3688 = vmatpush1.msra.mxu0 %v1743
    %3689 = vmatprep.subr.mxu0 %v1752
    %3690 = vmatpush1.msra.mxu0 %v1751
    %3691 = vmatprep.subr.mxu0 %v1760
    %3692 = vmatpush1.msra.mxu0 %v1759
    %3693 = vmatprep.subr.mxu0 %v1768
    %3694 = vmatpush1.msra.mxu0 %v1767
    %3695 = vmatprep.subr.mxu0 %v1776
    %3696 = vmatpush1.msra.mxu0 %v1775
    %3697 = vmatprep.subr.mxu0 %v1784
    %3698 = vmatpush1.msra.mxu0 %v1783
    %3699 = vmatprep.subr.mxu0 %v1792
    %3700 = vmatpush1.msra.mxu0 %v1791
    %3701 = vmatprep.subr.mxu0 %v1800
    %3702 = vmatpush1.msra.mxu0 %v1799
    %3703 = vmatprep.subr.mxu0 %v1808
    %3704 = vmatpush1.msra.mxu0 %v1807
    %3705 = vmatprep.subr.mxu0 %v1816
    %3706 = vmatpush1.msra.mxu0 %v1815
    %3707 = vmatprep.subr.mxu0 %v1824
    %3708 = vmatpush1.msra.mxu0 %v1823
    %3709 = vmatprep.subr.mxu0 %v1832
    %3710 = vmatpush1.msra.mxu0 %v1831
    %3711 = vmatprep.subr.mxu0 %v1840
    %3712 = vmatpush1.msra.mxu0 %v1839
    %3713 = vmatprep.subr.mxu0 %v1848
    %3714 = vmatpush1.msra.mxu0 %v1847
    %3715 = vmatprep.subr.mxu0 %v1856
    %3716 = vmatpush1.msra.mxu0 %v1855
    %3717 = vmatprep.subr.mxu0 %v1864
    %3718 = vmatpush1.msra.mxu0 %v1863
    %3719 = vmatprep.subr.mxu0 %v1872
    %3720 = vmatpush1.msra.mxu0 %v1871
    %3721 = vmatprep.subr.mxu0 %v1880
    %3722 = vmatpush1.msra.mxu0 %v1879
    %3723 = vmatprep.subr.mxu0 %v1888
    %3724 = vmatpush1.msra.mxu0 %v1887
    %3725 = vmatprep.subr.mxu0 %v1896
    %3726 = vmatpush1.msra.mxu0 %v1895
    %3727 = vmatprep.subr.mxu0 %v1904
    %3728 = vmatpush1.msra.mxu0 %v1903
    %3729 = vmatprep.subr.mxu0 %v1912
    %3730 = vmatpush1.msra.mxu0 %v1911
    %3731 = vmatprep.mubr.f32.mxu0 %v2780
    %3732 = vmatmul.mubr.f32.gmra.mrb[0].mxu0 %v2772
    %v3733 = vpop.f32.mrb[0].mxu0
    %v3734 = vadd.f32 %v3663, %v3733
    %v3735 = vpop.f32.mrb[0].mxu0
    %v3736 = vadd.f32 %v3665, %v3735
    %3737 = vdwg.mxu0
    %3738 = vmatprep.subr.mxu0 %v1920
    %3739 = vmatpush1.msra.mxu0 %v1919
    %3740 = vmatprep.subr.mxu0 %v1928
    %3741 = vmatpush1.msra.mxu0 %v1927
    %3742 = vmatprep.subr.mxu0 %v1936
    %3743 = vmatpush1.msra.mxu0 %v1935
    %3744 = vmatprep.subr.mxu0 %v1944
    %3745 = vmatpush1.msra.mxu0 %v1943
    %3746 = vmatprep.subr.mxu0 %v1952
    %3747 = vmatpush1.msra.mxu0 %v1951
    %3748 = vmatprep.subr.mxu0 %v1960
    %3749 = vmatpush1.msra.mxu0 %v1959
    %3750 = vmatprep.subr.mxu0 %v1968
    %3751 = vmatpush1.msra.mxu0 %v1967
    %3752 = vmatprep.subr.mxu0 %v1976
    %3753 = vmatpush1.msra.mxu0 %v1975
    %3754 = vmatprep.subr.mxu0 %v1984
    %3755 = vmatpush1.msra.mxu0 %v1983
    %3756 = vmatprep.subr.mxu0 %v1992
    %3757 = vmatpush1.msra.mxu0 %v1991
    %3758 = vmatprep.subr.mxu0 %v2000
    %3759 = vmatpush1.msra.mxu0 %v1999
    %3760 = vmatprep.subr.mxu0 %v2008
    %3761 = vmatpush1.msra.mxu0 %v2007
    %3762 = vmatprep.subr.mxu0 %v2016
    %3763 = vmatpush1.msra.mxu0 %v2015
    %3764 = vmatprep.subr.mxu0 %v2024
    %3765 = vmatpush1.msra.mxu0 %v2023
    %3766 = vmatprep.subr.mxu0 %v2032
    %3767 = vmatpush1.msra.mxu0 %v2031
    %3768 = vmatprep.subr.mxu0 %v2040
    %3769 = vmatpush1.msra.mxu0 %v2039
    %3770 = vmatprep.subr.mxu0 %v2048
    %3771 = vmatpush1.msra.mxu0 %v2047
    %3772 = vmatprep.subr.mxu0 %v2056
    %3773 = vmatpush1.msra.mxu0 %v2055
    %3774 = vmatprep.subr.mxu0 %v2064
    %3775 = vmatpush1.msra.mxu0 %v2063
    %3776 = vmatprep.subr.mxu0 %v2072
    %3777 = vmatpush1.msra.mxu0 %v2071
    %3778 = vmatprep.subr.mxu0 %v2080
    %3779 = vmatpush1.msra.mxu0 %v2079
    %3780 = vmatprep.subr.mxu0 %v2088
    %3781 = vmatpush1.msra.mxu0 %v2087
    %3782 = vmatprep.subr.mxu0 %v2096
    %3783 = vmatpush1.msra.mxu0 %v2095
    %3784 = vmatprep.subr.mxu0 %v2104
    %3785 = vmatpush1.msra.mxu0 %v2103
    %3786 = vmatprep.subr.mxu0 %v2112
    %3787 = vmatpush1.msra.mxu0 %v2111
    %3788 = vmatprep.subr.mxu0 %v2120
    %3789 = vmatpush1.msra.mxu0 %v2119
    %3790 = vmatprep.subr.mxu0 %v2128
    %3791 = vmatpush1.msra.mxu0 %v2127
    %3792 = vmatprep.subr.mxu0 %v2136
    %3793 = vmatpush1.msra.mxu0 %v2135
    %3794 = vmatprep.subr.mxu0 %v2144
    %3795 = vmatpush1.msra.mxu0 %v2143
    %3796 = vmatprep.subr.mxu0 %v2152
    %3797 = vmatpush1.msra.mxu0 %v2151
    %3798 = vmatprep.subr.mxu0 %v2160
    %3799 = vmatpush1.msra.mxu0 %v2159
    %3800 = vmatprep.subr.mxu0 %v2168
    %3801 = vmatpush1.msra.mxu0 %v2167
    %3802 = vmatprep.mubr.f32.mxu0 %v2781
    %3803 = vmatmul.mubr.f32.gmra.mrb[0].mxu0 %v2779
    %v3804 = vpop.f32.mrb[0].mxu0
    %v3805 = vadd.f32 %v3734, %v3804
    %v3806 = vpop.f32.mrb[0].mxu0
    %v3807 = vadd.f32 %v3736, %v3806
    %3808 = vdwg.mxu0
    %3809 = vmatprep.subr.mxu0 %v2176
    %3810 = vmatpush1.msra.mxu0 %v2175
    %3811 = vmatprep.subr.mxu0 %v2184
    %3812 = vmatpush1.msra.mxu0 %v2183
    %3813 = vmatprep.subr.mxu0 %v2192
    %3814 = vmatpush1.msra.mxu0 %v2191
    %3815 = vmatprep.subr.mxu0 %v2200
    %3816 = vmatpush1.msra.mxu0 %v2199
    %3817 = vmatprep.subr.mxu0 %v2208
    %3818 = vmatpush1.msra.mxu0 %v2207
    %3819 = vmatprep.subr.mxu0 %v2216
    %3820 = vmatpush1.msra.mxu0 %v2215
    %3821 = vmatprep.subr.mxu0 %v2224
    %3822 = vmatpush1.msra.mxu0 %v2223
    %3823 = vmatprep.subr.mxu0 %v2232
    %3824 = vmatpush1.msra.mxu0 %v2231
    %3825 = vmatprep.subr.mxu0 %v2240
    %3826 = vmatpush1.msra.mxu0 %v2239
    %3827 = vmatprep.subr.mxu0 %v2248
    %3828 = vmatpush1.msra.mxu0 %v2247
    %3829 = vmatprep.subr.mxu0 %v2256
    %3830 = vmatpush1.msra.mxu0 %v2255
    %3831 = vmatprep.subr.mxu0 %v2264
    %3832 = vmatpush1.msra.mxu0 %v2263
    %3833 = vmatprep.subr.mxu0 %v2272
    %3834 = vmatpush1.msra.mxu0 %v2271
    %3835 = vmatprep.subr.mxu0 %v2280
    %3836 = vmatpush1.msra.mxu0 %v2279
    %3837 = vmatprep.subr.mxu0 %v2288
    %3838 = vmatpush1.msra.mxu0 %v2287
    %3839 = vmatprep.subr.mxu0 %v2296
    %3840 = vmatpush1.msra.mxu0 %v2295
    %3841 = vmatprep.subr.mxu0 %v2304
    %3842 = vmatpush1.msra.mxu0 %v2303
    %3843 = vmatprep.subr.mxu0 %v2312
    %3844 = vmatpush1.msra.mxu0 %v2311
    %3845 = vmatprep.subr.mxu0 %v2320
    %3846 = vmatpush1.msra.mxu0 %v2319
    %3847 = vmatprep.subr.mxu0 %v2328
    %3848 = vmatpush1.msra.mxu0 %v2327
    %3849 = vmatprep.subr.mxu0 %v2336
    %3850 = vmatpush1.msra.mxu0 %v2335
    %3851 = vmatprep.subr.mxu0 %v2344
    %3852 = vmatpush1.msra.mxu0 %v2343
    %3853 = vmatprep.subr.mxu0 %v2352
    %3854 = vmatpush1.msra.mxu0 %v2351
    %3855 = vmatprep.subr.mxu0 %v2360
    %3856 = vmatpush1.msra.mxu0 %v2359
    %3857 = vmatprep.subr.mxu0 %v2368
    %3858 = vmatpush1.msra.mxu0 %v2367
    %3859 = vmatprep.subr.mxu0 %v2376
    %3860 = vmatpush1.msra.mxu0 %v2375
    %3861 = vmatprep.subr.mxu0 %v2384
    %3862 = vmatpush1.msra.mxu0 %v2383
    %3863 = vmatprep.subr.mxu0 %v2392
    %3864 = vmatpush1.msra.mxu0 %v2391
    %3865 = vmatprep.subr.mxu0 %v2400
    %3866 = vmatpush1.msra.mxu0 %v2399
    %3867 = vmatprep.subr.mxu0 %v2408
    %3868 = vmatpush1.msra.mxu0 %v2407
    %3869 = vmatprep.subr.mxu0 %v2416
    %3870 = vmatpush1.msra.mxu0 %v2415
    %3871 = vmatprep.subr.mxu0 %v2424
    %3872 = vmatpush1.msra.mxu0 %v2423
    %3873 = vmatprep.mubr.f32.mxu0 %v2797
    %3874 = vmatmul.mubr.f32.gmra.mrb[0].mxu0 %v2789
    %v3875 = vpop.f32.mrb[0].mxu0
    %v3876 = vadd.f32 %v3805, %v3875
    %v3877 = vpop.f32.mrb[0].mxu0
    %v3878 = vadd.f32 %v3807, %v3877
    %3879 = vdwg.mxu0
    %3880 = vmatprep.subr.mxu0 %v2432
    %3881 = vmatpush1.msra.mxu0 %v2431
    %3882 = vmatprep.subr.mxu0 %v2440
    %3883 = vmatpush1.msra.mxu0 %v2439
    %3884 = vmatprep.subr.mxu0 %v2448
    %3885 = vmatpush1.msra.mxu0 %v2447
    %3886 = vmatprep.subr.mxu0 %v2456
    %3887 = vmatpush1.msra.mxu0 %v2455
    %3888 = vmatprep.subr.mxu0 %v2464
    %3889 = vmatpush1.msra.mxu0 %v2463
    %3890 = vmatprep.subr.mxu0 %v2472
    %3891 = vmatpush1.msra.mxu0 %v2471
    %3892 = vmatprep.subr.mxu0 %v2480
    %3893 = vmatpush1.msra.mxu0 %v2479
    %3894 = vmatprep.subr.mxu0 %v2488
    %3895 = vmatpush1.msra.mxu0 %v2487
    %3896 = vmatprep.subr.mxu0 %v2496
    %3897 = vmatpush1.msra.mxu0 %v2495
    %3898 = vmatprep.subr.mxu0 %v2504
    %3899 = vmatpush1.msra.mxu0 %v2503
    %3900 = vmatprep.subr.mxu0 %v2512
    %3901 = vmatpush1.msra.mxu0 %v2511
    %3902 = vmatprep.subr.mxu0 %v2520
    %3903 = vmatpush1.msra.mxu0 %v2519
    %3904 = vmatprep.subr.mxu0 %v2528
    %3905 = vmatpush1.msra.mxu0 %v2527
    %3906 = vmatprep.subr.mxu0 %v2536
    %3907 = vmatpush1.msra.mxu0 %v2535
    %3908 = vmatprep.subr.mxu0 %v2544
    %3909 = vmatpush1.msra.mxu0 %v2543
    %3910 = vmatprep.subr.mxu0 %v2552
    %3911 = vmatpush1.msra.mxu0 %v2551
    %3912 = vmatprep.subr.mxu0 %v2560
    %3913 = vmatpush1.msra.mxu0 %v2559
    %3914 = vmatprep.subr.mxu0 %v2568
    %3915 = vmatpush1.msra.mxu0 %v2567
    %3916 = vmatprep.subr.mxu0 %v2576
    %3917 = vmatpush1.msra.mxu0 %v2575
    %3918 = vmatprep.subr.mxu0 %v2584
    %3919 = vmatpush1.msra.mxu0 %v2583
    %3920 = vmatprep.subr.mxu0 %v2592
    %3921 = vmatpush1.msra.mxu0 %v2591
    %3922 = vmatprep.subr.mxu0 %v2600
    %3923 = vmatpush1.msra.mxu0 %v2599
    %3924 = vmatprep.subr.mxu0 %v2608
    %3925 = vmatpush1.msra.mxu0 %v2607
    %3926 = vmatprep.subr.mxu0 %v2616
    %3927 = vmatpush1.msra.mxu0 %v2615
    %3928 = vmatprep.subr.mxu0 %v2624
    %3929 = vmatpush1.msra.mxu0 %v2623
    %3930 = vmatprep.subr.mxu0 %v2632
    %3931 = vmatpush1.msra.mxu0 %v2631
    %3932 = vmatprep.subr.mxu0 %v2640
    %3933 = vmatpush1.msra.mxu0 %v2639
    %3934 = vmatprep.subr.mxu0 %v2648
    %3935 = vmatpush1.msra.mxu0 %v2647
    %3936 = vmatprep.subr.mxu0 %v2656
    %3937 = vmatpush1.msra.mxu0 %v2655
    %3938 = vmatprep.subr.mxu0 %v2664
    %3939 = vmatpush1.msra.mxu0 %v2663
    %3940 = vmatprep.subr.mxu0 %v2672
    %3941 = vmatpush1.msra.mxu0 %v2671
    %3942 = vmatprep.subr.mxu0 %v2680
    %3943 = vmatpush1.msra.mxu0 %v2679
    %3944 = vmatprep.mubr.f32.mxu0 %v2798
    %3945 = vmatmul.mubr.f32.gmra.mrb[0].mxu0 %v2796
    %v3946 = vpop.f32.mrb[0].mxu0
    %v3947 = vadd.f32 %v3876, %v3946
    %v3948 = vpop.f32.mrb[0].mxu0
    %v3949 = vadd.f32 %v3878, %v3948
    %3950 = vdwg.mxu0
    %3951 = vmatprep.subr.mxu0 %v642
    %3952 = vmatpush1.msra.mxu0 %v641
    %3953 = vmatprep.subr.mxu0 %v650
    %3954 = vmatpush1.msra.mxu0 %v649
    %3955 = vmatprep.subr.mxu0 %v658
    %3956 = vmatpush1.msra.mxu0 %v657
    %3957 = vmatprep.subr.mxu0 %v666
    %3958 = vmatpush1.msra.mxu0 %v665
    %3959 = vmatprep.subr.mxu0 %v674
    %3960 = vmatpush1.msra.mxu0 %v673
    %3961 = vmatprep.subr.mxu0 %v682
    %3962 = vmatpush1.msra.mxu0 %v681
    %3963 = vmatprep.subr.mxu0 %v690
    %3964 = vmatpush1.msra.mxu0 %v689
    %3965 = vmatprep.subr.mxu0 %v698
    %3966 = vmatpush1.msra.mxu0 %v697
    %3967 = vmatprep.subr.mxu0 %v706
    %3968 = vmatpush1.msra.mxu0 %v705
    %3969 = vmatprep.subr.mxu0 %v714
    %3970 = vmatpush1.msra.mxu0 %v713
    %3971 = vmatprep.subr.mxu0 %v722
    %3972 = vmatpush1.msra.mxu0 %v721
    %3973 = vmatprep.subr.mxu0 %v730
    %3974 = vmatpush1.msra.mxu0 %v729
    %3975 = vmatprep.subr.mxu0 %v738
    %3976 = vmatpush1.msra.mxu0 %v737
    %3977 = vmatprep.subr.mxu0 %v746
    %3978 = vmatpush1.msra.mxu0 %v745
    %3979 = vmatprep.subr.mxu0 %v754
    %3980 = vmatpush1.msra.mxu0 %v753
    %3981 = vmatprep.subr.mxu0 %v762
    %3982 = vmatpush1.msra.mxu0 %v761
    %3983 = vmatprep.subr.mxu0 %v770
    %3984 = vmatpush1.msra.mxu0 %v769
    %3985 = vmatprep.subr.mxu0 %v778
    %3986 = vmatpush1.msra.mxu0 %v777
    %3987 = vmatprep.subr.mxu0 %v786
    %3988 = vmatpush1.msra.mxu0 %v785
    %3989 = vmatprep.subr.mxu0 %v794
    %3990 = vmatpush1.msra.mxu0 %v793
    %3991 = vmatprep.subr.mxu0 %v802
    %3992 = vmatpush1.msra.mxu0 %v801
    %3993 = vmatprep.subr.mxu0 %v810
    %3994 = vmatpush1.msra.mxu0 %v809
    %3995 = vmatprep.subr.mxu0 %v818
    %3996 = vmatpush1.msra.mxu0 %v817
    %3997 = vmatprep.subr.mxu0 %v826
    %3998 = vmatpush1.msra.mxu0 %v825
    %3999 = vmatprep.subr.mxu0 %v834
    %4000 = vmatpush1.msra.mxu0 %v833
    %4001 = vmatprep.subr.mxu0 %v842
    %4002 = vmatpush1.msra.mxu0 %v841
    %4003 = vmatprep.subr.mxu0 %v850
    %4004 = vmatpush1.msra.mxu0 %v849
    %4005 = vmatprep.subr.mxu0 %v858
    %4006 = vmatpush1.msra.mxu0 %v857
    %4007 = vmatprep.subr.mxu0 %v866
    %4008 = vmatpush1.msra.mxu0 %v865
    %4009 = vmatprep.subr.mxu0 %v874
    %4010 = vmatpush1.msra.mxu0 %v873
    %4011 = vmatprep.subr.mxu0 %v882
    %4012 = vmatpush1.msra.mxu0 %v881
    %4013 = vmatprep.subr.mxu0 %v890
    %4014 = vmatpush1.msra.mxu0 %v889
    %4015 = vmatprep.mubr.f32.mxu0 %v2746
    %4016 = vmatmul.mubr.f32.gmra.mrb[0].mxu0 %v2738
    %v4017 = vpop.f32.mrb[0].mxu0
    %v4018 = vadd.f32 %v2706, %v4017
    %v4019 = vpop.f32.mrb[0].mxu0
    %v4020 = vadd.f32 %v2710, %v4019
    %4021 = vdwg.mxu0
    %4022 = vmatprep.subr.mxu0 %v898
    %4023 = vmatpush1.msra.mxu0 %v897
    %4024 = vmatprep.subr.mxu0 %v906
    %4025 = vmatpush1.msra.mxu0 %v905
    %4026 = vmatprep.subr.mxu0 %v914
    %4027 = vmatpush1.msra.mxu0 %v913
    %4028 = vmatprep.subr.mxu0 %v922
    %4029 = vmatpush1.msra.mxu0 %v921
    %4030 = vmatprep.subr.mxu0 %v930
    %4031 = vmatpush1.msra.mxu0 %v929
    %4032 = vmatprep.subr.mxu0 %v938
    %4033 = vmatpush1.msra.mxu0 %v937
    %4034 = vmatprep.subr.mxu0 %v946
    %4035 = vmatpush1.msra.mxu0 %v945
    %4036 = vmatprep.subr.mxu0 %v954
    %4037 = vmatpush1.msra.mxu0 %v953
    %4038 = vmatprep.subr.mxu0 %v962
    %4039 = vmatpush1.msra.mxu0 %v961
    %4040 = vmatprep.subr.mxu0 %v970
    %4041 = vmatpush1.msra.mxu0 %v969
    %4042 = vmatprep.subr.mxu0 %v978
    %4043 = vmatpush1.msra.mxu0 %v977
    %4044 = vmatprep.subr.mxu0 %v986
    %4045 = vmatpush1.msra.mxu0 %v985
    %4046 = vmatprep.subr.mxu0 %v994
    %4047 = vmatpush1.msra.mxu0 %v993
    %4048 = vmatprep.subr.mxu0 %v1002
    %4049 = vmatpush1.msra.mxu0 %v1001
    %4050 = vmatprep.subr.mxu0 %v1010
    %4051 = vmatpush1.msra.mxu0 %v1009
    %4052 = vmatprep.subr.mxu0 %v1018
    %4053 = vmatpush1.msra.mxu0 %v1017
    %4054 = vmatprep.subr.mxu0 %v1026
    %4055 = vmatpush1.msra.mxu0 %v1025
    %4056 = vmatprep.subr.mxu0 %v1034
    %4057 = vmatpush1.msra.mxu0 %v1033
    %4058 = vmatprep.subr.mxu0 %v1042
    %4059 = vmatpush1.msra.mxu0 %v1041
    %4060 = vmatprep.subr.mxu0 %v1050
    %4061 = vmatpush1.msra.mxu0 %v1049
    %4062 = vmatprep.subr.mxu0 %v1058
    %4063 = vmatpush1.msra.mxu0 %v1057
    %4064 = vmatprep.subr.mxu0 %v1066
    %4065 = vmatpush1.msra.mxu0 %v1065
    %4066 = vmatprep.subr.mxu0 %v1074
    %4067 = vmatpush1.msra.mxu0 %v1073
    %4068 = vmatprep.subr.mxu0 %v1082
    %4069 = vmatpush1.msra.mxu0 %v1081
    %4070 = vmatprep.subr.mxu0 %v1090
    %4071 = vmatpush1.msra.mxu0 %v1089
    %4072 = vmatprep.subr.mxu0 %v1098
    %4073 = vmatpush1.msra.mxu0 %v1097
    %4074 = vmatprep.subr.mxu0 %v1106
    %4075 = vmatpush1.msra.mxu0 %v1105
    %4076 = vmatprep.subr.mxu0 %v1114
    %4077 = vmatpush1.msra.mxu0 %v1113
    %4078 = vmatprep.subr.mxu0 %v1122
    %4079 = vmatpush1.msra.mxu0 %v1121
    %4080 = vmatprep.subr.mxu0 %v1130
    %4081 = vmatpush1.msra.mxu0 %v1129
    %4082 = vmatprep.subr.mxu0 %v1138
    %4083 = vmatpush1.msra.mxu0 %v1137
    %4084 = vmatprep.subr.mxu0 %v1146
    %4085 = vmatpush1.msra.mxu0 %v1145
    %4086 = vmatprep.mubr.f32.mxu0 %v2747
    %4087 = vmatmul.mubr.f32.gmra.mrb[0].mxu0 %v2745
    %v4088 = vpop.f32.mrb[0].mxu0
    %v4089 = vadd.f32 %v4018, %v4088
    %v4090 = vpop.f32.mrb[0].mxu0
    %v4091 = vadd.f32 %v4020, %v4090
    %4092 = vdwg.mxu0
    %4093 = vmatprep.subr.mxu0 %v1154
    %4094 = vmatpush1.msra.mxu0 %v1153
    %4095 = vmatprep.subr.mxu0 %v1162
    %4096 = vmatpush1.msra.mxu0 %v1161
    %4097 = vmatprep.subr.mxu0 %v1170
    %4098 = vmatpush1.msra.mxu0 %v1169
    %4099 = vmatprep.subr.mxu0 %v1178
    %4100 = vmatpush1.msra.mxu0 %v1177
    %4101 = vmatprep.subr.mxu0 %v1186
    %4102 = vmatpush1.msra.mxu0 %v1185
    %4103 = vmatprep.subr.mxu0 %v1194
    %4104 = vmatpush1.msra.mxu0 %v1193
    %4105 = vmatprep.subr.mxu0 %v1202
    %4106 = vmatpush1.msra.mxu0 %v1201
    %4107 = vmatprep.subr.mxu0 %v1210
    %4108 = vmatpush1.msra.mxu0 %v1209
    %4109 = vmatprep.subr.mxu0 %v1218
    %4110 = vmatpush1.msra.mxu0 %v1217
    %4111 = vmatprep.subr.mxu0 %v1226
    %4112 = vmatpush1.msra.mxu0 %v1225
    %4113 = vmatprep.subr.mxu0 %v1234
    %4114 = vmatpush1.msra.mxu0 %v1233
    %4115 = vmatprep.subr.mxu0 %v1242
    %4116 = vmatpush1.msra.mxu0 %v1241
    %4117 = vmatprep.subr.mxu0 %v1250
    %4118 = vmatpush1.msra.mxu0 %v1249
    %4119 = vmatprep.subr.mxu0 %v1258
    %4120 = vmatpush1.msra.mxu0 %v1257
    %4121 = vmatprep.subr.mxu0 %v1266
    %4122 = vmatpush1.msra.mxu0 %v1265
    %4123 = vmatprep.subr.mxu0 %v1274
    %4124 = vmatpush1.msra.mxu0 %v1273
    %4125 = vmatprep.subr.mxu0 %v1282
    %4126 = vmatpush1.msra.mxu0 %v1281
    %4127 = vmatprep.subr.mxu0 %v1290
    %4128 = vmatpush1.msra.mxu0 %v1289
    %4129 = vmatprep.subr.mxu0 %v1298
    %4130 = vmatpush1.msra.mxu0 %v1297
    %4131 = vmatprep.subr.mxu0 %v1306
    %4132 = vmatpush1.msra.mxu0 %v1305
    %4133 = vmatprep.subr.mxu0 %v1314
    %4134 = vmatpush1.msra.mxu0 %v1313
    %4135 = vmatprep.subr.mxu0 %v1322
    %4136 = vmatpush1.msra.mxu0 %v1321
    %4137 = vmatprep.subr.mxu0 %v1330
    %4138 = vmatpush1.msra.mxu0 %v1329
    %4139 = vmatprep.subr.mxu0 %v1338
    %4140 = vmatpush1.msra.mxu0 %v1337
    %4141 = vmatprep.subr.mxu0 %v1346
    %4142 = vmatpush1.msra.mxu0 %v1345
    %4143 = vmatprep.subr.mxu0 %v1354
    %4144 = vmatpush1.msra.mxu0 %v1353
    %4145 = vmatprep.subr.mxu0 %v1362
    %4146 = vmatpush1.msra.mxu0 %v1361
    %4147 = vmatprep.subr.mxu0 %v1370
    %4148 = vmatpush1.msra.mxu0 %v1369
    %4149 = vmatprep.subr.mxu0 %v1378
    %4150 = vmatpush1.msra.mxu0 %v1377
    %4151 = vmatprep.subr.mxu0 %v1386
    %4152 = vmatpush1.msra.mxu0 %v1385
    %4153 = vmatprep.subr.mxu0 %v1394
    %4154 = vmatpush1.msra.mxu0 %v1393
    %4155 = vmatprep.subr.mxu0 %v1402
    %4156 = vmatpush1.msra.mxu0 %v1401
    %4157 = vmatprep.mubr.f32.mxu0 %v2763
    %4158 = vmatmul.mubr.f32.gmra.mrb[0].mxu0 %v2755
    %v4159 = vpop.f32.mrb[0].mxu0
    %v4160 = vadd.f32 %v4089, %v4159
    %v4161 = vpop.f32.mrb[0].mxu0
    %v4162 = vadd.f32 %v4091, %v4161
    %4163 = vdwg.mxu0
    %4164 = vmatprep.subr.mxu0 %v1410
    %4165 = vmatpush1.msra.mxu0 %v1409
    %4166 = vmatprep.subr.mxu0 %v1418
    %4167 = vmatpush1.msra.mxu0 %v1417
    %4168 = vmatprep.subr.mxu0 %v1426
    %4169 = vmatpush1.msra.mxu0 %v1425
    %4170 = vmatprep.subr.mxu0 %v1434
    %4171 = vmatpush1.msra.mxu0 %v1433
    %4172 = vmatprep.subr.mxu0 %v1442
    %4173 = vmatpush1.msra.mxu0 %v1441
    %4174 = vmatprep.subr.mxu0 %v1450
    %4175 = vmatpush1.msra.mxu0 %v1449
    %4176 = vmatprep.subr.mxu0 %v1458
    %4177 = vmatpush1.msra.mxu0 %v1457
    %4178 = vmatprep.subr.mxu0 %v1466
    %4179 = vmatpush1.msra.mxu0 %v1465
    %4180 = vmatprep.subr.mxu0 %v1474
    %4181 = vmatpush1.msra.mxu0 %v1473
    %4182 = vmatprep.subr.mxu0 %v1482
    %4183 = vmatpush1.msra.mxu0 %v1481
    %4184 = vmatprep.subr.mxu0 %v1490
    %4185 = vmatpush1.msra.mxu0 %v1489
    %4186 = vmatprep.subr.mxu0 %v1498
    %4187 = vmatpush1.msra.mxu0 %v1497
    %4188 = vmatprep.subr.mxu0 %v1506
    %4189 = vmatpush1.msra.mxu0 %v1505
    %4190 = vmatprep.subr.mxu0 %v1514
    %4191 = vmatpush1.msra.mxu0 %v1513
    %4192 = vmatprep.subr.mxu0 %v1522
    %4193 = vmatpush1.msra.mxu0 %v1521
    %4194 = vmatprep.subr.mxu0 %v1530
    %4195 = vmatpush1.msra.mxu0 %v1529
    %4196 = vmatprep.subr.mxu0 %v1538
    %4197 = vmatpush1.msra.mxu0 %v1537
    %4198 = vmatprep.subr.mxu0 %v1546
    %4199 = vmatpush1.msra.mxu0 %v1545
    %4200 = vmatprep.subr.mxu0 %v1554
    %4201 = vmatpush1.msra.mxu0 %v1553
    %4202 = vmatprep.subr.mxu0 %v1562
    %4203 = vmatpush1.msra.mxu0 %v1561
    %4204 = vmatprep.subr.mxu0 %v1570
    %4205 = vmatpush1.msra.mxu0 %v1569
    %4206 = vmatprep.subr.mxu0 %v1578
    %4207 = vmatpush1.msra.mxu0 %v1577
    %4208 = vmatprep.subr.mxu0 %v1586
    %4209 = vmatpush1.msra.mxu0 %v1585
    %4210 = vmatprep.subr.mxu0 %v1594
    %4211 = vmatpush1.msra.mxu0 %v1593
    %4212 = vmatprep.subr.mxu0 %v1602
    %4213 = vmatpush1.msra.mxu0 %v1601
    %4214 = vmatprep.subr.mxu0 %v1610
    %4215 = vmatpush1.msra.mxu0 %v1609
    %4216 = vmatprep.subr.mxu0 %v1618
    %4217 = vmatpush1.msra.mxu0 %v1617
    %4218 = vmatprep.subr.mxu0 %v1626
    %4219 = vmatpush1.msra.mxu0 %v1625
    %4220 = vmatprep.subr.mxu0 %v1634
    %4221 = vmatpush1.msra.mxu0 %v1633
    %4222 = vmatprep.subr.mxu0 %v1642
    %4223 = vmatpush1.msra.mxu0 %v1641
    %4224 = vmatprep.subr.mxu0 %v1650
    %4225 = vmatpush1.msra.mxu0 %v1649
    %4226 = vmatprep.subr.mxu0 %v1658
    %4227 = vmatpush1.msra.mxu0 %v1657
    %4228 = vmatprep.mubr.f32.mxu0 %v2764
    %4229 = vmatmul.mubr.f32.gmra.mrb[0].mxu0 %v2762
    %v4230 = vpop.f32.mrb[0].mxu0
    %v4231 = vadd.f32 %v4160, %v4230
    %v4232 = vpop.f32.mrb[0].mxu0
    %v4233 = vadd.f32 %v4162, %v4232
    %4234 = vdwg.mxu0
    %4235 = vmatprep.subr.mxu0 %v1666
    %4236 = vmatpush1.msra.mxu0 %v1665
    %4237 = vmatprep.subr.mxu0 %v1674
    %4238 = vmatpush1.msra.mxu0 %v1673
    %4239 = vmatprep.subr.mxu0 %v1682
    %4240 = vmatpush1.msra.mxu0 %v1681
    %4241 = vmatprep.subr.mxu0 %v1690
    %4242 = vmatpush1.msra.mxu0 %v1689
    %4243 = vmatprep.subr.mxu0 %v1698
    %4244 = vmatpush1.msra.mxu0 %v1697
    %4245 = vmatprep.subr.mxu0 %v1706
    %4246 = vmatpush1.msra.mxu0 %v1705
    %4247 = vmatprep.subr.mxu0 %v1714
    %4248 = vmatpush1.msra.mxu0 %v1713
    %4249 = vmatprep.subr.mxu0 %v1722
    %4250 = vmatpush1.msra.mxu0 %v1721
    %4251 = vmatprep.subr.mxu0 %v1730
    %4252 = vmatpush1.msra.mxu0 %v1729
    %4253 = vmatprep.subr.mxu0 %v1738
    %4254 = vmatpush1.msra.mxu0 %v1737
    %4255 = vmatprep.subr.mxu0 %v1746
    %4256 = vmatpush1.msra.mxu0 %v1745
    %4257 = vmatprep.subr.mxu0 %v1754
    %4258 = vmatpush1.msra.mxu0 %v1753
    %4259 = vmatprep.subr.mxu0 %v1762
    %4260 = vmatpush1.msra.mxu0 %v1761
    %4261 = vmatprep.subr.mxu0 %v1770
    %4262 = vmatpush1.msra.mxu0 %v1769
    %4263 = vmatprep.subr.mxu0 %v1778
    %4264 = vmatpush1.msra.mxu0 %v1777
    %4265 = vmatprep.subr.mxu0 %v1786
    %4266 = vmatpush1.msra.mxu0 %v1785
    %4267 = vmatprep.subr.mxu0 %v1794
    %4268 = vmatpush1.msra.mxu0 %v1793
    %4269 = vmatprep.subr.mxu0 %v1802
    %4270 = vmatpush1.msra.mxu0 %v1801
    %4271 = vmatprep.subr.mxu0 %v1810
    %4272 = vmatpush1.msra.mxu0 %v1809
    %4273 = vmatprep.subr.mxu0 %v1818
    %4274 = vmatpush1.msra.mxu0 %v1817
    %4275 = vmatprep.subr.mxu0 %v1826
    %4276 = vmatpush1.msra.mxu0 %v1825
    %4277 = vmatprep.subr.mxu0 %v1834
    %4278 = vmatpush1.msra.mxu0 %v1833
    %4279 = vmatprep.subr.mxu0 %v1842
    %4280 = vmatpush1.msra.mxu0 %v1841
    %4281 = vmatprep.subr.mxu0 %v1850
    %4282 = vmatpush1.msra.mxu0 %v1849
    %4283 = vmatprep.subr.mxu0 %v1858
    %4284 = vmatpush1.msra.mxu0 %v1857
    %4285 = vmatprep.subr.mxu0 %v1866
    %4286 = vmatpush1.msra.mxu0 %v1865
    %4287 = vmatprep.subr.mxu0 %v1874
    %4288 = vmatpush1.msra.mxu0 %v1873
    %4289 = vmatprep.subr.mxu0 %v1882
    %4290 = vmatpush1.msra.mxu0 %v1881
    %4291 = vmatprep.subr.mxu0 %v1890
    %4292 = vmatpush1.msra.mxu0 %v1889
    %4293 = vmatprep.subr.mxu0 %v1898
    %4294 = vmatpush1.msra.mxu0 %v1897
    %4295 = vmatprep.subr.mxu0 %v1906
    %4296 = vmatpush1.msra.mxu0 %v1905
    %4297 = vmatprep.subr.mxu0 %v1914
    %4298 = vmatpush1.msra.mxu0 %v1913
    %4299 = vmatprep.mubr.f32.mxu0 %v2780
    %4300 = vmatmul.mubr.f32.gmra.mrb[0].mxu0 %v2772
    %v4301 = vpop.f32.mrb[0].mxu0
    %v4302 = vadd.f32 %v4231, %v4301
    %v4303 = vpop.f32.mrb[0].mxu0
    %v4304 = vadd.f32 %v4233, %v4303
    %4305 = vdwg.mxu0
    %4306 = vmatprep.subr.mxu0 %v1922
    %4307 = vmatpush1.msra.mxu0 %v1921
    %4308 = vmatprep.subr.mxu0 %v1930
    %4309 = vmatpush1.msra.mxu0 %v1929
    %4310 = vmatprep.subr.mxu0 %v1938
    %4311 = vmatpush1.msra.mxu0 %v1937
    %4312 = vmatprep.subr.mxu0 %v1946
    %4313 = vmatpush1.msra.mxu0 %v1945
    %4314 = vmatprep.subr.mxu0 %v1954
    %4315 = vmatpush1.msra.mxu0 %v1953
    %4316 = vmatprep.subr.mxu0 %v1962
    %4317 = vmatpush1.msra.mxu0 %v1961
    %4318 = vmatprep.subr.mxu0 %v1970
    %4319 = vmatpush1.msra.mxu0 %v1969
    %4320 = vmatprep.subr.mxu0 %v1978
    %4321 = vmatpush1.msra.mxu0 %v1977
    %4322 = vmatprep.subr.mxu0 %v1986
    %4323 = vmatpush1.msra.mxu0 %v1985
    %4324 = vmatprep.subr.mxu0 %v1994
    %4325 = vmatpush1.msra.mxu0 %v1993
    %4326 = vmatprep.subr.mxu0 %v2002
    %4327 = vmatpush1.msra.mxu0 %v2001
    %4328 = vmatprep.subr.mxu0 %v2010
    %4329 = vmatpush1.msra.mxu0 %v2009
    %4330 = vmatprep.subr.mxu0 %v2018
    %4331 = vmatpush1.msra.mxu0 %v2017
    %4332 = vmatprep.subr.mxu0 %v2026
    %4333 = vmatpush1.msra.mxu0 %v2025
    %4334 = vmatprep.subr.mxu0 %v2034
    %4335 = vmatpush1.msra.mxu0 %v2033
    %4336 = vmatprep.subr.mxu0 %v2042
    %4337 = vmatpush1.msra.mxu0 %v2041
    %4338 = vmatprep.subr.mxu0 %v2050
    %4339 = vmatpush1.msra.mxu0 %v2049
    %4340 = vmatprep.subr.mxu0 %v2058
    %4341 = vmatpush1.msra.mxu0 %v2057
    %4342 = vmatprep.subr.mxu0 %v2066
    %4343 = vmatpush1.msra.mxu0 %v2065
    %4344 = vmatprep.subr.mxu0 %v2074
    %4345 = vmatpush1.msra.mxu0 %v2073
    %4346 = vmatprep.subr.mxu0 %v2082
    %4347 = vmatpush1.msra.mxu0 %v2081
    %4348 = vmatprep.subr.mxu0 %v2090
    %4349 = vmatpush1.msra.mxu0 %v2089
    %4350 = vmatprep.subr.mxu0 %v2098
    %4351 = vmatpush1.msra.mxu0 %v2097
    %4352 = vmatprep.subr.mxu0 %v2106
    %4353 = vmatpush1.msra.mxu0 %v2105
    %4354 = vmatprep.subr.mxu0 %v2114
    %4355 = vmatpush1.msra.mxu0 %v2113
    %4356 = vmatprep.subr.mxu0 %v2122
    %4357 = vmatpush1.msra.mxu0 %v2121
    %4358 = vmatprep.subr.mxu0 %v2130
    %4359 = vmatpush1.msra.mxu0 %v2129
    %4360 = vmatprep.subr.mxu0 %v2138
    %4361 = vmatpush1.msra.mxu0 %v2137
    %4362 = vmatprep.subr.mxu0 %v2146
    %4363 = vmatpush1.msra.mxu0 %v2145
    %4364 = vmatprep.subr.mxu0 %v2154
    %4365 = vmatpush1.msra.mxu0 %v2153
    %4366 = vmatprep.subr.mxu0 %v2162
    %4367 = vmatpush1.msra.mxu0 %v2161
    %4368 = vmatprep.subr.mxu0 %v2170
    %4369 = vmatpush1.msra.mxu0 %v2169
    %4370 = vmatprep.mubr.f32.mxu0 %v2781
    %4371 = vmatmul.mubr.f32.gmra.mrb[0].mxu0 %v2779
    %v4372 = vpop.f32.mrb[0].mxu0
    %v4373 = vadd.f32 %v4302, %v4372
    %v4374 = vpop.f32.mrb[0].mxu0
    %v4375 = vadd.f32 %v4304, %v4374
    %4376 = vdwg.mxu0
    %4377 = vmatprep.subr.mxu0 %v2178
    %4378 = vmatpush1.msra.mxu0 %v2177
    %4379 = vmatprep.subr.mxu0 %v2186
    %4380 = vmatpush1.msra.mxu0 %v2185
    %4381 = vmatprep.subr.mxu0 %v2194
    %4382 = vmatpush1.msra.mxu0 %v2193
    %4383 = vmatprep.subr.mxu0 %v2202
    %4384 = vmatpush1.msra.mxu0 %v2201
    %4385 = vmatprep.subr.mxu0 %v2210
    %4386 = vmatpush1.msra.mxu0 %v2209
    %4387 = vmatprep.subr.mxu0 %v2218
    %4388 = vmatpush1.msra.mxu0 %v2217
    %4389 = vmatprep.subr.mxu0 %v2226
    %4390 = vmatpush1.msra.mxu0 %v2225
    %4391 = vmatprep.subr.mxu0 %v2234
    %4392 = vmatpush1.msra.mxu0 %v2233
    %4393 = vmatprep.subr.mxu0 %v2242
    %4394 = vmatpush1.msra.mxu0 %v2241
    %4395 = vmatprep.subr.mxu0 %v2250
    %4396 = vmatpush1.msra.mxu0 %v2249
    %4397 = vmatprep.subr.mxu0 %v2258
    %4398 = vmatpush1.msra.mxu0 %v2257
    %4399 = vmatprep.subr.mxu0 %v2266
    %4400 = vmatpush1.msra.mxu0 %v2265
    %4401 = vmatprep.subr.mxu0 %v2274
    %4402 = vmatpush1.msra.mxu0 %v2273
    %4403 = vmatprep.subr.mxu0 %v2282
    %4404 = vmatpush1.msra.mxu0 %v2281
    %4405 = vmatprep.subr.mxu0 %v2290
    %4406 = vmatpush1.msra.mxu0 %v2289
    %4407 = vmatprep.subr.mxu0 %v2298
    %4408 = vmatpush1.msra.mxu0 %v2297
    %4409 = vmatprep.subr.mxu0 %v2306
    %4410 = vmatpush1.msra.mxu0 %v2305
    %4411 = vmatprep.subr.mxu0 %v2314
    %4412 = vmatpush1.msra.mxu0 %v2313
    %4413 = vmatprep.subr.mxu0 %v2322
    %4414 = vmatpush1.msra.mxu0 %v2321
    %4415 = vmatprep.subr.mxu0 %v2330
    %4416 = vmatpush1.msra.mxu0 %v2329
    %4417 = vmatprep.subr.mxu0 %v2338
    %4418 = vmatpush1.msra.mxu0 %v2337
    %4419 = vmatprep.subr.mxu0 %v2346
    %4420 = vmatpush1.msra.mxu0 %v2345
    %4421 = vmatprep.subr.mxu0 %v2354
    %4422 = vmatpush1.msra.mxu0 %v2353
    %4423 = vmatprep.subr.mxu0 %v2362
    %4424 = vmatpush1.msra.mxu0 %v2361
    %4425 = vmatprep.subr.mxu0 %v2370
    %4426 = vmatpush1.msra.mxu0 %v2369
    %4427 = vmatprep.subr.mxu0 %v2378
    %4428 = vmatpush1.msra.mxu0 %v2377
    %4429 = vmatprep.subr.mxu0 %v2386
    %4430 = vmatpush1.msra.mxu0 %v2385
    %4431 = vmatprep.subr.mxu0 %v2394
    %4432 = vmatpush1.msra.mxu0 %v2393
    %4433 = vmatprep.subr.mxu0 %v2402
    %4434 = vmatpush1.msra.mxu0 %v2401
    %4435 = vmatprep.subr.mxu0 %v2410
    %4436 = vmatpush1.msra.mxu0 %v2409
    %4437 = vmatprep.subr.mxu0 %v2418
    %4438 = vmatpush1.msra.mxu0 %v2417
    %4439 = vmatprep.subr.mxu0 %v2426
    %4440 = vmatpush1.msra.mxu0 %v2425
    %4441 = vmatprep.mubr.f32.mxu0 %v2797
    %4442 = vmatmul.mubr.f32.gmra.mrb[0].mxu0 %v2789
    %v4443 = vpop.f32.mrb[0].mxu0
    %v4444 = vadd.f32 %v4373, %v4443
    %v4445 = vpop.f32.mrb[0].mxu0
    %v4446 = vadd.f32 %v4375, %v4445
    %4447 = vdwg.mxu0
    %4448 = vmatprep.subr.mxu0 %v2434
    %4449 = vmatpush1.msra.mxu0 %v2433
    %4450 = vmatprep.subr.mxu0 %v2442
    %4451 = vmatpush1.msra.mxu0 %v2441
    %4452 = vmatprep.subr.mxu0 %v2450
    %4453 = vmatpush1.msra.mxu0 %v2449
    %4454 = vmatprep.subr.mxu0 %v2458
    %4455 = vmatpush1.msra.mxu0 %v2457
    %4456 = vmatprep.subr.mxu0 %v2466
    %4457 = vmatpush1.msra.mxu0 %v2465
    %4458 = vmatprep.subr.mxu0 %v2474
    %4459 = vmatpush1.msra.mxu0 %v2473
    %4460 = vmatprep.subr.mxu0 %v2482
    %4461 = vmatpush1.msra.mxu0 %v2481
    %4462 = vmatprep.subr.mxu0 %v2490
    %4463 = vmatpush1.msra.mxu0 %v2489
    %4464 = vmatprep.subr.mxu0 %v2498
    %4465 = vmatpush1.msra.mxu0 %v2497
    %4466 = vmatprep.subr.mxu0 %v2506
    %4467 = vmatpush1.msra.mxu0 %v2505
    %4468 = vmatprep.subr.mxu0 %v2514
    %4469 = vmatpush1.msra.mxu0 %v2513
    %4470 = vmatprep.subr.mxu0 %v2522
    %4471 = vmatpush1.msra.mxu0 %v2521
    %4472 = vmatprep.subr.mxu0 %v2530
    %4473 = vmatpush1.msra.mxu0 %v2529
    %4474 = vmatprep.subr.mxu0 %v2538
    %4475 = vmatpush1.msra.mxu0 %v2537
    %4476 = vmatprep.subr.mxu0 %v2546
    %4477 = vmatpush1.msra.mxu0 %v2545
    %4478 = vmatprep.subr.mxu0 %v2554
    %4479 = vmatpush1.msra.mxu0 %v2553
    %4480 = vmatprep.subr.mxu0 %v2562
    %4481 = vmatpush1.msra.mxu0 %v2561
    %4482 = vmatprep.subr.mxu0 %v2570
    %4483 = vmatpush1.msra.mxu0 %v2569
    %4484 = vmatprep.subr.mxu0 %v2578
    %4485 = vmatpush1.msra.mxu0 %v2577
    %4486 = vmatprep.subr.mxu0 %v2586
    %4487 = vmatpush1.msra.mxu0 %v2585
    %4488 = vmatprep.subr.mxu0 %v2594
    %4489 = vmatpush1.msra.mxu0 %v2593
    %4490 = vmatprep.subr.mxu0 %v2602
    %4491 = vmatpush1.msra.mxu0 %v2601
    %4492 = vmatprep.subr.mxu0 %v2610
    %4493 = vmatpush1.msra.mxu0 %v2609
    %4494 = vmatprep.subr.mxu0 %v2618
    %4495 = vmatpush1.msra.mxu0 %v2617
    %4496 = vmatprep.subr.mxu0 %v2626
    %4497 = vmatpush1.msra.mxu0 %v2625
    %4498 = vmatprep.subr.mxu0 %v2634
    %4499 = vmatpush1.msra.mxu0 %v2633
    %4500 = vmatprep.subr.mxu0 %v2642
    %4501 = vmatpush1.msra.mxu0 %v2641
    %4502 = vmatprep.subr.mxu0 %v2650
    %4503 = vmatpush1.msra.mxu0 %v2649
    %4504 = vmatprep.subr.mxu0 %v2658
    %4505 = vmatpush1.msra.mxu0 %v2657
    %4506 = vmatprep.subr.mxu0 %v2666
    %4507 = vmatpush1.msra.mxu0 %v2665
    %4508 = vmatprep.subr.mxu0 %v2674
    %4509 = vmatpush1.msra.mxu0 %v2673
    %4510 = vmatprep.subr.mxu0 %v2682
    %4511 = vmatpush1.msra.mxu0 %v2681
    %4512 = vmatprep.mubr.f32.mxu0 %v2798
    %4513 = vmatmul.mubr.f32.gmra.mrb[0].mxu0 %v2796
    %v4514 = vpop.f32.mrb[0].mxu0
    %v4515 = vadd.f32 %v4444, %v4514
    %v4516 = vpop.f32.mrb[0].mxu0
    %v4517 = vadd.f32 %v4446, %v4516
    %4518 = vdwg.mxu0
    %4519 = vmatprep.subr.mxu0 %v644
    %4520 = vmatpush1.msra.mxu0 %v643
    %4521 = vmatprep.subr.mxu0 %v652
    %4522 = vmatpush1.msra.mxu0 %v651
    %4523 = vmatprep.subr.mxu0 %v660
    %4524 = vmatpush1.msra.mxu0 %v659
    %4525 = vmatprep.subr.mxu0 %v668
    %4526 = vmatpush1.msra.mxu0 %v667
    %4527 = vmatprep.subr.mxu0 %v676
    %4528 = vmatpush1.msra.mxu0 %v675
    %4529 = vmatprep.subr.mxu0 %v684
    %4530 = vmatpush1.msra.mxu0 %v683
    %4531 = vmatprep.subr.mxu0 %v692
    %4532 = vmatpush1.msra.mxu0 %v691
    %4533 = vmatprep.subr.mxu0 %v700
    %4534 = vmatpush1.msra.mxu0 %v699
    %4535 = vmatprep.subr.mxu0 %v708
    %4536 = vmatpush1.msra.mxu0 %v707
    %4537 = vmatprep.subr.mxu0 %v716
    %4538 = vmatpush1.msra.mxu0 %v715
    %4539 = vmatprep.subr.mxu0 %v724
    %4540 = vmatpush1.msra.mxu0 %v723
    %4541 = vmatprep.subr.mxu0 %v732
    %4542 = vmatpush1.msra.mxu0 %v731
    %4543 = vmatprep.subr.mxu0 %v740
    %4544 = vmatpush1.msra.mxu0 %v739
    %4545 = vmatprep.subr.mxu0 %v748
    %4546 = vmatpush1.msra.mxu0 %v747
    %4547 = vmatprep.subr.mxu0 %v756
    %4548 = vmatpush1.msra.mxu0 %v755
    %4549 = vmatprep.subr.mxu0 %v764
    %4550 = vmatpush1.msra.mxu0 %v763
    %4551 = vmatprep.subr.mxu0 %v772
    %4552 = vmatpush1.msra.mxu0 %v771
    %4553 = vmatprep.subr.mxu0 %v780
    %4554 = vmatpush1.msra.mxu0 %v779
    %4555 = vmatprep.subr.mxu0 %v788
    %4556 = vmatpush1.msra.mxu0 %v787
    %4557 = vmatprep.subr.mxu0 %v796
    %4558 = vmatpush1.msra.mxu0 %v795
    %4559 = vmatprep.subr.mxu0 %v804
    %4560 = vmatpush1.msra.mxu0 %v803
    %4561 = vmatprep.subr.mxu0 %v812
    %4562 = vmatpush1.msra.mxu0 %v811
    %4563 = vmatprep.subr.mxu0 %v820
    %4564 = vmatpush1.msra.mxu0 %v819
    %4565 = vmatprep.subr.mxu0 %v828
    %4566 = vmatpush1.msra.mxu0 %v827
    %4567 = vmatprep.subr.mxu0 %v836
    %4568 = vmatpush1.msra.mxu0 %v835
    %4569 = vmatprep.subr.mxu0 %v844
    %4570 = vmatpush1.msra.mxu0 %v843
    %4571 = vmatprep.subr.mxu0 %v852
    %4572 = vmatpush1.msra.mxu0 %v851
    %4573 = vmatprep.subr.mxu0 %v860
    %4574 = vmatpush1.msra.mxu0 %v859
    %4575 = vmatprep.subr.mxu0 %v868
    %4576 = vmatpush1.msra.mxu0 %v867
    %4577 = vmatprep.subr.mxu0 %v876
    %4578 = vmatpush1.msra.mxu0 %v875
    %4579 = vmatprep.subr.mxu0 %v884
    %4580 = vmatpush1.msra.mxu0 %v883
    %4581 = vmatprep.subr.mxu0 %v892
    %4582 = vmatpush1.msra.mxu0 %v891
    %4583 = vmatprep.mubr.f32.mxu0 %v2746
    %4584 = vmatmul.mubr.f32.gmra.mrb[0].mxu0 %v2738
    %v4585 = vpop.f32.mrb[0].mxu0
    %v4586 = vadd.f32 %v2714, %v4585
    %v4587 = vpop.f32.mrb[0].mxu0
    %v4588 = vadd.f32 %v2718, %v4587
    %4589 = vdwg.mxu0
    %4590 = vmatprep.subr.mxu0 %v900
    %4591 = vmatpush1.msra.mxu0 %v899
    %4592 = vmatprep.subr.mxu0 %v908
    %4593 = vmatpush1.msra.mxu0 %v907
    %4594 = vmatprep.subr.mxu0 %v916
    %4595 = vmatpush1.msra.mxu0 %v915
    %4596 = vmatprep.subr.mxu0 %v924
    %4597 = vmatpush1.msra.mxu0 %v923
    %4598 = vmatprep.subr.mxu0 %v932
    %4599 = vmatpush1.msra.mxu0 %v931
    %4600 = vmatprep.subr.mxu0 %v940
    %4601 = vmatpush1.msra.mxu0 %v939
    %4602 = vmatprep.subr.mxu0 %v948
    %4603 = vmatpush1.msra.mxu0 %v947
    %4604 = vmatprep.subr.mxu0 %v956
    %4605 = vmatpush1.msra.mxu0 %v955
    %4606 = vmatprep.subr.mxu0 %v964
    %4607 = vmatpush1.msra.mxu0 %v963
    %4608 = vmatprep.subr.mxu0 %v972
    %4609 = vmatpush1.msra.mxu0 %v971
    %4610 = vmatprep.subr.mxu0 %v980
    %4611 = vmatpush1.msra.mxu0 %v979
    %4612 = vmatprep.subr.mxu0 %v988
    %4613 = vmatpush1.msra.mxu0 %v987
    %4614 = vmatprep.subr.mxu0 %v996
    %4615 = vmatpush1.msra.mxu0 %v995
    %4616 = vmatprep.subr.mxu0 %v1004
    %4617 = vmatpush1.msra.mxu0 %v1003
    %4618 = vmatprep.subr.mxu0 %v1012
    %4619 = vmatpush1.msra.mxu0 %v1011
    %4620 = vmatprep.subr.mxu0 %v1020
    %4621 = vmatpush1.msra.mxu0 %v1019
    %4622 = vmatprep.subr.mxu0 %v1028
    %4623 = vmatpush1.msra.mxu0 %v1027
    %4624 = vmatprep.subr.mxu0 %v1036
    %4625 = vmatpush1.msra.mxu0 %v1035
    %4626 = vmatprep.subr.mxu0 %v1044
    %4627 = vmatpush1.msra.mxu0 %v1043
    %4628 = vmatprep.subr.mxu0 %v1052
    %4629 = vmatpush1.msra.mxu0 %v1051
    %4630 = vmatprep.subr.mxu0 %v1060
    %4631 = vmatpush1.msra.mxu0 %v1059
    %4632 = vmatprep.subr.mxu0 %v1068
    %4633 = vmatpush1.msra.mxu0 %v1067
    %4634 = vmatprep.subr.mxu0 %v1076
    %4635 = vmatpush1.msra.mxu0 %v1075
    %4636 = vmatprep.subr.mxu0 %v1084
    %4637 = vmatpush1.msra.mxu0 %v1083
    %4638 = vmatprep.subr.mxu0 %v1092
    %4639 = vmatpush1.msra.mxu0 %v1091
    %4640 = vmatprep.subr.mxu0 %v1100
    %4641 = vmatpush1.msra.mxu0 %v1099
    %4642 = vmatprep.subr.mxu0 %v1108
    %4643 = vmatpush1.msra.mxu0 %v1107
    %4644 = vmatprep.subr.mxu0 %v1116
    %4645 = vmatpush1.msra.mxu0 %v1115
    %4646 = vmatprep.subr.mxu0 %v1124
    %4647 = vmatpush1.msra.mxu0 %v1123
    %4648 = vmatprep.subr.mxu0 %v1132
    %4649 = vmatpush1.msra.mxu0 %v1131
    %4650 = vmatprep.subr.mxu0 %v1140
    %4651 = vmatpush1.msra.mxu0 %v1139
    %4652 = vmatprep.subr.mxu0 %v1148
    %4653 = vmatpush1.msra.mxu0 %v1147
    %4654 = vmatprep.mubr.f32.mxu0 %v2747
    %4655 = vmatmul.mubr.f32.gmra.mrb[0].mxu0 %v2745
    %v4656 = vpop.f32.mrb[0].mxu0
    %v4657 = vadd.f32 %v4586, %v4656
    %v4658 = vpop.f32.mrb[0].mxu0
    %v4659 = vadd.f32 %v4588, %v4658
    %4660 = vdwg.mxu0
    %4661 = vmatprep.subr.mxu0 %v1156
    %4662 = vmatpush1.msra.mxu0 %v1155
    %4663 = vmatprep.subr.mxu0 %v1164
    %4664 = vmatpush1.msra.mxu0 %v1163
    %4665 = vmatprep.subr.mxu0 %v1172
    %4666 = vmatpush1.msra.mxu0 %v1171
    %4667 = vmatprep.subr.mxu0 %v1180
    %4668 = vmatpush1.msra.mxu0 %v1179
    %4669 = vmatprep.subr.mxu0 %v1188
    %4670 = vmatpush1.msra.mxu0 %v1187
    %4671 = vmatprep.subr.mxu0 %v1196
    %4672 = vmatpush1.msra.mxu0 %v1195
    %4673 = vmatprep.subr.mxu0 %v1204
    %4674 = vmatpush1.msra.mxu0 %v1203
    %4675 = vmatprep.subr.mxu0 %v1212
    %4676 = vmatpush1.msra.mxu0 %v1211
    %4677 = vmatprep.subr.mxu0 %v1220
    %4678 = vmatpush1.msra.mxu0 %v1219
    %4679 = vmatprep.subr.mxu0 %v1228
    %4680 = vmatpush1.msra.mxu0 %v1227
    %4681 = vmatprep.subr.mxu0 %v1236
    %4682 = vmatpush1.msra.mxu0 %v1235
    %4683 = vmatprep.subr.mxu0 %v1244
    %4684 = vmatpush1.msra.mxu0 %v1243
    %4685 = vmatprep.subr.mxu0 %v1252
    %4686 = vmatpush1.msra.mxu0 %v1251
    %4687 = vmatprep.subr.mxu0 %v1260
    %4688 = vmatpush1.msra.mxu0 %v1259
    %4689 = vmatprep.subr.mxu0 %v1268
    %4690 = vmatpush1.msra.mxu0 %v1267
    %4691 = vmatprep.subr.mxu0 %v1276
    %4692 = vmatpush1.msra.mxu0 %v1275
    %4693 = vmatprep.subr.mxu0 %v1284
    %4694 = vmatpush1.msra.mxu0 %v1283
    %4695 = vmatprep.subr.mxu0 %v1292
    %4696 = vmatpush1.msra.mxu0 %v1291
    %4697 = vmatprep.subr.mxu0 %v1300
    %4698 = vmatpush1.msra.mxu0 %v1299
    %4699 = vmatprep.subr.mxu0 %v1308
    %4700 = vmatpush1.msra.mxu0 %v1307
    %4701 = vmatprep.subr.mxu0 %v1316
    %4702 = vmatpush1.msra.mxu0 %v1315
    %4703 = vmatprep.subr.mxu0 %v1324
    %4704 = vmatpush1.msra.mxu0 %v1323
    %4705 = vmatprep.subr.mxu0 %v1332
    %4706 = vmatpush1.msra.mxu0 %v1331
    %4707 = vmatprep.subr.mxu0 %v1340
    %4708 = vmatpush1.msra.mxu0 %v1339
    %4709 = vmatprep.subr.mxu0 %v1348
    %4710 = vmatpush1.msra.mxu0 %v1347
    %4711 = vmatprep.subr.mxu0 %v1356
    %4712 = vmatpush1.msra.mxu0 %v1355
    %4713 = vmatprep.subr.mxu0 %v1364
    %4714 = vmatpush1.msra.mxu0 %v1363
    %4715 = vmatprep.subr.mxu0 %v1372
    %4716 = vmatpush1.msra.mxu0 %v1371
    %4717 = vmatprep.subr.mxu0 %v1380
    %4718 = vmatpush1.msra.mxu0 %v1379
    %4719 = vmatprep.subr.mxu0 %v1388
    %4720 = vmatpush1.msra.mxu0 %v1387
    %4721 = vmatprep.subr.mxu0 %v1396
    %4722 = vmatpush1.msra.mxu0 %v1395
    %4723 = vmatprep.subr.mxu0 %v1404
    %4724 = vmatpush1.msra.mxu0 %v1403
    %4725 = vmatprep.mubr.f32.mxu0 %v2763
    %4726 = vmatmul.mubr.f32.gmra.mrb[0].mxu0 %v2755
    %v4727 = vpop.f32.mrb[0].mxu0
    %v4728 = vadd.f32 %v4657, %v4727
    %v4729 = vpop.f32.mrb[0].mxu0
    %v4730 = vadd.f32 %v4659, %v4729
    %4731 = vdwg.mxu0
    %4732 = vmatprep.subr.mxu0 %v1412
    %4733 = vmatpush1.msra.mxu0 %v1411
    %4734 = vmatprep.subr.mxu0 %v1420
    %4735 = vmatpush1.msra.mxu0 %v1419
    %4736 = vmatprep.subr.mxu0 %v1428
    %4737 = vmatpush1.msra.mxu0 %v1427
    %4738 = vmatprep.subr.mxu0 %v1436
    %4739 = vmatpush1.msra.mxu0 %v1435
    %4740 = vmatprep.subr.mxu0 %v1444
    %4741 = vmatpush1.msra.mxu0 %v1443
    %4742 = vmatprep.subr.mxu0 %v1452
    %4743 = vmatpush1.msra.mxu0 %v1451
    %4744 = vmatprep.subr.mxu0 %v1460
    %4745 = vmatpush1.msra.mxu0 %v1459
    %4746 = vmatprep.subr.mxu0 %v1468
    %4747 = vmatpush1.msra.mxu0 %v1467
    %4748 = vmatprep.subr.mxu0 %v1476
    %4749 = vmatpush1.msra.mxu0 %v1475
    %4750 = vmatprep.subr.mxu0 %v1484
    %4751 = vmatpush1.msra.mxu0 %v1483
    %4752 = vmatprep.subr.mxu0 %v1492
    %4753 = vmatpush1.msra.mxu0 %v1491
    %4754 = vmatprep.subr.mxu0 %v1500
    %4755 = vmatpush1.msra.mxu0 %v1499
    %4756 = vmatprep.subr.mxu0 %v1508
    %4757 = vmatpush1.msra.mxu0 %v1507
    %4758 = vmatprep.subr.mxu0 %v1516
    %4759 = vmatpush1.msra.mxu0 %v1515
    %4760 = vmatprep.subr.mxu0 %v1524
    %4761 = vmatpush1.msra.mxu0 %v1523
    %4762 = vmatprep.subr.mxu0 %v1532
    %4763 = vmatpush1.msra.mxu0 %v1531
    %4764 = vmatprep.subr.mxu0 %v1540
    %4765 = vmatpush1.msra.mxu0 %v1539
    %4766 = vmatprep.subr.mxu0 %v1548
    %4767 = vmatpush1.msra.mxu0 %v1547
    %4768 = vmatprep.subr.mxu0 %v1556
    %4769 = vmatpush1.msra.mxu0 %v1555
    %4770 = vmatprep.subr.mxu0 %v1564
    %4771 = vmatpush1.msra.mxu0 %v1563
    %4772 = vmatprep.subr.mxu0 %v1572
    %4773 = vmatpush1.msra.mxu0 %v1571
    %4774 = vmatprep.subr.mxu0 %v1580
    %4775 = vmatpush1.msra.mxu0 %v1579
    %4776 = vmatprep.subr.mxu0 %v1588
    %4777 = vmatpush1.msra.mxu0 %v1587
    %4778 = vmatprep.subr.mxu0 %v1596
    %4779 = vmatpush1.msra.mxu0 %v1595
    %4780 = vmatprep.subr.mxu0 %v1604
    %4781 = vmatpush1.msra.mxu0 %v1603
    %4782 = vmatprep.subr.mxu0 %v1612
    %4783 = vmatpush1.msra.mxu0 %v1611
    %4784 = vmatprep.subr.mxu0 %v1620
    %4785 = vmatpush1.msra.mxu0 %v1619
    %4786 = vmatprep.subr.mxu0 %v1628
    %4787 = vmatpush1.msra.mxu0 %v1627
    %4788 = vmatprep.subr.mxu0 %v1636
    %4789 = vmatpush1.msra.mxu0 %v1635
    %4790 = vmatprep.subr.mxu0 %v1644
    %4791 = vmatpush1.msra.mxu0 %v1643
    %4792 = vmatprep.subr.mxu0 %v1652
    %4793 = vmatpush1.msra.mxu0 %v1651
    %4794 = vmatprep.subr.mxu0 %v1660
    %4795 = vmatpush1.msra.mxu0 %v1659
    %4796 = vmatprep.mubr.f32.mxu0 %v2764
    %4797 = vmatmul.mubr.f32.gmra.mrb[0].mxu0 %v2762
    %v4798 = vpop.f32.mrb[0].mxu0
    %v4799 = vadd.f32 %v4728, %v4798
    %v4800 = vpop.f32.mrb[0].mxu0
    %v4801 = vadd.f32 %v4730, %v4800
    %4802 = vdwg.mxu0
    %4803 = vmatprep.subr.mxu0 %v1668
    %4804 = vmatpush1.msra.mxu0 %v1667
    %4805 = vmatprep.subr.mxu0 %v1676
    %4806 = vmatpush1.msra.mxu0 %v1675
    %4807 = vmatprep.subr.mxu0 %v1684
    %4808 = vmatpush1.msra.mxu0 %v1683
    %4809 = vmatprep.subr.mxu0 %v1692
    %4810 = vmatpush1.msra.mxu0 %v1691
    %4811 = vmatprep.subr.mxu0 %v1700
    %4812 = vmatpush1.msra.mxu0 %v1699
    %4813 = vmatprep.subr.mxu0 %v1708
    %4814 = vmatpush1.msra.mxu0 %v1707
    %4815 = vmatprep.subr.mxu0 %v1716
    %4816 = vmatpush1.msra.mxu0 %v1715
    %4817 = vmatprep.subr.mxu0 %v1724
    %4818 = vmatpush1.msra.mxu0 %v1723
    %4819 = vmatprep.subr.mxu0 %v1732
    %4820 = vmatpush1.msra.mxu0 %v1731
    %4821 = vmatprep.subr.mxu0 %v1740
    %4822 = vmatpush1.msra.mxu0 %v1739
    %4823 = vmatprep.subr.mxu0 %v1748
    %4824 = vmatpush1.msra.mxu0 %v1747
    %4825 = vmatprep.subr.mxu0 %v1756
    %4826 = vmatpush1.msra.mxu0 %v1755
    %4827 = vmatprep.subr.mxu0 %v1764
    %4828 = vmatpush1.msra.mxu0 %v1763
    %4829 = vmatprep.subr.mxu0 %v1772
    %4830 = vmatpush1.msra.mxu0 %v1771
    %4831 = vmatprep.subr.mxu0 %v1780
    %4832 = vmatpush1.msra.mxu0 %v1779
    %4833 = vmatprep.subr.mxu0 %v1788
    %4834 = vmatpush1.msra.mxu0 %v1787
    %4835 = vmatprep.subr.mxu0 %v1796
    %4836 = vmatpush1.msra.mxu0 %v1795
    %4837 = vmatprep.subr.mxu0 %v1804
    %4838 = vmatpush1.msra.mxu0 %v1803
    %4839 = vmatprep.subr.mxu0 %v1812
    %4840 = vmatpush1.msra.mxu0 %v1811
    %4841 = vmatprep.subr.mxu0 %v1820
    %4842 = vmatpush1.msra.mxu0 %v1819
    %4843 = vmatprep.subr.mxu0 %v1828
    %4844 = vmatpush1.msra.mxu0 %v1827
    %4845 = vmatprep.subr.mxu0 %v1836
    %4846 = vmatpush1.msra.mxu0 %v1835
    %4847 = vmatprep.subr.mxu0 %v1844
    %4848 = vmatpush1.msra.mxu0 %v1843
    %4849 = vmatprep.subr.mxu0 %v1852
    %4850 = vmatpush1.msra.mxu0 %v1851
    %4851 = vmatprep.subr.mxu0 %v1860
    %4852 = vmatpush1.msra.mxu0 %v1859
    %4853 = vmatprep.subr.mxu0 %v1868
    %4854 = vmatpush1.msra.mxu0 %v1867
    %4855 = vmatprep.subr.mxu0 %v1876
    %4856 = vmatpush1.msra.mxu0 %v1875
    %4857 = vmatprep.subr.mxu0 %v1884
    %4858 = vmatpush1.msra.mxu0 %v1883
    %4859 = vmatprep.subr.mxu0 %v1892
    %4860 = vmatpush1.msra.mxu0 %v1891
    %4861 = vmatprep.subr.mxu0 %v1900
    %4862 = vmatpush1.msra.mxu0 %v1899
    %4863 = vmatprep.subr.mxu0 %v1908
    %4864 = vmatpush1.msra.mxu0 %v1907
    %4865 = vmatprep.subr.mxu0 %v1916
    %4866 = vmatpush1.msra.mxu0 %v1915
    %4867 = vmatprep.mubr.f32.mxu0 %v2780
    %4868 = vmatmul.mubr.f32.gmra.mrb[0].mxu0 %v2772
    %v4869 = vpop.f32.mrb[0].mxu0
    %v4870 = vadd.f32 %v4799, %v4869
    %v4871 = vpop.f32.mrb[0].mxu0
    %v4872 = vadd.f32 %v4801, %v4871
    %4873 = vdwg.mxu0
    %4874 = vmatprep.subr.mxu0 %v1924
    %4875 = vmatpush1.msra.mxu0 %v1923
    %4876 = vmatprep.subr.mxu0 %v1932
    %4877 = vmatpush1.msra.mxu0 %v1931
    %4878 = vmatprep.subr.mxu0 %v1940
    %4879 = vmatpush1.msra.mxu0 %v1939
    %4880 = vmatprep.subr.mxu0 %v1948
    %4881 = vmatpush1.msra.mxu0 %v1947
    %4882 = vmatprep.subr.mxu0 %v1956
    %4883 = vmatpush1.msra.mxu0 %v1955
    %4884 = vmatprep.subr.mxu0 %v1964
    %4885 = vmatpush1.msra.mxu0 %v1963
    %4886 = vmatprep.subr.mxu0 %v1972
    %4887 = vmatpush1.msra.mxu0 %v1971
    %4888 = vmatprep.subr.mxu0 %v1980
    %4889 = vmatpush1.msra.mxu0 %v1979
    %4890 = vmatprep.subr.mxu0 %v1988
    %4891 = vmatpush1.msra.mxu0 %v1987
    %4892 = vmatprep.subr.mxu0 %v1996
    %4893 = vmatpush1.msra.mxu0 %v1995
    %4894 = vmatprep.subr.mxu0 %v2004
    %4895 = vmatpush1.msra.mxu0 %v2003
    %4896 = vmatprep.subr.mxu0 %v2012
    %4897 = vmatpush1.msra.mxu0 %v2011
    %4898 = vmatprep.subr.mxu0 %v2020
    %4899 = vmatpush1.msra.mxu0 %v2019
    %4900 = vmatprep.subr.mxu0 %v2028
    %4901 = vmatpush1.msra.mxu0 %v2027
    %4902 = vmatprep.subr.mxu0 %v2036
    %4903 = vmatpush1.msra.mxu0 %v2035
    %4904 = vmatprep.subr.mxu0 %v2044
    %4905 = vmatpush1.msra.mxu0 %v2043
    %4906 = vmatprep.subr.mxu0 %v2052
    %4907 = vmatpush1.msra.mxu0 %v2051
    %4908 = vmatprep.subr.mxu0 %v2060
    %4909 = vmatpush1.msra.mxu0 %v2059
    %4910 = vmatprep.subr.mxu0 %v2068
    %4911 = vmatpush1.msra.mxu0 %v2067
    %4912 = vmatprep.subr.mxu0 %v2076
    %4913 = vmatpush1.msra.mxu0 %v2075
    %4914 = vmatprep.subr.mxu0 %v2084
    %4915 = vmatpush1.msra.mxu0 %v2083
    %4916 = vmatprep.subr.mxu0 %v2092
    %4917 = vmatpush1.msra.mxu0 %v2091
    %4918 = vmatprep.subr.mxu0 %v2100
    %4919 = vmatpush1.msra.mxu0 %v2099
    %4920 = vmatprep.subr.mxu0 %v2108
    %4921 = vmatpush1.msra.mxu0 %v2107
    %4922 = vmatprep.subr.mxu0 %v2116
    %4923 = vmatpush1.msra.mxu0 %v2115
    %4924 = vmatprep.subr.mxu0 %v2124
    %4925 = vmatpush1.msra.mxu0 %v2123
    %4926 = vmatprep.subr.mxu0 %v2132
    %4927 = vmatpush1.msra.mxu0 %v2131
    %4928 = vmatprep.subr.mxu0 %v2140
    %4929 = vmatpush1.msra.mxu0 %v2139
    %4930 = vmatprep.subr.mxu0 %v2148
    %4931 = vmatpush1.msra.mxu0 %v2147
    %4932 = vmatprep.subr.mxu0 %v2156
    %4933 = vmatpush1.msra.mxu0 %v2155
    %4934 = vmatprep.subr.mxu0 %v2164
    %4935 = vmatpush1.msra.mxu0 %v2163
    %4936 = vmatprep.subr.mxu0 %v2172
    %4937 = vmatpush1.msra.mxu0 %v2171
    %4938 = vmatprep.mubr.f32.mxu0 %v2781
    %4939 = vmatmul.mubr.f32.gmra.mrb[0].mxu0 %v2779
    %v4940 = vpop.f32.mrb[0].mxu0
    %v4941 = vadd.f32 %v4870, %v4940
    %v4942 = vpop.f32.mrb[0].mxu0
    %v4943 = vadd.f32 %v4872, %v4942
    %4944 = vdwg.mxu0
    %4945 = vmatprep.subr.mxu0 %v2180
    %4946 = vmatpush1.msra.mxu0 %v2179
    %4947 = vmatprep.subr.mxu0 %v2188
    %4948 = vmatpush1.msra.mxu0 %v2187
    %4949 = vmatprep.subr.mxu0 %v2196
    %4950 = vmatpush1.msra.mxu0 %v2195
    %4951 = vmatprep.subr.mxu0 %v2204
    %4952 = vmatpush1.msra.mxu0 %v2203
    %4953 = vmatprep.subr.mxu0 %v2212
    %4954 = vmatpush1.msra.mxu0 %v2211
    %4955 = vmatprep.subr.mxu0 %v2220
    %4956 = vmatpush1.msra.mxu0 %v2219
    %4957 = vmatprep.subr.mxu0 %v2228
    %4958 = vmatpush1.msra.mxu0 %v2227
    %4959 = vmatprep.subr.mxu0 %v2236
    %4960 = vmatpush1.msra.mxu0 %v2235
    %4961 = vmatprep.subr.mxu0 %v2244
    %4962 = vmatpush1.msra.mxu0 %v2243
    %4963 = vmatprep.subr.mxu0 %v2252
    %4964 = vmatpush1.msra.mxu0 %v2251
    %4965 = vmatprep.subr.mxu0 %v2260
    %4966 = vmatpush1.msra.mxu0 %v2259
    %4967 = vmatprep.subr.mxu0 %v2268
    %4968 = vmatpush1.msra.mxu0 %v2267
    %4969 = vmatprep.subr.mxu0 %v2276
    %4970 = vmatpush1.msra.mxu0 %v2275
    %4971 = vmatprep.subr.mxu0 %v2284
    %4972 = vmatpush1.msra.mxu0 %v2283
    %4973 = vmatprep.subr.mxu0 %v2292
    %4974 = vmatpush1.msra.mxu0 %v2291
    %4975 = vmatprep.subr.mxu0 %v2300
    %4976 = vmatpush1.msra.mxu0 %v2299
    %4977 = vmatprep.subr.mxu0 %v2308
    %4978 = vmatpush1.msra.mxu0 %v2307
    %4979 = vmatprep.subr.mxu0 %v2316
    %4980 = vmatpush1.msra.mxu0 %v2315
    %4981 = vmatprep.subr.mxu0 %v2324
    %4982 = vmatpush1.msra.mxu0 %v2323
    %4983 = vmatprep.subr.mxu0 %v2332
    %4984 = vmatpush1.msra.mxu0 %v2331
    %4985 = vmatprep.subr.mxu0 %v2340
    %4986 = vmatpush1.msra.mxu0 %v2339
    %4987 = vmatprep.subr.mxu0 %v2348
    %4988 = vmatpush1.msra.mxu0 %v2347
    %4989 = vmatprep.subr.mxu0 %v2356
    %4990 = vmatpush1.msra.mxu0 %v2355
    %4991 = vmatprep.subr.mxu0 %v2364
    %4992 = vmatpush1.msra.mxu0 %v2363
    %4993 = vmatprep.subr.mxu0 %v2372
    %4994 = vmatpush1.msra.mxu0 %v2371
    %4995 = vmatprep.subr.mxu0 %v2380
    %4996 = vmatpush1.msra.mxu0 %v2379
    %4997 = vmatprep.subr.mxu0 %v2388
    %4998 = vmatpush1.msra.mxu0 %v2387
    %4999 = vmatprep.subr.mxu0 %v2396
    %5000 = vmatpush1.msra.mxu0 %v2395
    %5001 = vmatprep.subr.mxu0 %v2404
    %5002 = vmatpush1.msra.mxu0 %v2403
    %5003 = vmatprep.subr.mxu0 %v2412
    %5004 = vmatpush1.msra.mxu0 %v2411
    %5005 = vmatprep.subr.mxu0 %v2420
    %5006 = vmatpush1.msra.mxu0 %v2419
    %5007 = vmatprep.subr.mxu0 %v2428
    %5008 = vmatpush1.msra.mxu0 %v2427
    %5009 = vmatprep.mubr.f32.mxu0 %v2797
    %5010 = vmatmul.mubr.f32.gmra.mrb[0].mxu0 %v2789
    %v5011 = vpop.f32.mrb[0].mxu0
    %v5012 = vadd.f32 %v4941, %v5011
    %v5013 = vpop.f32.mrb[0].mxu0
    %v5014 = vadd.f32 %v4943, %v5013
    %5015 = vdwg.mxu0
    %5016 = vmatprep.subr.mxu0 %v2436
    %5017 = vmatpush1.msra.mxu0 %v2435
    %5018 = vmatprep.subr.mxu0 %v2444
    %5019 = vmatpush1.msra.mxu0 %v2443
    %5020 = vmatprep.subr.mxu0 %v2452
    %5021 = vmatpush1.msra.mxu0 %v2451
    %5022 = vmatprep.subr.mxu0 %v2460
    %5023 = vmatpush1.msra.mxu0 %v2459
    %5024 = vmatprep.subr.mxu0 %v2468
    %5025 = vmatpush1.msra.mxu0 %v2467
    %5026 = vmatprep.subr.mxu0 %v2476
    %5027 = vmatpush1.msra.mxu0 %v2475
    %5028 = vmatprep.subr.mxu0 %v2484
    %5029 = vmatpush1.msra.mxu0 %v2483
    %5030 = vmatprep.subr.mxu0 %v2492
    %5031 = vmatpush1.msra.mxu0 %v2491
    %5032 = vmatprep.subr.mxu0 %v2500
    %5033 = vmatpush1.msra.mxu0 %v2499
    %5034 = vmatprep.subr.mxu0 %v2508
    %5035 = vmatpush1.msra.mxu0 %v2507
    %5036 = vmatprep.subr.mxu0 %v2516
    %5037 = vmatpush1.msra.mxu0 %v2515
    %5038 = vmatprep.subr.mxu0 %v2524
    %5039 = vmatpush1.msra.mxu0 %v2523
    %5040 = vmatprep.subr.mxu0 %v2532
    %5041 = vmatpush1.msra.mxu0 %v2531
    %5042 = vmatprep.subr.mxu0 %v2540
    %5043 = vmatpush1.msra.mxu0 %v2539
    %5044 = vmatprep.subr.mxu0 %v2548
    %5045 = vmatpush1.msra.mxu0 %v2547
    %5046 = vmatprep.subr.mxu0 %v2556
    %5047 = vmatpush1.msra.mxu0 %v2555
    %5048 = vmatprep.subr.mxu0 %v2564
    %5049 = vmatpush1.msra.mxu0 %v2563
    %5050 = vmatprep.subr.mxu0 %v2572
    %5051 = vmatpush1.msra.mxu0 %v2571
    %5052 = vmatprep.subr.mxu0 %v2580
    %5053 = vmatpush1.msra.mxu0 %v2579
    %5054 = vmatprep.subr.mxu0 %v2588
    %5055 = vmatpush1.msra.mxu0 %v2587
    %5056 = vmatprep.subr.mxu0 %v2596
    %5057 = vmatpush1.msra.mxu0 %v2595
    %5058 = vmatprep.subr.mxu0 %v2604
    %5059 = vmatpush1.msra.mxu0 %v2603
    %5060 = vmatprep.subr.mxu0 %v2612
    %5061 = vmatpush1.msra.mxu0 %v2611
    %5062 = vmatprep.subr.mxu0 %v2620
    %5063 = vmatpush1.msra.mxu0 %v2619
    %5064 = vmatprep.subr.mxu0 %v2628
    %5065 = vmatpush1.msra.mxu0 %v2627
    %5066 = vmatprep.subr.mxu0 %v2636
    %5067 = vmatpush1.msra.mxu0 %v2635
    %5068 = vmatprep.subr.mxu0 %v2644
    %5069 = vmatpush1.msra.mxu0 %v2643
    %5070 = vmatprep.subr.mxu0 %v2652
    %5071 = vmatpush1.msra.mxu0 %v2651
    %5072 = vmatprep.subr.mxu0 %v2660
    %5073 = vmatpush1.msra.mxu0 %v2659
    %5074 = vmatprep.subr.mxu0 %v2668
    %5075 = vmatpush1.msra.mxu0 %v2667
    %5076 = vmatprep.subr.mxu0 %v2676
    %5077 = vmatpush1.msra.mxu0 %v2675
    %5078 = vmatprep.subr.mxu0 %v2684
    %5079 = vmatpush1.msra.mxu0 %v2683
    %5080 = vmatprep.mubr.f32.mxu0 %v2798
    %5081 = vmatmul.mubr.f32.gmra.mrb[0].mxu0 %v2796
    %v5082 = vpop.f32.mrb[0].mxu0
    %v5083 = vadd.f32 %v5012, %v5082
    %v5084 = vpop.f32.mrb[0].mxu0
    %v5085 = vadd.f32 %v5014, %v5084
    %5086 = vdwg.mxu0
    %v5087 = vmax.f32 %v3379, 0.0
    %v5088 = vmax.f32 %v3381, 0.0
    %v5089 = vmax.f32 %v3947, 0.0
    %v5090 = vmax.f32 %v3949, 0.0
    %v5091 = vmax.f32 %v4515, 0.0
    %v5092 = vmax.f32 %v4517, 0.0
    %v5093 = vmax.f32 %v5083, 0.0
    %v5094 = vmax.f32 %v5085, 0.0
    %v5095 = vld [vmem:[#allocation12] sm:$0xff]
    %v5096 = vld [vmem:[#allocation12 + $0x8] sm:$0xff]
    %v5097 = vld [vmem:[#allocation12 + $0x10] sm:$0xff]
    %v5098 = vld [vmem:[#allocation12 + $0x18] sm:$0xff]
    %v5099 = vld [vmem:[#allocation12 + $0x20] sm:$0xff]
    %v5100 = vld [vmem:[#allocation12 + $0x28] sm:$0xff]
    %v5101 = vld [vmem:[#allocation12 + $0x30] sm:$0xff]
    %v5102 = vld [vmem:[#allocation12 + $0x38] sm:$0xff]
    %v5103 = vld [vmem:[#allocation12 + $0x40] sm:$0xff]
    %v5104 = vld [vmem:[#allocation12 + $0x48] sm:$0xff]
    %v5105 = vld [vmem:[#allocation12 + $0x50] sm:$0xff]
    %v5106 = vld [vmem:[#allocation12 + $0x58] sm:$0xff]
    %v5107 = vld [vmem:[#allocation12 + $0x60] sm:$0xff]
    %v5108 = vld [vmem:[#allocation12 + $0x68] sm:$0xff]
    %v5109 = vld [vmem:[#allocation12 + $0x70] sm:$0xff]
    %v5110 = vld [vmem:[#allocation12 + $0x78] sm:$0xff]
    %v5111 = vld [vmem:[#allocation12 + $0x80] sm:$0xff]
    %v5112 = vld [vmem:[#allocation12 + $0x88] sm:$0xff]
    %v5113 = vld [vmem:[#allocation12 + $0x90] sm:$0xff]
    %v5114 = vld [vmem:[#allocation12 + $0x98] sm:$0xff]
    %v5115 = vld [vmem:[#allocation12 + $0xa0] sm:$0xff]
    %v5116 = vld [vmem:[#allocation12 + $0xa8] sm:$0xff]
    %v5117 = vld [vmem:[#allocation12 + $0xb0] sm:$0xff]
    %v5118 = vld [vmem:[#allocation12 + $0xb8] sm:$0xff]
    %v5119 = vld [vmem:[#allocation12 + $0xc0] sm:$0xff]
    %v5120 = vld [vmem:[#allocation12 + $0xc8] sm:$0xff]
    %v5121 = vld [vmem:[#allocation12 + $0xd0] sm:$0xff]
    %v5122 = vld [vmem:[#allocation12 + $0xd8] sm:$0xff]
    %v5123 = vld [vmem:[#allocation12 + $0xe0] sm:$0xff]
    %v5124 = vld [vmem:[#allocation12 + $0xe8] sm:$0xff]
    %v5125 = vld [vmem:[#allocation12 + $0xf0] sm:$0xff]
    %v5126 = vld [vmem:[#allocation12 + $0xf8] sm:$0xff]
    %v5127 = vld [vmem:[#allocation12 + $0x100] sm:$0xff]
    %v5128 = vld [vmem:[#allocation12 + $0x108] sm:$0xff]
    %v5129 = vld [vmem:[#allocation12 + $0x110] sm:$0xff]
    %v5130 = vld [vmem:[#allocation12 + $0x118] sm:$0xff]
    %v5131 = vld [vmem:[#allocation12 + $0x120] sm:$0xff]
    %v5132 = vld [vmem:[#allocation12 + $0x128] sm:$0xff]
    %v5133 = vld [vmem:[#allocation12 + $0x130] sm:$0xff]
    %v5134 = vld [vmem:[#allocation12 + $0x138] sm:$0xff]
    %v5135 = vld [vmem:[#allocation12 + $0x140] sm:$0xff]
    %v5136 = vld [vmem:[#allocation12 + $0x148] sm:$0xff]
    %v5137 = vld [vmem:[#allocation12 + $0x150] sm:$0xff]
    %v5138 = vld [vmem:[#allocation12 + $0x158] sm:$0xff]
    %v5139 = vld [vmem:[#allocation12 + $0x160] sm:$0xff]
    %v5140 = vld [vmem:[#allocation12 + $0x168] sm:$0xff]
    %v5141 = vld [vmem:[#allocation12 + $0x170] sm:$0xff]
    %v5142 = vld [vmem:[#allocation12 + $0x178] sm:$0xff]
    %v5143 = vld [vmem:[#allocation12 + $0x180] sm:$0xff]
    %v5144 = vld [vmem:[#allocation12 + $0x188] sm:$0xff]
    %v5145 = vld [vmem:[#allocation12 + $0x190] sm:$0xff]
    %v5146 = vld [vmem:[#allocation12 + $0x198] sm:$0xff]
    %v5147 = vld [vmem:[#allocation12 + $0x1a0] sm:$0xff]
    %v5148 = vld [vmem:[#allocation12 + $0x1a8] sm:$0xff]
    %v5149 = vld [vmem:[#allocation12 + $0x1b0] sm:$0xff]
    %v5150 = vld [vmem:[#allocation12 + $0x1b8] sm:$0xff]
    %v5151 = vld [vmem:[#allocation12 + $0x1c0] sm:$0xff]
    %v5152 = vld [vmem:[#allocation12 + $0x1c8] sm:$0xff]
    %v5153 = vld [vmem:[#allocation12 + $0x1d0] sm:$0xff]
    %v5154 = vld [vmem:[#allocation12 + $0x1d8] sm:$0xff]
    %v5155 = vld [vmem:[#allocation12 + $0x1e0] sm:$0xff]
    %v5156 = vld [vmem:[#allocation12 + $0x1e8] sm:$0xff]
    %v5157 = vld [vmem:[#allocation12 + $0x1f0] sm:$0xff]
    %v5158 = vld [vmem:[#allocation12 + $0x1f8] sm:$0xff]
    %v5159 = vld [vmem:[#allocation12 + $0x200] sm:$0xff]
    %v5160 = vld [vmem:[#allocation12 + $0x208] sm:$0xff]
    %v5161 = vld [vmem:[#allocation12 + $0x210] sm:$0xff]
    %v5162 = vld [vmem:[#allocation12 + $0x218] sm:$0xff]
    %v5163 = vld [vmem:[#allocation12 + $0x220] sm:$0xff]
    %v5164 = vld [vmem:[#allocation12 + $0x228] sm:$0xff]
    %v5165 = vld [vmem:[#allocation12 + $0x230] sm:$0xff]
    %v5166 = vld [vmem:[#allocation12 + $0x238] sm:$0xff]
    %v5167 = vld [vmem:[#allocation12 + $0x240] sm:$0xff]
    %v5168 = vld [vmem:[#allocation12 + $0x248] sm:$0xff]
    %v5169 = vld [vmem:[#allocation12 + $0x250] sm:$0xff]
    %v5170 = vld [vmem:[#allocation12 + $0x258] sm:$0xff]
    %v5171 = vld [vmem:[#allocation12 + $0x260] sm:$0xff]
    %v5172 = vld [vmem:[#allocation12 + $0x268] sm:$0xff]
    %v5173 = vld [vmem:[#allocation12 + $0x270] sm:$0xff]
    %v5174 = vld [vmem:[#allocation12 + $0x278] sm:$0xff]
    %v5175 = vld [vmem:[#allocation12 + $0x280] sm:$0xff]
    %v5176 = vld [vmem:[#allocation12 + $0x288] sm:$0xff]
    %v5177 = vld [vmem:[#allocation12 + $0x290] sm:$0xff]
    %v5178 = vld [vmem:[#allocation12 + $0x298] sm:$0xff]
    %v5179 = vld [vmem:[#allocation12 + $0x2a0] sm:$0xff]
    %v5180 = vld [vmem:[#allocation12 + $0x2a8] sm:$0xff]
    %v5181 = vld [vmem:[#allocation12 + $0x2b0] sm:$0xff]
    %v5182 = vld [vmem:[#allocation12 + $0x2b8] sm:$0xff]
    %v5183 = vld [vmem:[#allocation12 + $0x2c0] sm:$0xff]
    %v5184 = vld [vmem:[#allocation12 + $0x2c8] sm:$0xff]
    %v5185 = vld [vmem:[#allocation12 + $0x2d0] sm:$0xff]
    %v5186 = vld [vmem:[#allocation12 + $0x2d8] sm:$0xff]
    %v5187 = vld [vmem:[#allocation12 + $0x2e0] sm:$0xff]
    %v5188 = vld [vmem:[#allocation12 + $0x2e8] sm:$0xff]
    %v5189 = vld [vmem:[#allocation12 + $0x2f0] sm:$0xff]
    %v5190 = vld [vmem:[#allocation12 + $0x2f8] sm:$0xff]
    %v5191 = vld [vmem:[#allocation12 + $0x300] sm:$0xff]
    %v5192 = vld [vmem:[#allocation12 + $0x308] sm:$0xff]
    %v5193 = vld [vmem:[#allocation12 + $0x310] sm:$0xff]
    %v5194 = vld [vmem:[#allocation12 + $0x318] sm:$0xff]
    %v5195 = vld [vmem:[#allocation12 + $0x320] sm:$0xff]
    %v5196 = vld [vmem:[#allocation12 + $0x328] sm:$0xff]
    %v5197 = vld [vmem:[#allocation12 + $0x330] sm:$0xff]
    %v5198 = vld [vmem:[#allocation12 + $0x338] sm:$0xff]
    %v5199 = vld [vmem:[#allocation12 + $0x340] sm:$0xff]
    %v5200 = vld [vmem:[#allocation12 + $0x348] sm:$0xff]
    %v5201 = vld [vmem:[#allocation12 + $0x350] sm:$0xff]
    %v5202 = vld [vmem:[#allocation12 + $0x358] sm:$0xff]
    %v5203 = vld [vmem:[#allocation12 + $0x360] sm:$0xff]
    %v5204 = vld [vmem:[#allocation12 + $0x368] sm:$0xff]
    %v5205 = vld [vmem:[#allocation12 + $0x370] sm:$0xff]
    %v5206 = vld [vmem:[#allocation12 + $0x378] sm:$0xff]
    %v5207 = vld [vmem:[#allocation12 + $0x380] sm:$0xff]
    %v5208 = vld [vmem:[#allocation12 + $0x388] sm:$0xff]
    %v5209 = vld [vmem:[#allocation12 + $0x390] sm:$0xff]
    %v5210 = vld [vmem:[#allocation12 + $0x398] sm:$0xff]
    %v5211 = vld [vmem:[#allocation12 + $0x3a0] sm:$0xff]
    %v5212 = vld [vmem:[#allocation12 + $0x3a8] sm:$0xff]
    %v5213 = vld [vmem:[#allocation12 + $0x3b0] sm:$0xff]
    %v5214 = vld [vmem:[#allocation12 + $0x3b8] sm:$0xff]
    %v5215 = vld [vmem:[#allocation12 + $0x3c0] sm:$0xff]
    %v5216 = vld [vmem:[#allocation12 + $0x3c8] sm:$0xff]
    %v5217 = vld [vmem:[#allocation12 + $0x3d0] sm:$0xff]
    %v5218 = vld [vmem:[#allocation12 + $0x3d8] sm:$0xff]
    %v5219 = vld [vmem:[#allocation12 + $0x3e0] sm:$0xff]
    %v5220 = vld [vmem:[#allocation12 + $0x3e8] sm:$0xff]
    %v5221 = vld [vmem:[#allocation12 + $0x3f0] sm:$0xff]
    %v5222 = vld [vmem:[#allocation12 + $0x3f8] sm:$0xff]
    %v5223 = vld [vmem:[#allocation14] sm:$0x1]
    %v5225 = vlaneseq
    %v5226 = vshrl.u32 %v5225, 7
    %v5227 = vsub.s32 0, %v5226
    %v5228 = vrot.slane %v5223, %v5227
    %5230 = vmatprep.subr.mxu0 0.0
    %5231 = vmatpush1.msra.mxu0 %v5095
    %5232 = vmatprep.subr.mxu0 0.0
    %5233 = vmatpush1.msra.mxu0 %v5096
    %5234 = vmatprep.subr.mxu0 0.0
    %5235 = vmatpush1.msra.mxu0 %v5097
    %5236 = vmatprep.subr.mxu0 0.0
    %5237 = vmatpush1.msra.mxu0 %v5098
    %5238 = vmatprep.subr.mxu0 0.0
    %5239 = vmatpush1.msra.mxu0 %v5099
    %5240 = vmatprep.subr.mxu0 0.0
    %5241 = vmatpush1.msra.mxu0 %v5100
    %5242 = vmatprep.subr.mxu0 0.0
    %5243 = vmatpush1.msra.mxu0 %v5101
    %5244 = vmatprep.subr.mxu0 0.0
    %5245 = vmatpush1.msra.mxu0 %v5102
    %5246 = vmatprep.subr.mxu0 0.0
    %5247 = vmatpush1.msra.mxu0 %v5103
    %5248 = vmatprep.subr.mxu0 0.0
    %5249 = vmatpush1.msra.mxu0 %v5104
    %5250 = vmatprep.subr.mxu0 0.0
    %5251 = vmatpush1.msra.mxu0 %v5105
    %5252 = vmatprep.subr.mxu0 0.0
    %5253 = vmatpush1.msra.mxu0 %v5106
    %5254 = vmatprep.subr.mxu0 0.0
    %5255 = vmatpush1.msra.mxu0 %v5107
    %5256 = vmatprep.subr.mxu0 0.0
    %5257 = vmatpush1.msra.mxu0 %v5108
    %5258 = vmatprep.subr.mxu0 0.0
    %5259 = vmatpush1.msra.mxu0 %v5109
    %5260 = vmatprep.subr.mxu0 0.0
    %5261 = vmatpush1.msra.mxu0 %v5110
    %5262 = vmatprep.subr.mxu0 0.0
    %5263 = vmatpush1.msra.mxu0 %v5111
    %5264 = vmatprep.subr.mxu0 0.0
    %5265 = vmatpush1.msra.mxu0 %v5112
    %5266 = vmatprep.subr.mxu0 0.0
    %5267 = vmatpush1.msra.mxu0 %v5113
    %5268 = vmatprep.subr.mxu0 0.0
    %5269 = vmatpush1.msra.mxu0 %v5114
    %5270 = vmatprep.subr.mxu0 0.0
    %5271 = vmatpush1.msra.mxu0 %v5115
    %5272 = vmatprep.subr.mxu0 0.0
    %5273 = vmatpush1.msra.mxu0 %v5116
    %5274 = vmatprep.subr.mxu0 0.0
    %5275 = vmatpush1.msra.mxu0 %v5117
    %5276 = vmatprep.subr.mxu0 0.0
    %5277 = vmatpush1.msra.mxu0 %v5118
    %5278 = vmatprep.subr.mxu0 0.0
    %5279 = vmatpush1.msra.mxu0 %v5119
    %5280 = vmatprep.subr.mxu0 0.0
    %5281 = vmatpush1.msra.mxu0 %v5120
    %5282 = vmatprep.subr.mxu0 0.0
    %5283 = vmatpush1.msra.mxu0 %v5121
    %5284 = vmatprep.subr.mxu0 0.0
    %5285 = vmatpush1.msra.mxu0 %v5122
    %5286 = vmatprep.subr.mxu0 0.0
    %5287 = vmatpush1.msra.mxu0 %v5123
    %5288 = vmatprep.subr.mxu0 0.0
    %5289 = vmatpush1.msra.mxu0 %v5124
    %5290 = vmatprep.subr.mxu0 0.0
    %5291 = vmatpush1.msra.mxu0 %v5125
    %5292 = vmatprep.subr.mxu0 0.0
    %5293 = vmatpush1.msra.mxu0 %v5126
    %5294 = vmatprep.mubr.f32.mxu0 %v5088
    %5295 = vmatmul.mubr.f32.gmra.mrb[0].mxu0 %v5087
    %v5296 = vpop.f32.mrb[0].mxu0
    %v5297 = vadd.f32 %v5228, %v5296
    %v5298 = vpop.f32.mrb[0].mxu0
    %5299 = vdwg.mxu0
    %5300 = vmatprep.subr.mxu0 0.0
    %5301 = vmatpush1.msra.mxu0 %v5127
    %5302 = vmatprep.subr.mxu0 0.0
    %5303 = vmatpush1.msra.mxu0 %v5128
    %5304 = vmatprep.subr.mxu0 0.0
    %5305 = vmatpush1.msra.mxu0 %v5129
    %5306 = vmatprep.subr.mxu0 0.0
    %5307 = vmatpush1.msra.mxu0 %v5130
    %5308 = vmatprep.subr.mxu0 0.0
    %5309 = vmatpush1.msra.mxu0 %v5131
    %5310 = vmatprep.subr.mxu0 0.0
    %5311 = vmatpush1.msra.mxu0 %v5132
    %5312 = vmatprep.subr.mxu0 0.0
    %5313 = vmatpush1.msra.mxu0 %v5133
    %5314 = vmatprep.subr.mxu0 0.0
    %5315 = vmatpush1.msra.mxu0 %v5134
    %5316 = vmatprep.subr.mxu0 0.0
    %5317 = vmatpush1.msra.mxu0 %v5135
    %5318 = vmatprep.subr.mxu0 0.0
    %5319 = vmatpush1.msra.mxu0 %v5136
    %5320 = vmatprep.subr.mxu0 0.0
    %5321 = vmatpush1.msra.mxu0 %v5137
    %5322 = vmatprep.subr.mxu0 0.0
    %5323 = vmatpush1.msra.mxu0 %v5138
    %5324 = vmatprep.subr.mxu0 0.0
    %5325 = vmatpush1.msra.mxu0 %v5139
    %5326 = vmatprep.subr.mxu0 0.0
    %5327 = vmatpush1.msra.mxu0 %v5140
    %5328 = vmatprep.subr.mxu0 0.0
    %5329 = vmatpush1.msra.mxu0 %v5141
    %5330 = vmatprep.subr.mxu0 0.0
    %5331 = vmatpush1.msra.mxu0 %v5142
    %5332 = vmatprep.subr.mxu0 0.0
    %5333 = vmatpush1.msra.mxu0 %v5143
    %5334 = vmatprep.subr.mxu0 0.0
    %5335 = vmatpush1.msra.mxu0 %v5144
    %5336 = vmatprep.subr.mxu0 0.0
    %5337 = vmatpush1.msra.mxu0 %v5145
    %5338 = vmatprep.subr.mxu0 0.0
    %5339 = vmatpush1.msra.mxu0 %v5146
    %5340 = vmatprep.subr.mxu0 0.0
    %5341 = vmatpush1.msra.mxu0 %v5147
    %5342 = vmatprep.subr.mxu0 0.0
    %5343 = vmatpush1.msra.mxu0 %v5148
    %5344 = vmatprep.subr.mxu0 0.0
    %5345 = vmatpush1.msra.mxu0 %v5149
    %5346 = vmatprep.subr.mxu0 0.0
    %5347 = vmatpush1.msra.mxu0 %v5150
    %5348 = vmatprep.subr.mxu0 0.0
    %5349 = vmatpush1.msra.mxu0 %v5151
    %5350 = vmatprep.subr.mxu0 0.0
    %5351 = vmatpush1.msra.mxu0 %v5152
    %5352 = vmatprep.subr.mxu0 0.0
    %5353 = vmatpush1.msra.mxu0 %v5153
    %5354 = vmatprep.subr.mxu0 0.0
    %5355 = vmatpush1.msra.mxu0 %v5154
    %5356 = vmatprep.subr.mxu0 0.0
    %5357 = vmatpush1.msra.mxu0 %v5155
    %5358 = vmatprep.subr.mxu0 0.0
    %5359 = vmatpush1.msra.mxu0 %v5156
    %5360 = vmatprep.subr.mxu0 0.0
    %5361 = vmatpush1.msra.mxu0 %v5157
    %5362 = vmatprep.subr.mxu0 0.0
    %5363 = vmatpush1.msra.mxu0 %v5158
    %5364 = vmatprep.mubr.f32.mxu0 %v5090
    %5365 = vmatmul.mubr.f32.gmra.mrb[0].mxu0 %v5089
    %v5366 = vpop.f32.mrb[0].mxu0
    %v5367 = vadd.f32 %v5297, %v5366
    %v5368 = vpop.f32.mrb[0].mxu0
    %5369 = vdwg.mxu0
    %5370 = vmatprep.subr.mxu0 0.0
    %5371 = vmatpush1.msra.mxu0 %v5159
    %5372 = vmatprep.subr.mxu0 0.0
    %5373 = vmatpush1.msra.mxu0 %v5160
    %5374 = vmatprep.subr.mxu0 0.0
    %5375 = vmatpush1.msra.mxu0 %v5161
    %5376 = vmatprep.subr.mxu0 0.0
    %5377 = vmatpush1.msra.mxu0 %v5162
    %5378 = vmatprep.subr.mxu0 0.0
    %5379 = vmatpush1.msra.mxu0 %v5163
    %5380 = vmatprep.subr.mxu0 0.0
    %5381 = vmatpush1.msra.mxu0 %v5164
    %5382 = vmatprep.subr.mxu0 0.0
    %5383 = vmatpush1.msra.mxu0 %v5165
    %5384 = vmatprep.subr.mxu0 0.0
    %5385 = vmatpush1.msra.mxu0 %v5166
    %5386 = vmatprep.subr.mxu0 0.0
    %5387 = vmatpush1.msra.mxu0 %v5167
    %5388 = vmatprep.subr.mxu0 0.0
    %5389 = vmatpush1.msra.mxu0 %v5168
    %5390 = vmatprep.subr.mxu0 0.0
    %5391 = vmatpush1.msra.mxu0 %v5169
    %5392 = vmatprep.subr.mxu0 0.0
    %5393 = vmatpush1.msra.mxu0 %v5170
    %5394 = vmatprep.subr.mxu0 0.0
    %5395 = vmatpush1.msra.mxu0 %v5171
    %5396 = vmatprep.subr.mxu0 0.0
    %5397 = vmatpush1.msra.mxu0 %v5172
    %5398 = vmatprep.subr.mxu0 0.0
    %5399 = vmatpush1.msra.mxu0 %v5173
    %5400 = vmatprep.subr.mxu0 0.0
    %5401 = vmatpush1.msra.mxu0 %v5174
    %5402 = vmatprep.subr.mxu0 0.0
    %5403 = vmatpush1.msra.mxu0 %v5175
    %5404 = vmatprep.subr.mxu0 0.0
    %5405 = vmatpush1.msra.mxu0 %v5176
    %5406 = vmatprep.subr.mxu0 0.0
    %5407 = vmatpush1.msra.mxu0 %v5177
    %5408 = vmatprep.subr.mxu0 0.0
    %5409 = vmatpush1.msra.mxu0 %v5178
    %5410 = vmatprep.subr.mxu0 0.0
    %5411 = vmatpush1.msra.mxu0 %v5179
    %5412 = vmatprep.subr.mxu0 0.0
    %5413 = vmatpush1.msra.mxu0 %v5180
    %5414 = vmatprep.subr.mxu0 0.0
    %5415 = vmatpush1.msra.mxu0 %v5181
    %5416 = vmatprep.subr.mxu0 0.0
    %5417 = vmatpush1.msra.mxu0 %v5182
    %5418 = vmatprep.subr.mxu0 0.0
    %5419 = vmatpush1.msra.mxu0 %v5183
    %5420 = vmatprep.subr.mxu0 0.0
    %5421 = vmatpush1.msra.mxu0 %v5184
    %5422 = vmatprep.subr.mxu0 0.0
    %5423 = vmatpush1.msra.mxu0 %v5185
    %5424 = vmatprep.subr.mxu0 0.0
    %5425 = vmatpush1.msra.mxu0 %v5186
    %5426 = vmatprep.subr.mxu0 0.0
    %5427 = vmatpush1.msra.mxu0 %v5187
    %5428 = vmatprep.subr.mxu0 0.0
    %5429 = vmatpush1.msra.mxu0 %v5188
    %5430 = vmatprep.subr.mxu0 0.0
    %5431 = vmatpush1.msra.mxu0 %v5189
    %5432 = vmatprep.subr.mxu0 0.0
    %5433 = vmatpush1.msra.mxu0 %v5190
    %5434 = vmatprep.mubr.f32.mxu0 %v5092
    %5435 = vmatmul.mubr.f32.gmra.mrb[0].mxu0 %v5091
    %v5436 = vpop.f32.mrb[0].mxu0
    %v5437 = vadd.f32 %v5367, %v5436
    %v5438 = vpop.f32.mrb[0].mxu0
    %5439 = vdwg.mxu0
    %5440 = vmatprep.subr.mxu0 0.0
    %5441 = vmatpush1.msra.mxu0 %v5191
    %5442 = vmatprep.subr.mxu0 0.0
    %5443 = vmatpush1.msra.mxu0 %v5192
    %5444 = vmatprep.subr.mxu0 0.0
    %5445 = vmatpush1.msra.mxu0 %v5193
    %5446 = vmatprep.subr.mxu0 0.0
    %5447 = vmatpush1.msra.mxu0 %v5194
    %5448 = vmatprep.subr.mxu0 0.0
    %5449 = vmatpush1.msra.mxu0 %v5195
    %5450 = vmatprep.subr.mxu0 0.0
    %5451 = vmatpush1.msra.mxu0 %v5196
    %5452 = vmatprep.subr.mxu0 0.0
    %5453 = vmatpush1.msra.mxu0 %v5197
    %5454 = vmatprep.subr.mxu0 0.0
    %5455 = vmatpush1.msra.mxu0 %v5198
    %5456 = vmatprep.subr.mxu0 0.0
    %5457 = vmatpush1.msra.mxu0 %v5199
    %5458 = vmatprep.subr.mxu0 0.0
    %5459 = vmatpush1.msra.mxu0 %v5200
    %5460 = vmatprep.subr.mxu0 0.0
    %5461 = vmatpush1.msra.mxu0 %v5201
    %5462 = vmatprep.subr.mxu0 0.0
    %5463 = vmatpush1.msra.mxu0 %v5202
    %5464 = vmatprep.subr.mxu0 0.0
    %5465 = vmatpush1.msra.mxu0 %v5203
    %5466 = vmatprep.subr.mxu0 0.0
    %5467 = vmatpush1.msra.mxu0 %v5204
    %5468 = vmatprep.subr.mxu0 0.0
    %5469 = vmatpush1.msra.mxu0 %v5205
    %5470 = vmatprep.subr.mxu0 0.0
    %5471 = vmatpush1.msra.mxu0 %v5206
    %5472 = vmatprep.subr.mxu0 0.0
    %5473 = vmatpush1.msra.mxu0 %v5207
    %5474 = vmatprep.subr.mxu0 0.0
    %5475 = vmatpush1.msra.mxu0 %v5208
    %5476 = vmatprep.subr.mxu0 0.0
    %5477 = vmatpush1.msra.mxu0 %v5209
    %5478 = vmatprep.subr.mxu0 0.0
    %5479 = vmatpush1.msra.mxu0 %v5210
    %5480 = vmatprep.subr.mxu0 0.0
    %5481 = vmatpush1.msra.mxu0 %v5211
    %5482 = vmatprep.subr.mxu0 0.0
    %5483 = vmatpush1.msra.mxu0 %v5212
    %5484 = vmatprep.subr.mxu0 0.0
    %5485 = vmatpush1.msra.mxu0 %v5213
    %5486 = vmatprep.subr.mxu0 0.0
    %5487 = vmatpush1.msra.mxu0 %v5214
    %5488 = vmatprep.subr.mxu0 0.0
    %5489 = vmatpush1.msra.mxu0 %v5215
    %5490 = vmatprep.subr.mxu0 0.0
    %5491 = vmatpush1.msra.mxu0 %v5216
    %5492 = vmatprep.subr.mxu0 0.0
    %5493 = vmatpush1.msra.mxu0 %v5217
    %5494 = vmatprep.subr.mxu0 0.0
    %5495 = vmatpush1.msra.mxu0 %v5218
    %5496 = vmatprep.subr.mxu0 0.0
    %5497 = vmatpush1.msra.mxu0 %v5219
    %5498 = vmatprep.subr.mxu0 0.0
    %5499 = vmatpush1.msra.mxu0 %v5220
    %5500 = vmatprep.subr.mxu0 0.0
    %5501 = vmatpush1.msra.mxu0 %v5221
    %5502 = vmatprep.subr.mxu0 0.0
    %5503 = vmatpush1.msra.mxu0 %v5222
    %5504 = vmatprep.mubr.f32.mxu0 %v5094
    %5505 = vmatmul.mubr.f32.gmra.mrb[0].mxu0 %v5093
    %v5506 = vpop.f32.mrb[0].mxu0
    %v5507 = vadd.f32 %v5437, %v5506
    %v5508 = vpop.f32.mrb[0].mxu0
    %5509 = vdwg.mxu0
    %vm5510 = vcmask 1041408
    %v5511 = vsel %vm5510, %v5507, -inf
    %5512 = vmax.xlane.f32.xlu0 %v5511
    %v5513 = vpop.xlane.xlu0 %5512
    %v5514 = vsub.f32 %v5507, %v5513
    %v5515 = vmul.f32 %v5514, 1.442695
    %v5516 = vpow.pop %v5515
    %v5517 = vsel %vm5510, %v5516, 0.0
    %5518 = vadd.xlane.f32.xlu0 %v5517
    %v5519 = vpop.xlane.xlu0 %5518
    %v5520 = vrcp.pop %v5519
    %v5521 = vmul.f32 %v5516, %v5520
    %5522 = vst [vmem:[#allocation15] sm:$0x3] %v5521
    // Predicated region
    $region62: #{_forward_jit.1} parent=1 // pred_check
      _
    $region63: #{_forward_jit.1} parent=1 // pred_check_branch
      %5524 = sbr.rel (0) target = $region65
    $region64: #{_forward_jit.1} parent=1 // pred_region
      %s5526 = ssub.s32 32, 32
      %5527 = vsyncadd [#allocation5], %s5526
      %s5529 = sshll.u32 [#allocation15], 4
      %s5530 = int_to_ptr.vmem [resolvable:$true] %s5529
      %5532 = dma.vmem_to_hbm [thread:$0]  %s5530, 32, %s8, [#allocation5]
    $region65: #{_forward_jit.1} parent=1 // pred_fallthru
      _
    // Predicated region
    $region66: #{_forward_jit.1} parent=1 // pred_check
      _
    $region67: #{_forward_jit.1} parent=1 // pred_check_branch
      %5534 = sbr.rel (0) target = $region69
    $region68: #{_forward_jit.1} parent=1 // pred_region
      %5535 = dma.done [#allocation5], 32
    $region69: #{_forward_jit.1} parent=1 // pred_fallthru
      _
    %5536 = vsyncpa [#allocation4], 1
    %5537 = vsyncpa [#allocation7], 1
    %5538 = vsyncpa [#allocation10], 1
    %5539 = vsyncpa [#allocation13], 1
    %5540 = vsyncpa [#allocation5], 1

</llo_original>
